<compile_context>
chip_gen: v6e
topology: v6e:2x2x1
jax: 0.10.0
libtpu: 0.0.40
codegen_flags: <defaults>
</compile_context>

<pallas_src>
import functools

import jax
import jax.numpy as jnp
from jax import lax
from jax.experimental import pallas as pl
from jax.experimental.pallas import tpu as pltpu


def _fused_ecbsrt_kernel(num_hidden, tile_h, H, W, num_in_ch, c_final, rr,
                         compute_dtype, x_ref, *refs):
    """One grid step = one (batch element, H-tile).

    x_ref : (H + 2L, W, Cin) f32 input, pre-padded with L zero rows per side
            of H (L = num_hidden + 1 = total number of conv layers).
    refs  : per hidden layer (w (9*Cin, F), b (1, F), prelu slope (1, F)),
            then final conv (wf (9*F, c_final), bf (1, c_final)), then o_ref.
    o_ref : (tile_h, W * c_final) f32 lane-dense output tile
            (pre-pixel-shuffle backbone output + shortcut).
    """
    L = num_hidden + 1
    hidden = [(refs[3 * i], refs[3 * i + 1], refs[3 * i + 2])
              for i in range(num_hidden)]
    wf_ref, bf_ref = refs[3 * num_hidden], refs[3 * num_hidden + 1]
    o_ref = refs[3 * num_hidden + 2]

    t = pl.program_id(1)
    row0 = t * tile_h                       # tile start row in the padded input

    def conv3x3(a, w_ref, b_ref, slope_ref):
        # a: (R_in, W, Cin) f32.  3x3 conv, stride 1, zero pad 1.
        # H-padding is supplied by the halo rows already present in `a`;
        # W-padding is materialised here.  Single im2col matmul, K = 9*Cin.
        r_in, wd, cin = a.shape
        r_out = r_in - 2
        ac = a.astype(compute_dtype)
        zcol = jnp.zeros((r_in, 1, cin), compute_dtype)
        ap = jnp.concatenate([zcol, ac, zcol], axis=1)        # (R_in, W+2, Cin)
        patches = [ap[ky:ky + r_out, kx:kx + wd, :]
                   for ky in range(3) for kx in range(3)]
        p = jnp.concatenate(patches, axis=-1).reshape(r_out * wd, 9 * cin)
        cout = w_ref.shape[-1]
        acc = jnp.dot(p, w_ref[...], preferred_element_type=jnp.float32)
        acc = acc + b_ref[...]                                # (R_out*W, Cout)
        if slope_ref is not None:                             # per-channel PReLU
            acc = jnp.where(acc >= 0.0, acc, acc * slope_ref[...])
        return acc.reshape(r_out, wd, cout)

    # Layer-0 input window: padded rows [t*TH, t*TH + TH + 2L), i.e. global
    # rows [t*TH - L, t*TH + TH + L); out-of-image rows are exact zeros.
    act = x_ref[pl.ds(row0, tile_h + 2 * L)]                  # (TH+2L, W, Cin)

    for k, (w_r, b_r, s_r) in enumerate(hidden):
        act = conv3x3(act, w_r, b_r, s_r)
        # Rows outside the real image must be exactly zero: they serve as the
        # NEXT layer's zero padding (per-layer F.pad semantics).
        g0 = row0 - (L - k - 1)              # global row index of act[0]
        ridx = g0 + lax.broadcasted_iota(jnp.int32, (act.shape[0], 1, 1), 0)
        act = jnp.where(jnp.logical_and(ridx >= 0, ridx < H), act, 0.0)

    y = conv3x3(act, wf_ref, bf_ref, None)                    # (TH, W, c_final)

    # Residual: torch.repeat_interleave(x, r*r, dim=channel), or broadcast
    # over channels when num_in_ch == 1 (matches torch broadcasting).
    sc = x_ref[pl.ds(row0 + L, tile_h)]                       # (TH, W, Cin) f32
    if num_in_ch > 1:
        sc = jnp.broadcast_to(
            sc[:, :, :, None],
            (tile_h, W, num_in_ch, rr)).reshape(tile_h, W, num_in_ch * rr)
    y = y + sc

    o_ref[...] = y.reshape(tile_h, W * c_final)               # lane-dense store


def _pick_tile_h(H, tile_h=None, target=64):
    if tile_h is not None:
        if H % tile_h != 0:
            raise ValueError(f"tile_h={tile_h} must divide H={H}")
        return tile_h
    best = H
    for d in range(1, H + 1):
        if H % d == 0 and d <= target:
            best = d
    return best


def ecbsrt_forward(x_nchw, params, num_in_ch, upscale, *,
                   compute_dtype=jnp.float32, tile_h=None):
    """ECBSRT forward. x_nchw: (N, num_in_ch, H, W) -> (N, num_out_ch, H*r, W*r)."""
    N, cin, H, W = x_nchw.shape
    assert cin == num_in_ch
    hidden = params["hidden"]
    wf, bf = params["final"]
    num_hidden = len(hidden)
    L = num_hidden + 1
    c_final = wf.shape[-1]
    rr = upscale * upscale
    if num_in_ch > 1 and num_in_ch * rr != c_final:
        raise ValueError("shortcut channels must match backbone output channels")

    th = _pick_tile_h(H, tile_h)
    n_ht = H // th

    x = jnp.transpose(x_nchw, (0, 2, 3, 1)).astype(jnp.float32)   # NCHW -> NHWC
    # Pad H ONCE by L zero rows per side.  All per-layer padding is in-kernel.
    xp = jnp.pad(x, ((0, 0), (L, L), (0, 0), (0, 0)))

    def const_spec(shape):
        nd = len(shape)
        return pl.BlockSpec(shape, lambda n, t: (0,) * nd)

    inputs = [xp]
    in_specs = [pl.BlockSpec((None, H + 2 * L, W, num_in_ch),
                             lambda n, t: (n, 0, 0, 0))]
    for (w, b, a) in hidden:
        k9, cout = 9 * w.shape[2], w.shape[3]
        inputs += [w.reshape(k9, cout).astype(compute_dtype),      # im2col weight
                   b.reshape(1, cout).astype(jnp.float32),
                   a.reshape(1, cout).astype(jnp.float32)]
        in_specs += [const_spec((k9, cout)),
                     const_spec((1, cout)),
                     const_spec((1, cout))]
    inputs += [wf.reshape(9 * wf.shape[2], c_final).astype(compute_dtype),
               bf.reshape(1, c_final).astype(jnp.float32)]
    in_specs += [const_spec((9 * wf.shape[2], c_final)),
                 const_spec((1, c_final))]

    kern = functools.partial(_fused_ecbsrt_kernel, num_hidden, th, H, W,
                             num_in_ch, c_final, rr, compute_dtype)

    y = pl.pallas_call(
        kern,
        out_shape=jax.ShapeDtypeStruct((N, H, W * c_final), jnp.float32),
        grid=(N, n_ht),
        in_specs=in_specs,
        out_specs=pl.BlockSpec((None, th, W * c_final), lambda n, t: (n, t, 0)),
        compiler_params=pltpu.CompilerParams(
            dimension_semantics=("parallel", "parallel")),
    )(*inputs)

    # PixelShuffle(upscale) in NHWC (equivalent to torch.nn.PixelShuffle on NCHW),
    # then back to NCHW.  Pure layout glue, left to XLA.
    y = y.reshape(N, H, W, c_final)
    r = upscale
    cout = c_final // (r * r)
    y = y.reshape(N, H, W, cout, r, r)
    y = jnp.transpose(y, (0, 1, 4, 2, 5, 3))      # N, H, r, W, r, Cout
    y = y.reshape(N, H * r, W * r, cout)
    return jnp.transpose(y, (0, 3, 1, 2))         # NHWC -> NCHW


def init_params(key, num_in_ch, num_out_ch, upscale, num_block, num_feat):
    """Deterministic synthetic parameters (same shapes as ECBSRT.__init__)."""
    params = {"hidden": [], "final": None}
    k = key

    def nxt():
        nonlocal k
        k, sub = jax.random.split(k)
        return sub

    cin = num_in_ch
    for _ in range(num_block + 1):              # first conv + num_block convs
        w = jax.random.normal(nxt(), (3, 3, cin, num_feat), jnp.float32) * 0.1
        b = jax.random.normal(nxt(), (num_feat,), jnp.float32) * 0.1
        a = jax.random.uniform(nxt(), (num_feat,), jnp.float32, 0.1, 0.3)
        params["hidden"].append((w, b, a))
        cin = num_feat
    cf = num_out_ch * upscale * upscale
    wf = jax.random.normal(nxt(), (3, 3, num_feat, cf), jnp.float32) * 0.1
    bf = jax.random.normal(nxt(), (cf,), jnp.float32) * 0.1
    params["final"] = (wf, bf)
    return params


def ref_forward(x, params, num_in_ch, upscale):
    """Pure-JAX NCHW reference (mirrors the PyTorch module)."""
    def conv(x, w_hwio, b):
        w = jnp.transpose(w_hwio, (3, 2, 0, 1))  # HWIO -> OIHW
        y = jax.lax.conv_general_dilated(
            x, w, (1, 1), ((1, 1), (1, 1)),
            dimension_numbers=("NCHW", "OIHW", "NCHW"))
        return y + b[None, :, None, None]

    y = x
    for (w, b, a) in params["hidden"]:
        y = conv(y, w, b)
        y = jnp.where(y >= 0, y, y * a[None, :, None, None])   # PReLU
    wf, bf = params["final"]
    y = conv(y, wf, bf)
    shortcut = jnp.repeat(x, upscale * upscale, axis=1) if num_in_ch > 1 else x
    y = y + shortcut
    N, C, H, W = y.shape
    r = upscale
    y = y.reshape(N, C // (r * r), r, r, H, W)
    y = jnp.transpose(y, (0, 1, 4, 2, 5, 3))
    return y.reshape(N, C // (r * r), H * r, W * r)


if __name__ == "__main__":
    # Small, forward-consistent config:
    #   num_in_ch=3, num_out_ch=3, upscale=2, num_block=2, num_feat=16, prelu
    num_in_ch, num_out_ch, upscale, num_block, num_feat = 3, 3, 2, 2, 16
    N, H, W = 2, 16, 16

    key = jax.random.PRNGKey(0)
    kx, kp = jax.random.split(key)
    x = jax.random.normal(kx, (N, num_in_ch, H, W), jnp.float32)
    params = init_params(kp, num_in_ch, num_out_ch, upscale, num_block, num_feat)

    ref = jax.block_until_ready(ref_forward(x, params, num_in_ch, upscale))

    # 1) f32 path, multi-H-tile grid (exercises halo + boundary masking).
    out = jax.block_until_ready(
        ecbsrt_forward(x, params, num_in_ch, upscale, tile_h=8))
    assert out.shape == (N, num_out_ch, H * upscale, W * upscale), out.shape
    assert jnp.allclose(out, ref, atol=1e-4, rtol=1e-4), (
        float(jnp.max(jnp.abs(out - ref))))

    # 2) f32 path, one H-tile per image (default tiling).
    out1 = jax.block_until_ready(ecbsrt_forward(x, params, num_in_ch, upscale))
    assert jnp.allclose(out1, ref, atol=1e-4, rtol=1e-4), (
        float(jnp.max(jnp.abs(out1 - ref))))

    # 3) bf16 MXU inputs, f32 accumulation (tolerance loosened for bf16 rounding).
    out_bf = jax.block_until_ready(
        ecbsrt_forward(x, params, num_in_ch, upscale,
                       compute_dtype=jnp.bfloat16, tile_h=8))
    assert jnp.allclose(out_bf, ref, atol=2e-1, rtol=5e-2), (
        float(jnp.max(jnp.abs(out_bf - ref))))

    print("KERNEL_OK")
</pallas_src>

<mosaic_0001>
module attributes {stable_mosaic.version = 11 : i64} {
  func.func @_fused_ecbsrt_kernel(%arg0: i32, %arg1: i32, %arg2: memref<1x24x16x3xf32, #tpu.memory_space<vmem>>, %arg3: memref<27x16xf32, #tpu.memory_space<vmem>>, %arg4: memref<1x16xf32, #tpu.memory_space<vmem>>, %arg5: memref<1x16xf32, #tpu.memory_space<vmem>>, %arg6: memref<144x16xf32, #tpu.memory_space<vmem>>, %arg7: memref<1x16xf32, #tpu.memory_space<vmem>>, %arg8: memref<1x16xf32, #tpu.memory_space<vmem>>, %arg9: memref<144x16xf32, #tpu.memory_space<vmem>>, %arg10: memref<1x16xf32, #tpu.memory_space<vmem>>, %arg11: memref<1x16xf32, #tpu.memory_space<vmem>>, %arg12: memref<144x12xf32, #tpu.memory_space<vmem>>, %arg13: memref<1x12xf32, #tpu.memory_space<vmem>>, %arg14: memref<1x8x192xf32, #tpu.memory_space<vmem>>) attributes {dimension_semantics = [#tpu.dimension_semantics<parallel>, #tpu.dimension_semantics<parallel>], iteration_bounds = array<i64: 2, 2>, scalar_prefetch = 0 : i64, scratch_operands = 0 : i64, tpu.core_type = #tpu.core_type<tc>, window_params = [{transform_indices = @transform_0, window_bounds = array<i64: 1, 24, 16, 3>}, {pipeline_mode = #tpu.pipeline_mode<synchronous>, transform_indices = @transform_1, window_bounds = array<i64: 27, 16>}, {pipeline_mode = #tpu.pipeline_mode<synchronous>, transform_indices = @transform_2, window_bounds = array<i64: 1, 16>}, {pipeline_mode = #tpu.pipeline_mode<synchronous>, transform_indices = @transform_3, window_bounds = array<i64: 1, 16>}, {pipeline_mode = #tpu.pipeline_mode<synchronous>, transform_indices = @transform_4, window_bounds = array<i64: 144, 16>}, {pipeline_mode = #tpu.pipeline_mode<synchronous>, transform_indices = @transform_5, window_bounds = array<i64: 1, 16>}, {pipeline_mode = #tpu.pipeline_mode<synchronous>, transform_indices = @transform_6, window_bounds = array<i64: 1, 16>}, {pipeline_mode = #tpu.pipeline_mode<synchronous>, transform_indices = @transform_7, window_bounds = array<i64: 144, 16>}, {pipeline_mode = #tpu.pipeline_mode<synchronous>, transform_indices = @transform_8, window_bounds = array<i64: 1, 16>}, {pipeline_mode = #tpu.pipeline_mode<synchronous>, transform_indices = @transform_9, window_bounds = array<i64: 1, 16>}, {pipeline_mode = #tpu.pipeline_mode<synchronous>, transform_indices = @transform_10, window_bounds = array<i64: 144, 12>}, {pipeline_mode = #tpu.pipeline_mode<synchronous>, transform_indices = @transform_11, window_bounds = array<i64: 1, 12>}, {transform_indices = @transform_12, window_bounds = array<i64: 1, 8, 192>}]} {
    %c8_i32 = arith.constant 8 : i32
    %0 = arith.muli %arg1, %c8_i32 : i32
    %c0 = arith.constant 0 : index
    %1 = arith.index_cast %0 : i32 to index
    %c0_0 = arith.constant 0 : index
    %c0_1 = arith.constant 0 : index
    %2 = vector.load %arg2[%c0, %1, %c0_0, %c0_1] : memref<1x24x16x3xf32, #tpu.memory_space<vmem>>, vector<1x16x16x3xf32>
    %3 = vector.shape_cast %2 : vector<1x16x16x3xf32> to vector<16x16x3xf32>
    %cst = arith.constant 0.000000e+00 : f32
    %4 = vector.broadcast %cst : f32 to vector<16x1x3xf32>
    %5 = tpu.concatenate %4, %3, %4 in 1 : vector<16x1x3xf32>, vector<16x16x3xf32>, vector<16x1x3xf32> -> vector<16x18x3xf32>
    %6 = vector.extract_strided_slice %5 {offsets = [0, 0, 0], sizes = [14, 16, 3], strides = [1, 1, 1]} : vector<16x18x3xf32> to vector<14x16x3xf32>
    %7 = vector.extract_strided_slice %5 {offsets = [0, 1, 0], sizes = [14, 16, 3], strides = [1, 1, 1]} : vector<16x18x3xf32> to vector<14x16x3xf32>
    %8 = vector.extract_strided_slice %5 {offsets = [0, 2, 0], sizes = [14, 16, 3], strides = [1, 1, 1]} : vector<16x18x3xf32> to vector<14x16x3xf32>
    %9 = vector.extract_strided_slice %5 {offsets = [1, 0, 0], sizes = [14, 16, 3], strides = [1, 1, 1]} : vector<16x18x3xf32> to vector<14x16x3xf32>
    %10 = vector.extract_strided_slice %5 {offsets = [1, 1, 0], sizes = [14, 16, 3], strides = [1, 1, 1]} : vector<16x18x3xf32> to vector<14x16x3xf32>
    %11 = vector.extract_strided_slice %5 {offsets = [1, 2, 0], sizes = [14, 16, 3], strides = [1, 1, 1]} : vector<16x18x3xf32> to vector<14x16x3xf32>
    %12 = vector.extract_strided_slice %5 {offsets = [2, 0, 0], sizes = [14, 16, 3], strides = [1, 1, 1]} : vector<16x18x3xf32> to vector<14x16x3xf32>
    %13 = vector.extract_strided_slice %5 {offsets = [2, 1, 0], sizes = [14, 16, 3], strides = [1, 1, 1]} : vector<16x18x3xf32> to vector<14x16x3xf32>
    %14 = vector.extract_strided_slice %5 {offsets = [2, 2, 0], sizes = [14, 16, 3], strides = [1, 1, 1]} : vector<16x18x3xf32> to vector<14x16x3xf32>
    %15 = tpu.concatenate %6, %7, %8, %9, %10, %11, %12, %13, %14 in 2 : vector<14x16x3xf32>, vector<14x16x3xf32>, vector<14x16x3xf32>, vector<14x16x3xf32>, vector<14x16x3xf32>, vector<14x16x3xf32>, vector<14x16x3xf32>, vector<14x16x3xf32>, vector<14x16x3xf32> -> vector<14x16x27xf32>
    %16 = vector.shape_cast %15 : vector<14x16x27xf32> to vector<224x27xf32>
    %c0_2 = arith.constant 0 : index
    %c0_3 = arith.constant 0 : index
    %17 = vector.load %arg3[%c0_2, %c0_3] : memref<27x16xf32, #tpu.memory_space<vmem>>, vector<27x16xf32>
    %cst_4 = arith.constant dense<0.000000e+00> : vector<224x16xf32>
    %18 = tpu.matmul %16, %17, %cst_4 {dimension_numbers = #tpu.dot_dimension_numbers<[1], [0], [0], [1], [0, 0, 1, 1], [], []>} : vector<224x27xf32>, vector<27x16xf32>, vector<224x16xf32> -> vector<224x16xf32>
    %c0_5 = arith.constant 0 : index
    %c0_6 = arith.constant 0 : index
    %19 = vector.load %arg4[%c0_5, %c0_6] : memref<1x16xf32, #tpu.memory_space<vmem>>, vector<1x16xf32>
    %20 = vector.broadcast %19 : vector<1x16xf32> to vector<224x16xf32>
    %21 = arith.addf %18, %20 : vector<224x16xf32>
    %cst_7 = arith.constant 0.000000e+00 : f32
    %22 = vector.broadcast %cst_7 : f32 to vector<224x16xf32>
    %23 = arith.cmpf oge, %21, %22 : vector<224x16xf32>
    %c0_8 = arith.constant 0 : index
    %c0_9 = arith.constant 0 : index
    %24 = vector.load %arg5[%c0_8, %c0_9] : memref<1x16xf32, #tpu.memory_space<vmem>>, vector<1x16xf32>
    %25 = vector.broadcast %24 : vector<1x16xf32> to vector<224x16xf32>
    %26 = arith.mulf %21, %25 : vector<224x16xf32>
    %27 = arith.select %23, %21, %26 : vector<224x16xi1>, vector<224x16xf32>
    %28 = vector.shape_cast %27 : vector<224x16xf32> to vector<14x16x16xf32>
    %c3_i32 = arith.constant 3 : i32
    %29 = arith.subi %0, %c3_i32 : i32
    %30 = tpu.iota {dimensions = array<i32: 0>} : vector<14x1x1xi32>
    %31 = vector.broadcast %29 : i32 to vector<14x1x1xi32>
    %32 = arith.addi %31, %30 : vector<14x1x1xi32>
    %c0_i32 = arith.constant 0 : i32
    %33 = vector.broadcast %c0_i32 : i32 to vector<14x1x1xi32>
    %34 = arith.cmpi sge, %32, %33 : vector<14x1x1xi32>
    %c16_i32 = arith.constant 16 : i32
    %35 = vector.broadcast %c16_i32 : i32 to vector<14x1x1xi32>
    %36 = arith.cmpi slt, %32, %35 : vector<14x1x1xi32>
    %37 = arith.andi %34, %36 : vector<14x1x1xi1>
    %cst_10 = arith.constant 0.000000e+00 : f32
    %38 = vector.shape_cast %37 : vector<14x1x1xi1> to vector<14x1x1xi1>
    %39 = vector.broadcast %38 : vector<14x1x1xi1> to vector<14x16x16xi1>
    %40 = vector.broadcast %cst_10 : f32 to vector<14x16x16xf32>
    %41 = arith.select %39, %28, %40 : vector<14x16x16xi1>, vector<14x16x16xf32>
    %cst_11 = arith.constant 0.000000e+00 : f32
    %42 = vector.broadcast %cst_11 : f32 to vector<14x1x16xf32>
    %43 = tpu.concatenate %42, %41, %42 in 1 : vector<14x1x16xf32>, vector<14x16x16xf32>, vector<14x1x16xf32> -> vector<14x18x16xf32>
    %44 = vector.extract_strided_slice %43 {offsets = [0, 0, 0], sizes = [12, 16, 16], strides = [1, 1, 1]} : vector<14x18x16xf32> to vector<12x16x16xf32>
    %45 = vector.extract_strided_slice %43 {offsets = [0, 1, 0], sizes = [12, 16, 16], strides = [1, 1, 1]} : vector<14x18x16xf32> to vector<12x16x16xf32>
    %46 = vector.extract_strided_slice %43 {offsets = [0, 2, 0], sizes = [12, 16, 16], strides = [1, 1, 1]} : vector<14x18x16xf32> to vector<12x16x16xf32>
    %47 = vector.extract_strided_slice %43 {offsets = [1, 0, 0], sizes = [12, 16, 16], strides = [1, 1, 1]} : vector<14x18x16xf32> to vector<12x16x16xf32>
    %48 = vector.extract_strided_slice %43 {offsets = [1, 1, 0], sizes = [12, 16, 16], strides = [1, 1, 1]} : vector<14x18x16xf32> to vector<12x16x16xf32>
    %49 = vector.extract_strided_slice %43 {offsets = [1, 2, 0], sizes = [12, 16, 16], strides = [1, 1, 1]} : vector<14x18x16xf32> to vector<12x16x16xf32>
    %50 = vector.extract_strided_slice %43 {offsets = [2, 0, 0], sizes = [12, 16, 16], strides = [1, 1, 1]} : vector<14x18x16xf32> to vector<12x16x16xf32>
    %51 = vector.extract_strided_slice %43 {offsets = [2, 1, 0], sizes = [12, 16, 16], strides = [1, 1, 1]} : vector<14x18x16xf32> to vector<12x16x16xf32>
    %52 = vector.extract_strided_slice %43 {offsets = [2, 2, 0], sizes = [12, 16, 16], strides = [1, 1, 1]} : vector<14x18x16xf32> to vector<12x16x16xf32>
    %53 = tpu.concatenate %44, %45, %46, %47, %48, %49, %50, %51, %52 in 2 : vector<12x16x16xf32>, vector<12x16x16xf32>, vector<12x16x16xf32>, vector<12x16x16xf32>, vector<12x16x16xf32>, vector<12x16x16xf32>, vector<12x16x16xf32>, vector<12x16x16xf32>, vector<12x16x16xf32> -> vector<12x16x144xf32>
    %54 = vector.shape_cast %53 : vector<12x16x144xf32> to vector<192x144xf32>
    %c0_12 = arith.constant 0 : index
    %c0_13 = arith.constant 0 : index
    %55 = vector.load %arg6[%c0_12, %c0_13] : memref<144x16xf32, #tpu.memory_space<vmem>>, vector<144x16xf32>
    %cst_14 = arith.constant dense<0.000000e+00> : vector<192x16xf32>
    %56 = tpu.matmul %54, %55, %cst_14 {dimension_numbers = #tpu.dot_dimension_numbers<[1], [0], [0], [1], [0, 0, 1, 1], [], []>} : vector<192x144xf32>, vector<144x16xf32>, vector<192x16xf32> -> vector<192x16xf32>
    %c0_15 = arith.constant 0 : index
    %c0_16 = arith.constant 0 : index
    %57 = vector.load %arg7[%c0_15, %c0_16] : memref<1x16xf32, #tpu.memory_space<vmem>>, vector<1x16xf32>
    %58 = vector.broadcast %57 : vector<1x16xf32> to vector<192x16xf32>
    %59 = arith.addf %56, %58 : vector<192x16xf32>
    %cst_17 = arith.constant 0.000000e+00 : f32
    %60 = vector.broadcast %cst_17 : f32 to vector<192x16xf32>
    %61 = arith.cmpf oge, %59, %60 : vector<192x16xf32>
    %c0_18 = arith.constant 0 : index
    %c0_19 = arith.constant 0 : index
    %62 = vector.load %arg8[%c0_18, %c0_19] : memref<1x16xf32, #tpu.memory_space<vmem>>, vector<1x16xf32>
    %63 = vector.broadcast %62 : vector<1x16xf32> to vector<192x16xf32>
    %64 = arith.mulf %59, %63 : vector<192x16xf32>
    %65 = arith.select %61, %59, %64 : vector<192x16xi1>, vector<192x16xf32>
    %66 = vector.shape_cast %65 : vector<192x16xf32> to vector<12x16x16xf32>
    %c2_i32 = arith.constant 2 : i32
    %67 = arith.subi %0, %c2_i32 : i32
    %68 = tpu.iota {dimensions = array<i32: 0>} : vector<12x1x1xi32>
    %69 = vector.broadcast %67 : i32 to vector<12x1x1xi32>
    %70 = arith.addi %69, %68 : vector<12x1x1xi32>
    %c0_i32_20 = arith.constant 0 : i32
    %71 = vector.broadcast %c0_i32_20 : i32 to vector<12x1x1xi32>
    %72 = arith.cmpi sge, %70, %71 : vector<12x1x1xi32>
    %c16_i32_21 = arith.constant 16 : i32
    %73 = vector.broadcast %c16_i32_21 : i32 to vector<12x1x1xi32>
    %74 = arith.cmpi slt, %70, %73 : vector<12x1x1xi32>
    %75 = arith.andi %72, %74 : vector<12x1x1xi1>
    %cst_22 = arith.constant 0.000000e+00 : f32
    %76 = vector.shape_cast %75 : vector<12x1x1xi1> to vector<12x1x1xi1>
    %77 = vector.broadcast %76 : vector<12x1x1xi1> to vector<12x16x16xi1>
    %78 = vector.broadcast %cst_22 : f32 to vector<12x16x16xf32>
    %79 = arith.select %77, %66, %78 : vector<12x16x16xi1>, vector<12x16x16xf32>
    %cst_23 = arith.constant 0.000000e+00 : f32
    %80 = vector.broadcast %cst_23 : f32 to vector<12x1x16xf32>
    %81 = tpu.concatenate %80, %79, %80 in 1 : vector<12x1x16xf32>, vector<12x16x16xf32>, vector<12x1x16xf32> -> vector<12x18x16xf32>
    %82 = vector.extract_strided_slice %81 {offsets = [0, 0, 0], sizes = [10, 16, 16], strides = [1, 1, 1]} : vector<12x18x16xf32> to vector<10x16x16xf32>
    %83 = vector.extract_strided_slice %81 {offsets = [0, 1, 0], sizes = [10, 16, 16], strides = [1, 1, 1]} : vector<12x18x16xf32> to vector<10x16x16xf32>
    %84 = vector.extract_strided_slice %81 {offsets = [0, 2, 0], sizes = [10, 16, 16], strides = [1, 1, 1]} : vector<12x18x16xf32> to vector<10x16x16xf32>
    %85 = vector.extract_strided_slice %81 {offsets = [1, 0, 0], sizes = [10, 16, 16], strides = [1, 1, 1]} : vector<12x18x16xf32> to vector<10x16x16xf32>
    %86 = vector.extract_strided_slice %81 {offsets = [1, 1, 0], sizes = [10, 16, 16], strides = [1, 1, 1]} : vector<12x18x16xf32> to vector<10x16x16xf32>
    %87 = vector.extract_strided_slice %81 {offsets = [1, 2, 0], sizes = [10, 16, 16], strides = [1, 1, 1]} : vector<12x18x16xf32> to vector<10x16x16xf32>
    %88 = vector.extract_strided_slice %81 {offsets = [2, 0, 0], sizes = [10, 16, 16], strides = [1, 1, 1]} : vector<12x18x16xf32> to vector<10x16x16xf32>
    %89 = vector.extract_strided_slice %81 {offsets = [2, 1, 0], sizes = [10, 16, 16], strides = [1, 1, 1]} : vector<12x18x16xf32> to vector<10x16x16xf32>
    %90 = vector.extract_strided_slice %81 {offsets = [2, 2, 0], sizes = [10, 16, 16], strides = [1, 1, 1]} : vector<12x18x16xf32> to vector<10x16x16xf32>
    %91 = tpu.concatenate %82, %83, %84, %85, %86, %87, %88, %89, %90 in 2 : vector<10x16x16xf32>, vector<10x16x16xf32>, vector<10x16x16xf32>, vector<10x16x16xf32>, vector<10x16x16xf32>, vector<10x16x16xf32>, vector<10x16x16xf32>, vector<10x16x16xf32>, vector<10x16x16xf32> -> vector<10x16x144xf32>
    %92 = vector.shape_cast %91 : vector<10x16x144xf32> to vector<160x144xf32>
    %c0_24 = arith.constant 0 : index
    %c0_25 = arith.constant 0 : index
    %93 = vector.load %arg9[%c0_24, %c0_25] : memref<144x16xf32, #tpu.memory_space<vmem>>, vector<144x16xf32>
    %cst_26 = arith.constant dense<0.000000e+00> : vector<160x16xf32>
    %94 = tpu.matmul %92, %93, %cst_26 {dimension_numbers = #tpu.dot_dimension_numbers<[1], [0], [0], [1], [0, 0, 1, 1], [], []>} : vector<160x144xf32>, vector<144x16xf32>, vector<160x16xf32> -> vector<160x16xf32>
    %c0_27 = arith.constant 0 : index
    %c0_28 = arith.constant 0 : index
    %95 = vector.load %arg10[%c0_27, %c0_28] : memref<1x16xf32, #tpu.memory_space<vmem>>, vector<1x16xf32>
    %96 = vector.broadcast %95 : vector<1x16xf32> to vector<160x16xf32>
    %97 = arith.addf %94, %96 : vector<160x16xf32>
    %cst_29 = arith.constant 0.000000e+00 : f32
    %98 = vector.broadcast %cst_29 : f32 to vector<160x16xf32>
    %99 = arith.cmpf oge, %97, %98 : vector<160x16xf32>
    %c0_30 = arith.constant 0 : index
    %c0_31 = arith.constant 0 : index
    %100 = vector.load %arg11[%c0_30, %c0_31] : memref<1x16xf32, #tpu.memory_space<vmem>>, vector<1x16xf32>
    %101 = vector.broadcast %100 : vector<1x16xf32> to vector<160x16xf32>
    %102 = arith.mulf %97, %101 : vector<160x16xf32>
    %103 = arith.select %99, %97, %102 : vector<160x16xi1>, vector<160x16xf32>
    %104 = vector.shape_cast %103 : vector<160x16xf32> to vector<10x16x16xf32>
    %c1_i32 = arith.constant 1 : i32
    %105 = arith.subi %0, %c1_i32 : i32
    %106 = tpu.iota {dimensions = array<i32: 0>} : vector<10x1x1xi32>
    %107 = vector.broadcast %105 : i32 to vector<10x1x1xi32>
    %108 = arith.addi %107, %106 : vector<10x1x1xi32>
    %c0_i32_32 = arith.constant 0 : i32
    %109 = vector.broadcast %c0_i32_32 : i32 to vector<10x1x1xi32>
    %110 = arith.cmpi sge, %108, %109 : vector<10x1x1xi32>
    %c16_i32_33 = arith.constant 16 : i32
    %111 = vector.broadcast %c16_i32_33 : i32 to vector<10x1x1xi32>
    %112 = arith.cmpi slt, %108, %111 : vector<10x1x1xi32>
    %113 = arith.andi %110, %112 : vector<10x1x1xi1>
    %cst_34 = arith.constant 0.000000e+00 : f32
    %114 = vector.shape_cast %113 : vector<10x1x1xi1> to vector<10x1x1xi1>
    %115 = vector.broadcast %114 : vector<10x1x1xi1> to vector<10x16x16xi1>
    %116 = vector.broadcast %cst_34 : f32 to vector<10x16x16xf32>
    %117 = arith.select %115, %104, %116 : vector<10x16x16xi1>, vector<10x16x16xf32>
    %cst_35 = arith.constant 0.000000e+00 : f32
    %118 = vector.broadcast %cst_35 : f32 to vector<10x1x16xf32>
    %119 = tpu.concatenate %118, %117, %118 in 1 : vector<10x1x16xf32>, vector<10x16x16xf32>, vector<10x1x16xf32> -> vector<10x18x16xf32>
    %120 = vector.extract_strided_slice %119 {offsets = [0, 0, 0], sizes = [8, 16, 16], strides = [1, 1, 1]} : vector<10x18x16xf32> to vector<8x16x16xf32>
    %121 = vector.extract_strided_slice %119 {offsets = [0, 1, 0], sizes = [8, 16, 16], strides = [1, 1, 1]} : vector<10x18x16xf32> to vector<8x16x16xf32>
    %122 = vector.extract_strided_slice %119 {offsets = [0, 2, 0], sizes = [8, 16, 16], strides = [1, 1, 1]} : vector<10x18x16xf32> to vector<8x16x16xf32>
    %123 = vector.extract_strided_slice %119 {offsets = [1, 0, 0], sizes = [8, 16, 16], strides = [1, 1, 1]} : vector<10x18x16xf32> to vector<8x16x16xf32>
    %124 = vector.extract_strided_slice %119 {offsets = [1, 1, 0], sizes = [8, 16, 16], strides = [1, 1, 1]} : vector<10x18x16xf32> to vector<8x16x16xf32>
    %125 = vector.extract_strided_slice %119 {offsets = [1, 2, 0], sizes = [8, 16, 16], strides = [1, 1, 1]} : vector<10x18x16xf32> to vector<8x16x16xf32>
    %126 = vector.extract_strided_slice %119 {offsets = [2, 0, 0], sizes = [8, 16, 16], strides = [1, 1, 1]} : vector<10x18x16xf32> to vector<8x16x16xf32>
    %127 = vector.extract_strided_slice %119 {offsets = [2, 1, 0], sizes = [8, 16, 16], strides = [1, 1, 1]} : vector<10x18x16xf32> to vector<8x16x16xf32>
    %128 = vector.extract_strided_slice %119 {offsets = [2, 2, 0], sizes = [8, 16, 16], strides = [1, 1, 1]} : vector<10x18x16xf32> to vector<8x16x16xf32>
    %129 = tpu.concatenate %120, %121, %122, %123, %124, %125, %126, %127, %128 in 2 : vector<8x16x16xf32>, vector<8x16x16xf32>, vector<8x16x16xf32>, vector<8x16x16xf32>, vector<8x16x16xf32>, vector<8x16x16xf32>, vector<8x16x16xf32>, vector<8x16x16xf32>, vector<8x16x16xf32> -> vector<8x16x144xf32>
    %130 = vector.shape_cast %129 : vector<8x16x144xf32> to vector<128x144xf32>
    %c0_36 = arith.constant 0 : index
    %c0_37 = arith.constant 0 : index
    %131 = vector.load %arg12[%c0_36, %c0_37] : memref<144x12xf32, #tpu.memory_space<vmem>>, vector<144x12xf32>
    %cst_38 = arith.constant dense<0.000000e+00> : vector<128x12xf32>
    %132 = tpu.matmul %130, %131, %cst_38 {dimension_numbers = #tpu.dot_dimension_numbers<[1], [0], [0], [1], [0, 0, 1, 1], [], []>} : vector<128x144xf32>, vector<144x12xf32>, vector<128x12xf32> -> vector<128x12xf32>
    %c0_39 = arith.constant 0 : index
    %c0_40 = arith.constant 0 : index
    %133 = vector.load %arg13[%c0_39, %c0_40] : memref<1x12xf32, #tpu.memory_space<vmem>>, vector<1x12xf32>
    %134 = vector.broadcast %133 : vector<1x12xf32> to vector<128x12xf32>
    %135 = arith.addf %132, %134 : vector<128x12xf32>
    %136 = vector.shape_cast %135 : vector<128x12xf32> to vector<8x16x12xf32>
    %c4_i32 = arith.constant 4 : i32
    %137 = arith.addi %0, %c4_i32 : i32
    %c0_41 = arith.constant 0 : index
    %138 = arith.index_cast %137 : i32 to index
    %c0_42 = arith.constant 0 : index
    %c0_43 = arith.constant 0 : index
    %139 = vector.load %arg2[%c0_41, %138, %c0_42, %c0_43] : memref<1x24x16x3xf32, #tpu.memory_space<vmem>>, vector<1x8x16x3xf32>
    %140 = vector.shape_cast %139 : vector<1x8x16x3xf32> to vector<8x16x3xf32>
    %141 = vector.shape_cast %140 : vector<8x16x3xf32> to vector<8x16x3x1xf32>
    %142 = vector.shape_cast %141 : vector<8x16x3x1xf32> to vector<8x16x3x1xf32>
    %143 = vector.broadcast %142 : vector<8x16x3x1xf32> to vector<8x16x3x4xf32>
    %144 = vector.shape_cast %143 : vector<8x16x3x4xf32> to vector<8x16x12xf32>
    %145 = arith.addf %136, %144 : vector<8x16x12xf32>
    %146 = vector.shape_cast %145 : vector<8x16x12xf32> to vector<8x192xf32>
    %c0_44 = arith.constant 0 : index
    %c0_45 = arith.constant 0 : index
    %c0_46 = arith.constant 0 : index
    %147 = vector.load %arg14[%c0_44, %c0_45, %c0_46] : memref<1x8x192xf32, #tpu.memory_space<vmem>>, vector<1x8x192xf32>
    %148 = vector.shape_cast %147 : vector<1x8x192xf32> to vector<8x192xf32>
    %149 = vector.shape_cast %146 : vector<8x192xf32> to vector<1x8x192xf32>
    tpu.vector_store %arg14[%c0_44, %c0_45, %c0_46], %149 {strides = array<i32>} : memref<1x8x192xf32, #tpu.memory_space<vmem>>, vector<1x8x192xf32>,
    return
  }
  func.func @transform_0(%arg0: i32, %arg1: i32) -> (i32, i32, i32, i32) {
    %c0_i32 = arith.constant 0 : i32
    %c0_i32_0 = arith.constant 0 : i32
    %c0_i32_1 = arith.constant 0 : i32
    %c0_i32_2 = arith.constant 0 : i32
    return %arg0, %c0_i32, %c0_i32_0, %c0_i32_1 : i32, i32, i32, i32
  }
  func.func @transform_1(%arg0: i32, %arg1: i32) -> (i32, i32) {
    %c0_i32 = arith.constant 0 : i32
    %c0_i32_0 = arith.constant 0 : i32
    %c0_i32_1 = arith.constant 0 : i32
    return %c0_i32, %c0_i32_0 : i32, i32
  }
  func.func @transform_2(%arg0: i32, %arg1: i32) -> (i32, i32) {
    %c0_i32 = arith.constant 0 : i32
    %c0_i32_0 = arith.constant 0 : i32
    %c0_i32_1 = arith.constant 0 : i32
    return %c0_i32, %c0_i32_0 : i32, i32
  }
  func.func @transform_3(%arg0: i32, %arg1: i32) -> (i32, i32) {
    %c0_i32 = arith.constant 0 : i32
    %c0_i32_0 = arith.constant 0 : i32
    %c0_i32_1 = arith.constant 0 : i32
    return %c0_i32, %c0_i32_0 : i32, i32
  }
  func.func @transform_4(%arg0: i32, %arg1: i32) -> (i32, i32) {
    %c0_i32 = arith.constant 0 : i32
    %c0_i32_0 = arith.constant 0 : i32
    %c0_i32_1 = arith.constant 0 : i32
    return %c0_i32, %c0_i32_0 : i32, i32
  }
  func.func @transform_5(%arg0: i32, %arg1: i32) -> (i32, i32) {
    %c0_i32 = arith.constant 0 : i32
    %c0_i32_0 = arith.constant 0 : i32
    %c0_i32_1 = arith.constant 0 : i32
    return %c0_i32, %c0_i32_0 : i32, i32
  }
  func.func @transform_6(%arg0: i32, %arg1: i32) -> (i32, i32) {
    %c0_i32 = arith.constant 0 : i32
    %c0_i32_0 = arith.constant 0 : i32
    %c0_i32_1 = arith.constant 0 : i32
    return %c0_i32, %c0_i32_0 : i32, i32
  }
  func.func @transform_7(%arg0: i32, %arg1: i32) -> (i32, i32) {
    %c0_i32 = arith.constant 0 : i32
    %c0_i32_0 = arith.constant 0 : i32
    %c0_i32_1 = arith.constant 0 : i32
    return %c0_i32, %c0_i32_0 : i32, i32
  }
  func.func @transform_8(%arg0: i32, %arg1: i32) -> (i32, i32) {
    %c0_i32 = arith.constant 0 : i32
    %c0_i32_0 = arith.constant 0 : i32
    %c0_i32_1 = arith.constant 0 : i32
    return %c0_i32, %c0_i32_0 : i32, i32
  }
  func.func @transform_9(%arg0: i32, %arg1: i32) -> (i32, i32) {
    %c0_i32 = arith.constant 0 : i32
    %c0_i32_0 = arith.constant 0 : i32
    %c0_i32_1 = arith.constant 0 : i32
    return %c0_i32, %c0_i32_0 : i32, i32
  }
  func.func @transform_10(%arg0: i32, %arg1: i32) -> (i32, i32) {
    %c0_i32 = arith.constant 0 : i32
    %c0_i32_0 = arith.constant 0 : i32
    %c0_i32_1 = arith.constant 0 : i32
    return %c0_i32, %c0_i32_0 : i32, i32
  }
  func.func @transform_11(%arg0: i32, %arg1: i32) -> (i32, i32) {
    %c0_i32 = arith.constant 0 : i32
    %c0_i32_0 = arith.constant 0 : i32
    %c0_i32_1 = arith.constant 0 : i32
    return %c0_i32, %c0_i32_0 : i32, i32
  }
  func.func @transform_12(%arg0: i32, %arg1: i32) -> (i32, i32, i32) {
    %c0_i32 = arith.constant 0 : i32
    %c0_i32_0 = arith.constant 0 : i32
    return %arg0, %arg1, %c0_i32 : i32, i32, i32
  }
}

</mosaic_0001>

<llo_original>
// kernel: tpu_custom_call.1
$region0: #{tpu_custom_call.1}
  #allocation0 [shape = 'u32[]', space=smem, size = 0x4, offset = 0x4, fixed_abs, tag = 'smem constant byte address 0x4 - core index']
  #allocation1 [shape = 'u32[144,128]{1,0:T(1,128)}', space=vmem, size = 0x12000, scoped, tag = 'internal scratch']
  %s0 = inlined_call_operand.vmem [shape: f32[2,24,16,3], index: 0, kind: input, shape index: {}]
  %s1 = inlined_call_operand.vmem [shape: f32[27,16], index: 1, kind: input, shape index: {}]
  %s2 = inlined_call_operand.vmem [shape: f32[1,16], index: 2, kind: input, shape index: {}]
  %s3 = inlined_call_operand.vmem [shape: f32[1,16], index: 3, kind: input, shape index: {}]
  %s4 = inlined_call_operand.vmem [shape: f32[144,16], index: 4, kind: input, shape index: {}]
  %s5 = inlined_call_operand.vmem [shape: f32[1,16], index: 5, kind: input, shape index: {}]
  %s6 = inlined_call_operand.vmem [shape: f32[1,16], index: 6, kind: input, shape index: {}]
  %s7 = inlined_call_operand.vmem [shape: f32[144,16], index: 7, kind: input, shape index: {}]
  %s8 = inlined_call_operand.vmem [shape: f32[1,16], index: 8, kind: input, shape index: {}]
  %s9 = inlined_call_operand.vmem [shape: f32[1,16], index: 9, kind: input, shape index: {}]
  %s10 = inlined_call_operand.vmem [shape: f32[144,12], index: 10, kind: input, shape index: {}]
  %s11 = inlined_call_operand.vmem [shape: f32[1,12], index: 11, kind: input, shape index: {}]
  %s12 = inlined_call_operand.hbm [shape: f32[2,16,192], index: 12, kind: output, shape index: {}]
  %s13 = sld [smem:[#allocation0]]
  $region81: #{tpu_custom_call.1} parent=0
    _
  %s15 = ssub.s32 1, %s13
  %s16 = scalar_select 0, %s15, %s13
  $region1: #{tpu_custom_call.1} parent=0
    #allocation2 [shape = 'u8[16384]{0}', space=vmem, size = 0x4000, scoped, tag = 'output window, operand 0']
    #allocation3 [shape = 's32[2]{0}', space=sflag, size = 0x8, scoped, tag = 'scoped memory for tpu_custom_call.1']
    %17 = vsyncpa [#allocation3], 0
    %s18 = scalar_lea.sflag [#allocation3], 1
    %19 = vsyncpa %s18, 0
    loop: start=0, step=1, limit=6
    $region2: #{tpu_custom_call.1} parent=1 // loop_pre_header
      _
    $region3: #{tpu_custom_call.1} parent=1 // loop_header
      %s21 = sphi 0, %s25
      %p22 = scmp.ge.s32.totalorder %s21, 6
      %s28 = sphi 0, %s40
      %s29 = sphi 0, %s36
      %s30 = sphi 0, %s28
      %s31 = sphi 0, %s29
      %s32 = sphi 0, %s30
      %s33 = sphi 0, %s31
      %s43 = sphi 0, %s45
      %s46 = sphi 0, %s43
      %s47 = sphi 0, %s46
      %s63 = sphi 0, %s47
      %s67 = sphi 0, %s67
      %s69 = sphi 0, %s67
      %s70 = sphi 0, %s69
      %s84 = sphi 0, %s70
      %s88 = sphi 0, %s88
      %s90 = sphi 0, %s88
      %s91 = sphi 0, %s90
      %s105 = sphi 0, %s91
      %s109 = sphi 0, %s109
      %s111 = sphi 0, %s109
      %s112 = sphi 0, %s111
      %s126 = sphi 0, %s112
      %s130 = sphi 0, %s130
      %s132 = sphi 0, %s130
      %s133 = sphi 0, %s132
      %s147 = sphi 0, %s133
      %s151 = sphi 0, %s151
      %s153 = sphi 0, %s151
      %s154 = sphi 0, %s153
      %s168 = sphi 0, %s154
      %s172 = sphi 0, %s172
      %s174 = sphi 0, %s172
      %s175 = sphi 0, %s174
      %s189 = sphi 0, %s175
      %s193 = sphi 0, %s193
      %s195 = sphi 0, %s193
      %s196 = sphi 0, %s195
      %s210 = sphi 0, %s196
      %s214 = sphi 0, %s214
      %s216 = sphi 0, %s214
      %s217 = sphi 0, %s216
      %s231 = sphi 0, %s217
      %s235 = sphi 0, %s235
      %s237 = sphi 0, %s235
      %s238 = sphi 0, %s237
      %s252 = sphi 0, %s238
      %s256 = sphi 0, %s256
      %s258 = sphi 0, %s256
      %s259 = sphi 0, %s258
      %s273 = sphi 0, %s259
      %s277 = sphi 0, %s277
      %s279 = sphi 0, %s277
      %s280 = sphi 0, %s279
      %s294 = sphi 0, %s280
      %s302 = sphi 0, %s304
      %s305 = sphi 0, %s302
      %s306 = sphi 0, %s305
      %s322 = sphi 0, %s306
    $region4: #{tpu_custom_call.1} parent=1 // loop_header_branch
      %24 = sbr.rel (%p22) target = $region8
    $region5: #{tpu_custom_call.1} parent=1 // loop_body
      %s26 = ssub.s32 %s21, 1
      %s27 = ssub.s32 %s21, 2
      %s34 = sadd.s32 1, %s29
      %p35 = scmp.ge.s32.totalorder %s34, 2
      %s36 = scalar_select %p35, 0, %s34
      %s37 = sadd.s32 1, %s28
      %s38 = scalar_select %p35, %s37, %s28
      %p39 = scmp.ge.s32.totalorder %s38, 2
      %s40 = scalar_select %p39, 0, %s38
      %s41 = ssub.s32 %s28, %s40
      %p42 = scmp.eq.s32.totalorder %s41, 0
      %s44 = sadd.s32 %s43, 1
      %s45 = scalar_select %p42, %s43, %s44
      %p48 = pneg %p42
      %p49 = scmp.eq.s32.totalorder %s21, 3
      %p50 = por %p48, %p49
      %p51 = scmp.ne.s32.totalorder %s43, %s46
      %p52 = scmp.eq.s32.totalorder %s21, 0
      %p53 = por %p51, %p52
      %p54 = scmp.ne.s32.totalorder %s43, %s46
      %p55 = scmp.eq.s32.totalorder %s26, 3
      %p56 = por %p54, %p55
      %p57 = scmp.ne.s32.totalorder %s46, %s47
      %p58 = scmp.eq.s32.totalorder %s26, 0
      %p59 = por %p57, %p58
      %p60 = scmp.ne.s32.totalorder %s46, %s47
      %p61 = scmp.eq.s32.totalorder %s27, 3
      %p62 = por %p60, %p61
      %p64 = scmp.ne.s32.totalorder %s47, %s63
      %p65 = scmp.eq.s32.totalorder %s27, 0
      %p66 = por %p64, %p65
      %s68 = sadd.s32 %s67, 1
      %p71 = scmp.eq.s32.totalorder %s21, 3
      %p72 = scmp.ne.s32.totalorder %s67, %s69
      %p73 = scmp.eq.s32.totalorder %s21, 0
      %p74 = por %p72, %p73
      %p75 = scmp.ne.s32.totalorder %s67, %s69
      %p76 = scmp.eq.s32.totalorder %s26, 3
      %p77 = por %p75, %p76
      %p78 = scmp.ne.s32.totalorder %s69, %s70
      %p79 = scmp.eq.s32.totalorder %s26, 0
      %p80 = por %p78, %p79
      %p81 = scmp.ne.s32.totalorder %s69, %s70
      %p82 = scmp.eq.s32.totalorder %s27, 3
      %p83 = por %p81, %p82
      %p85 = scmp.ne.s32.totalorder %s70, %s84
      %p86 = scmp.eq.s32.totalorder %s27, 0
      %p87 = por %p85, %p86
      %s89 = sadd.s32 %s88, 1
      %p92 = scmp.eq.s32.totalorder %s21, 3
      %p93 = scmp.ne.s32.totalorder %s88, %s90
      %p94 = scmp.eq.s32.totalorder %s21, 0
      %p95 = por %p93, %p94
      %p96 = scmp.ne.s32.totalorder %s88, %s90
      %p97 = scmp.eq.s32.totalorder %s26, 3
      %p98 = por %p96, %p97
      %p99 = scmp.ne.s32.totalorder %s90, %s91
      %p100 = scmp.eq.s32.totalorder %s26, 0
      %p101 = por %p99, %p100
      %p102 = scmp.ne.s32.totalorder %s90, %s91
      %p103 = scmp.eq.s32.totalorder %s27, 3
      %p104 = por %p102, %p103
      %p106 = scmp.ne.s32.totalorder %s91, %s105
      %p107 = scmp.eq.s32.totalorder %s27, 0
      %p108 = por %p106, %p107
      %s110 = sadd.s32 %s109, 1
      %p113 = scmp.eq.s32.totalorder %s21, 3
      %p114 = scmp.ne.s32.totalorder %s109, %s111
      %p115 = scmp.eq.s32.totalorder %s21, 0
      %p116 = por %p114, %p115
      %p117 = scmp.ne.s32.totalorder %s109, %s111
      %p118 = scmp.eq.s32.totalorder %s26, 3
      %p119 = por %p117, %p118
      %p120 = scmp.ne.s32.totalorder %s111, %s112
      %p121 = scmp.eq.s32.totalorder %s26, 0
      %p122 = por %p120, %p121
      %p123 = scmp.ne.s32.totalorder %s111, %s112
      %p124 = scmp.eq.s32.totalorder %s27, 3
      %p125 = por %p123, %p124
      %p127 = scmp.ne.s32.totalorder %s112, %s126
      %p128 = scmp.eq.s32.totalorder %s27, 0
      %p129 = por %p127, %p128
      %s131 = sadd.s32 %s130, 1
      %p134 = scmp.eq.s32.totalorder %s21, 3
      %p135 = scmp.ne.s32.totalorder %s130, %s132
      %p136 = scmp.eq.s32.totalorder %s21, 0
      %p137 = por %p135, %p136
      %p138 = scmp.ne.s32.totalorder %s130, %s132
      %p139 = scmp.eq.s32.totalorder %s26, 3
      %p140 = por %p138, %p139
      %p141 = scmp.ne.s32.totalorder %s132, %s133
      %p142 = scmp.eq.s32.totalorder %s26, 0
      %p143 = por %p141, %p142
      %p144 = scmp.ne.s32.totalorder %s132, %s133
      %p145 = scmp.eq.s32.totalorder %s27, 3
      %p146 = por %p144, %p145
      %p148 = scmp.ne.s32.totalorder %s133, %s147
      %p149 = scmp.eq.s32.totalorder %s27, 0
      %p150 = por %p148, %p149
      %s152 = sadd.s32 %s151, 1
      %p155 = scmp.eq.s32.totalorder %s21, 3
      %p156 = scmp.ne.s32.totalorder %s151, %s153
      %p157 = scmp.eq.s32.totalorder %s21, 0
      %p158 = por %p156, %p157
      %p159 = scmp.ne.s32.totalorder %s151, %s153
      %p160 = scmp.eq.s32.totalorder %s26, 3
      %p161 = por %p159, %p160
      %p162 = scmp.ne.s32.totalorder %s153, %s154
      %p163 = scmp.eq.s32.totalorder %s26, 0
      %p164 = por %p162, %p163
      %p165 = scmp.ne.s32.totalorder %s153, %s154
      %p166 = scmp.eq.s32.totalorder %s27, 3
      %p167 = por %p165, %p166
      %p169 = scmp.ne.s32.totalorder %s154, %s168
      %p170 = scmp.eq.s32.totalorder %s27, 0
      %p171 = por %p169, %p170
      %s173 = sadd.s32 %s172, 1
      %p176 = scmp.eq.s32.totalorder %s21, 3
      %p177 = scmp.ne.s32.totalorder %s172, %s174
      %p178 = scmp.eq.s32.totalorder %s21, 0
      %p179 = por %p177, %p178
      %p180 = scmp.ne.s32.totalorder %s172, %s174
      %p181 = scmp.eq.s32.totalorder %s26, 3
      %p182 = por %p180, %p181
      %p183 = scmp.ne.s32.totalorder %s174, %s175
      %p184 = scmp.eq.s32.totalorder %s26, 0
      %p185 = por %p183, %p184
      %p186 = scmp.ne.s32.totalorder %s174, %s175
      %p187 = scmp.eq.s32.totalorder %s27, 3
      %p188 = por %p186, %p187
      %p190 = scmp.ne.s32.totalorder %s175, %s189
      %p191 = scmp.eq.s32.totalorder %s27, 0
      %p192 = por %p190, %p191
      %s194 = sadd.s32 %s193, 1
      %p197 = scmp.eq.s32.totalorder %s21, 3
      %p198 = scmp.ne.s32.totalorder %s193, %s195
      %p199 = scmp.eq.s32.totalorder %s21, 0
      %p200 = por %p198, %p199
      %p201 = scmp.ne.s32.totalorder %s193, %s195
      %p202 = scmp.eq.s32.totalorder %s26, 3
      %p203 = por %p201, %p202
      %p204 = scmp.ne.s32.totalorder %s195, %s196
      %p205 = scmp.eq.s32.totalorder %s26, 0
      %p206 = por %p204, %p205
      %p207 = scmp.ne.s32.totalorder %s195, %s196
      %p208 = scmp.eq.s32.totalorder %s27, 3
      %p209 = por %p207, %p208
      %p211 = scmp.ne.s32.totalorder %s196, %s210
      %p212 = scmp.eq.s32.totalorder %s27, 0
      %p213 = por %p211, %p212
      %s215 = sadd.s32 %s214, 1
      %p218 = scmp.eq.s32.totalorder %s21, 3
      %p219 = scmp.ne.s32.totalorder %s214, %s216
      %p220 = scmp.eq.s32.totalorder %s21, 0
      %p221 = por %p219, %p220
      %p222 = scmp.ne.s32.totalorder %s214, %s216
      %p223 = scmp.eq.s32.totalorder %s26, 3
      %p224 = por %p222, %p223
      %p225 = scmp.ne.s32.totalorder %s216, %s217
      %p226 = scmp.eq.s32.totalorder %s26, 0
      %p227 = por %p225, %p226
      %p228 = scmp.ne.s32.totalorder %s216, %s217
      %p229 = scmp.eq.s32.totalorder %s27, 3
      %p230 = por %p228, %p229
      %p232 = scmp.ne.s32.totalorder %s217, %s231
      %p233 = scmp.eq.s32.totalorder %s27, 0
      %p234 = por %p232, %p233
      %s236 = sadd.s32 %s235, 1
      %p239 = scmp.eq.s32.totalorder %s21, 3
      %p240 = scmp.ne.s32.totalorder %s235, %s237
      %p241 = scmp.eq.s32.totalorder %s21, 0
      %p242 = por %p240, %p241
      %p243 = scmp.ne.s32.totalorder %s235, %s237
      %p244 = scmp.eq.s32.totalorder %s26, 3
      %p245 = por %p243, %p244
      %p246 = scmp.ne.s32.totalorder %s237, %s238
      %p247 = scmp.eq.s32.totalorder %s26, 0
      %p248 = por %p246, %p247
      %p249 = scmp.ne.s32.totalorder %s237, %s238
      %p250 = scmp.eq.s32.totalorder %s27, 3
      %p251 = por %p249, %p250
      %p253 = scmp.ne.s32.totalorder %s238, %s252
      %p254 = scmp.eq.s32.totalorder %s27, 0
      %p255 = por %p253, %p254
      %s257 = sadd.s32 %s256, 1
      %p260 = scmp.eq.s32.totalorder %s21, 3
      %p261 = scmp.ne.s32.totalorder %s256, %s258
      %p262 = scmp.eq.s32.totalorder %s21, 0
      %p263 = por %p261, %p262
      %p264 = scmp.ne.s32.totalorder %s256, %s258
      %p265 = scmp.eq.s32.totalorder %s26, 3
      %p266 = por %p264, %p265
      %p267 = scmp.ne.s32.totalorder %s258, %s259
      %p268 = scmp.eq.s32.totalorder %s26, 0
      %p269 = por %p267, %p268
      %p270 = scmp.ne.s32.totalorder %s258, %s259
      %p271 = scmp.eq.s32.totalorder %s27, 3
      %p272 = por %p270, %p271
      %p274 = scmp.ne.s32.totalorder %s259, %s273
      %p275 = scmp.eq.s32.totalorder %s27, 0
      %p276 = por %p274, %p275
      %s278 = sadd.s32 %s277, 1
      %p281 = scmp.eq.s32.totalorder %s21, 3
      %p282 = scmp.ne.s32.totalorder %s277, %s279
      %p283 = scmp.eq.s32.totalorder %s21, 0
      %p284 = por %p282, %p283
      %p285 = scmp.ne.s32.totalorder %s277, %s279
      %p286 = scmp.eq.s32.totalorder %s26, 3
      %p287 = por %p285, %p286
      %p288 = scmp.ne.s32.totalorder %s279, %s280
      %p289 = scmp.eq.s32.totalorder %s26, 0
      %p290 = por %p288, %p289
      %p291 = scmp.ne.s32.totalorder %s279, %s280
      %p292 = scmp.eq.s32.totalorder %s27, 3
      %p293 = por %p291, %p292
      %p295 = scmp.ne.s32.totalorder %s280, %s294
      %p296 = scmp.eq.s32.totalorder %s27, 0
      %p297 = por %p295, %p296
      %s298 = ssub.s32 %s28, %s40
      %s299 = ssub.s32 %s29, %s36
      %s300 = sor.u32 %s298, %s299
      %p301 = scmp.eq.s32.totalorder %s300, 0
      %s303 = sadd.s32 %s302, 1
      %s304 = scalar_select %p301, %s302, %s303
      %p307 = pneg %p301
      %p308 = scmp.eq.s32.totalorder %s21, 3
      %p309 = por %p307, %p308
      %p310 = scmp.ne.s32.totalorder %s302, %s305
      %p311 = scmp.eq.s32.totalorder %s21, 0
      %p312 = por %p310, %p311
      %p313 = scmp.ne.s32.totalorder %s302, %s305
      %p314 = scmp.eq.s32.totalorder %s26, 3
      %p315 = por %p313, %p314
      %p316 = scmp.ne.s32.totalorder %s305, %s306
      %p317 = scmp.eq.s32.totalorder %s26, 0
      %p318 = por %p316, %p317
      %p319 = scmp.ne.s32.totalorder %s305, %s306
      %p320 = scmp.eq.s32.totalorder %s27, 3
      %p321 = por %p319, %p320
      %p323 = scmp.ne.s32.totalorder %s306, %s322
      %p324 = scmp.eq.s32.totalorder %s27, 0
      %p325 = por %p323, %p324
      %p326 = scmp.le.s32.totalorder 1, %s21
      %p327 = scmp.lt.s32.totalorder %s21, 5
      %p328 = pnand %p326, %p327
      %p329 = pneg %p328
      // Predicated region
      $region9: #{tpu_custom_call.1} parent=5 // pred_check
        _
      $region10: #{tpu_custom_call.1} parent=5 // pred_check_branch
        %331 = sbr.rel (%p328) target = $region12
      $region11: #{tpu_custom_call.1} parent=5 // pred_region
        %s332 = ssub.s32 %s21, 1
        // Predicated region
        $region13: #{tpu_custom_call.1} parent=11 // pred_check
          %p333 = pneg %p80
        $region14: #{tpu_custom_call.1} parent=11 // pred_check_branch
          %335 = sbr.rel (%p333) target = $region16
        $region15: #{tpu_custom_call.1} parent=11 // pred_region
          _
        $region16: #{tpu_custom_call.1} parent=11 // pred_fallthru
          _
        // Predicated region
        $region17: #{tpu_custom_call.1} parent=11 // pred_check
          %p336 = pneg %p101
        $region18: #{tpu_custom_call.1} parent=11 // pred_check_branch
          %338 = sbr.rel (%p336) target = $region20
        $region19: #{tpu_custom_call.1} parent=11 // pred_region
          _
        $region20: #{tpu_custom_call.1} parent=11 // pred_fallthru
          _
        // Predicated region
        $region21: #{tpu_custom_call.1} parent=11 // pred_check
          %p339 = pneg %p122
        $region22: #{tpu_custom_call.1} parent=11 // pred_check_branch
          %341 = sbr.rel (%p339) target = $region24
        $region23: #{tpu_custom_call.1} parent=11 // pred_region
          _
        $region24: #{tpu_custom_call.1} parent=11 // pred_fallthru
          _
        // Predicated region
        $region25: #{tpu_custom_call.1} parent=11 // pred_check
          %p342 = pneg %p143
        $region26: #{tpu_custom_call.1} parent=11 // pred_check_branch
          %344 = sbr.rel (%p342) target = $region28
        $region27: #{tpu_custom_call.1} parent=11 // pred_region
          _
        $region28: #{tpu_custom_call.1} parent=11 // pred_fallthru
          _
        // Predicated region
        $region29: #{tpu_custom_call.1} parent=11 // pred_check
          %p345 = pneg %p164
        $region30: #{tpu_custom_call.1} parent=11 // pred_check_branch
          %347 = sbr.rel (%p345) target = $region32
        $region31: #{tpu_custom_call.1} parent=11 // pred_region
          _
        $region32: #{tpu_custom_call.1} parent=11 // pred_fallthru
          _
        // Predicated region
        $region33: #{tpu_custom_call.1} parent=11 // pred_check
          %p348 = pneg %p185
        $region34: #{tpu_custom_call.1} parent=11 // pred_check_branch
          %350 = sbr.rel (%p348) target = $region36
        $region35: #{tpu_custom_call.1} parent=11 // pred_region
          _
        $region36: #{tpu_custom_call.1} parent=11 // pred_fallthru
          _
        // Predicated region
        $region37: #{tpu_custom_call.1} parent=11 // pred_check
          %p351 = pneg %p206
        $region38: #{tpu_custom_call.1} parent=11 // pred_check_branch
          %353 = sbr.rel (%p351) target = $region40
        $region39: #{tpu_custom_call.1} parent=11 // pred_region
          _
        $region40: #{tpu_custom_call.1} parent=11 // pred_fallthru
          _
        // Predicated region
        $region41: #{tpu_custom_call.1} parent=11 // pred_check
          %p354 = pneg %p227
        $region42: #{tpu_custom_call.1} parent=11 // pred_check_branch
          %356 = sbr.rel (%p354) target = $region44
        $region43: #{tpu_custom_call.1} parent=11 // pred_region
          _
        $region44: #{tpu_custom_call.1} parent=11 // pred_fallthru
          _
        // Predicated region
        $region45: #{tpu_custom_call.1} parent=11 // pred_check
          %p357 = pneg %p248
        $region46: #{tpu_custom_call.1} parent=11 // pred_check_branch
          %359 = sbr.rel (%p357) target = $region48
        $region47: #{tpu_custom_call.1} parent=11 // pred_region
          _
        $region48: #{tpu_custom_call.1} parent=11 // pred_fallthru
          _
        // Predicated region
        $region49: #{tpu_custom_call.1} parent=11 // pred_check
          %p360 = pneg %p269
        $region50: #{tpu_custom_call.1} parent=11 // pred_check_branch
          %362 = sbr.rel (%p360) target = $region52
        $region51: #{tpu_custom_call.1} parent=11 // pred_region
          _
        $region52: #{tpu_custom_call.1} parent=11 // pred_fallthru
          _
        // Predicated region
        $region53: #{tpu_custom_call.1} parent=11 // pred_check
          %p363 = pneg %p290
        $region54: #{tpu_custom_call.1} parent=11 // pred_check_branch
          %365 = sbr.rel (%p363) target = $region56
        $region55: #{tpu_custom_call.1} parent=11 // pred_region
          _
        $region56: #{tpu_custom_call.1} parent=11 // pred_fallthru
          _
      $region12: #{tpu_custom_call.1} parent=5 // pred_fallthru
        _
      %p366 = scmp.lt.s32.totalorder %s21, 4
      // Predicated region
      $region57: #{tpu_custom_call.1} parent=5 // pred_check
        %p367 = pneg %p366
      $region58: #{tpu_custom_call.1} parent=5 // pred_check_branch
        %369 = sbr.rel (%p367) target = $region60
      $region59: #{tpu_custom_call.1} parent=5 // pred_region
        // Predicated region
        $region61: #{tpu_custom_call.1} parent=59 // pred_check
          %p370 = pneg %p53
        $region62: #{tpu_custom_call.1} parent=59 // pred_check_branch
          %372 = sbr.rel (%p370) target = $region64
        $region63: #{tpu_custom_call.1} parent=59 // pred_region
          %p373 = scmp.lt.s32.totalorder %s28, 1
          %s374 = scalar_select %p373, %s28, 1
          %s375 = smul.addr %s374, 48
          %s376 = smul.addr %s375, 8
          %s377 = scalar_lea.vmem %s0, %s376
        $region64: #{tpu_custom_call.1} parent=59 // pred_fallthru
          _
      $region60: #{tpu_custom_call.1} parent=5 // pred_fallthru
        _
      %p378 = scmp.le.s32.totalorder 1, %s21
      %p379 = scmp.lt.s32.totalorder %s21, 5
      %p380 = pnand %p378, %p379
      %p381 = pneg %p380
      // Predicated region
      $region65: #{tpu_custom_call.1} parent=5 // pred_check
        _
      $region66: #{tpu_custom_call.1} parent=5 // pred_check_branch
        %383 = sbr.rel (%p380) target = $region68
      $region67: #{tpu_custom_call.1} parent=5 // pred_region
        %s384 = ssub.s32 %s21, 1
        %p385 = scmp.lt.s32.totalorder %s30, 1
        %s386 = scalar_select %p385, %s30, 1
        %s387 = smul.addr %s386, 48
        %s388 = smul.addr %s387, 8
        %s389 = scalar_lea.vmem %s0, %s388
        %p390 = pneg %p59
        %p391 = pneg %p56
        %p392 = pneg %p80
        %p393 = pneg %p77
        %p394 = pneg %p101
        %p395 = pneg %p98
        %p396 = pneg %p122
        %p397 = pneg %p119
        %p398 = pneg %p143
        %p399 = pneg %p140
        %p400 = pneg %p164
        %p401 = pneg %p161
        %p402 = pneg %p185
        %p403 = pneg %p182
        %p404 = pneg %p206
        %p405 = pneg %p203
        %p406 = pneg %p227
        %p407 = pneg %p224
        %p408 = pneg %p248
        %p409 = pneg %p245
        %p410 = pneg %p269
        %p411 = pneg %p266
        %p412 = pneg %p290
        %p413 = pneg %p287
        %p414 = pneg %p318
        %p415 = pneg %p315
        %s416 = sand.u32 %s305, 1
        %s417 = scalar_lea.sflag [#allocation3], %s416
        %s418 = sand.u32 %s305, 1
        %s419 = smul.addr %s418, 16
        %s420 = scalar_lea.vmem [#allocation2], %s419
        %p421 = scmp.lt.s32.totalorder %s30, 1
        %s422 = scalar_select %p421, %s30, 1
        %s423 = smul.addr %s422, 48
        %s424 = smul.addr %s423, 8
        %s425 = scalar_lea.vmem %s0, %s424
        %s426 = smul.u32 %s31, 8
        %s427 = smul.u32 %s426, 16
        %s428 = scalar_lea.vmem %s425, %s427
        %v429 = vld [vmem:[%s428] sm:$0xff]
        %v430 = vld [vmem:[%s428 + $0x8] sm:$0xff]
        %v431 = vld [vmem:[%s428 + $0x10] sm:$0xff]
        %v432 = vld [vmem:[%s428 + $0x18] sm:$0xff]
        %v433 = vld [vmem:[%s428 + $0x20] sm:$0xff]
        %v434 = vld [vmem:[%s428 + $0x28] sm:$0xff]
        %v435 = vld [vmem:[%s428 + $0x30] sm:$0xff]
        %v436 = vld [vmem:[%s428 + $0x38] sm:$0xff]
        %v437 = vld [vmem:[%s428 + $0x40] sm:$0xff]
        %v438 = vld [vmem:[%s428 + $0x48] sm:$0xff]
        %v439 = vld [vmem:[%s428 + $0x50] sm:$0xff]
        %v440 = vld [vmem:[%s428 + $0x58] sm:$0xff]
        %v441 = vld [vmem:[%s428 + $0x60] sm:$0xff]
        %v442 = vld [vmem:[%s428 + $0x68] sm:$0xff]
        %v443 = vld [vmem:[%s428 + $0x70] sm:$0xff]
        %v444 = vld [vmem:[%s428 + $0x78] sm:$0xff]
        %v445 = vld [vmem:[%s428 + $0x80] sm:$0xff]
        %v446 = vld [vmem:[%s428 + $0x88] sm:$0xff]
        %v447 = vld [vmem:[%s428 + $0x90] sm:$0xff]
        %v448 = vld [vmem:[%s428 + $0x98] sm:$0xff]
        %v449 = vld [vmem:[%s428 + $0xa0] sm:$0xff]
        %v450 = vld [vmem:[%s428 + $0xa8] sm:$0xff]
        %v451 = vld [vmem:[%s428 + $0xb0] sm:$0xff]
        %v452 = vld [vmem:[%s428 + $0xb8] sm:$0xff]
        %v453 = vld [vmem:[%s428 + $0xc0] sm:$0xff]
        %v454 = vld [vmem:[%s428 + $0xc8] sm:$0xff]
        %v455 = vld [vmem:[%s428 + $0xd0] sm:$0xff]
        %v456 = vld [vmem:[%s428 + $0xd8] sm:$0xff]
        %v457 = vld [vmem:[%s428 + $0xe0] sm:$0xff]
        %v458 = vld [vmem:[%s428 + $0xe8] sm:$0xff]
        %v459 = vld [vmem:[%s428 + $0xf0] sm:$0xff]
        %v460 = vld [vmem:[%s428 + $0xf8] sm:$0xff]
        %vm493 = vcmask 1040384
        %v494 = vrot.slane %v429, 7
        %v495 = vrot.slane %v430, 7
        %v496 = vsel %vm493, %v494, %v495
        %v497 = vrot.slane %v431, 7
        %v498 = vrot.slane %v432, 7
        %v499 = vsel %vm493, %v497, %v498
        %v500 = vrot.slane %v433, 7
        %v501 = vrot.slane %v434, 7
        %v502 = vsel %vm493, %v500, %v501
        %v503 = vrot.slane %v435, 7
        %v504 = vrot.slane %v436, 7
        %v505 = vsel %vm493, %v503, %v504
        %v506 = vrot.slane %v437, 7
        %v507 = vrot.slane %v438, 7
        %v508 = vsel %vm493, %v506, %v507
        %v509 = vrot.slane %v439, 7
        %v510 = vrot.slane %v440, 7
        %v511 = vsel %vm493, %v509, %v510
        %v512 = vrot.slane %v441, 7
        %v513 = vrot.slane %v442, 7
        %v514 = vsel %vm493, %v512, %v513
        %v515 = vrot.slane %v443, 7
        %v516 = vrot.slane %v444, 7
        %v517 = vsel %vm493, %v515, %v516
        %v518 = vrot.slane %v445, 7
        %v519 = vrot.slane %v446, 7
        %v520 = vsel %vm493, %v518, %v519
        %v521 = vrot.slane %v447, 7
        %v522 = vrot.slane %v448, 7
        %v523 = vsel %vm493, %v521, %v522
        %v524 = vrot.slane %v449, 7
        %v525 = vrot.slane %v450, 7
        %v526 = vsel %vm493, %v524, %v525
        %v527 = vrot.slane %v451, 7
        %v528 = vrot.slane %v452, 7
        %v529 = vsel %vm493, %v527, %v528
        %v530 = vrot.slane %v453, 7
        %v531 = vrot.slane %v454, 7
        %v532 = vsel %vm493, %v530, %v531
        %v533 = vrot.slane %v455, 7
        %v534 = vrot.slane %v456, 7
        %v535 = vsel %vm493, %v533, %v534
        %v536 = vrot.slane %v457, 7
        %v537 = vrot.slane %v458, 7
        %v538 = vsel %vm493, %v536, %v537
        %v539 = vrot.slane %v459, 7
        %v540 = vrot.slane %v460, 7
        %v541 = vsel %vm493, %v539, %v540
        %v588 = vsel %vm493, 0.0, %v494
        %v589 = vsel %vm493, 0.0, %v497
        %v590 = vsel %vm493, 0.0, %v500
        %v591 = vsel %vm493, 0.0, %v503
        %v592 = vsel %vm493, 0.0, %v506
        %v593 = vsel %vm493, 0.0, %v509
        %v594 = vsel %vm493, 0.0, %v512
        %v595 = vsel %vm493, 0.0, %v515
        %v596 = vsel %vm493, 0.0, %v518
        %v597 = vsel %vm493, 0.0, %v521
        %v598 = vsel %vm493, 0.0, %v524
        %v599 = vsel %vm493, 0.0, %v527
        %v600 = vsel %vm493, 0.0, %v530
        %v601 = vsel %vm493, 0.0, %v533
        %v602 = vsel %vm493, 0.0, %v536
        %v603 = vsel %vm493, 0.0, %v539
        %v604 = vsel %vm493, %v495, 0.0
        %v605 = vsel %vm493, %v498, 0.0
        %v606 = vsel %vm493, %v501, 0.0
        %v607 = vsel %vm493, %v504, 0.0
        %v608 = vsel %vm493, %v507, 0.0
        %v609 = vsel %vm493, %v510, 0.0
        %v610 = vsel %vm493, %v513, 0.0
        %v611 = vsel %vm493, %v516, 0.0
        %v612 = vsel %vm493, %v519, 0.0
        %v613 = vsel %vm493, %v522, 0.0
        %v614 = vsel %vm493, %v525, 0.0
        %v615 = vsel %vm493, %v528, 0.0
        %v616 = vsel %vm493, %v531, 0.0
        %v617 = vsel %vm493, %v534, 0.0
        %v618 = vsel %vm493, %v537, 0.0
        %v619 = vsel %vm493, %v540, 0.0
        %vm648 = vcmask 1046528
        %v649 = vrot.slane %v588, 1
        %v650 = vrot.slane %v496, 1
        %v651 = vsel %vm648, %v649, %v650
        %v652 = vrot.slane %v604, 1
        %v653 = vsel %vm648, %v650, %v652
        %v654 = vrot.slane %v589, 1
        %v655 = vrot.slane %v499, 1
        %v656 = vsel %vm648, %v654, %v655
        %v657 = vrot.slane %v605, 1
        %v658 = vsel %vm648, %v655, %v657
        %v659 = vrot.slane %v590, 1
        %v660 = vrot.slane %v502, 1
        %v661 = vsel %vm648, %v659, %v660
        %v662 = vrot.slane %v606, 1
        %v663 = vsel %vm648, %v660, %v662
        %v664 = vrot.slane %v591, 1
        %v665 = vrot.slane %v505, 1
        %v666 = vsel %vm648, %v664, %v665
        %v667 = vrot.slane %v607, 1
        %v668 = vsel %vm648, %v665, %v667
        %v669 = vrot.slane %v592, 1
        %v670 = vrot.slane %v508, 1
        %v671 = vsel %vm648, %v669, %v670
        %v672 = vrot.slane %v608, 1
        %v673 = vsel %vm648, %v670, %v672
        %v674 = vrot.slane %v593, 1
        %v675 = vrot.slane %v511, 1
        %v676 = vsel %vm648, %v674, %v675
        %v677 = vrot.slane %v609, 1
        %v678 = vsel %vm648, %v675, %v677
        %v679 = vrot.slane %v594, 1
        %v680 = vrot.slane %v514, 1
        %v681 = vsel %vm648, %v679, %v680
        %v682 = vrot.slane %v610, 1
        %v683 = vsel %vm648, %v680, %v682
        %v684 = vrot.slane %v595, 1
        %v685 = vrot.slane %v517, 1
        %v686 = vsel %vm648, %v684, %v685
        %v687 = vrot.slane %v611, 1
        %v688 = vsel %vm648, %v685, %v687
        %v689 = vrot.slane %v596, 1
        %v690 = vrot.slane %v520, 1
        %v691 = vsel %vm648, %v689, %v690
        %v692 = vrot.slane %v612, 1
        %v693 = vsel %vm648, %v690, %v692
        %v694 = vrot.slane %v597, 1
        %v695 = vrot.slane %v523, 1
        %v696 = vsel %vm648, %v694, %v695
        %v697 = vrot.slane %v613, 1
        %v698 = vsel %vm648, %v695, %v697
        %v699 = vrot.slane %v598, 1
        %v700 = vrot.slane %v526, 1
        %v701 = vsel %vm648, %v699, %v700
        %v702 = vrot.slane %v614, 1
        %v703 = vsel %vm648, %v700, %v702
        %v704 = vrot.slane %v599, 1
        %v705 = vrot.slane %v529, 1
        %v706 = vsel %vm648, %v704, %v705
        %v707 = vrot.slane %v615, 1
        %v708 = vsel %vm648, %v705, %v707
        %v709 = vrot.slane %v600, 1
        %v710 = vrot.slane %v532, 1
        %v711 = vsel %vm648, %v709, %v710
        %v712 = vrot.slane %v616, 1
        %v713 = vsel %vm648, %v710, %v712
        %v714 = vrot.slane %v601, 1
        %v715 = vrot.slane %v535, 1
        %v716 = vsel %vm648, %v714, %v715
        %v717 = vrot.slane %v617, 1
        %v718 = vsel %vm648, %v715, %v717
        %719 = vrot.lane.b32.xlu0 %v651, 3
        %v720 = vpop.permute.xlu0 %719
        %721 = vrot.lane.b32.xlu0 %v653, 3
        %v722 = vpop.permute.xlu0 %721
        %723 = vrot.lane.b32.xlu0 %v656, 3
        %v724 = vpop.permute.xlu0 %723
        %725 = vrot.lane.b32.xlu0 %v658, 3
        %v726 = vpop.permute.xlu0 %725
        %727 = vrot.lane.b32.xlu0 %v661, 3
        %v728 = vpop.permute.xlu0 %727
        %729 = vrot.lane.b32.xlu0 %v663, 3
        %v730 = vpop.permute.xlu0 %729
        %731 = vrot.lane.b32.xlu0 %v666, 3
        %v732 = vpop.permute.xlu0 %731
        %733 = vrot.lane.b32.xlu0 %v668, 3
        %v734 = vpop.permute.xlu0 %733
        %735 = vrot.lane.b32.xlu0 %v671, 3
        %v736 = vpop.permute.xlu0 %735
        %737 = vrot.lane.b32.xlu0 %v673, 3
        %v738 = vpop.permute.xlu0 %737
        %739 = vrot.lane.b32.xlu0 %v676, 3
        %v740 = vpop.permute.xlu0 %739
        %741 = vrot.lane.b32.xlu0 %v678, 3
        %v742 = vpop.permute.xlu0 %741
        %743 = vrot.lane.b32.xlu0 %v681, 3
        %v744 = vpop.permute.xlu0 %743
        %745 = vrot.lane.b32.xlu0 %v683, 3
        %v746 = vpop.permute.xlu0 %745
        %747 = vrot.lane.b32.xlu0 %v686, 3
        %v748 = vpop.permute.xlu0 %747
        %749 = vrot.lane.b32.xlu0 %v688, 3
        %v750 = vpop.permute.xlu0 %749
        %751 = vrot.lane.b32.xlu0 %v691, 3
        %v752 = vpop.permute.xlu0 %751
        %753 = vrot.lane.b32.xlu0 %v693, 3
        %v754 = vpop.permute.xlu0 %753
        %755 = vrot.lane.b32.xlu0 %v696, 3
        %v756 = vpop.permute.xlu0 %755
        %757 = vrot.lane.b32.xlu0 %v698, 3
        %v758 = vpop.permute.xlu0 %757
        %759 = vrot.lane.b32.xlu0 %v701, 3
        %v760 = vpop.permute.xlu0 %759
        %761 = vrot.lane.b32.xlu0 %v703, 3
        %v762 = vpop.permute.xlu0 %761
        %763 = vrot.lane.b32.xlu0 %v706, 3
        %v764 = vpop.permute.xlu0 %763
        %765 = vrot.lane.b32.xlu0 %v708, 3
        %v766 = vpop.permute.xlu0 %765
        %767 = vrot.lane.b32.xlu0 %v711, 3
        %v768 = vpop.permute.xlu0 %767
        %769 = vrot.lane.b32.xlu0 %v713, 3
        %v770 = vpop.permute.xlu0 %769
        %771 = vrot.lane.b32.xlu0 %v716, 3
        %v772 = vpop.permute.xlu0 %771
        %773 = vrot.lane.b32.xlu0 %v718, 3
        %v774 = vpop.permute.xlu0 %773
        %vm803 = vcmask 1045504
        %v804 = vrot.slane %v588, 2
        %v805 = vrot.slane %v496, 2
        %v806 = vsel %vm803, %v804, %v805
        %v807 = vrot.slane %v604, 2
        %v808 = vsel %vm803, %v805, %v807
        %v809 = vrot.slane %v589, 2
        %v810 = vrot.slane %v499, 2
        %v811 = vsel %vm803, %v809, %v810
        %v812 = vrot.slane %v605, 2
        %v813 = vsel %vm803, %v810, %v812
        %v814 = vrot.slane %v590, 2
        %v815 = vrot.slane %v502, 2
        %v816 = vsel %vm803, %v814, %v815
        %v817 = vrot.slane %v606, 2
        %v818 = vsel %vm803, %v815, %v817
        %v819 = vrot.slane %v591, 2
        %v820 = vrot.slane %v505, 2
        %v821 = vsel %vm803, %v819, %v820
        %v822 = vrot.slane %v607, 2
        %v823 = vsel %vm803, %v820, %v822
        %v824 = vrot.slane %v592, 2
        %v825 = vrot.slane %v508, 2
        %v826 = vsel %vm803, %v824, %v825
        %v827 = vrot.slane %v608, 2
        %v828 = vsel %vm803, %v825, %v827
        %v829 = vrot.slane %v593, 2
        %v830 = vrot.slane %v511, 2
        %v831 = vsel %vm803, %v829, %v830
        %v832 = vrot.slane %v609, 2
        %v833 = vsel %vm803, %v830, %v832
        %v834 = vrot.slane %v594, 2
        %v835 = vrot.slane %v514, 2
        %v836 = vsel %vm803, %v834, %v835
        %v837 = vrot.slane %v610, 2
        %v838 = vsel %vm803, %v835, %v837
        %v839 = vrot.slane %v595, 2
        %v840 = vrot.slane %v517, 2
        %v841 = vsel %vm803, %v839, %v840
        %v842 = vrot.slane %v611, 2
        %v843 = vsel %vm803, %v840, %v842
        %v844 = vrot.slane %v596, 2
        %v845 = vrot.slane %v520, 2
        %v846 = vsel %vm803, %v844, %v845
        %v847 = vrot.slane %v612, 2
        %v848 = vsel %vm803, %v845, %v847
        %v849 = vrot.slane %v597, 2
        %v850 = vrot.slane %v523, 2
        %v851 = vsel %vm803, %v849, %v850
        %v852 = vrot.slane %v613, 2
        %v853 = vsel %vm803, %v850, %v852
        %v854 = vrot.slane %v598, 2
        %v855 = vrot.slane %v526, 2
        %v856 = vsel %vm803, %v854, %v855
        %v857 = vrot.slane %v614, 2
        %v858 = vsel %vm803, %v855, %v857
        %v859 = vrot.slane %v599, 2
        %v860 = vrot.slane %v529, 2
        %v861 = vsel %vm803, %v859, %v860
        %v862 = vrot.slane %v615, 2
        %v863 = vsel %vm803, %v860, %v862
        %v864 = vrot.slane %v600, 2
        %v865 = vrot.slane %v532, 2
        %v866 = vsel %vm803, %v864, %v865
        %v867 = vrot.slane %v616, 2
        %v868 = vsel %vm803, %v865, %v867
        %v869 = vrot.slane %v601, 2
        %v870 = vrot.slane %v535, 2
        %v871 = vsel %vm803, %v869, %v870
        %v872 = vrot.slane %v617, 2
        %v873 = vsel %vm803, %v870, %v872
        %874 = vrot.lane.b32.xlu0 %v806, 6
        %v875 = vpop.permute.xlu0 %874
        %876 = vrot.lane.b32.xlu0 %v808, 6
        %v877 = vpop.permute.xlu0 %876
        %878 = vrot.lane.b32.xlu0 %v811, 6
        %v879 = vpop.permute.xlu0 %878
        %880 = vrot.lane.b32.xlu0 %v813, 6
        %v881 = vpop.permute.xlu0 %880
        %882 = vrot.lane.b32.xlu0 %v816, 6
        %v883 = vpop.permute.xlu0 %882
        %884 = vrot.lane.b32.xlu0 %v818, 6
        %v885 = vpop.permute.xlu0 %884
        %886 = vrot.lane.b32.xlu0 %v821, 6
        %v887 = vpop.permute.xlu0 %886
        %888 = vrot.lane.b32.xlu0 %v823, 6
        %v889 = vpop.permute.xlu0 %888
        %890 = vrot.lane.b32.xlu0 %v826, 6
        %v891 = vpop.permute.xlu0 %890
        %892 = vrot.lane.b32.xlu0 %v828, 6
        %v893 = vpop.permute.xlu0 %892
        %894 = vrot.lane.b32.xlu0 %v831, 6
        %v895 = vpop.permute.xlu0 %894
        %896 = vrot.lane.b32.xlu0 %v833, 6
        %v897 = vpop.permute.xlu0 %896
        %898 = vrot.lane.b32.xlu0 %v836, 6
        %v899 = vpop.permute.xlu0 %898
        %900 = vrot.lane.b32.xlu0 %v838, 6
        %v901 = vpop.permute.xlu0 %900
        %902 = vrot.lane.b32.xlu0 %v841, 6
        %v903 = vpop.permute.xlu0 %902
        %904 = vrot.lane.b32.xlu0 %v843, 6
        %v905 = vpop.permute.xlu0 %904
        %906 = vrot.lane.b32.xlu0 %v846, 6
        %v907 = vpop.permute.xlu0 %906
        %908 = vrot.lane.b32.xlu0 %v848, 6
        %v909 = vpop.permute.xlu0 %908
        %910 = vrot.lane.b32.xlu0 %v851, 6
        %v911 = vpop.permute.xlu0 %910
        %912 = vrot.lane.b32.xlu0 %v853, 6
        %v913 = vpop.permute.xlu0 %912
        %914 = vrot.lane.b32.xlu0 %v856, 6
        %v915 = vpop.permute.xlu0 %914
        %916 = vrot.lane.b32.xlu0 %v858, 6
        %v917 = vpop.permute.xlu0 %916
        %918 = vrot.lane.b32.xlu0 %v861, 6
        %v919 = vpop.permute.xlu0 %918
        %920 = vrot.lane.b32.xlu0 %v863, 6
        %v921 = vpop.permute.xlu0 %920
        %922 = vrot.lane.b32.xlu0 %v866, 6
        %v923 = vpop.permute.xlu0 %922
        %924 = vrot.lane.b32.xlu0 %v868, 6
        %v925 = vpop.permute.xlu0 %924
        %926 = vrot.lane.b32.xlu0 %v871, 6
        %v927 = vpop.permute.xlu0 %926
        %928 = vrot.lane.b32.xlu0 %v873, 6
        %v929 = vpop.permute.xlu0 %928
        %959 = vrot.lane.b32.xlu0 %v589, 9
        %v960 = vpop.permute.xlu0 %959
        %961 = vrot.lane.b32.xlu0 %v499, 9
        %v962 = vpop.permute.xlu0 %961
        %963 = vrot.lane.b32.xlu0 %v590, 9
        %v964 = vpop.permute.xlu0 %963
        %965 = vrot.lane.b32.xlu0 %v502, 9
        %v966 = vpop.permute.xlu0 %965
        %967 = vrot.lane.b32.xlu0 %v591, 9
        %v968 = vpop.permute.xlu0 %967
        %969 = vrot.lane.b32.xlu0 %v505, 9
        %v970 = vpop.permute.xlu0 %969
        %971 = vrot.lane.b32.xlu0 %v592, 9
        %v972 = vpop.permute.xlu0 %971
        %973 = vrot.lane.b32.xlu0 %v508, 9
        %v974 = vpop.permute.xlu0 %973
        %975 = vrot.lane.b32.xlu0 %v593, 9
        %v976 = vpop.permute.xlu0 %975
        %977 = vrot.lane.b32.xlu0 %v511, 9
        %v978 = vpop.permute.xlu0 %977
        %979 = vrot.lane.b32.xlu0 %v594, 9
        %v980 = vpop.permute.xlu0 %979
        %981 = vrot.lane.b32.xlu0 %v514, 9
        %v982 = vpop.permute.xlu0 %981
        %983 = vrot.lane.b32.xlu0 %v595, 9
        %v984 = vpop.permute.xlu0 %983
        %985 = vrot.lane.b32.xlu0 %v517, 9
        %v986 = vpop.permute.xlu0 %985
        %987 = vrot.lane.b32.xlu0 %v596, 9
        %v988 = vpop.permute.xlu0 %987
        %989 = vrot.lane.b32.xlu0 %v520, 9
        %v990 = vpop.permute.xlu0 %989
        %991 = vrot.lane.b32.xlu0 %v597, 9
        %v992 = vpop.permute.xlu0 %991
        %993 = vrot.lane.b32.xlu0 %v523, 9
        %v994 = vpop.permute.xlu0 %993
        %995 = vrot.lane.b32.xlu0 %v598, 9
        %v996 = vpop.permute.xlu0 %995
        %997 = vrot.lane.b32.xlu0 %v526, 9
        %v998 = vpop.permute.xlu0 %997
        %999 = vrot.lane.b32.xlu0 %v599, 9
        %v1000 = vpop.permute.xlu0 %999
        %1001 = vrot.lane.b32.xlu0 %v529, 9
        %v1002 = vpop.permute.xlu0 %1001
        %1003 = vrot.lane.b32.xlu0 %v600, 9
        %v1004 = vpop.permute.xlu0 %1003
        %1005 = vrot.lane.b32.xlu0 %v532, 9
        %v1006 = vpop.permute.xlu0 %1005
        %1007 = vrot.lane.b32.xlu0 %v601, 9
        %v1008 = vpop.permute.xlu0 %1007
        %1009 = vrot.lane.b32.xlu0 %v535, 9
        %v1010 = vpop.permute.xlu0 %1009
        %1011 = vrot.lane.b32.xlu0 %v602, 9
        %v1012 = vpop.permute.xlu0 %1011
        %1013 = vrot.lane.b32.xlu0 %v538, 9
        %v1014 = vpop.permute.xlu0 %1013
        %v1044 = vrot.slane %v602, 1
        %v1045 = vrot.slane %v538, 1
        %v1046 = vsel %vm648, %v1044, %v1045
        %v1047 = vrot.slane %v618, 1
        %v1048 = vsel %vm648, %v1045, %v1047
        %1049 = vrot.lane.b32.xlu0 %v656, 12
        %v1050 = vpop.permute.xlu0 %1049
        %1051 = vrot.lane.b32.xlu0 %v658, 12
        %v1052 = vpop.permute.xlu0 %1051
        %1053 = vrot.lane.b32.xlu0 %v661, 12
        %v1054 = vpop.permute.xlu0 %1053
        %1055 = vrot.lane.b32.xlu0 %v663, 12
        %v1056 = vpop.permute.xlu0 %1055
        %1057 = vrot.lane.b32.xlu0 %v666, 12
        %v1058 = vpop.permute.xlu0 %1057
        %1059 = vrot.lane.b32.xlu0 %v668, 12
        %v1060 = vpop.permute.xlu0 %1059
        %1061 = vrot.lane.b32.xlu0 %v671, 12
        %v1062 = vpop.permute.xlu0 %1061
        %1063 = vrot.lane.b32.xlu0 %v673, 12
        %v1064 = vpop.permute.xlu0 %1063
        %1065 = vrot.lane.b32.xlu0 %v676, 12
        %v1066 = vpop.permute.xlu0 %1065
        %1067 = vrot.lane.b32.xlu0 %v678, 12
        %v1068 = vpop.permute.xlu0 %1067
        %1069 = vrot.lane.b32.xlu0 %v681, 12
        %v1070 = vpop.permute.xlu0 %1069
        %1071 = vrot.lane.b32.xlu0 %v683, 12
        %v1072 = vpop.permute.xlu0 %1071
        %1073 = vrot.lane.b32.xlu0 %v686, 12
        %v1074 = vpop.permute.xlu0 %1073
        %1075 = vrot.lane.b32.xlu0 %v688, 12
        %v1076 = vpop.permute.xlu0 %1075
        %1077 = vrot.lane.b32.xlu0 %v691, 12
        %v1078 = vpop.permute.xlu0 %1077
        %1079 = vrot.lane.b32.xlu0 %v693, 12
        %v1080 = vpop.permute.xlu0 %1079
        %1081 = vrot.lane.b32.xlu0 %v696, 12
        %v1082 = vpop.permute.xlu0 %1081
        %1083 = vrot.lane.b32.xlu0 %v698, 12
        %v1084 = vpop.permute.xlu0 %1083
        %1085 = vrot.lane.b32.xlu0 %v701, 12
        %v1086 = vpop.permute.xlu0 %1085
        %1087 = vrot.lane.b32.xlu0 %v703, 12
        %v1088 = vpop.permute.xlu0 %1087
        %1089 = vrot.lane.b32.xlu0 %v706, 12
        %v1090 = vpop.permute.xlu0 %1089
        %1091 = vrot.lane.b32.xlu0 %v708, 12
        %v1092 = vpop.permute.xlu0 %1091
        %1093 = vrot.lane.b32.xlu0 %v711, 12
        %v1094 = vpop.permute.xlu0 %1093
        %1095 = vrot.lane.b32.xlu0 %v713, 12
        %v1096 = vpop.permute.xlu0 %1095
        %1097 = vrot.lane.b32.xlu0 %v716, 12
        %v1098 = vpop.permute.xlu0 %1097
        %1099 = vrot.lane.b32.xlu0 %v718, 12
        %v1100 = vpop.permute.xlu0 %1099
        %1101 = vrot.lane.b32.xlu0 %v1046, 12
        %v1102 = vpop.permute.xlu0 %1101
        %1103 = vrot.lane.b32.xlu0 %v1048, 12
        %v1104 = vpop.permute.xlu0 %1103
        %v1133 = vrot.slane %v602, 2
        %v1134 = vrot.slane %v538, 2
        %v1135 = vsel %vm803, %v1133, %v1134
        %v1136 = vrot.slane %v618, 2
        %v1137 = vsel %vm803, %v1134, %v1136
        %1138 = vrot.lane.b32.xlu0 %v811, 15
        %v1139 = vpop.permute.xlu0 %1138
        %1140 = vrot.lane.b32.xlu0 %v813, 15
        %v1141 = vpop.permute.xlu0 %1140
        %1142 = vrot.lane.b32.xlu0 %v816, 15
        %v1143 = vpop.permute.xlu0 %1142
        %1144 = vrot.lane.b32.xlu0 %v818, 15
        %v1145 = vpop.permute.xlu0 %1144
        %1146 = vrot.lane.b32.xlu0 %v821, 15
        %v1147 = vpop.permute.xlu0 %1146
        %1148 = vrot.lane.b32.xlu0 %v823, 15
        %v1149 = vpop.permute.xlu0 %1148
        %1150 = vrot.lane.b32.xlu0 %v826, 15
        %v1151 = vpop.permute.xlu0 %1150
        %1152 = vrot.lane.b32.xlu0 %v828, 15
        %v1153 = vpop.permute.xlu0 %1152
        %1154 = vrot.lane.b32.xlu0 %v831, 15
        %v1155 = vpop.permute.xlu0 %1154
        %1156 = vrot.lane.b32.xlu0 %v833, 15
        %v1157 = vpop.permute.xlu0 %1156
        %1158 = vrot.lane.b32.xlu0 %v836, 15
        %v1159 = vpop.permute.xlu0 %1158
        %1160 = vrot.lane.b32.xlu0 %v838, 15
        %v1161 = vpop.permute.xlu0 %1160
        %1162 = vrot.lane.b32.xlu0 %v841, 15
        %v1163 = vpop.permute.xlu0 %1162
        %1164 = vrot.lane.b32.xlu0 %v843, 15
        %v1165 = vpop.permute.xlu0 %1164
        %1166 = vrot.lane.b32.xlu0 %v846, 15
        %v1167 = vpop.permute.xlu0 %1166
        %1168 = vrot.lane.b32.xlu0 %v848, 15
        %v1169 = vpop.permute.xlu0 %1168
        %1170 = vrot.lane.b32.xlu0 %v851, 15
        %v1171 = vpop.permute.xlu0 %1170
        %1172 = vrot.lane.b32.xlu0 %v853, 15
        %v1173 = vpop.permute.xlu0 %1172
        %1174 = vrot.lane.b32.xlu0 %v856, 15
        %v1175 = vpop.permute.xlu0 %1174
        %1176 = vrot.lane.b32.xlu0 %v858, 15
        %v1177 = vpop.permute.xlu0 %1176
        %1178 = vrot.lane.b32.xlu0 %v861, 15
        %v1179 = vpop.permute.xlu0 %1178
        %1180 = vrot.lane.b32.xlu0 %v863, 15
        %v1181 = vpop.permute.xlu0 %1180
        %1182 = vrot.lane.b32.xlu0 %v866, 15
        %v1183 = vpop.permute.xlu0 %1182
        %1184 = vrot.lane.b32.xlu0 %v868, 15
        %v1185 = vpop.permute.xlu0 %1184
        %1186 = vrot.lane.b32.xlu0 %v871, 15
        %v1187 = vpop.permute.xlu0 %1186
        %1188 = vrot.lane.b32.xlu0 %v873, 15
        %v1189 = vpop.permute.xlu0 %1188
        %1190 = vrot.lane.b32.xlu0 %v1135, 15
        %v1191 = vpop.permute.xlu0 %1190
        %1192 = vrot.lane.b32.xlu0 %v1137, 15
        %v1193 = vpop.permute.xlu0 %1192
        %1223 = vrot.lane.b32.xlu0 %v590, 18
        %v1224 = vpop.permute.xlu0 %1223
        %1225 = vrot.lane.b32.xlu0 %v502, 18
        %v1226 = vpop.permute.xlu0 %1225
        %1227 = vrot.lane.b32.xlu0 %v591, 18
        %v1228 = vpop.permute.xlu0 %1227
        %1229 = vrot.lane.b32.xlu0 %v505, 18
        %v1230 = vpop.permute.xlu0 %1229
        %1231 = vrot.lane.b32.xlu0 %v592, 18
        %v1232 = vpop.permute.xlu0 %1231
        %1233 = vrot.lane.b32.xlu0 %v508, 18
        %v1234 = vpop.permute.xlu0 %1233
        %1235 = vrot.lane.b32.xlu0 %v593, 18
        %v1236 = vpop.permute.xlu0 %1235
        %1237 = vrot.lane.b32.xlu0 %v511, 18
        %v1238 = vpop.permute.xlu0 %1237
        %1239 = vrot.lane.b32.xlu0 %v594, 18
        %v1240 = vpop.permute.xlu0 %1239
        %1241 = vrot.lane.b32.xlu0 %v514, 18
        %v1242 = vpop.permute.xlu0 %1241
        %1243 = vrot.lane.b32.xlu0 %v595, 18
        %v1244 = vpop.permute.xlu0 %1243
        %1245 = vrot.lane.b32.xlu0 %v517, 18
        %v1246 = vpop.permute.xlu0 %1245
        %1247 = vrot.lane.b32.xlu0 %v596, 18
        %v1248 = vpop.permute.xlu0 %1247
        %1249 = vrot.lane.b32.xlu0 %v520, 18
        %v1250 = vpop.permute.xlu0 %1249
        %1251 = vrot.lane.b32.xlu0 %v597, 18
        %v1252 = vpop.permute.xlu0 %1251
        %1253 = vrot.lane.b32.xlu0 %v523, 18
        %v1254 = vpop.permute.xlu0 %1253
        %1255 = vrot.lane.b32.xlu0 %v598, 18
        %v1256 = vpop.permute.xlu0 %1255
        %1257 = vrot.lane.b32.xlu0 %v526, 18
        %v1258 = vpop.permute.xlu0 %1257
        %1259 = vrot.lane.b32.xlu0 %v599, 18
        %v1260 = vpop.permute.xlu0 %1259
        %1261 = vrot.lane.b32.xlu0 %v529, 18
        %v1262 = vpop.permute.xlu0 %1261
        %1263 = vrot.lane.b32.xlu0 %v600, 18
        %v1264 = vpop.permute.xlu0 %1263
        %1265 = vrot.lane.b32.xlu0 %v532, 18
        %v1266 = vpop.permute.xlu0 %1265
        %1267 = vrot.lane.b32.xlu0 %v601, 18
        %v1268 = vpop.permute.xlu0 %1267
        %1269 = vrot.lane.b32.xlu0 %v535, 18
        %v1270 = vpop.permute.xlu0 %1269
        %1271 = vrot.lane.b32.xlu0 %v602, 18
        %v1272 = vpop.permute.xlu0 %1271
        %1273 = vrot.lane.b32.xlu0 %v538, 18
        %v1274 = vpop.permute.xlu0 %1273
        %1275 = vrot.lane.b32.xlu0 %v603, 18
        %v1276 = vpop.permute.xlu0 %1275
        %1277 = vrot.lane.b32.xlu0 %v541, 18
        %v1278 = vpop.permute.xlu0 %1277
        %v1308 = vrot.slane %v603, 1
        %v1309 = vrot.slane %v541, 1
        %v1310 = vsel %vm648, %v1308, %v1309
        %v1311 = vrot.slane %v619, 1
        %v1312 = vsel %vm648, %v1309, %v1311
        %1313 = vrot.lane.b32.xlu0 %v661, 21
        %v1314 = vpop.permute.xlu0 %1313
        %1315 = vrot.lane.b32.xlu0 %v663, 21
        %v1316 = vpop.permute.xlu0 %1315
        %1317 = vrot.lane.b32.xlu0 %v666, 21
        %v1318 = vpop.permute.xlu0 %1317
        %1319 = vrot.lane.b32.xlu0 %v668, 21
        %v1320 = vpop.permute.xlu0 %1319
        %1321 = vrot.lane.b32.xlu0 %v671, 21
        %v1322 = vpop.permute.xlu0 %1321
        %1323 = vrot.lane.b32.xlu0 %v673, 21
        %v1324 = vpop.permute.xlu0 %1323
        %1325 = vrot.lane.b32.xlu0 %v676, 21
        %v1326 = vpop.permute.xlu0 %1325
        %1327 = vrot.lane.b32.xlu0 %v678, 21
        %v1328 = vpop.permute.xlu0 %1327
        %1329 = vrot.lane.b32.xlu0 %v681, 21
        %v1330 = vpop.permute.xlu0 %1329
        %1331 = vrot.lane.b32.xlu0 %v683, 21
        %v1332 = vpop.permute.xlu0 %1331
        %1333 = vrot.lane.b32.xlu0 %v686, 21
        %v1334 = vpop.permute.xlu0 %1333
        %1335 = vrot.lane.b32.xlu0 %v688, 21
        %v1336 = vpop.permute.xlu0 %1335
        %1337 = vrot.lane.b32.xlu0 %v691, 21
        %v1338 = vpop.permute.xlu0 %1337
        %1339 = vrot.lane.b32.xlu0 %v693, 21
        %v1340 = vpop.permute.xlu0 %1339
        %1341 = vrot.lane.b32.xlu0 %v696, 21
        %v1342 = vpop.permute.xlu0 %1341
        %1343 = vrot.lane.b32.xlu0 %v698, 21
        %v1344 = vpop.permute.xlu0 %1343
        %1345 = vrot.lane.b32.xlu0 %v701, 21
        %v1346 = vpop.permute.xlu0 %1345
        %1347 = vrot.lane.b32.xlu0 %v703, 21
        %v1348 = vpop.permute.xlu0 %1347
        %1349 = vrot.lane.b32.xlu0 %v706, 21
        %v1350 = vpop.permute.xlu0 %1349
        %1351 = vrot.lane.b32.xlu0 %v708, 21
        %v1352 = vpop.permute.xlu0 %1351
        %1353 = vrot.lane.b32.xlu0 %v711, 21
        %v1354 = vpop.permute.xlu0 %1353
        %1355 = vrot.lane.b32.xlu0 %v713, 21
        %v1356 = vpop.permute.xlu0 %1355
        %1357 = vrot.lane.b32.xlu0 %v716, 21
        %v1358 = vpop.permute.xlu0 %1357
        %1359 = vrot.lane.b32.xlu0 %v718, 21
        %v1360 = vpop.permute.xlu0 %1359
        %1361 = vrot.lane.b32.xlu0 %v1046, 21
        %v1362 = vpop.permute.xlu0 %1361
        %1363 = vrot.lane.b32.xlu0 %v1048, 21
        %v1364 = vpop.permute.xlu0 %1363
        %1365 = vrot.lane.b32.xlu0 %v1310, 21
        %v1366 = vpop.permute.xlu0 %1365
        %1367 = vrot.lane.b32.xlu0 %v1312, 21
        %v1368 = vpop.permute.xlu0 %1367
        %v1397 = vrot.slane %v603, 2
        %v1398 = vrot.slane %v541, 2
        %v1399 = vsel %vm803, %v1397, %v1398
        %v1400 = vrot.slane %v619, 2
        %v1401 = vsel %vm803, %v1398, %v1400
        %1402 = vrot.lane.b32.xlu0 %v816, 24
        %v1403 = vpop.permute.xlu0 %1402
        %1404 = vrot.lane.b32.xlu0 %v818, 24
        %v1405 = vpop.permute.xlu0 %1404
        %1406 = vrot.lane.b32.xlu0 %v821, 24
        %v1407 = vpop.permute.xlu0 %1406
        %1408 = vrot.lane.b32.xlu0 %v823, 24
        %v1409 = vpop.permute.xlu0 %1408
        %1410 = vrot.lane.b32.xlu0 %v826, 24
        %v1411 = vpop.permute.xlu0 %1410
        %1412 = vrot.lane.b32.xlu0 %v828, 24
        %v1413 = vpop.permute.xlu0 %1412
        %1414 = vrot.lane.b32.xlu0 %v831, 24
        %v1415 = vpop.permute.xlu0 %1414
        %1416 = vrot.lane.b32.xlu0 %v833, 24
        %v1417 = vpop.permute.xlu0 %1416
        %1418 = vrot.lane.b32.xlu0 %v836, 24
        %v1419 = vpop.permute.xlu0 %1418
        %1420 = vrot.lane.b32.xlu0 %v838, 24
        %v1421 = vpop.permute.xlu0 %1420
        %1422 = vrot.lane.b32.xlu0 %v841, 24
        %v1423 = vpop.permute.xlu0 %1422
        %1424 = vrot.lane.b32.xlu0 %v843, 24
        %v1425 = vpop.permute.xlu0 %1424
        %1426 = vrot.lane.b32.xlu0 %v846, 24
        %v1427 = vpop.permute.xlu0 %1426
        %1428 = vrot.lane.b32.xlu0 %v848, 24
        %v1429 = vpop.permute.xlu0 %1428
        %1430 = vrot.lane.b32.xlu0 %v851, 24
        %v1431 = vpop.permute.xlu0 %1430
        %1432 = vrot.lane.b32.xlu0 %v853, 24
        %v1433 = vpop.permute.xlu0 %1432
        %1434 = vrot.lane.b32.xlu0 %v856, 24
        %v1435 = vpop.permute.xlu0 %1434
        %1436 = vrot.lane.b32.xlu0 %v858, 24
        %v1437 = vpop.permute.xlu0 %1436
        %1438 = vrot.lane.b32.xlu0 %v861, 24
        %v1439 = vpop.permute.xlu0 %1438
        %1440 = vrot.lane.b32.xlu0 %v863, 24
        %v1441 = vpop.permute.xlu0 %1440
        %1442 = vrot.lane.b32.xlu0 %v866, 24
        %v1443 = vpop.permute.xlu0 %1442
        %1444 = vrot.lane.b32.xlu0 %v868, 24
        %v1445 = vpop.permute.xlu0 %1444
        %1446 = vrot.lane.b32.xlu0 %v871, 24
        %v1447 = vpop.permute.xlu0 %1446
        %1448 = vrot.lane.b32.xlu0 %v873, 24
        %v1449 = vpop.permute.xlu0 %1448
        %1450 = vrot.lane.b32.xlu0 %v1135, 24
        %v1451 = vpop.permute.xlu0 %1450
        %1452 = vrot.lane.b32.xlu0 %v1137, 24
        %v1453 = vpop.permute.xlu0 %1452
        %1454 = vrot.lane.b32.xlu0 %v1399, 24
        %v1455 = vpop.permute.xlu0 %1454
        %1456 = vrot.lane.b32.xlu0 %v1401, 24
        %v1457 = vpop.permute.xlu0 %1456
        %vm1486 = vcmask 23552
        %v1487 = vsel %vm1486, %v588, %v720
        %v1488 = vsel %vm1486, %v496, %v722
        %v1489 = vsel %vm1486, %v589, %v724
        %v1490 = vsel %vm1486, %v499, %v726
        %v1491 = vsel %vm1486, %v590, %v728
        %v1492 = vsel %vm1486, %v502, %v730
        %v1493 = vsel %vm1486, %v591, %v732
        %v1494 = vsel %vm1486, %v505, %v734
        %v1495 = vsel %vm1486, %v592, %v736
        %v1496 = vsel %vm1486, %v508, %v738
        %v1497 = vsel %vm1486, %v593, %v740
        %v1498 = vsel %vm1486, %v511, %v742
        %v1499 = vsel %vm1486, %v594, %v744
        %v1500 = vsel %vm1486, %v514, %v746
        %v1501 = vsel %vm1486, %v595, %v748
        %v1502 = vsel %vm1486, %v517, %v750
        %v1503 = vsel %vm1486, %v596, %v752
        %v1504 = vsel %vm1486, %v520, %v754
        %v1505 = vsel %vm1486, %v597, %v756
        %v1506 = vsel %vm1486, %v523, %v758
        %v1507 = vsel %vm1486, %v598, %v760
        %v1508 = vsel %vm1486, %v526, %v762
        %v1509 = vsel %vm1486, %v599, %v764
        %v1510 = vsel %vm1486, %v529, %v766
        %v1511 = vsel %vm1486, %v600, %v768
        %v1512 = vsel %vm1486, %v532, %v770
        %v1513 = vsel %vm1486, %v601, %v772
        %v1514 = vsel %vm1486, %v535, %v774
        %vm1515 = vcmask 48128
        %v1516 = vsel %vm1515, %v1487, %v875
        %v1517 = vsel %vm1515, %v1488, %v877
        %v1518 = vsel %vm1515, %v1489, %v879
        %v1519 = vsel %vm1515, %v1490, %v881
        %v1520 = vsel %vm1515, %v1491, %v883
        %v1521 = vsel %vm1515, %v1492, %v885
        %v1522 = vsel %vm1515, %v1493, %v887
        %v1523 = vsel %vm1515, %v1494, %v889
        %v1524 = vsel %vm1515, %v1495, %v891
        %v1525 = vsel %vm1515, %v1496, %v893
        %v1526 = vsel %vm1515, %v1497, %v895
        %v1527 = vsel %vm1515, %v1498, %v897
        %v1528 = vsel %vm1515, %v1499, %v899
        %v1529 = vsel %vm1515, %v1500, %v901
        %v1530 = vsel %vm1515, %v1501, %v903
        %v1531 = vsel %vm1515, %v1502, %v905
        %v1532 = vsel %vm1515, %v1503, %v907
        %v1533 = vsel %vm1515, %v1504, %v909
        %v1534 = vsel %vm1515, %v1505, %v911
        %v1535 = vsel %vm1515, %v1506, %v913
        %v1536 = vsel %vm1515, %v1507, %v915
        %v1537 = vsel %vm1515, %v1508, %v917
        %v1538 = vsel %vm1515, %v1509, %v919
        %v1539 = vsel %vm1515, %v1510, %v921
        %v1540 = vsel %vm1515, %v1511, %v923
        %v1541 = vsel %vm1515, %v1512, %v925
        %v1542 = vsel %vm1515, %v1513, %v927
        %v1543 = vsel %vm1515, %v1514, %v929
        %vm1544 = vcmask 72704
        %v1545 = vsel %vm1544, %v1516, %v960
        %v1546 = vsel %vm1544, %v1517, %v962
        %v1547 = vsel %vm1544, %v1518, %v964
        %v1548 = vsel %vm1544, %v1519, %v966
        %v1549 = vsel %vm1544, %v1520, %v968
        %v1550 = vsel %vm1544, %v1521, %v970
        %v1551 = vsel %vm1544, %v1522, %v972
        %v1552 = vsel %vm1544, %v1523, %v974
        %v1553 = vsel %vm1544, %v1524, %v976
        %v1554 = vsel %vm1544, %v1525, %v978
        %v1555 = vsel %vm1544, %v1526, %v980
        %v1556 = vsel %vm1544, %v1527, %v982
        %v1557 = vsel %vm1544, %v1528, %v984
        %v1558 = vsel %vm1544, %v1529, %v986
        %v1559 = vsel %vm1544, %v1530, %v988
        %v1560 = vsel %vm1544, %v1531, %v990
        %v1561 = vsel %vm1544, %v1532, %v992
        %v1562 = vsel %vm1544, %v1533, %v994
        %v1563 = vsel %vm1544, %v1534, %v996
        %v1564 = vsel %vm1544, %v1535, %v998
        %v1565 = vsel %vm1544, %v1536, %v1000
        %v1566 = vsel %vm1544, %v1537, %v1002
        %v1567 = vsel %vm1544, %v1538, %v1004
        %v1568 = vsel %vm1544, %v1539, %v1006
        %v1569 = vsel %vm1544, %v1540, %v1008
        %v1570 = vsel %vm1544, %v1541, %v1010
        %v1571 = vsel %vm1544, %v1542, %v1012
        %v1572 = vsel %vm1544, %v1543, %v1014
        %vm1573 = vcmask 97280
        %v1574 = vsel %vm1573, %v1545, %v1050
        %v1575 = vsel %vm1573, %v1546, %v1052
        %v1576 = vsel %vm1573, %v1547, %v1054
        %v1577 = vsel %vm1573, %v1548, %v1056
        %v1578 = vsel %vm1573, %v1549, %v1058
        %v1579 = vsel %vm1573, %v1550, %v1060
        %v1580 = vsel %vm1573, %v1551, %v1062
        %v1581 = vsel %vm1573, %v1552, %v1064
        %v1582 = vsel %vm1573, %v1553, %v1066
        %v1583 = vsel %vm1573, %v1554, %v1068
        %v1584 = vsel %vm1573, %v1555, %v1070
        %v1585 = vsel %vm1573, %v1556, %v1072
        %v1586 = vsel %vm1573, %v1557, %v1074
        %v1587 = vsel %vm1573, %v1558, %v1076
        %v1588 = vsel %vm1573, %v1559, %v1078
        %v1589 = vsel %vm1573, %v1560, %v1080
        %v1590 = vsel %vm1573, %v1561, %v1082
        %v1591 = vsel %vm1573, %v1562, %v1084
        %v1592 = vsel %vm1573, %v1563, %v1086
        %v1593 = vsel %vm1573, %v1564, %v1088
        %v1594 = vsel %vm1573, %v1565, %v1090
        %v1595 = vsel %vm1573, %v1566, %v1092
        %v1596 = vsel %vm1573, %v1567, %v1094
        %v1597 = vsel %vm1573, %v1568, %v1096
        %v1598 = vsel %vm1573, %v1569, %v1098
        %v1599 = vsel %vm1573, %v1570, %v1100
        %v1600 = vsel %vm1573, %v1571, %v1102
        %v1601 = vsel %vm1573, %v1572, %v1104
        %vm1602 = vcmask 121856
        %v1603 = vsel %vm1602, %v1574, %v1139
        %v1604 = vsel %vm1602, %v1575, %v1141
        %v1605 = vsel %vm1602, %v1576, %v1143
        %v1606 = vsel %vm1602, %v1577, %v1145
        %v1607 = vsel %vm1602, %v1578, %v1147
        %v1608 = vsel %vm1602, %v1579, %v1149
        %v1609 = vsel %vm1602, %v1580, %v1151
        %v1610 = vsel %vm1602, %v1581, %v1153
        %v1611 = vsel %vm1602, %v1582, %v1155
        %v1612 = vsel %vm1602, %v1583, %v1157
        %v1613 = vsel %vm1602, %v1584, %v1159
        %v1614 = vsel %vm1602, %v1585, %v1161
        %v1615 = vsel %vm1602, %v1586, %v1163
        %v1616 = vsel %vm1602, %v1587, %v1165
        %v1617 = vsel %vm1602, %v1588, %v1167
        %v1618 = vsel %vm1602, %v1589, %v1169
        %v1619 = vsel %vm1602, %v1590, %v1171
        %v1620 = vsel %vm1602, %v1591, %v1173
        %v1621 = vsel %vm1602, %v1592, %v1175
        %v1622 = vsel %vm1602, %v1593, %v1177
        %v1623 = vsel %vm1602, %v1594, %v1179
        %v1624 = vsel %vm1602, %v1595, %v1181
        %v1625 = vsel %vm1602, %v1596, %v1183
        %v1626 = vsel %vm1602, %v1597, %v1185
        %v1627 = vsel %vm1602, %v1598, %v1187
        %v1628 = vsel %vm1602, %v1599, %v1189
        %v1629 = vsel %vm1602, %v1600, %v1191
        %v1630 = vsel %vm1602, %v1601, %v1193
        %vm1631 = vcmask 146432
        %v1632 = vsel %vm1631, %v1603, %v1224
        %v1633 = vsel %vm1631, %v1604, %v1226
        %v1634 = vsel %vm1631, %v1605, %v1228
        %v1635 = vsel %vm1631, %v1606, %v1230
        %v1636 = vsel %vm1631, %v1607, %v1232
        %v1637 = vsel %vm1631, %v1608, %v1234
        %v1638 = vsel %vm1631, %v1609, %v1236
        %v1639 = vsel %vm1631, %v1610, %v1238
        %v1640 = vsel %vm1631, %v1611, %v1240
        %v1641 = vsel %vm1631, %v1612, %v1242
        %v1642 = vsel %vm1631, %v1613, %v1244
        %v1643 = vsel %vm1631, %v1614, %v1246
        %v1644 = vsel %vm1631, %v1615, %v1248
        %v1645 = vsel %vm1631, %v1616, %v1250
        %v1646 = vsel %vm1631, %v1617, %v1252
        %v1647 = vsel %vm1631, %v1618, %v1254
        %v1648 = vsel %vm1631, %v1619, %v1256
        %v1649 = vsel %vm1631, %v1620, %v1258
        %v1650 = vsel %vm1631, %v1621, %v1260
        %v1651 = vsel %vm1631, %v1622, %v1262
        %v1652 = vsel %vm1631, %v1623, %v1264
        %v1653 = vsel %vm1631, %v1624, %v1266
        %v1654 = vsel %vm1631, %v1625, %v1268
        %v1655 = vsel %vm1631, %v1626, %v1270
        %v1656 = vsel %vm1631, %v1627, %v1272
        %v1657 = vsel %vm1631, %v1628, %v1274
        %v1658 = vsel %vm1631, %v1629, %v1276
        %v1659 = vsel %vm1631, %v1630, %v1278
        %vm1660 = vcmask 171008
        %v1661 = vsel %vm1660, %v1632, %v1314
        %v1662 = vsel %vm1660, %v1633, %v1316
        %v1663 = vsel %vm1660, %v1634, %v1318
        %v1664 = vsel %vm1660, %v1635, %v1320
        %v1665 = vsel %vm1660, %v1636, %v1322
        %v1666 = vsel %vm1660, %v1637, %v1324
        %v1667 = vsel %vm1660, %v1638, %v1326
        %v1668 = vsel %vm1660, %v1639, %v1328
        %v1669 = vsel %vm1660, %v1640, %v1330
        %v1670 = vsel %vm1660, %v1641, %v1332
        %v1671 = vsel %vm1660, %v1642, %v1334
        %v1672 = vsel %vm1660, %v1643, %v1336
        %v1673 = vsel %vm1660, %v1644, %v1338
        %v1674 = vsel %vm1660, %v1645, %v1340
        %v1675 = vsel %vm1660, %v1646, %v1342
        %v1676 = vsel %vm1660, %v1647, %v1344
        %v1677 = vsel %vm1660, %v1648, %v1346
        %v1678 = vsel %vm1660, %v1649, %v1348
        %v1679 = vsel %vm1660, %v1650, %v1350
        %v1680 = vsel %vm1660, %v1651, %v1352
        %v1681 = vsel %vm1660, %v1652, %v1354
        %v1682 = vsel %vm1660, %v1653, %v1356
        %v1683 = vsel %vm1660, %v1654, %v1358
        %v1684 = vsel %vm1660, %v1655, %v1360
        %v1685 = vsel %vm1660, %v1656, %v1362
        %v1686 = vsel %vm1660, %v1657, %v1364
        %v1687 = vsel %vm1660, %v1658, %v1366
        %v1688 = vsel %vm1660, %v1659, %v1368
        %vm1689 = vcmask 195584
        %v1690 = vsel %vm1689, %v1661, %v1403
        %v1691 = vsel %vm1689, %v1662, %v1405
        %v1692 = vsel %vm1689, %v1663, %v1407
        %v1693 = vsel %vm1689, %v1664, %v1409
        %v1694 = vsel %vm1689, %v1665, %v1411
        %v1695 = vsel %vm1689, %v1666, %v1413
        %v1696 = vsel %vm1689, %v1667, %v1415
        %v1697 = vsel %vm1689, %v1668, %v1417
        %v1698 = vsel %vm1689, %v1669, %v1419
        %v1699 = vsel %vm1689, %v1670, %v1421
        %v1700 = vsel %vm1689, %v1671, %v1423
        %v1701 = vsel %vm1689, %v1672, %v1425
        %v1702 = vsel %vm1689, %v1673, %v1427
        %v1703 = vsel %vm1689, %v1674, %v1429
        %v1704 = vsel %vm1689, %v1675, %v1431
        %v1705 = vsel %vm1689, %v1676, %v1433
        %v1706 = vsel %vm1689, %v1677, %v1435
        %v1707 = vsel %vm1689, %v1678, %v1437
        %v1708 = vsel %vm1689, %v1679, %v1439
        %v1709 = vsel %vm1689, %v1680, %v1441
        %v1710 = vsel %vm1689, %v1681, %v1443
        %v1711 = vsel %vm1689, %v1682, %v1445
        %v1712 = vsel %vm1689, %v1683, %v1447
        %v1713 = vsel %vm1689, %v1684, %v1449
        %v1714 = vsel %vm1689, %v1685, %v1451
        %v1715 = vsel %vm1689, %v1686, %v1453
        %v1716 = vsel %vm1689, %v1687, %v1455
        %v1717 = vsel %vm1689, %v1688, %v1457
        %v1718 = vld [vmem:[%s1] sm:$0xff]
        %v1719 = vld [vmem:[%s1 + $0x8] sm:$0xff]
        %v1720 = vld [vmem:[%s1 + $0x10] sm:$0xff]
        %v1721 = vld [vmem:[%s1 + $0x18] sm:$0x7]
        %v1722 = vld [vmem:[%s2] sm:$0x1]
        %v1724 = vlaneseq
        %v1725 = vshrl.u32 %v1724, 7
        %v1726 = vsub.s32 0, %v1725
        %v1727 = vrot.slane %v1722, %v1726
        %vm1729 = vcmask 220160
        %v1731 = vsel %vm1729, %v1690, 0
        %v1734 = vsel %vm1729, %v1691, 0
        %v1737 = vsel %vm1729, %v1692, 0
        %v1740 = vsel %vm1729, %v1693, 0
        %v1743 = vsel %vm1729, %v1694, 0
        %v1746 = vsel %vm1729, %v1695, 0
        %v1749 = vsel %vm1729, %v1696, 0
        %v1752 = vsel %vm1729, %v1697, 0
        %v1755 = vsel %vm1729, %v1698, 0
        %v1758 = vsel %vm1729, %v1699, 0
        %v1761 = vsel %vm1729, %v1700, 0
        %v1764 = vsel %vm1729, %v1701, 0
        %v1767 = vsel %vm1729, %v1702, 0
        %v1770 = vsel %vm1729, %v1703, 0
        %v1773 = vsel %vm1729, %v1704, 0
        %v1776 = vsel %vm1729, %v1705, 0
        %v1779 = vsel %vm1729, %v1706, 0
        %v1782 = vsel %vm1729, %v1707, 0
        %v1785 = vsel %vm1729, %v1708, 0
        %v1788 = vsel %vm1729, %v1709, 0
        %v1791 = vsel %vm1729, %v1710, 0
        %v1794 = vsel %vm1729, %v1711, 0
        %v1797 = vsel %vm1729, %v1712, 0
        %v1800 = vsel %vm1729, %v1713, 0
        %v1803 = vsel %vm1729, %v1714, 0
        %v1806 = vsel %vm1729, %v1715, 0
        %v1809 = vsel %vm1729, %v1716, 0
        %v1812 = vsel %vm1729, %v1717, 0
        %vm1814 = vcmask 1042432
        %v1816 = vsel %vm1814, %v1721, 0
        %1818 = vmatprep.subr.mxu0 0.0
        %1819 = vmatpush1.msra.mxu0 0.0
        %1820 = vmatprep.subr.mxu0 0.0
        %1821 = vmatpush1.msra.mxu0 0.0
        %1822 = vmatprep.subr.mxu0 0.0
        %1823 = vmatpush1.msra.mxu0 0.0
        %1824 = vmatprep.subr.mxu0 0.0
        %1825 = vmatpush1.msra.mxu0 0.0
        %1826 = vmatprep.subr.mxu0 0.0
        %1827 = vmatpush1.msra.mxu0 0.0
        %1828 = vmatprep.subr.mxu0 0.0
        %1829 = vmatpush1.msra.mxu0 0.0
        %1830 = vmatprep.subr.mxu0 0.0
        %1831 = vmatpush1.msra.mxu0 0.0
        %1832 = vmatprep.subr.mxu0 0.0
        %1833 = vmatpush1.msra.mxu0 0.0
        %1834 = vmatprep.subr.mxu0 0.0
        %1835 = vmatpush1.msra.mxu0 0.0
        %1836 = vmatprep.subr.mxu0 0.0
        %1837 = vmatpush1.msra.mxu0 0.0
        %1838 = vmatprep.subr.mxu0 0.0
        %1839 = vmatpush1.msra.mxu0 0.0
        %1840 = vmatprep.subr.mxu0 0.0
        %1841 = vmatpush1.msra.mxu0 0.0
        %1842 = vmatprep.subr.mxu0 0.0
        %1843 = vmatpush1.msra.mxu0 %v1816
        %1844 = vmatprep.subr.mxu0 0.0
        %1845 = vmatpush1.msra.mxu0 %v1720
        %1846 = vmatprep.subr.mxu0 0.0
        %1847 = vmatpush1.msra.mxu0 %v1719
        %1848 = vmatprep.subr.mxu0 0.0
        %1849 = vmatpush1.msra.mxu0 %v1718
        %1850 = vmatprep.subr.mxu0 0.0
        %1851 = vmatpush2.msra.mxu0 0.0
        %1852 = vmatprep.subr.mxu0 0.0
        %1853 = vmatpush2.msra.mxu0 0.0
        %1854 = vmatprep.subr.mxu0 0.0
        %1855 = vmatpush2.msra.mxu0 0.0
        %1856 = vmatprep.subr.mxu0 0.0
        %1857 = vmatpush2.msra.mxu0 0.0
        %1858 = vmatprep.subr.mxu0 0.0
        %1859 = vmatpush2.msra.mxu0 0.0
        %1860 = vmatprep.subr.mxu0 0.0
        %1861 = vmatpush2.msra.mxu0 0.0
        %1862 = vmatprep.subr.mxu0 0.0
        %1863 = vmatpush2.msra.mxu0 0.0
        %1864 = vmatprep.subr.mxu0 0.0
        %1865 = vmatpush2.msra.mxu0 0.0
        %1866 = vmatprep.subr.mxu0 0.0
        %1867 = vmatpush2.msra.mxu0 0.0
        %1868 = vmatprep.subr.mxu0 0.0
        %1869 = vmatpush2.msra.mxu0 0.0
        %1870 = vmatprep.subr.mxu0 0.0
        %1871 = vmatpush2.msra.mxu0 0.0
        %1872 = vmatprep.subr.mxu0 0.0
        %1873 = vmatpush2.msra.mxu0 0.0
        %1874 = vmatprep.subr.mxu0 0.0
        %1875 = vmatpush2.msra.mxu0 0.0
        %1876 = vmatprep.subr.mxu0 0.0
        %1877 = vmatpush2.msra.mxu0 0.0
        %1878 = vmatprep.subr.mxu0 0.0
        %1879 = vmatpush2.msra.mxu0 0.0
        %1880 = vmatprep.subr.mxu0 0.0
        %1881 = vmatpush2.msra.mxu0 0.0
        %1882 = vmatprep.mubr.f32.mxu0 0.0
        %1883 = vmatmul.mubr.f32.gmra.mxu0 %v1731
        %v1884 = vpop.f32.mrf.mxu0
        %v1885 = vadd.f32 %v1727, %v1884
        %v1886 = vpop.f32.mrf.mxu0
        %1887 = vmatprep.mubr.f32.mxu0 0.0
        %1888 = vmatmul.mubr.f32.gmra.mxu0 %v1734
        %v1889 = vpop.f32.mrf.mxu0
        %v1890 = vadd.f32 %v1727, %v1889
        %v1891 = vpop.f32.mrf.mxu0
        %1892 = vmatprep.mubr.f32.mxu0 0.0
        %1893 = vmatmul.mubr.f32.gmra.mxu0 %v1737
        %v1894 = vpop.f32.mrf.mxu0
        %v1895 = vadd.f32 %v1727, %v1894
        %v1896 = vpop.f32.mrf.mxu0
        %1897 = vmatprep.mubr.f32.mxu0 0.0
        %1898 = vmatmul.mubr.f32.gmra.mxu0 %v1740
        %v1899 = vpop.f32.mrf.mxu0
        %v1900 = vadd.f32 %v1727, %v1899
        %v1901 = vpop.f32.mrf.mxu0
        %1902 = vmatprep.mubr.f32.mxu0 0.0
        %1903 = vmatmul.mubr.f32.gmra.mxu0 %v1743
        %v1904 = vpop.f32.mrf.mxu0
        %v1905 = vadd.f32 %v1727, %v1904
        %v1906 = vpop.f32.mrf.mxu0
        %1907 = vmatprep.mubr.f32.mxu0 0.0
        %1908 = vmatmul.mubr.f32.gmra.mxu0 %v1746
        %v1909 = vpop.f32.mrf.mxu0
        %v1910 = vadd.f32 %v1727, %v1909
        %v1911 = vpop.f32.mrf.mxu0
        %1912 = vmatprep.mubr.f32.mxu0 0.0
        %1913 = vmatmul.mubr.f32.gmra.mxu0 %v1749
        %v1914 = vpop.f32.mrf.mxu0
        %v1915 = vadd.f32 %v1727, %v1914
        %v1916 = vpop.f32.mrf.mxu0
        %1917 = vmatprep.mubr.f32.mxu0 0.0
        %1918 = vmatmul.mubr.f32.gmra.mxu0 %v1752
        %v1919 = vpop.f32.mrf.mxu0
        %v1920 = vadd.f32 %v1727, %v1919
        %v1921 = vpop.f32.mrf.mxu0
        %1922 = vmatprep.mubr.f32.mxu0 0.0
        %1923 = vmatmul.mubr.f32.gmra.mxu0 %v1755
        %v1924 = vpop.f32.mrf.mxu0
        %v1925 = vadd.f32 %v1727, %v1924
        %v1926 = vpop.f32.mrf.mxu0
        %1927 = vmatprep.mubr.f32.mxu0 0.0
        %1928 = vmatmul.mubr.f32.gmra.mxu0 %v1758
        %v1929 = vpop.f32.mrf.mxu0
        %v1930 = vadd.f32 %v1727, %v1929
        %v1931 = vpop.f32.mrf.mxu0
        %1932 = vmatprep.mubr.f32.mxu0 0.0
        %1933 = vmatmul.mubr.f32.gmra.mxu0 %v1761
        %v1934 = vpop.f32.mrf.mxu0
        %v1935 = vadd.f32 %v1727, %v1934
        %v1936 = vpop.f32.mrf.mxu0
        %1937 = vmatprep.mubr.f32.mxu0 0.0
        %1938 = vmatmul.mubr.f32.gmra.mxu0 %v1764
        %v1939 = vpop.f32.mrf.mxu0
        %v1940 = vadd.f32 %v1727, %v1939
        %v1941 = vpop.f32.mrf.mxu0
        %1942 = vmatprep.mubr.f32.mxu0 0.0
        %1943 = vmatmul.mubr.f32.gmra.mxu0 %v1767
        %v1944 = vpop.f32.mrf.mxu0
        %v1945 = vadd.f32 %v1727, %v1944
        %v1946 = vpop.f32.mrf.mxu0
        %1947 = vmatprep.mubr.f32.mxu0 0.0
        %1948 = vmatmul.mubr.f32.gmra.mxu0 %v1770
        %v1949 = vpop.f32.mrf.mxu0
        %v1950 = vadd.f32 %v1727, %v1949
        %v1951 = vpop.f32.mrf.mxu0
        %1952 = vmatprep.mubr.f32.mxu0 0.0
        %1953 = vmatmul.mubr.f32.gmra.mxu0 %v1773
        %v1954 = vpop.f32.mrf.mxu0
        %v1955 = vadd.f32 %v1727, %v1954
        %v1956 = vpop.f32.mrf.mxu0
        %1957 = vmatprep.mubr.f32.mxu0 0.0
        %1958 = vmatmul.mubr.f32.gmra.mxu0 %v1776
        %v1959 = vpop.f32.mrf.mxu0
        %v1960 = vadd.f32 %v1727, %v1959
        %v1961 = vpop.f32.mrf.mxu0
        %1962 = vmatprep.mubr.f32.mxu0 0.0
        %1963 = vmatmul.mubr.f32.gmra.mxu0 %v1779
        %v1964 = vpop.f32.mrf.mxu0
        %v1965 = vadd.f32 %v1727, %v1964
        %v1966 = vpop.f32.mrf.mxu0
        %1967 = vmatprep.mubr.f32.mxu0 0.0
        %1968 = vmatmul.mubr.f32.gmra.mxu0 %v1782
        %v1969 = vpop.f32.mrf.mxu0
        %v1970 = vadd.f32 %v1727, %v1969
        %v1971 = vpop.f32.mrf.mxu0
        %1972 = vmatprep.mubr.f32.mxu0 0.0
        %1973 = vmatmul.mubr.f32.gmra.mxu0 %v1785
        %v1974 = vpop.f32.mrf.mxu0
        %v1975 = vadd.f32 %v1727, %v1974
        %v1976 = vpop.f32.mrf.mxu0
        %1977 = vmatprep.mubr.f32.mxu0 0.0
        %1978 = vmatmul.mubr.f32.gmra.mxu0 %v1788
        %v1979 = vpop.f32.mrf.mxu0
        %v1980 = vadd.f32 %v1727, %v1979
        %v1981 = vpop.f32.mrf.mxu0
        %1982 = vmatprep.mubr.f32.mxu0 0.0
        %1983 = vmatmul.mubr.f32.gmra.mxu0 %v1791
        %v1984 = vpop.f32.mrf.mxu0
        %v1985 = vadd.f32 %v1727, %v1984
        %v1986 = vpop.f32.mrf.mxu0
        %1987 = vmatprep.mubr.f32.mxu0 0.0
        %1988 = vmatmul.mubr.f32.gmra.mxu0 %v1794
        %v1989 = vpop.f32.mrf.mxu0
        %v1990 = vadd.f32 %v1727, %v1989
        %v1991 = vpop.f32.mrf.mxu0
        %1992 = vmatprep.mubr.f32.mxu0 0.0
        %1993 = vmatmul.mubr.f32.gmra.mxu0 %v1797
        %v1994 = vpop.f32.mrf.mxu0
        %v1995 = vadd.f32 %v1727, %v1994
        %v1996 = vpop.f32.mrf.mxu0
        %1997 = vmatprep.mubr.f32.mxu0 0.0
        %1998 = vmatmul.mubr.f32.gmra.mxu0 %v1800
        %v1999 = vpop.f32.mrf.mxu0
        %v2000 = vadd.f32 %v1727, %v1999
        %v2001 = vpop.f32.mrf.mxu0
        %2002 = vmatprep.mubr.f32.mxu0 0.0
        %2003 = vmatmul.mubr.f32.gmra.mxu0 %v1803
        %v2004 = vpop.f32.mrf.mxu0
        %v2005 = vadd.f32 %v1727, %v2004
        %v2006 = vpop.f32.mrf.mxu0
        %2007 = vmatprep.mubr.f32.mxu0 0.0
        %2008 = vmatmul.mubr.f32.gmra.mxu0 %v1806
        %v2009 = vpop.f32.mrf.mxu0
        %v2010 = vadd.f32 %v1727, %v2009
        %v2011 = vpop.f32.mrf.mxu0
        %2012 = vmatprep.mubr.f32.mxu0 0.0
        %2013 = vmatmul.mubr.f32.gmra.mxu0 %v1809
        %v2014 = vpop.f32.mrf.mxu0
        %v2015 = vadd.f32 %v1727, %v2014
        %v2016 = vpop.f32.mrf.mxu0
        %2017 = vmatprep.mubr.f32.mxu0 0.0
        %2018 = vmatmul.mubr.f32.gmra.mxu0 %v1812
        %v2019 = vpop.f32.mrf.mxu0
        %v2020 = vadd.f32 %v1727, %v2019
        %v2021 = vpop.f32.mrf.mxu0
        %2022 = vdwg.mxu0
        %vm2023 = vcmp.ge.f32.partialorder %v1885, 0.0
        %vm2024 = vcmp.ge.f32.partialorder %v1890, 0.0
        %vm2025 = vcmp.ge.f32.partialorder %v1895, 0.0
        %vm2026 = vcmp.ge.f32.partialorder %v1900, 0.0
        %vm2027 = vcmp.ge.f32.partialorder %v1905, 0.0
        %vm2028 = vcmp.ge.f32.partialorder %v1910, 0.0
        %vm2029 = vcmp.ge.f32.partialorder %v1915, 0.0
        %vm2030 = vcmp.ge.f32.partialorder %v1920, 0.0
        %vm2031 = vcmp.ge.f32.partialorder %v1925, 0.0
        %vm2032 = vcmp.ge.f32.partialorder %v1930, 0.0
        %vm2033 = vcmp.ge.f32.partialorder %v1935, 0.0
        %vm2034 = vcmp.ge.f32.partialorder %v1940, 0.0
        %vm2035 = vcmp.ge.f32.partialorder %v1945, 0.0
        %vm2036 = vcmp.ge.f32.partialorder %v1950, 0.0
        %vm2037 = vcmp.ge.f32.partialorder %v1955, 0.0
        %vm2038 = vcmp.ge.f32.partialorder %v1960, 0.0
        %vm2039 = vcmp.ge.f32.partialorder %v1965, 0.0
        %vm2040 = vcmp.ge.f32.partialorder %v1970, 0.0
        %vm2041 = vcmp.ge.f32.partialorder %v1975, 0.0
        %vm2042 = vcmp.ge.f32.partialorder %v1980, 0.0
        %vm2043 = vcmp.ge.f32.partialorder %v1985, 0.0
        %vm2044 = vcmp.ge.f32.partialorder %v1990, 0.0
        %vm2045 = vcmp.ge.f32.partialorder %v1995, 0.0
        %vm2046 = vcmp.ge.f32.partialorder %v2000, 0.0
        %vm2047 = vcmp.ge.f32.partialorder %v2005, 0.0
        %vm2048 = vcmp.ge.f32.partialorder %v2010, 0.0
        %vm2049 = vcmp.ge.f32.partialorder %v2015, 0.0
        %vm2050 = vcmp.ge.f32.partialorder %v2020, 0.0
        %v2051 = vld [vmem:[%s3] sm:$0x1]
        %v2053 = vlaneseq
        %v2054 = vshrl.u32 %v2053, 7
        %v2055 = vsub.s32 0, %v2054
        %v2056 = vrot.slane %v2051, %v2055
        %v2058 = vmul.f32 %v1885, %v2056
        %v2059 = vmul.f32 %v1890, %v2056
        %v2060 = vmul.f32 %v1895, %v2056
        %v2061 = vmul.f32 %v1900, %v2056
        %v2062 = vmul.f32 %v1905, %v2056
        %v2063 = vmul.f32 %v1910, %v2056
        %v2064 = vmul.f32 %v1915, %v2056
        %v2065 = vmul.f32 %v1920, %v2056
        %v2066 = vmul.f32 %v1925, %v2056
        %v2067 = vmul.f32 %v1930, %v2056
        %v2068 = vmul.f32 %v1935, %v2056
        %v2069 = vmul.f32 %v1940, %v2056
        %v2070 = vmul.f32 %v1945, %v2056
        %v2071 = vmul.f32 %v1950, %v2056
        %v2072 = vmul.f32 %v1955, %v2056
        %v2073 = vmul.f32 %v1960, %v2056
        %v2074 = vmul.f32 %v1965, %v2056
        %v2075 = vmul.f32 %v1970, %v2056
        %v2076 = vmul.f32 %v1975, %v2056
        %v2077 = vmul.f32 %v1980, %v2056
        %v2078 = vmul.f32 %v1985, %v2056
        %v2079 = vmul.f32 %v1990, %v2056
        %v2080 = vmul.f32 %v1995, %v2056
        %v2081 = vmul.f32 %v2000, %v2056
        %v2082 = vmul.f32 %v2005, %v2056
        %v2083 = vmul.f32 %v2010, %v2056
        %v2084 = vmul.f32 %v2015, %v2056
        %v2085 = vmul.f32 %v2020, %v2056
        %v2086 = vsel %vm2023, %v1885, %v2058
        %v2087 = vsel %vm2024, %v1890, %v2059
        %v2088 = vsel %vm2025, %v1895, %v2060
        %v2089 = vsel %vm2026, %v1900, %v2061
        %v2090 = vsel %vm2027, %v1905, %v2062
        %v2091 = vsel %vm2028, %v1910, %v2063
        %v2092 = vsel %vm2029, %v1915, %v2064
        %v2093 = vsel %vm2030, %v1920, %v2065
        %v2094 = vsel %vm2031, %v1925, %v2066
        %v2095 = vsel %vm2032, %v1930, %v2067
        %v2096 = vsel %vm2033, %v1935, %v2068
        %v2097 = vsel %vm2034, %v1940, %v2069
        %v2098 = vsel %vm2035, %v1945, %v2070
        %v2099 = vsel %vm2036, %v1950, %v2071
        %v2100 = vsel %vm2037, %v1955, %v2072
        %v2101 = vsel %vm2038, %v1960, %v2073
        %v2102 = vsel %vm2039, %v1965, %v2074
        %v2103 = vsel %vm2040, %v1970, %v2075
        %v2104 = vsel %vm2041, %v1975, %v2076
        %v2105 = vsel %vm2042, %v1980, %v2077
        %v2106 = vsel %vm2043, %v1985, %v2078
        %v2107 = vsel %vm2044, %v1990, %v2079
        %v2108 = vsel %vm2045, %v1995, %v2080
        %v2109 = vsel %vm2046, %v2000, %v2081
        %v2110 = vsel %vm2047, %v2005, %v2082
        %v2111 = vsel %vm2048, %v2010, %v2083
        %v2112 = vsel %vm2049, %v2015, %v2084
        %v2113 = vsel %vm2050, %v2020, %v2085
        %s2114 = ssub.s32 %s426, 3
        %v2115 = vstv %s2114
        %v2116 = vadd.s32 %v2115, 1
        %v2117 = vadd.s32 %v2115, 2
        %v2118 = vadd.s32 %v2115, 3
        %v2119 = vadd.s32 %v2115, 4
        %v2120 = vadd.s32 %v2115, 5
        %v2121 = vadd.s32 %v2115, 6
        %v2122 = vadd.s32 %v2115, 7
        %v2123 = vadd.s32 %v2115, 8
        %v2124 = vadd.s32 %v2115, 9
        %v2125 = vadd.s32 %v2115, 10
        %v2126 = vadd.s32 %v2115, 11
        %v2127 = vadd.s32 %v2115, 12
        %v2128 = vadd.s32 %v2115, 13
        %vm2129 = vcmp.ge.s32.totalorder %v2115, 0
        %vm2130 = vcmp.ge.s32.totalorder %v2116, 0
        %vm2131 = vcmp.ge.s32.totalorder %v2117, 0
        %vm2132 = vcmp.ge.s32.totalorder %v2118, 0
        %vm2133 = vcmp.ge.s32.totalorder %v2119, 0
        %vm2134 = vcmp.ge.s32.totalorder %v2120, 0
        %vm2135 = vcmp.ge.s32.totalorder %v2121, 0
        %vm2136 = vcmp.ge.s32.totalorder %v2122, 0
        %vm2137 = vcmp.ge.s32.totalorder %v2123, 0
        %vm2138 = vcmp.ge.s32.totalorder %v2124, 0
        %vm2139 = vcmp.ge.s32.totalorder %v2125, 0
        %vm2140 = vcmp.ge.s32.totalorder %v2126, 0
        %vm2141 = vcmp.ge.s32.totalorder %v2127, 0
        %vm2142 = vcmp.ge.s32.totalorder %v2128, 0
        %vm2143 = vcmp.lt.s32.totalorder %v2115, 16
        %vm2144 = vcmp.lt.s32.totalorder %v2116, 16
        %vm2145 = vcmp.lt.s32.totalorder %v2117, 16
        %vm2146 = vcmp.lt.s32.totalorder %v2118, 16
        %vm2147 = vcmp.lt.s32.totalorder %v2119, 16
        %vm2148 = vcmp.lt.s32.totalorder %v2120, 16
        %vm2149 = vcmp.lt.s32.totalorder %v2121, 16
        %vm2150 = vcmp.lt.s32.totalorder %v2122, 16
        %vm2151 = vcmp.lt.s32.totalorder %v2123, 16
        %vm2152 = vcmp.lt.s32.totalorder %v2124, 16
        %vm2153 = vcmp.lt.s32.totalorder %v2125, 16
        %vm2154 = vcmp.lt.s32.totalorder %v2126, 16
        %vm2155 = vcmp.lt.s32.totalorder %v2127, 16
        %vm2156 = vcmp.lt.s32.totalorder %v2128, 16
        %vm2157 = vmand %vm2129, %vm2143
        %vm2158 = vmand %vm2130, %vm2144
        %vm2159 = vmand %vm2131, %vm2145
        %vm2160 = vmand %vm2132, %vm2146
        %vm2161 = vmand %vm2133, %vm2147
        %vm2162 = vmand %vm2134, %vm2148
        %vm2163 = vmand %vm2135, %vm2149
        %vm2164 = vmand %vm2136, %vm2150
        %vm2165 = vmand %vm2137, %vm2151
        %vm2166 = vmand %vm2138, %vm2152
        %vm2167 = vmand %vm2139, %vm2153
        %vm2168 = vmand %vm2140, %vm2154
        %vm2169 = vmand %vm2141, %vm2155
        %vm2170 = vmand %vm2142, %vm2156
        %v2171 = vsel %vm2157, 1, 0
        %v2172 = vsel %vm2158, 1, 0
        %v2173 = vsel %vm2159, 1, 0
        %v2174 = vsel %vm2160, 1, 0
        %v2175 = vsel %vm2161, 1, 0
        %v2176 = vsel %vm2162, 1, 0
        %v2177 = vsel %vm2163, 1, 0
        %v2178 = vsel %vm2164, 1, 0
        %v2179 = vsel %vm2165, 1, 0
        %v2180 = vsel %vm2166, 1, 0
        %v2181 = vsel %vm2167, 1, 0
        %v2182 = vsel %vm2168, 1, 0
        %v2183 = vsel %vm2169, 1, 0
        %v2184 = vsel %vm2170, 1, 0
        %vm2185 = vcmp.eq.s32.totalorder %v2171, 1
        %vm2186 = vcmp.eq.s32.totalorder %v2172, 1
        %vm2187 = vcmp.eq.s32.totalorder %v2173, 1
        %vm2188 = vcmp.eq.s32.totalorder %v2174, 1
        %vm2189 = vcmp.eq.s32.totalorder %v2175, 1
        %vm2190 = vcmp.eq.s32.totalorder %v2176, 1
        %vm2191 = vcmp.eq.s32.totalorder %v2177, 1
        %vm2192 = vcmp.eq.s32.totalorder %v2178, 1
        %vm2193 = vcmp.eq.s32.totalorder %v2179, 1
        %vm2194 = vcmp.eq.s32.totalorder %v2180, 1
        %vm2195 = vcmp.eq.s32.totalorder %v2181, 1
        %vm2196 = vcmp.eq.s32.totalorder %v2182, 1
        %vm2197 = vcmp.eq.s32.totalorder %v2183, 1
        %vm2198 = vcmp.eq.s32.totalorder %v2184, 1
        %v2199 = vsel %vm2185, %v2086, 0.0
        %v2200 = vsel %vm2185, %v2087, 0.0
        %v2201 = vsel %vm2186, %v2088, 0.0
        %v2202 = vsel %vm2186, %v2089, 0.0
        %v2203 = vsel %vm2187, %v2090, 0.0
        %v2204 = vsel %vm2187, %v2091, 0.0
        %v2205 = vsel %vm2188, %v2092, 0.0
        %v2206 = vsel %vm2188, %v2093, 0.0
        %v2207 = vsel %vm2189, %v2094, 0.0
        %v2208 = vsel %vm2189, %v2095, 0.0
        %v2209 = vsel %vm2190, %v2096, 0.0
        %v2210 = vsel %vm2190, %v2097, 0.0
        %v2211 = vsel %vm2191, %v2098, 0.0
        %v2212 = vsel %vm2191, %v2099, 0.0
        %v2213 = vsel %vm2192, %v2100, 0.0
        %v2214 = vsel %vm2192, %v2101, 0.0
        %v2215 = vsel %vm2193, %v2102, 0.0
        %v2216 = vsel %vm2193, %v2103, 0.0
        %v2217 = vsel %vm2194, %v2104, 0.0
        %v2218 = vsel %vm2194, %v2105, 0.0
        %v2219 = vsel %vm2195, %v2106, 0.0
        %v2220 = vsel %vm2195, %v2107, 0.0
        %v2221 = vsel %vm2196, %v2108, 0.0
        %v2222 = vsel %vm2196, %v2109, 0.0
        %v2223 = vsel %vm2197, %v2110, 0.0
        %v2224 = vsel %vm2197, %v2111, 0.0
        %v2225 = vsel %vm2198, %v2112, 0.0
        %v2226 = vsel %vm2198, %v2113, 0.0
        %v2255 = vrot.slane %v2199, 7
        %v2256 = vrot.slane %v2200, 7
        %v2257 = vsel %vm493, %v2255, %v2256
        %v2258 = vrot.slane %v2201, 7
        %v2259 = vrot.slane %v2202, 7
        %v2260 = vsel %vm493, %v2258, %v2259
        %v2261 = vrot.slane %v2203, 7
        %v2262 = vrot.slane %v2204, 7
        %v2263 = vsel %vm493, %v2261, %v2262
        %v2264 = vrot.slane %v2205, 7
        %v2265 = vrot.slane %v2206, 7
        %v2266 = vsel %vm493, %v2264, %v2265
        %v2267 = vrot.slane %v2207, 7
        %v2268 = vrot.slane %v2208, 7
        %v2269 = vsel %vm493, %v2267, %v2268
        %v2270 = vrot.slane %v2209, 7
        %v2271 = vrot.slane %v2210, 7
        %v2272 = vsel %vm493, %v2270, %v2271
        %v2273 = vrot.slane %v2211, 7
        %v2274 = vrot.slane %v2212, 7
        %v2275 = vsel %vm493, %v2273, %v2274
        %v2276 = vrot.slane %v2213, 7
        %v2277 = vrot.slane %v2214, 7
        %v2278 = vsel %vm493, %v2276, %v2277
        %v2279 = vrot.slane %v2215, 7
        %v2280 = vrot.slane %v2216, 7
        %v2281 = vsel %vm493, %v2279, %v2280
        %v2282 = vrot.slane %v2217, 7
        %v2283 = vrot.slane %v2218, 7
        %v2284 = vsel %vm493, %v2282, %v2283
        %v2285 = vrot.slane %v2219, 7
        %v2286 = vrot.slane %v2220, 7
        %v2287 = vsel %vm493, %v2285, %v2286
        %v2288 = vrot.slane %v2221, 7
        %v2289 = vrot.slane %v2222, 7
        %v2290 = vsel %vm493, %v2288, %v2289
        %v2291 = vrot.slane %v2223, 7
        %v2292 = vrot.slane %v2224, 7
        %v2293 = vsel %vm493, %v2291, %v2292
        %v2294 = vrot.slane %v2225, 7
        %v2295 = vrot.slane %v2226, 7
        %v2296 = vsel %vm493, %v2294, %v2295
        %v2337 = vsel %vm493, 0.0, %v2255
        %v2338 = vsel %vm493, 0.0, %v2258
        %v2339 = vsel %vm493, 0.0, %v2261
        %v2340 = vsel %vm493, 0.0, %v2264
        %v2341 = vsel %vm493, 0.0, %v2267
        %v2342 = vsel %vm493, 0.0, %v2270
        %v2343 = vsel %vm493, 0.0, %v2273
        %v2344 = vsel %vm493, 0.0, %v2276
        %v2345 = vsel %vm493, 0.0, %v2279
        %v2346 = vsel %vm493, 0.0, %v2282
        %v2347 = vsel %vm493, 0.0, %v2285
        %v2348 = vsel %vm493, 0.0, %v2288
        %v2349 = vsel %vm493, 0.0, %v2291
        %v2350 = vsel %vm493, 0.0, %v2294
        %v2351 = vsel %vm493, %v2256, 0.0
        %v2352 = vsel %vm493, %v2259, 0.0
        %v2353 = vsel %vm493, %v2262, 0.0
        %v2354 = vsel %vm493, %v2265, 0.0
        %v2355 = vsel %vm493, %v2268, 0.0
        %v2356 = vsel %vm493, %v2271, 0.0
        %v2357 = vsel %vm493, %v2274, 0.0
        %v2358 = vsel %vm493, %v2277, 0.0
        %v2359 = vsel %vm493, %v2280, 0.0
        %v2360 = vsel %vm493, %v2283, 0.0
        %v2361 = vsel %vm493, %v2286, 0.0
        %v2362 = vsel %vm493, %v2289, 0.0
        %v2363 = vsel %vm493, %v2292, 0.0
        %v2364 = vsel %vm493, %v2295, 0.0
        %v2389 = vrot.slane %v2337, 1
        %v2390 = vrot.slane %v2257, 1
        %v2391 = vsel %vm648, %v2389, %v2390
        %v2392 = vrot.slane %v2351, 1
        %v2393 = vsel %vm648, %v2390, %v2392
        %v2394 = vrot.slane %v2338, 1
        %v2395 = vrot.slane %v2260, 1
        %v2396 = vsel %vm648, %v2394, %v2395
        %v2397 = vrot.slane %v2352, 1
        %v2398 = vsel %vm648, %v2395, %v2397
        %v2399 = vrot.slane %v2339, 1
        %v2400 = vrot.slane %v2263, 1
        %v2401 = vsel %vm648, %v2399, %v2400
        %v2402 = vrot.slane %v2353, 1
        %v2403 = vsel %vm648, %v2400, %v2402
        %v2404 = vrot.slane %v2340, 1
        %v2405 = vrot.slane %v2266, 1
        %v2406 = vsel %vm648, %v2404, %v2405
        %v2407 = vrot.slane %v2354, 1
        %v2408 = vsel %vm648, %v2405, %v2407
        %v2409 = vrot.slane %v2341, 1
        %v2410 = vrot.slane %v2269, 1
        %v2411 = vsel %vm648, %v2409, %v2410
        %v2412 = vrot.slane %v2355, 1
        %v2413 = vsel %vm648, %v2410, %v2412
        %v2414 = vrot.slane %v2342, 1
        %v2415 = vrot.slane %v2272, 1
        %v2416 = vsel %vm648, %v2414, %v2415
        %v2417 = vrot.slane %v2356, 1
        %v2418 = vsel %vm648, %v2415, %v2417
        %v2419 = vrot.slane %v2343, 1
        %v2420 = vrot.slane %v2275, 1
        %v2421 = vsel %vm648, %v2419, %v2420
        %v2422 = vrot.slane %v2357, 1
        %v2423 = vsel %vm648, %v2420, %v2422
        %v2424 = vrot.slane %v2344, 1
        %v2425 = vrot.slane %v2278, 1
        %v2426 = vsel %vm648, %v2424, %v2425
        %v2427 = vrot.slane %v2358, 1
        %v2428 = vsel %vm648, %v2425, %v2427
        %v2429 = vrot.slane %v2345, 1
        %v2430 = vrot.slane %v2281, 1
        %v2431 = vsel %vm648, %v2429, %v2430
        %v2432 = vrot.slane %v2359, 1
        %v2433 = vsel %vm648, %v2430, %v2432
        %v2434 = vrot.slane %v2346, 1
        %v2435 = vrot.slane %v2284, 1
        %v2436 = vsel %vm648, %v2434, %v2435
        %v2437 = vrot.slane %v2360, 1
        %v2438 = vsel %vm648, %v2435, %v2437
        %v2439 = vrot.slane %v2347, 1
        %v2440 = vrot.slane %v2287, 1
        %v2441 = vsel %vm648, %v2439, %v2440
        %v2442 = vrot.slane %v2361, 1
        %v2443 = vsel %vm648, %v2440, %v2442
        %v2444 = vrot.slane %v2348, 1
        %v2445 = vrot.slane %v2290, 1
        %v2446 = vsel %vm648, %v2444, %v2445
        %v2447 = vrot.slane %v2362, 1
        %v2448 = vsel %vm648, %v2445, %v2447
        %2449 = vrot.lane.b32.xlu0 %v2391, 16
        %v2450 = vpop.permute.xlu0 %2449
        %2451 = vrot.lane.b32.xlu0 %v2393, 16
        %v2452 = vpop.permute.xlu0 %2451
        %2453 = vrot.lane.b32.xlu0 %v2396, 16
        %v2454 = vpop.permute.xlu0 %2453
        %2455 = vrot.lane.b32.xlu0 %v2398, 16
        %v2456 = vpop.permute.xlu0 %2455
        %2457 = vrot.lane.b32.xlu0 %v2401, 16
        %v2458 = vpop.permute.xlu0 %2457
        %2459 = vrot.lane.b32.xlu0 %v2403, 16
        %v2460 = vpop.permute.xlu0 %2459
        %2461 = vrot.lane.b32.xlu0 %v2406, 16
        %v2462 = vpop.permute.xlu0 %2461
        %2463 = vrot.lane.b32.xlu0 %v2408, 16
        %v2464 = vpop.permute.xlu0 %2463
        %2465 = vrot.lane.b32.xlu0 %v2411, 16
        %v2466 = vpop.permute.xlu0 %2465
        %2467 = vrot.lane.b32.xlu0 %v2413, 16
        %v2468 = vpop.permute.xlu0 %2467
        %2469 = vrot.lane.b32.xlu0 %v2416, 16
        %v2470 = vpop.permute.xlu0 %2469
        %2471 = vrot.lane.b32.xlu0 %v2418, 16
        %v2472 = vpop.permute.xlu0 %2471
        %2473 = vrot.lane.b32.xlu0 %v2421, 16
        %v2474 = vpop.permute.xlu0 %2473
        %2475 = vrot.lane.b32.xlu0 %v2423, 16
        %v2476 = vpop.permute.xlu0 %2475
        %2477 = vrot.lane.b32.xlu0 %v2426, 16
        %v2478 = vpop.permute.xlu0 %2477
        %2479 = vrot.lane.b32.xlu0 %v2428, 16
        %v2480 = vpop.permute.xlu0 %2479
        %2481 = vrot.lane.b32.xlu0 %v2431, 16
        %v2482 = vpop.permute.xlu0 %2481
        %2483 = vrot.lane.b32.xlu0 %v2433, 16
        %v2484 = vpop.permute.xlu0 %2483
        %2485 = vrot.lane.b32.xlu0 %v2436, 16
        %v2486 = vpop.permute.xlu0 %2485
        %2487 = vrot.lane.b32.xlu0 %v2438, 16
        %v2488 = vpop.permute.xlu0 %2487
        %2489 = vrot.lane.b32.xlu0 %v2441, 16
        %v2490 = vpop.permute.xlu0 %2489
        %2491 = vrot.lane.b32.xlu0 %v2443, 16
        %v2492 = vpop.permute.xlu0 %2491
        %2493 = vrot.lane.b32.xlu0 %v2446, 16
        %v2494 = vpop.permute.xlu0 %2493
        %2495 = vrot.lane.b32.xlu0 %v2448, 16
        %v2496 = vpop.permute.xlu0 %2495
        %v2521 = vrot.slane %v2337, 2
        %v2522 = vrot.slane %v2257, 2
        %v2523 = vsel %vm803, %v2521, %v2522
        %v2524 = vrot.slane %v2351, 2
        %v2525 = vsel %vm803, %v2522, %v2524
        %v2526 = vrot.slane %v2338, 2
        %v2527 = vrot.slane %v2260, 2
        %v2528 = vsel %vm803, %v2526, %v2527
        %v2529 = vrot.slane %v2352, 2
        %v2530 = vsel %vm803, %v2527, %v2529
        %v2531 = vrot.slane %v2339, 2
        %v2532 = vrot.slane %v2263, 2
        %v2533 = vsel %vm803, %v2531, %v2532
        %v2534 = vrot.slane %v2353, 2
        %v2535 = vsel %vm803, %v2532, %v2534
        %v2536 = vrot.slane %v2340, 2
        %v2537 = vrot.slane %v2266, 2
        %v2538 = vsel %vm803, %v2536, %v2537
        %v2539 = vrot.slane %v2354, 2
        %v2540 = vsel %vm803, %v2537, %v2539
        %v2541 = vrot.slane %v2341, 2
        %v2542 = vrot.slane %v2269, 2
        %v2543 = vsel %vm803, %v2541, %v2542
        %v2544 = vrot.slane %v2355, 2
        %v2545 = vsel %vm803, %v2542, %v2544
        %v2546 = vrot.slane %v2342, 2
        %v2547 = vrot.slane %v2272, 2
        %v2548 = vsel %vm803, %v2546, %v2547
        %v2549 = vrot.slane %v2356, 2
        %v2550 = vsel %vm803, %v2547, %v2549
        %v2551 = vrot.slane %v2343, 2
        %v2552 = vrot.slane %v2275, 2
        %v2553 = vsel %vm803, %v2551, %v2552
        %v2554 = vrot.slane %v2357, 2
        %v2555 = vsel %vm803, %v2552, %v2554
        %v2556 = vrot.slane %v2344, 2
        %v2557 = vrot.slane %v2278, 2
        %v2558 = vsel %vm803, %v2556, %v2557
        %v2559 = vrot.slane %v2358, 2
        %v2560 = vsel %vm803, %v2557, %v2559
        %v2561 = vrot.slane %v2345, 2
        %v2562 = vrot.slane %v2281, 2
        %v2563 = vsel %vm803, %v2561, %v2562
        %v2564 = vrot.slane %v2359, 2
        %v2565 = vsel %vm803, %v2562, %v2564
        %v2566 = vrot.slane %v2346, 2
        %v2567 = vrot.slane %v2284, 2
        %v2568 = vsel %vm803, %v2566, %v2567
        %v2569 = vrot.slane %v2360, 2
        %v2570 = vsel %vm803, %v2567, %v2569
        %v2571 = vrot.slane %v2347, 2
        %v2572 = vrot.slane %v2287, 2
        %v2573 = vsel %vm803, %v2571, %v2572
        %v2574 = vrot.slane %v2361, 2
        %v2575 = vsel %vm803, %v2572, %v2574
        %v2576 = vrot.slane %v2348, 2
        %v2577 = vrot.slane %v2290, 2
        %v2578 = vsel %vm803, %v2576, %v2577
        %v2579 = vrot.slane %v2362, 2
        %v2580 = vsel %vm803, %v2577, %v2579
        %2581 = vrot.lane.b32.xlu0 %v2523, 32
        %v2582 = vpop.permute.xlu0 %2581
        %2583 = vrot.lane.b32.xlu0 %v2525, 32
        %v2584 = vpop.permute.xlu0 %2583
        %2585 = vrot.lane.b32.xlu0 %v2528, 32
        %v2586 = vpop.permute.xlu0 %2585
        %2587 = vrot.lane.b32.xlu0 %v2530, 32
        %v2588 = vpop.permute.xlu0 %2587
        %2589 = vrot.lane.b32.xlu0 %v2533, 32
        %v2590 = vpop.permute.xlu0 %2589
        %2591 = vrot.lane.b32.xlu0 %v2535, 32
        %v2592 = vpop.permute.xlu0 %2591
        %2593 = vrot.lane.b32.xlu0 %v2538, 32
        %v2594 = vpop.permute.xlu0 %2593
        %2595 = vrot.lane.b32.xlu0 %v2540, 32
        %v2596 = vpop.permute.xlu0 %2595
        %2597 = vrot.lane.b32.xlu0 %v2543, 32
        %v2598 = vpop.permute.xlu0 %2597
        %2599 = vrot.lane.b32.xlu0 %v2545, 32
        %v2600 = vpop.permute.xlu0 %2599
        %2601 = vrot.lane.b32.xlu0 %v2548, 32
        %v2602 = vpop.permute.xlu0 %2601
        %2603 = vrot.lane.b32.xlu0 %v2550, 32
        %v2604 = vpop.permute.xlu0 %2603
        %2605 = vrot.lane.b32.xlu0 %v2553, 32
        %v2606 = vpop.permute.xlu0 %2605
        %2607 = vrot.lane.b32.xlu0 %v2555, 32
        %v2608 = vpop.permute.xlu0 %2607
        %2609 = vrot.lane.b32.xlu0 %v2558, 32
        %v2610 = vpop.permute.xlu0 %2609
        %2611 = vrot.lane.b32.xlu0 %v2560, 32
        %v2612 = vpop.permute.xlu0 %2611
        %2613 = vrot.lane.b32.xlu0 %v2563, 32
        %v2614 = vpop.permute.xlu0 %2613
        %2615 = vrot.lane.b32.xlu0 %v2565, 32
        %v2616 = vpop.permute.xlu0 %2615
        %2617 = vrot.lane.b32.xlu0 %v2568, 32
        %v2618 = vpop.permute.xlu0 %2617
        %2619 = vrot.lane.b32.xlu0 %v2570, 32
        %v2620 = vpop.permute.xlu0 %2619
        %2621 = vrot.lane.b32.xlu0 %v2573, 32
        %v2622 = vpop.permute.xlu0 %2621
        %2623 = vrot.lane.b32.xlu0 %v2575, 32
        %v2624 = vpop.permute.xlu0 %2623
        %2625 = vrot.lane.b32.xlu0 %v2578, 32
        %v2626 = vpop.permute.xlu0 %2625
        %2627 = vrot.lane.b32.xlu0 %v2580, 32
        %v2628 = vpop.permute.xlu0 %2627
        %2654 = vrot.lane.b32.xlu0 %v2338, 48
        %v2655 = vpop.permute.xlu0 %2654
        %2656 = vrot.lane.b32.xlu0 %v2260, 48
        %v2657 = vpop.permute.xlu0 %2656
        %2658 = vrot.lane.b32.xlu0 %v2339, 48
        %v2659 = vpop.permute.xlu0 %2658
        %2660 = vrot.lane.b32.xlu0 %v2263, 48
        %v2661 = vpop.permute.xlu0 %2660
        %2662 = vrot.lane.b32.xlu0 %v2340, 48
        %v2663 = vpop.permute.xlu0 %2662
        %2664 = vrot.lane.b32.xlu0 %v2266, 48
        %v2665 = vpop.permute.xlu0 %2664
        %2666 = vrot.lane.b32.xlu0 %v2341, 48
        %v2667 = vpop.permute.xlu0 %2666
        %2668 = vrot.lane.b32.xlu0 %v2269, 48
        %v2669 = vpop.permute.xlu0 %2668
        %2670 = vrot.lane.b32.xlu0 %v2342, 48
        %v2671 = vpop.permute.xlu0 %2670
        %2672 = vrot.lane.b32.xlu0 %v2272, 48
        %v2673 = vpop.permute.xlu0 %2672
        %2674 = vrot.lane.b32.xlu0 %v2343, 48
        %v2675 = vpop.permute.xlu0 %2674
        %2676 = vrot.lane.b32.xlu0 %v2275, 48
        %v2677 = vpop.permute.xlu0 %2676
        %2678 = vrot.lane.b32.xlu0 %v2344, 48
        %v2679 = vpop.permute.xlu0 %2678
        %2680 = vrot.lane.b32.xlu0 %v2278, 48
        %v2681 = vpop.permute.xlu0 %2680
        %2682 = vrot.lane.b32.xlu0 %v2345, 48
        %v2683 = vpop.permute.xlu0 %2682
        %2684 = vrot.lane.b32.xlu0 %v2281, 48
        %v2685 = vpop.permute.xlu0 %2684
        %2686 = vrot.lane.b32.xlu0 %v2346, 48
        %v2687 = vpop.permute.xlu0 %2686
        %2688 = vrot.lane.b32.xlu0 %v2284, 48
        %v2689 = vpop.permute.xlu0 %2688
        %2690 = vrot.lane.b32.xlu0 %v2347, 48
        %v2691 = vpop.permute.xlu0 %2690
        %2692 = vrot.lane.b32.xlu0 %v2287, 48
        %v2693 = vpop.permute.xlu0 %2692
        %2694 = vrot.lane.b32.xlu0 %v2348, 48
        %v2695 = vpop.permute.xlu0 %2694
        %2696 = vrot.lane.b32.xlu0 %v2290, 48
        %v2697 = vpop.permute.xlu0 %2696
        %2698 = vrot.lane.b32.xlu0 %v2349, 48
        %v2699 = vpop.permute.xlu0 %2698
        %2700 = vrot.lane.b32.xlu0 %v2293, 48
        %v2701 = vpop.permute.xlu0 %2700
        %v2727 = vrot.slane %v2349, 1
        %v2728 = vrot.slane %v2293, 1
        %v2729 = vsel %vm648, %v2727, %v2728
        %v2730 = vrot.slane %v2363, 1
        %v2731 = vsel %vm648, %v2728, %v2730
        %2732 = vrot.lane.b32.xlu0 %v2396, 64
        %v2733 = vpop.permute.xlu0 %2732
        %2734 = vrot.lane.b32.xlu0 %v2398, 64
        %v2735 = vpop.permute.xlu0 %2734
        %2736 = vrot.lane.b32.xlu0 %v2401, 64
        %v2737 = vpop.permute.xlu0 %2736
        %2738 = vrot.lane.b32.xlu0 %v2403, 64
        %v2739 = vpop.permute.xlu0 %2738
        %2740 = vrot.lane.b32.xlu0 %v2406, 64
        %v2741 = vpop.permute.xlu0 %2740
        %2742 = vrot.lane.b32.xlu0 %v2408, 64
        %v2743 = vpop.permute.xlu0 %2742
        %2744 = vrot.lane.b32.xlu0 %v2411, 64
        %v2745 = vpop.permute.xlu0 %2744
        %2746 = vrot.lane.b32.xlu0 %v2413, 64
        %v2747 = vpop.permute.xlu0 %2746
        %2748 = vrot.lane.b32.xlu0 %v2416, 64
        %v2749 = vpop.permute.xlu0 %2748
        %2750 = vrot.lane.b32.xlu0 %v2418, 64
        %v2751 = vpop.permute.xlu0 %2750
        %2752 = vrot.lane.b32.xlu0 %v2421, 64
        %v2753 = vpop.permute.xlu0 %2752
        %2754 = vrot.lane.b32.xlu0 %v2423, 64
        %v2755 = vpop.permute.xlu0 %2754
        %2756 = vrot.lane.b32.xlu0 %v2426, 64
        %v2757 = vpop.permute.xlu0 %2756
        %2758 = vrot.lane.b32.xlu0 %v2428, 64
        %v2759 = vpop.permute.xlu0 %2758
        %2760 = vrot.lane.b32.xlu0 %v2431, 64
        %v2761 = vpop.permute.xlu0 %2760
        %2762 = vrot.lane.b32.xlu0 %v2433, 64
        %v2763 = vpop.permute.xlu0 %2762
        %2764 = vrot.lane.b32.xlu0 %v2436, 64
        %v2765 = vpop.permute.xlu0 %2764
        %2766 = vrot.lane.b32.xlu0 %v2438, 64
        %v2767 = vpop.permute.xlu0 %2766
        %2768 = vrot.lane.b32.xlu0 %v2441, 64
        %v2769 = vpop.permute.xlu0 %2768
        %2770 = vrot.lane.b32.xlu0 %v2443, 64
        %v2771 = vpop.permute.xlu0 %2770
        %2772 = vrot.lane.b32.xlu0 %v2446, 64
        %v2773 = vpop.permute.xlu0 %2772
        %2774 = vrot.lane.b32.xlu0 %v2448, 64
        %v2775 = vpop.permute.xlu0 %2774
        %2776 = vrot.lane.b32.xlu0 %v2729, 64
        %v2777 = vpop.permute.xlu0 %2776
        %2778 = vrot.lane.b32.xlu0 %v2731, 64
        %v2779 = vpop.permute.xlu0 %2778
        %v2804 = vrot.slane %v2349, 2
        %v2805 = vrot.slane %v2293, 2
        %v2806 = vsel %vm803, %v2804, %v2805
        %v2807 = vrot.slane %v2363, 2
        %v2808 = vsel %vm803, %v2805, %v2807
        %2809 = vrot.lane.b32.xlu0 %v2528, 80
        %v2810 = vpop.permute.xlu0 %2809
        %2811 = vrot.lane.b32.xlu0 %v2530, 80
        %v2812 = vpop.permute.xlu0 %2811
        %2813 = vrot.lane.b32.xlu0 %v2533, 80
        %v2814 = vpop.permute.xlu0 %2813
        %2815 = vrot.lane.b32.xlu0 %v2535, 80
        %v2816 = vpop.permute.xlu0 %2815
        %2817 = vrot.lane.b32.xlu0 %v2538, 80
        %v2818 = vpop.permute.xlu0 %2817
        %2819 = vrot.lane.b32.xlu0 %v2540, 80
        %v2820 = vpop.permute.xlu0 %2819
        %2821 = vrot.lane.b32.xlu0 %v2543, 80
        %v2822 = vpop.permute.xlu0 %2821
        %2823 = vrot.lane.b32.xlu0 %v2545, 80
        %v2824 = vpop.permute.xlu0 %2823
        %2825 = vrot.lane.b32.xlu0 %v2548, 80
        %v2826 = vpop.permute.xlu0 %2825
        %2827 = vrot.lane.b32.xlu0 %v2550, 80
        %v2828 = vpop.permute.xlu0 %2827
        %2829 = vrot.lane.b32.xlu0 %v2553, 80
        %v2830 = vpop.permute.xlu0 %2829
        %2831 = vrot.lane.b32.xlu0 %v2555, 80
        %v2832 = vpop.permute.xlu0 %2831
        %2833 = vrot.lane.b32.xlu0 %v2558, 80
        %v2834 = vpop.permute.xlu0 %2833
        %2835 = vrot.lane.b32.xlu0 %v2560, 80
        %v2836 = vpop.permute.xlu0 %2835
        %2837 = vrot.lane.b32.xlu0 %v2563, 80
        %v2838 = vpop.permute.xlu0 %2837
        %2839 = vrot.lane.b32.xlu0 %v2565, 80
        %v2840 = vpop.permute.xlu0 %2839
        %2841 = vrot.lane.b32.xlu0 %v2568, 80
        %v2842 = vpop.permute.xlu0 %2841
        %2843 = vrot.lane.b32.xlu0 %v2570, 80
        %v2844 = vpop.permute.xlu0 %2843
        %2845 = vrot.lane.b32.xlu0 %v2573, 80
        %v2846 = vpop.permute.xlu0 %2845
        %2847 = vrot.lane.b32.xlu0 %v2575, 80
        %v2848 = vpop.permute.xlu0 %2847
        %2849 = vrot.lane.b32.xlu0 %v2578, 80
        %v2850 = vpop.permute.xlu0 %2849
        %2851 = vrot.lane.b32.xlu0 %v2580, 80
        %v2852 = vpop.permute.xlu0 %2851
        %2853 = vrot.lane.b32.xlu0 %v2806, 80
        %v2854 = vpop.permute.xlu0 %2853
        %2855 = vrot.lane.b32.xlu0 %v2808, 80
        %v2856 = vpop.permute.xlu0 %2855
        %2882 = vrot.lane.b32.xlu0 %v2339, 96
        %v2883 = vpop.permute.xlu0 %2882
        %2884 = vrot.lane.b32.xlu0 %v2263, 96
        %v2885 = vpop.permute.xlu0 %2884
        %2886 = vrot.lane.b32.xlu0 %v2340, 96
        %v2887 = vpop.permute.xlu0 %2886
        %2888 = vrot.lane.b32.xlu0 %v2266, 96
        %v2889 = vpop.permute.xlu0 %2888
        %2890 = vrot.lane.b32.xlu0 %v2341, 96
        %v2891 = vpop.permute.xlu0 %2890
        %2892 = vrot.lane.b32.xlu0 %v2269, 96
        %v2893 = vpop.permute.xlu0 %2892
        %2894 = vrot.lane.b32.xlu0 %v2342, 96
        %v2895 = vpop.permute.xlu0 %2894
        %2896 = vrot.lane.b32.xlu0 %v2272, 96
        %v2897 = vpop.permute.xlu0 %2896
        %2898 = vrot.lane.b32.xlu0 %v2343, 96
        %v2899 = vpop.permute.xlu0 %2898
        %2900 = vrot.lane.b32.xlu0 %v2275, 96
        %v2901 = vpop.permute.xlu0 %2900
        %2902 = vrot.lane.b32.xlu0 %v2344, 96
        %v2903 = vpop.permute.xlu0 %2902
        %2904 = vrot.lane.b32.xlu0 %v2278, 96
        %v2905 = vpop.permute.xlu0 %2904
        %2906 = vrot.lane.b32.xlu0 %v2345, 96
        %v2907 = vpop.permute.xlu0 %2906
        %2908 = vrot.lane.b32.xlu0 %v2281, 96
        %v2909 = vpop.permute.xlu0 %2908
        %2910 = vrot.lane.b32.xlu0 %v2346, 96
        %v2911 = vpop.permute.xlu0 %2910
        %2912 = vrot.lane.b32.xlu0 %v2284, 96
        %v2913 = vpop.permute.xlu0 %2912
        %2914 = vrot.lane.b32.xlu0 %v2347, 96
        %v2915 = vpop.permute.xlu0 %2914
        %2916 = vrot.lane.b32.xlu0 %v2287, 96
        %v2917 = vpop.permute.xlu0 %2916
        %2918 = vrot.lane.b32.xlu0 %v2348, 96
        %v2919 = vpop.permute.xlu0 %2918
        %2920 = vrot.lane.b32.xlu0 %v2290, 96
        %v2921 = vpop.permute.xlu0 %2920
        %2922 = vrot.lane.b32.xlu0 %v2349, 96
        %v2923 = vpop.permute.xlu0 %2922
        %2924 = vrot.lane.b32.xlu0 %v2293, 96
        %v2925 = vpop.permute.xlu0 %2924
        %2926 = vrot.lane.b32.xlu0 %v2350, 96
        %v2927 = vpop.permute.xlu0 %2926
        %2928 = vrot.lane.b32.xlu0 %v2296, 96
        %v2929 = vpop.permute.xlu0 %2928
        %v2955 = vrot.slane %v2350, 1
        %v2956 = vrot.slane %v2296, 1
        %v2957 = vsel %vm648, %v2955, %v2956
        %v2958 = vrot.slane %v2364, 1
        %v2959 = vsel %vm648, %v2956, %v2958
        %2960 = vrot.lane.b32.xlu0 %v2401, 112
        %v2961 = vpop.permute.xlu0 %2960
        %2962 = vrot.lane.b32.xlu0 %v2403, 112
        %v2963 = vpop.permute.xlu0 %2962
        %2964 = vrot.lane.b32.xlu0 %v2406, 112
        %v2965 = vpop.permute.xlu0 %2964
        %2966 = vrot.lane.b32.xlu0 %v2408, 112
        %v2967 = vpop.permute.xlu0 %2966
        %2968 = vrot.lane.b32.xlu0 %v2411, 112
        %v2969 = vpop.permute.xlu0 %2968
        %2970 = vrot.lane.b32.xlu0 %v2413, 112
        %v2971 = vpop.permute.xlu0 %2970
        %2972 = vrot.lane.b32.xlu0 %v2416, 112
        %v2973 = vpop.permute.xlu0 %2972
        %2974 = vrot.lane.b32.xlu0 %v2418, 112
        %v2975 = vpop.permute.xlu0 %2974
        %2976 = vrot.lane.b32.xlu0 %v2421, 112
        %v2977 = vpop.permute.xlu0 %2976
        %2978 = vrot.lane.b32.xlu0 %v2423, 112
        %v2979 = vpop.permute.xlu0 %2978
        %2980 = vrot.lane.b32.xlu0 %v2426, 112
        %v2981 = vpop.permute.xlu0 %2980
        %2982 = vrot.lane.b32.xlu0 %v2428, 112
        %v2983 = vpop.permute.xlu0 %2982
        %2984 = vrot.lane.b32.xlu0 %v2431, 112
        %v2985 = vpop.permute.xlu0 %2984
        %2986 = vrot.lane.b32.xlu0 %v2433, 112
        %v2987 = vpop.permute.xlu0 %2986
        %2988 = vrot.lane.b32.xlu0 %v2436, 112
        %v2989 = vpop.permute.xlu0 %2988
        %2990 = vrot.lane.b32.xlu0 %v2438, 112
        %v2991 = vpop.permute.xlu0 %2990
        %2992 = vrot.lane.b32.xlu0 %v2441, 112
        %v2993 = vpop.permute.xlu0 %2992
        %2994 = vrot.lane.b32.xlu0 %v2443, 112
        %v2995 = vpop.permute.xlu0 %2994
        %2996 = vrot.lane.b32.xlu0 %v2446, 112
        %v2997 = vpop.permute.xlu0 %2996
        %2998 = vrot.lane.b32.xlu0 %v2448, 112
        %v2999 = vpop.permute.xlu0 %2998
        %3000 = vrot.lane.b32.xlu0 %v2729, 112
        %v3001 = vpop.permute.xlu0 %3000
        %3002 = vrot.lane.b32.xlu0 %v2731, 112
        %v3003 = vpop.permute.xlu0 %3002
        %3004 = vrot.lane.b32.xlu0 %v2957, 112
        %v3005 = vpop.permute.xlu0 %3004
        %3006 = vrot.lane.b32.xlu0 %v2959, 112
        %v3007 = vpop.permute.xlu0 %3006
        %v3032 = vrot.slane %v2350, 2
        %v3033 = vrot.slane %v2296, 2
        %v3034 = vsel %vm803, %v3032, %v3033
        %v3035 = vrot.slane %v2364, 2
        %v3036 = vsel %vm803, %v3033, %v3035
        %vm3037 = vcmask 130048
        %v3038 = vsel %vm3037, %v2337, %v2450
        %v3039 = vsel %vm3037, %v2257, %v2452
        %v3040 = vsel %vm3037, %v2338, %v2454
        %v3041 = vsel %vm3037, %v2260, %v2456
        %v3042 = vsel %vm3037, %v2339, %v2458
        %v3043 = vsel %vm3037, %v2263, %v2460
        %v3044 = vsel %vm3037, %v2340, %v2462
        %v3045 = vsel %vm3037, %v2266, %v2464
        %v3046 = vsel %vm3037, %v2341, %v2466
        %v3047 = vsel %vm3037, %v2269, %v2468
        %v3048 = vsel %vm3037, %v2342, %v2470
        %v3049 = vsel %vm3037, %v2272, %v2472
        %v3050 = vsel %vm3037, %v2343, %v2474
        %v3051 = vsel %vm3037, %v2275, %v2476
        %v3052 = vsel %vm3037, %v2344, %v2478
        %v3053 = vsel %vm3037, %v2278, %v2480
        %v3054 = vsel %vm3037, %v2345, %v2482
        %v3055 = vsel %vm3037, %v2281, %v2484
        %v3056 = vsel %vm3037, %v2346, %v2486
        %v3057 = vsel %vm3037, %v2284, %v2488
        %v3058 = vsel %vm3037, %v2347, %v2490
        %v3059 = vsel %vm3037, %v2287, %v2492
        %v3060 = vsel %vm3037, %v2348, %v2494
        %v3061 = vsel %vm3037, %v2290, %v2496
        %vm3062 = vcmask 261120
        %v3063 = vsel %vm3062, %v3038, %v2582
        %v3064 = vsel %vm3062, %v3039, %v2584
        %v3065 = vsel %vm3062, %v3040, %v2586
        %v3066 = vsel %vm3062, %v3041, %v2588
        %v3067 = vsel %vm3062, %v3042, %v2590
        %v3068 = vsel %vm3062, %v3043, %v2592
        %v3069 = vsel %vm3062, %v3044, %v2594
        %v3070 = vsel %vm3062, %v3045, %v2596
        %v3071 = vsel %vm3062, %v3046, %v2598
        %v3072 = vsel %vm3062, %v3047, %v2600
        %v3073 = vsel %vm3062, %v3048, %v2602
        %v3074 = vsel %vm3062, %v3049, %v2604
        %v3075 = vsel %vm3062, %v3050, %v2606
        %v3076 = vsel %vm3062, %v3051, %v2608
        %v3077 = vsel %vm3062, %v3052, %v2610
        %v3078 = vsel %vm3062, %v3053, %v2612
        %v3079 = vsel %vm3062, %v3054, %v2614
        %v3080 = vsel %vm3062, %v3055, %v2616
        %v3081 = vsel %vm3062, %v3056, %v2618
        %v3082 = vsel %vm3062, %v3057, %v2620
        %v3083 = vsel %vm3062, %v3058, %v2622
        %v3084 = vsel %vm3062, %v3059, %v2624
        %v3085 = vsel %vm3062, %v3060, %v2626
        %v3086 = vsel %vm3062, %v3061, %v2628
        %vm3087 = vcmask 392192
        %v3088 = vsel %vm3087, %v3063, %v2655
        %v3089 = vsel %vm3087, %v3064, %v2657
        %v3090 = vsel %vm3087, %v3065, %v2659
        %v3091 = vsel %vm3087, %v3066, %v2661
        %v3092 = vsel %vm3087, %v3067, %v2663
        %v3093 = vsel %vm3087, %v3068, %v2665
        %v3094 = vsel %vm3087, %v3069, %v2667
        %v3095 = vsel %vm3087, %v3070, %v2669
        %v3096 = vsel %vm3087, %v3071, %v2671
        %v3097 = vsel %vm3087, %v3072, %v2673
        %v3098 = vsel %vm3087, %v3073, %v2675
        %v3099 = vsel %vm3087, %v3074, %v2677
        %v3100 = vsel %vm3087, %v3075, %v2679
        %v3101 = vsel %vm3087, %v3076, %v2681
        %v3102 = vsel %vm3087, %v3077, %v2683
        %v3103 = vsel %vm3087, %v3078, %v2685
        %v3104 = vsel %vm3087, %v3079, %v2687
        %v3105 = vsel %vm3087, %v3080, %v2689
        %v3106 = vsel %vm3087, %v3081, %v2691
        %v3107 = vsel %vm3087, %v3082, %v2693
        %v3108 = vsel %vm3087, %v3083, %v2695
        %v3109 = vsel %vm3087, %v3084, %v2697
        %v3110 = vsel %vm3087, %v3085, %v2699
        %v3111 = vsel %vm3087, %v3086, %v2701
        %vm3112 = vcmask 523264
        %v3113 = vsel %vm3112, %v3088, %v2733
        %v3114 = vsel %vm3112, %v3089, %v2735
        %v3115 = vsel %vm3112, %v3090, %v2737
        %v3116 = vsel %vm3112, %v3091, %v2739
        %v3117 = vsel %vm3112, %v3092, %v2741
        %v3118 = vsel %vm3112, %v3093, %v2743
        %v3119 = vsel %vm3112, %v3094, %v2745
        %v3120 = vsel %vm3112, %v3095, %v2747
        %v3121 = vsel %vm3112, %v3096, %v2749
        %v3122 = vsel %vm3112, %v3097, %v2751
        %v3123 = vsel %vm3112, %v3098, %v2753
        %v3124 = vsel %vm3112, %v3099, %v2755
        %v3125 = vsel %vm3112, %v3100, %v2757
        %v3126 = vsel %vm3112, %v3101, %v2759
        %v3127 = vsel %vm3112, %v3102, %v2761
        %v3128 = vsel %vm3112, %v3103, %v2763
        %v3129 = vsel %vm3112, %v3104, %v2765
        %v3130 = vsel %vm3112, %v3105, %v2767
        %v3131 = vsel %vm3112, %v3106, %v2769
        %v3132 = vsel %vm3112, %v3107, %v2771
        %v3133 = vsel %vm3112, %v3108, %v2773
        %v3134 = vsel %vm3112, %v3109, %v2775
        %v3135 = vsel %vm3112, %v3110, %v2777
        %v3136 = vsel %vm3112, %v3111, %v2779
        %vm3137 = vcmask 654336
        %v3138 = vsel %vm3137, %v3113, %v2810
        %v3139 = vsel %vm3137, %v3114, %v2812
        %v3140 = vsel %vm3137, %v3115, %v2814
        %v3141 = vsel %vm3137, %v3116, %v2816
        %v3142 = vsel %vm3137, %v3117, %v2818
        %v3143 = vsel %vm3137, %v3118, %v2820
        %v3144 = vsel %vm3137, %v3119, %v2822
        %v3145 = vsel %vm3137, %v3120, %v2824
        %v3146 = vsel %vm3137, %v3121, %v2826
        %v3147 = vsel %vm3137, %v3122, %v2828
        %v3148 = vsel %vm3137, %v3123, %v2830
        %v3149 = vsel %vm3137, %v3124, %v2832
        %v3150 = vsel %vm3137, %v3125, %v2834
        %v3151 = vsel %vm3137, %v3126, %v2836
        %v3152 = vsel %vm3137, %v3127, %v2838
        %v3153 = vsel %vm3137, %v3128, %v2840
        %v3154 = vsel %vm3137, %v3129, %v2842
        %v3155 = vsel %vm3137, %v3130, %v2844
        %v3156 = vsel %vm3137, %v3131, %v2846
        %v3157 = vsel %vm3137, %v3132, %v2848
        %v3158 = vsel %vm3137, %v3133, %v2850
        %v3159 = vsel %vm3137, %v3134, %v2852
        %v3160 = vsel %vm3137, %v3135, %v2854
        %v3161 = vsel %vm3137, %v3136, %v2856
        %vm3162 = vcmask 785408
        %v3163 = vsel %vm3162, %v3138, %v2883
        %v3164 = vsel %vm3162, %v3139, %v2885
        %v3165 = vsel %vm3162, %v3140, %v2887
        %v3166 = vsel %vm3162, %v3141, %v2889
        %v3167 = vsel %vm3162, %v3142, %v2891
        %v3168 = vsel %vm3162, %v3143, %v2893
        %v3169 = vsel %vm3162, %v3144, %v2895
        %v3170 = vsel %vm3162, %v3145, %v2897
        %v3171 = vsel %vm3162, %v3146, %v2899
        %v3172 = vsel %vm3162, %v3147, %v2901
        %v3173 = vsel %vm3162, %v3148, %v2903
        %v3174 = vsel %vm3162, %v3149, %v2905
        %v3175 = vsel %vm3162, %v3150, %v2907
        %v3176 = vsel %vm3162, %v3151, %v2909
        %v3177 = vsel %vm3162, %v3152, %v2911
        %v3178 = vsel %vm3162, %v3153, %v2913
        %v3179 = vsel %vm3162, %v3154, %v2915
        %v3180 = vsel %vm3162, %v3155, %v2917
        %v3181 = vsel %vm3162, %v3156, %v2919
        %v3182 = vsel %vm3162, %v3157, %v2921
        %v3183 = vsel %vm3162, %v3158, %v2923
        %v3184 = vsel %vm3162, %v3159, %v2925
        %v3185 = vsel %vm3162, %v3160, %v2927
        %v3186 = vsel %vm3162, %v3161, %v2929
        %vm3187 = vcmask 916480
        %v3188 = vsel %vm3187, %v3163, %v2961
        %v3189 = vsel %vm3187, %v3164, %v2963
        %v3190 = vsel %vm3187, %v3165, %v2965
        %v3191 = vsel %vm3187, %v3166, %v2967
        %v3192 = vsel %vm3187, %v3167, %v2969
        %v3193 = vsel %vm3187, %v3168, %v2971
        %v3194 = vsel %vm3187, %v3169, %v2973
        %v3195 = vsel %vm3187, %v3170, %v2975
        %v3196 = vsel %vm3187, %v3171, %v2977
        %v3197 = vsel %vm3187, %v3172, %v2979
        %v3198 = vsel %vm3187, %v3173, %v2981
        %v3199 = vsel %vm3187, %v3174, %v2983
        %v3200 = vsel %vm3187, %v3175, %v2985
        %v3201 = vsel %vm3187, %v3176, %v2987
        %v3202 = vsel %vm3187, %v3177, %v2989
        %v3203 = vsel %vm3187, %v3178, %v2991
        %v3204 = vsel %vm3187, %v3179, %v2993
        %v3205 = vsel %vm3187, %v3180, %v2995
        %v3206 = vsel %vm3187, %v3181, %v2997
        %v3207 = vsel %vm3187, %v3182, %v2999
        %v3208 = vsel %vm3187, %v3183, %v3001
        %v3209 = vsel %vm3187, %v3184, %v3003
        %v3210 = vsel %vm3187, %v3185, %v3005
        %v3211 = vsel %vm3187, %v3186, %v3007
        %v3212 = vld [vmem:[%s4] sm:$0xff]
        %v3213 = vld [vmem:[%s4 + $0x8] sm:$0xff]
        %v3214 = vld [vmem:[%s4 + $0x10] sm:$0xff]
        %v3215 = vld [vmem:[%s4 + $0x18] sm:$0xff]
        %v3216 = vld [vmem:[%s4 + $0x20] sm:$0xff]
        %v3217 = vld [vmem:[%s4 + $0x28] sm:$0xff]
        %v3218 = vld [vmem:[%s4 + $0x30] sm:$0xff]
        %v3219 = vld [vmem:[%s4 + $0x38] sm:$0xff]
        %v3220 = vld [vmem:[%s4 + $0x40] sm:$0xff]
        %v3221 = vld [vmem:[%s4 + $0x48] sm:$0xff]
        %v3222 = vld [vmem:[%s4 + $0x50] sm:$0xff]
        %v3223 = vld [vmem:[%s4 + $0x58] sm:$0xff]
        %v3224 = vld [vmem:[%s4 + $0x60] sm:$0xff]
        %v3225 = vld [vmem:[%s4 + $0x68] sm:$0xff]
        %v3226 = vld [vmem:[%s4 + $0x70] sm:$0xff]
        %v3227 = vld [vmem:[%s4 + $0x78] sm:$0xff]
        %v3228 = vld [vmem:[%s4 + $0x80] sm:$0xff]
        %v3229 = vld [vmem:[%s4 + $0x88] sm:$0xff]
        %v3230 = vld [vmem:[%s5] sm:$0x1]
        %v3232 = vlaneseq
        %v3233 = vshrl.u32 %v3232, 7
        %v3234 = vsub.s32 0, %v3233
        %v3235 = vrot.slane %v3230, %v3234
        %v3237 = vsel %vm3037, %v2533, 0
        %v3239 = vsel %vm3037, %v2535, 0
        %v3241 = vsel %vm3037, %v2538, 0
        %v3243 = vsel %vm3037, %v2540, 0
        %v3245 = vsel %vm3037, %v2543, 0
        %v3247 = vsel %vm3037, %v2545, 0
        %v3249 = vsel %vm3037, %v2548, 0
        %v3251 = vsel %vm3037, %v2550, 0
        %v3253 = vsel %vm3037, %v2553, 0
        %v3255 = vsel %vm3037, %v2555, 0
        %v3257 = vsel %vm3037, %v2558, 0
        %v3259 = vsel %vm3037, %v2560, 0
        %v3261 = vsel %vm3037, %v2563, 0
        %v3263 = vsel %vm3037, %v2565, 0
        %v3265 = vsel %vm3037, %v2568, 0
        %v3267 = vsel %vm3037, %v2570, 0
        %v3269 = vsel %vm3037, %v2573, 0
        %v3271 = vsel %vm3037, %v2575, 0
        %v3273 = vsel %vm3037, %v2578, 0
        %v3275 = vsel %vm3037, %v2580, 0
        %v3277 = vsel %vm3037, %v2806, 0
        %v3279 = vsel %vm3037, %v2808, 0
        %v3281 = vsel %vm3037, %v3034, 0
        %v3283 = vsel %vm3037, %v3036, 0
        %3285 = vmatprep.subr.mxu0 0.0
        %3286 = vmatpush1.msra.mxu0 %v3227
        %3287 = vmatprep.subr.mxu0 0.0
        %3288 = vmatpush1.msra.mxu0 %v3226
        %3289 = vmatprep.subr.mxu0 0.0
        %3290 = vmatpush1.msra.mxu0 %v3225
        %3291 = vmatprep.subr.mxu0 0.0
        %3292 = vmatpush1.msra.mxu0 %v3224
        %3293 = vmatprep.subr.mxu0 0.0
        %3294 = vmatpush1.msra.mxu0 %v3223
        %3295 = vmatprep.subr.mxu0 0.0
        %3296 = vmatpush1.msra.mxu0 %v3222
        %3297 = vmatprep.subr.mxu0 0.0
        %3298 = vmatpush1.msra.mxu0 %v3221
        %3299 = vmatprep.subr.mxu0 0.0
        %3300 = vmatpush1.msra.mxu0 %v3220
        %3301 = vmatprep.subr.mxu0 0.0
        %3302 = vmatpush1.msra.mxu0 %v3219
        %3303 = vmatprep.subr.mxu0 0.0
        %3304 = vmatpush1.msra.mxu0 %v3218
        %3305 = vmatprep.subr.mxu0 0.0
        %3306 = vmatpush1.msra.mxu0 %v3217
        %3307 = vmatprep.subr.mxu0 0.0
        %3308 = vmatpush1.msra.mxu0 %v3216
        %3309 = vmatprep.subr.mxu0 0.0
        %3310 = vmatpush1.msra.mxu0 %v3215
        %3311 = vmatprep.subr.mxu0 0.0
        %3312 = vmatpush1.msra.mxu0 %v3214
        %3313 = vmatprep.subr.mxu0 0.0
        %3314 = vmatpush1.msra.mxu0 %v3213
        %3315 = vmatprep.subr.mxu0 0.0
        %3316 = vmatpush1.msra.mxu0 %v3212
        %3317 = vmatprep.subr.mxu0 0.0
        %3318 = vmatpush2.msra.mxu0 0.0
        %3319 = vmatprep.subr.mxu0 0.0
        %3320 = vmatpush2.msra.mxu0 0.0
        %3321 = vmatprep.subr.mxu0 0.0
        %3322 = vmatpush2.msra.mxu0 0.0
        %3323 = vmatprep.subr.mxu0 0.0
        %3324 = vmatpush2.msra.mxu0 0.0
        %3325 = vmatprep.subr.mxu0 0.0
        %3326 = vmatpush2.msra.mxu0 0.0
        %3327 = vmatprep.subr.mxu0 0.0
        %3328 = vmatpush2.msra.mxu0 0.0
        %3329 = vmatprep.subr.mxu0 0.0
        %3330 = vmatpush2.msra.mxu0 0.0
        %3331 = vmatprep.subr.mxu0 0.0
        %3332 = vmatpush2.msra.mxu0 0.0
        %3333 = vmatprep.subr.mxu0 0.0
        %3334 = vmatpush2.msra.mxu0 0.0
        %3335 = vmatprep.subr.mxu0 0.0
        %3336 = vmatpush2.msra.mxu0 0.0
        %3337 = vmatprep.subr.mxu0 0.0
        %3338 = vmatpush2.msra.mxu0 0.0
        %3339 = vmatprep.subr.mxu0 0.0
        %3340 = vmatpush2.msra.mxu0 0.0
        %3341 = vmatprep.subr.mxu0 0.0
        %3342 = vmatpush2.msra.mxu0 0.0
        %3343 = vmatprep.subr.mxu0 0.0
        %3344 = vmatpush2.msra.mxu0 0.0
        %3345 = vmatprep.subr.mxu0 0.0
        %3346 = vmatpush2.msra.mxu0 %v3229
        %3347 = vmatprep.subr.mxu0 0.0
        %3348 = vmatpush2.msra.mxu0 %v3228
        %3349 = vmatprep.mubr.f32.mxu0 %v3237
        %3350 = vmatmul.mubr.f32.gmra.mxu0 %v3188
        %v3351 = vpop.f32.mrf.mxu0
        %v3352 = vadd.f32 %v3235, %v3351
        %v3353 = vpop.f32.mrf.mxu0
        %3354 = vmatprep.mubr.f32.mxu0 %v3239
        %3355 = vmatmul.mubr.f32.gmra.mxu0 %v3189
        %v3356 = vpop.f32.mrf.mxu0
        %v3357 = vadd.f32 %v3235, %v3356
        %v3358 = vpop.f32.mrf.mxu0
        %3359 = vmatprep.mubr.f32.mxu0 %v3241
        %3360 = vmatmul.mubr.f32.gmra.mxu0 %v3190
        %v3361 = vpop.f32.mrf.mxu0
        %v3362 = vadd.f32 %v3235, %v3361
        %v3363 = vpop.f32.mrf.mxu0
        %3364 = vmatprep.mubr.f32.mxu0 %v3243
        %3365 = vmatmul.mubr.f32.gmra.mxu0 %v3191
        %v3366 = vpop.f32.mrf.mxu0
        %v3367 = vadd.f32 %v3235, %v3366
        %v3368 = vpop.f32.mrf.mxu0
        %3369 = vmatprep.mubr.f32.mxu0 %v3245
        %3370 = vmatmul.mubr.f32.gmra.mxu0 %v3192
        %v3371 = vpop.f32.mrf.mxu0
        %v3372 = vadd.f32 %v3235, %v3371
        %v3373 = vpop.f32.mrf.mxu0
        %3374 = vmatprep.mubr.f32.mxu0 %v3247
        %3375 = vmatmul.mubr.f32.gmra.mxu0 %v3193
        %v3376 = vpop.f32.mrf.mxu0
        %v3377 = vadd.f32 %v3235, %v3376
        %v3378 = vpop.f32.mrf.mxu0
        %3379 = vmatprep.mubr.f32.mxu0 %v3249
        %3380 = vmatmul.mubr.f32.gmra.mxu0 %v3194
        %v3381 = vpop.f32.mrf.mxu0
        %v3382 = vadd.f32 %v3235, %v3381
        %v3383 = vpop.f32.mrf.mxu0
        %3384 = vmatprep.mubr.f32.mxu0 %v3251
        %3385 = vmatmul.mubr.f32.gmra.mxu0 %v3195
        %v3386 = vpop.f32.mrf.mxu0
        %v3387 = vadd.f32 %v3235, %v3386
        %v3388 = vpop.f32.mrf.mxu0
        %3389 = vmatprep.mubr.f32.mxu0 %v3253
        %3390 = vmatmul.mubr.f32.gmra.mxu0 %v3196
        %v3391 = vpop.f32.mrf.mxu0
        %v3392 = vadd.f32 %v3235, %v3391
        %v3393 = vpop.f32.mrf.mxu0
        %3394 = vmatprep.mubr.f32.mxu0 %v3255
        %3395 = vmatmul.mubr.f32.gmra.mxu0 %v3197
        %v3396 = vpop.f32.mrf.mxu0
        %v3397 = vadd.f32 %v3235, %v3396
        %v3398 = vpop.f32.mrf.mxu0
        %3399 = vmatprep.mubr.f32.mxu0 %v3257
        %3400 = vmatmul.mubr.f32.gmra.mxu0 %v3198
        %v3401 = vpop.f32.mrf.mxu0
        %v3402 = vadd.f32 %v3235, %v3401
        %v3403 = vpop.f32.mrf.mxu0
        %3404 = vmatprep.mubr.f32.mxu0 %v3259
        %3405 = vmatmul.mubr.f32.gmra.mxu0 %v3199
        %v3406 = vpop.f32.mrf.mxu0
        %v3407 = vadd.f32 %v3235, %v3406
        %v3408 = vpop.f32.mrf.mxu0
        %3409 = vmatprep.mubr.f32.mxu0 %v3261
        %3410 = vmatmul.mubr.f32.gmra.mxu0 %v3200
        %v3411 = vpop.f32.mrf.mxu0
        %v3412 = vadd.f32 %v3235, %v3411
        %v3413 = vpop.f32.mrf.mxu0
        %3414 = vmatprep.mubr.f32.mxu0 %v3263
        %3415 = vmatmul.mubr.f32.gmra.mxu0 %v3201
        %v3416 = vpop.f32.mrf.mxu0
        %v3417 = vadd.f32 %v3235, %v3416
        %v3418 = vpop.f32.mrf.mxu0
        %3419 = vmatprep.mubr.f32.mxu0 %v3265
        %3420 = vmatmul.mubr.f32.gmra.mxu0 %v3202
        %v3421 = vpop.f32.mrf.mxu0
        %v3422 = vadd.f32 %v3235, %v3421
        %v3423 = vpop.f32.mrf.mxu0
        %3424 = vmatprep.mubr.f32.mxu0 %v3267
        %3425 = vmatmul.mubr.f32.gmra.mxu0 %v3203
        %v3426 = vpop.f32.mrf.mxu0
        %v3427 = vadd.f32 %v3235, %v3426
        %v3428 = vpop.f32.mrf.mxu0
        %3429 = vmatprep.mubr.f32.mxu0 %v3269
        %3430 = vmatmul.mubr.f32.gmra.mxu0 %v3204
        %v3431 = vpop.f32.mrf.mxu0
        %v3432 = vadd.f32 %v3235, %v3431
        %v3433 = vpop.f32.mrf.mxu0
        %3434 = vmatprep.mubr.f32.mxu0 %v3271
        %3435 = vmatmul.mubr.f32.gmra.mxu0 %v3205
        %v3436 = vpop.f32.mrf.mxu0
        %v3437 = vadd.f32 %v3235, %v3436
        %v3438 = vpop.f32.mrf.mxu0
        %3439 = vmatprep.mubr.f32.mxu0 %v3273
        %3440 = vmatmul.mubr.f32.gmra.mxu0 %v3206
        %v3441 = vpop.f32.mrf.mxu0
        %v3442 = vadd.f32 %v3235, %v3441
        %v3443 = vpop.f32.mrf.mxu0
        %3444 = vmatprep.mubr.f32.mxu0 %v3275
        %3445 = vmatmul.mubr.f32.gmra.mxu0 %v3207
        %v3446 = vpop.f32.mrf.mxu0
        %v3447 = vadd.f32 %v3235, %v3446
        %v3448 = vpop.f32.mrf.mxu0
        %3449 = vmatprep.mubr.f32.mxu0 %v3277
        %3450 = vmatmul.mubr.f32.gmra.mxu0 %v3208
        %v3451 = vpop.f32.mrf.mxu0
        %v3452 = vadd.f32 %v3235, %v3451
        %v3453 = vpop.f32.mrf.mxu0
        %3454 = vmatprep.mubr.f32.mxu0 %v3279
        %3455 = vmatmul.mubr.f32.gmra.mxu0 %v3209
        %v3456 = vpop.f32.mrf.mxu0
        %v3457 = vadd.f32 %v3235, %v3456
        %v3458 = vpop.f32.mrf.mxu0
        %3459 = vmatprep.mubr.f32.mxu0 %v3281
        %3460 = vmatmul.mubr.f32.gmra.mxu0 %v3210
        %v3461 = vpop.f32.mrf.mxu0
        %v3462 = vadd.f32 %v3235, %v3461
        %v3463 = vpop.f32.mrf.mxu0
        %3464 = vmatprep.mubr.f32.mxu0 %v3283
        %3465 = vmatmul.mubr.f32.gmra.mxu0 %v3211
        %v3466 = vpop.f32.mrf.mxu0
        %v3467 = vadd.f32 %v3235, %v3466
        %v3468 = vpop.f32.mrf.mxu0
        %3469 = vdwg.mxu0
        %vm3470 = vcmp.ge.f32.partialorder %v3352, 0.0
        %vm3471 = vcmp.ge.f32.partialorder %v3357, 0.0
        %vm3472 = vcmp.ge.f32.partialorder %v3362, 0.0
        %vm3473 = vcmp.ge.f32.partialorder %v3367, 0.0
        %vm3474 = vcmp.ge.f32.partialorder %v3372, 0.0
        %vm3475 = vcmp.ge.f32.partialorder %v3377, 0.0
        %vm3476 = vcmp.ge.f32.partialorder %v3382, 0.0
        %vm3477 = vcmp.ge.f32.partialorder %v3387, 0.0
        %vm3478 = vcmp.ge.f32.partialorder %v3392, 0.0
        %vm3479 = vcmp.ge.f32.partialorder %v3397, 0.0
        %vm3480 = vcmp.ge.f32.partialorder %v3402, 0.0
        %vm3481 = vcmp.ge.f32.partialorder %v3407, 0.0
        %vm3482 = vcmp.ge.f32.partialorder %v3412, 0.0
        %vm3483 = vcmp.ge.f32.partialorder %v3417, 0.0
        %vm3484 = vcmp.ge.f32.partialorder %v3422, 0.0
        %vm3485 = vcmp.ge.f32.partialorder %v3427, 0.0
        %vm3486 = vcmp.ge.f32.partialorder %v3432, 0.0
        %vm3487 = vcmp.ge.f32.partialorder %v3437, 0.0
        %vm3488 = vcmp.ge.f32.partialorder %v3442, 0.0
        %vm3489 = vcmp.ge.f32.partialorder %v3447, 0.0
        %vm3490 = vcmp.ge.f32.partialorder %v3452, 0.0
        %vm3491 = vcmp.ge.f32.partialorder %v3457, 0.0
        %vm3492 = vcmp.ge.f32.partialorder %v3462, 0.0
        %vm3493 = vcmp.ge.f32.partialorder %v3467, 0.0
        %v3494 = vld [vmem:[%s6] sm:$0x1]
        %v3496 = vlaneseq
        %v3497 = vshrl.u32 %v3496, 7
        %v3498 = vsub.s32 0, %v3497
        %v3499 = vrot.slane %v3494, %v3498
        %v3501 = vmul.f32 %v3352, %v3499
        %v3502 = vmul.f32 %v3357, %v3499
        %v3503 = vmul.f32 %v3362, %v3499
        %v3504 = vmul.f32 %v3367, %v3499
        %v3505 = vmul.f32 %v3372, %v3499
        %v3506 = vmul.f32 %v3377, %v3499
        %v3507 = vmul.f32 %v3382, %v3499
        %v3508 = vmul.f32 %v3387, %v3499
        %v3509 = vmul.f32 %v3392, %v3499
        %v3510 = vmul.f32 %v3397, %v3499
        %v3511 = vmul.f32 %v3402, %v3499
        %v3512 = vmul.f32 %v3407, %v3499
        %v3513 = vmul.f32 %v3412, %v3499
        %v3514 = vmul.f32 %v3417, %v3499
        %v3515 = vmul.f32 %v3422, %v3499
        %v3516 = vmul.f32 %v3427, %v3499
        %v3517 = vmul.f32 %v3432, %v3499
        %v3518 = vmul.f32 %v3437, %v3499
        %v3519 = vmul.f32 %v3442, %v3499
        %v3520 = vmul.f32 %v3447, %v3499
        %v3521 = vmul.f32 %v3452, %v3499
        %v3522 = vmul.f32 %v3457, %v3499
        %v3523 = vmul.f32 %v3462, %v3499
        %v3524 = vmul.f32 %v3467, %v3499
        %v3525 = vsel %vm3470, %v3352, %v3501
        %v3526 = vsel %vm3471, %v3357, %v3502
        %v3527 = vsel %vm3472, %v3362, %v3503
        %v3528 = vsel %vm3473, %v3367, %v3504
        %v3529 = vsel %vm3474, %v3372, %v3505
        %v3530 = vsel %vm3475, %v3377, %v3506
        %v3531 = vsel %vm3476, %v3382, %v3507
        %v3532 = vsel %vm3477, %v3387, %v3508
        %v3533 = vsel %vm3478, %v3392, %v3509
        %v3534 = vsel %vm3479, %v3397, %v3510
        %v3535 = vsel %vm3480, %v3402, %v3511
        %v3536 = vsel %vm3481, %v3407, %v3512
        %v3537 = vsel %vm3482, %v3412, %v3513
        %v3538 = vsel %vm3483, %v3417, %v3514
        %v3539 = vsel %vm3484, %v3422, %v3515
        %v3540 = vsel %vm3485, %v3427, %v3516
        %v3541 = vsel %vm3486, %v3432, %v3517
        %v3542 = vsel %vm3487, %v3437, %v3518
        %v3543 = vsel %vm3488, %v3442, %v3519
        %v3544 = vsel %vm3489, %v3447, %v3520
        %v3545 = vsel %vm3490, %v3452, %v3521
        %v3546 = vsel %vm3491, %v3457, %v3522
        %v3547 = vsel %vm3492, %v3462, %v3523
        %v3548 = vsel %vm3493, %v3467, %v3524
        %s3549 = ssub.s32 %s426, 2
        %v3550 = vstv %s3549
        %v3551 = vadd.s32 %v3550, 1
        %v3552 = vadd.s32 %v3550, 2
        %v3553 = vadd.s32 %v3550, 3
        %v3554 = vadd.s32 %v3550, 4
        %v3555 = vadd.s32 %v3550, 5
        %v3556 = vadd.s32 %v3550, 6
        %v3557 = vadd.s32 %v3550, 7
        %v3558 = vadd.s32 %v3550, 8
        %v3559 = vadd.s32 %v3550, 9
        %v3560 = vadd.s32 %v3550, 10
        %v3561 = vadd.s32 %v3550, 11
        %vm3562 = vcmp.ge.s32.totalorder %v3550, 0
        %vm3563 = vcmp.ge.s32.totalorder %v3551, 0
        %vm3564 = vcmp.ge.s32.totalorder %v3552, 0
        %vm3565 = vcmp.ge.s32.totalorder %v3553, 0
        %vm3566 = vcmp.ge.s32.totalorder %v3554, 0
        %vm3567 = vcmp.ge.s32.totalorder %v3555, 0
        %vm3568 = vcmp.ge.s32.totalorder %v3556, 0
        %vm3569 = vcmp.ge.s32.totalorder %v3557, 0
        %vm3570 = vcmp.ge.s32.totalorder %v3558, 0
        %vm3571 = vcmp.ge.s32.totalorder %v3559, 0
        %vm3572 = vcmp.ge.s32.totalorder %v3560, 0
        %vm3573 = vcmp.ge.s32.totalorder %v3561, 0
        %vm3574 = vcmp.lt.s32.totalorder %v3550, 16
        %vm3575 = vcmp.lt.s32.totalorder %v3551, 16
        %vm3576 = vcmp.lt.s32.totalorder %v3552, 16
        %vm3577 = vcmp.lt.s32.totalorder %v3553, 16
        %vm3578 = vcmp.lt.s32.totalorder %v3554, 16
        %vm3579 = vcmp.lt.s32.totalorder %v3555, 16
        %vm3580 = vcmp.lt.s32.totalorder %v3556, 16
        %vm3581 = vcmp.lt.s32.totalorder %v3557, 16
        %vm3582 = vcmp.lt.s32.totalorder %v3558, 16
        %vm3583 = vcmp.lt.s32.totalorder %v3559, 16
        %vm3584 = vcmp.lt.s32.totalorder %v3560, 16
        %vm3585 = vcmp.lt.s32.totalorder %v3561, 16
        %vm3586 = vmand %vm3562, %vm3574
        %vm3587 = vmand %vm3563, %vm3575
        %vm3588 = vmand %vm3564, %vm3576
        %vm3589 = vmand %vm3565, %vm3577
        %vm3590 = vmand %vm3566, %vm3578
        %vm3591 = vmand %vm3567, %vm3579
        %vm3592 = vmand %vm3568, %vm3580
        %vm3593 = vmand %vm3569, %vm3581
        %vm3594 = vmand %vm3570, %vm3582
        %vm3595 = vmand %vm3571, %vm3583
        %vm3596 = vmand %vm3572, %vm3584
        %vm3597 = vmand %vm3573, %vm3585
        %v3598 = vsel %vm3586, 1, 0
        %v3599 = vsel %vm3587, 1, 0
        %v3600 = vsel %vm3588, 1, 0
        %v3601 = vsel %vm3589, 1, 0
        %v3602 = vsel %vm3590, 1, 0
        %v3603 = vsel %vm3591, 1, 0
        %v3604 = vsel %vm3592, 1, 0
        %v3605 = vsel %vm3593, 1, 0
        %v3606 = vsel %vm3594, 1, 0
        %v3607 = vsel %vm3595, 1, 0
        %v3608 = vsel %vm3596, 1, 0
        %v3609 = vsel %vm3597, 1, 0
        %vm3610 = vcmp.eq.s32.totalorder %v3598, 1
        %vm3611 = vcmp.eq.s32.totalorder %v3599, 1
        %vm3612 = vcmp.eq.s32.totalorder %v3600, 1
        %vm3613 = vcmp.eq.s32.totalorder %v3601, 1
        %vm3614 = vcmp.eq.s32.totalorder %v3602, 1
        %vm3615 = vcmp.eq.s32.totalorder %v3603, 1
        %vm3616 = vcmp.eq.s32.totalorder %v3604, 1
        %vm3617 = vcmp.eq.s32.totalorder %v3605, 1
        %vm3618 = vcmp.eq.s32.totalorder %v3606, 1
        %vm3619 = vcmp.eq.s32.totalorder %v3607, 1
        %vm3620 = vcmp.eq.s32.totalorder %v3608, 1
        %vm3621 = vcmp.eq.s32.totalorder %v3609, 1
        %v3622 = vsel %vm3610, %v3525, 0.0
        %v3623 = vsel %vm3610, %v3526, 0.0
        %v3624 = vsel %vm3611, %v3527, 0.0
        %v3625 = vsel %vm3611, %v3528, 0.0
        %v3626 = vsel %vm3612, %v3529, 0.0
        %v3627 = vsel %vm3612, %v3530, 0.0
        %v3628 = vsel %vm3613, %v3531, 0.0
        %v3629 = vsel %vm3613, %v3532, 0.0
        %v3630 = vsel %vm3614, %v3533, 0.0
        %v3631 = vsel %vm3614, %v3534, 0.0
        %v3632 = vsel %vm3615, %v3535, 0.0
        %v3633 = vsel %vm3615, %v3536, 0.0
        %v3634 = vsel %vm3616, %v3537, 0.0
        %v3635 = vsel %vm3616, %v3538, 0.0
        %v3636 = vsel %vm3617, %v3539, 0.0
        %v3637 = vsel %vm3617, %v3540, 0.0
        %v3638 = vsel %vm3618, %v3541, 0.0
        %v3639 = vsel %vm3618, %v3542, 0.0
        %v3640 = vsel %vm3619, %v3543, 0.0
        %v3641 = vsel %vm3619, %v3544, 0.0
        %v3642 = vsel %vm3620, %v3545, 0.0
        %v3643 = vsel %vm3620, %v3546, 0.0
        %v3644 = vsel %vm3621, %v3547, 0.0
        %v3645 = vsel %vm3621, %v3548, 0.0
        %v3670 = vrot.slane %v3622, 7
        %v3671 = vrot.slane %v3623, 7
        %v3672 = vsel %vm493, %v3670, %v3671
        %v3673 = vrot.slane %v3624, 7
        %v3674 = vrot.slane %v3625, 7
        %v3675 = vsel %vm493, %v3673, %v3674
        %v3676 = vrot.slane %v3626, 7
        %v3677 = vrot.slane %v3627, 7
        %v3678 = vsel %vm493, %v3676, %v3677
        %v3679 = vrot.slane %v3628, 7
        %v3680 = vrot.slane %v3629, 7
        %v3681 = vsel %vm493, %v3679, %v3680
        %v3682 = vrot.slane %v3630, 7
        %v3683 = vrot.slane %v3631, 7
        %v3684 = vsel %vm493, %v3682, %v3683
        %v3685 = vrot.slane %v3632, 7
        %v3686 = vrot.slane %v3633, 7
        %v3687 = vsel %vm493, %v3685, %v3686
        %v3688 = vrot.slane %v3634, 7
        %v3689 = vrot.slane %v3635, 7
        %v3690 = vsel %vm493, %v3688, %v3689
        %v3691 = vrot.slane %v3636, 7
        %v3692 = vrot.slane %v3637, 7
        %v3693 = vsel %vm493, %v3691, %v3692
        %v3694 = vrot.slane %v3638, 7
        %v3695 = vrot.slane %v3639, 7
        %v3696 = vsel %vm493, %v3694, %v3695
        %v3697 = vrot.slane %v3640, 7
        %v3698 = vrot.slane %v3641, 7
        %v3699 = vsel %vm493, %v3697, %v3698
        %v3700 = vrot.slane %v3642, 7
        %v3701 = vrot.slane %v3643, 7
        %v3702 = vsel %vm493, %v3700, %v3701
        %v3703 = vrot.slane %v3644, 7
        %v3704 = vrot.slane %v3645, 7
        %v3705 = vsel %vm493, %v3703, %v3704
        %v3740 = vsel %vm493, 0.0, %v3670
        %v3741 = vsel %vm493, 0.0, %v3673
        %v3742 = vsel %vm493, 0.0, %v3676
        %v3743 = vsel %vm493, 0.0, %v3679
        %v3744 = vsel %vm493, 0.0, %v3682
        %v3745 = vsel %vm493, 0.0, %v3685
        %v3746 = vsel %vm493, 0.0, %v3688
        %v3747 = vsel %vm493, 0.0, %v3691
        %v3748 = vsel %vm493, 0.0, %v3694
        %v3749 = vsel %vm493, 0.0, %v3697
        %v3750 = vsel %vm493, 0.0, %v3700
        %v3751 = vsel %vm493, 0.0, %v3703
        %v3752 = vsel %vm493, %v3671, 0.0
        %v3753 = vsel %vm493, %v3674, 0.0
        %v3754 = vsel %vm493, %v3677, 0.0
        %v3755 = vsel %vm493, %v3680, 0.0
        %v3756 = vsel %vm493, %v3683, 0.0
        %v3757 = vsel %vm493, %v3686, 0.0
        %v3758 = vsel %vm493, %v3689, 0.0
        %v3759 = vsel %vm493, %v3692, 0.0
        %v3760 = vsel %vm493, %v3695, 0.0
        %v3761 = vsel %vm493, %v3698, 0.0
        %v3762 = vsel %vm493, %v3701, 0.0
        %v3763 = vsel %vm493, %v3704, 0.0
        %v3784 = vrot.slane %v3740, 1
        %v3785 = vrot.slane %v3672, 1
        %v3786 = vsel %vm648, %v3784, %v3785
        %v3787 = vrot.slane %v3752, 1
        %v3788 = vsel %vm648, %v3785, %v3787
        %v3789 = vrot.slane %v3741, 1
        %v3790 = vrot.slane %v3675, 1
        %v3791 = vsel %vm648, %v3789, %v3790
        %v3792 = vrot.slane %v3753, 1
        %v3793 = vsel %vm648, %v3790, %v3792
        %v3794 = vrot.slane %v3742, 1
        %v3795 = vrot.slane %v3678, 1
        %v3796 = vsel %vm648, %v3794, %v3795
        %v3797 = vrot.slane %v3754, 1
        %v3798 = vsel %vm648, %v3795, %v3797
        %v3799 = vrot.slane %v3743, 1
        %v3800 = vrot.slane %v3681, 1
        %v3801 = vsel %vm648, %v3799, %v3800
        %v3802 = vrot.slane %v3755, 1
        %v3803 = vsel %vm648, %v3800, %v3802
        %v3804 = vrot.slane %v3744, 1
        %v3805 = vrot.slane %v3684, 1
        %v3806 = vsel %vm648, %v3804, %v3805
        %v3807 = vrot.slane %v3756, 1
        %v3808 = vsel %vm648, %v3805, %v3807
        %v3809 = vrot.slane %v3745, 1
        %v3810 = vrot.slane %v3687, 1
        %v3811 = vsel %vm648, %v3809, %v3810
        %v3812 = vrot.slane %v3757, 1
        %v3813 = vsel %vm648, %v3810, %v3812
        %v3814 = vrot.slane %v3746, 1
        %v3815 = vrot.slane %v3690, 1
        %v3816 = vsel %vm648, %v3814, %v3815
        %v3817 = vrot.slane %v3758, 1
        %v3818 = vsel %vm648, %v3815, %v3817
        %v3819 = vrot.slane %v3747, 1
        %v3820 = vrot.slane %v3693, 1
        %v3821 = vsel %vm648, %v3819, %v3820
        %v3822 = vrot.slane %v3759, 1
        %v3823 = vsel %vm648, %v3820, %v3822
        %v3824 = vrot.slane %v3748, 1
        %v3825 = vrot.slane %v3696, 1
        %v3826 = vsel %vm648, %v3824, %v3825
        %v3827 = vrot.slane %v3760, 1
        %v3828 = vsel %vm648, %v3825, %v3827
        %v3829 = vrot.slane %v3749, 1
        %v3830 = vrot.slane %v3699, 1
        %v3831 = vsel %vm648, %v3829, %v3830
        %v3832 = vrot.slane %v3761, 1
        %v3833 = vsel %vm648, %v3830, %v3832
        %3834 = vrot.lane.b32.xlu0 %v3786, 16
        %v3835 = vpop.permute.xlu0 %3834
        %3836 = vrot.lane.b32.xlu0 %v3788, 16
        %v3837 = vpop.permute.xlu0 %3836
        %3838 = vrot.lane.b32.xlu0 %v3791, 16
        %v3839 = vpop.permute.xlu0 %3838
        %3840 = vrot.lane.b32.xlu0 %v3793, 16
        %v3841 = vpop.permute.xlu0 %3840
        %3842 = vrot.lane.b32.xlu0 %v3796, 16
        %v3843 = vpop.permute.xlu0 %3842
        %3844 = vrot.lane.b32.xlu0 %v3798, 16
        %v3845 = vpop.permute.xlu0 %3844
        %3846 = vrot.lane.b32.xlu0 %v3801, 16
        %v3847 = vpop.permute.xlu0 %3846
        %3848 = vrot.lane.b32.xlu0 %v3803, 16
        %v3849 = vpop.permute.xlu0 %3848
        %3850 = vrot.lane.b32.xlu0 %v3806, 16
        %v3851 = vpop.permute.xlu0 %3850
        %3852 = vrot.lane.b32.xlu0 %v3808, 16
        %v3853 = vpop.permute.xlu0 %3852
        %3854 = vrot.lane.b32.xlu0 %v3811, 16
        %v3855 = vpop.permute.xlu0 %3854
        %3856 = vrot.lane.b32.xlu0 %v3813, 16
        %v3857 = vpop.permute.xlu0 %3856
        %3858 = vrot.lane.b32.xlu0 %v3816, 16
        %v3859 = vpop.permute.xlu0 %3858
        %3860 = vrot.lane.b32.xlu0 %v3818, 16
        %v3861 = vpop.permute.xlu0 %3860
        %3862 = vrot.lane.b32.xlu0 %v3821, 16
        %v3863 = vpop.permute.xlu0 %3862
        %3864 = vrot.lane.b32.xlu0 %v3823, 16
        %v3865 = vpop.permute.xlu0 %3864
        %3866 = vrot.lane.b32.xlu0 %v3826, 16
        %v3867 = vpop.permute.xlu0 %3866
        %3868 = vrot.lane.b32.xlu0 %v3828, 16
        %v3869 = vpop.permute.xlu0 %3868
        %3870 = vrot.lane.b32.xlu0 %v3831, 16
        %v3871 = vpop.permute.xlu0 %3870
        %3872 = vrot.lane.b32.xlu0 %v3833, 16
        %v3873 = vpop.permute.xlu0 %3872
        %v3894 = vrot.slane %v3740, 2
        %v3895 = vrot.slane %v3672, 2
        %v3896 = vsel %vm803, %v3894, %v3895
        %v3897 = vrot.slane %v3752, 2
        %v3898 = vsel %vm803, %v3895, %v3897
        %v3899 = vrot.slane %v3741, 2
        %v3900 = vrot.slane %v3675, 2
        %v3901 = vsel %vm803, %v3899, %v3900
        %v3902 = vrot.slane %v3753, 2
        %v3903 = vsel %vm803, %v3900, %v3902
        %v3904 = vrot.slane %v3742, 2
        %v3905 = vrot.slane %v3678, 2
        %v3906 = vsel %vm803, %v3904, %v3905
        %v3907 = vrot.slane %v3754, 2
        %v3908 = vsel %vm803, %v3905, %v3907
        %v3909 = vrot.slane %v3743, 2
        %v3910 = vrot.slane %v3681, 2
        %v3911 = vsel %vm803, %v3909, %v3910
        %v3912 = vrot.slane %v3755, 2
        %v3913 = vsel %vm803, %v3910, %v3912
        %v3914 = vrot.slane %v3744, 2
        %v3915 = vrot.slane %v3684, 2
        %v3916 = vsel %vm803, %v3914, %v3915
        %v3917 = vrot.slane %v3756, 2
        %v3918 = vsel %vm803, %v3915, %v3917
        %v3919 = vrot.slane %v3745, 2
        %v3920 = vrot.slane %v3687, 2
        %v3921 = vsel %vm803, %v3919, %v3920
        %v3922 = vrot.slane %v3757, 2
        %v3923 = vsel %vm803, %v3920, %v3922
        %v3924 = vrot.slane %v3746, 2
        %v3925 = vrot.slane %v3690, 2
        %v3926 = vsel %vm803, %v3924, %v3925
        %v3927 = vrot.slane %v3758, 2
        %v3928 = vsel %vm803, %v3925, %v3927
        %v3929 = vrot.slane %v3747, 2
        %v3930 = vrot.slane %v3693, 2
        %v3931 = vsel %vm803, %v3929, %v3930
        %v3932 = vrot.slane %v3759, 2
        %v3933 = vsel %vm803, %v3930, %v3932
        %v3934 = vrot.slane %v3748, 2
        %v3935 = vrot.slane %v3696, 2
        %v3936 = vsel %vm803, %v3934, %v3935
        %v3937 = vrot.slane %v3760, 2
        %v3938 = vsel %vm803, %v3935, %v3937
        %v3939 = vrot.slane %v3749, 2
        %v3940 = vrot.slane %v3699, 2
        %v3941 = vsel %vm803, %v3939, %v3940
        %v3942 = vrot.slane %v3761, 2
        %v3943 = vsel %vm803, %v3940, %v3942
        %3944 = vrot.lane.b32.xlu0 %v3896, 32
        %v3945 = vpop.permute.xlu0 %3944
        %3946 = vrot.lane.b32.xlu0 %v3898, 32
        %v3947 = vpop.permute.xlu0 %3946
        %3948 = vrot.lane.b32.xlu0 %v3901, 32
        %v3949 = vpop.permute.xlu0 %3948
        %3950 = vrot.lane.b32.xlu0 %v3903, 32
        %v3951 = vpop.permute.xlu0 %3950
        %3952 = vrot.lane.b32.xlu0 %v3906, 32
        %v3953 = vpop.permute.xlu0 %3952
        %3954 = vrot.lane.b32.xlu0 %v3908, 32
        %v3955 = vpop.permute.xlu0 %3954
        %3956 = vrot.lane.b32.xlu0 %v3911, 32
        %v3957 = vpop.permute.xlu0 %3956
        %3958 = vrot.lane.b32.xlu0 %v3913, 32
        %v3959 = vpop.permute.xlu0 %3958
        %3960 = vrot.lane.b32.xlu0 %v3916, 32
        %v3961 = vpop.permute.xlu0 %3960
        %3962 = vrot.lane.b32.xlu0 %v3918, 32
        %v3963 = vpop.permute.xlu0 %3962
        %3964 = vrot.lane.b32.xlu0 %v3921, 32
        %v3965 = vpop.permute.xlu0 %3964
        %3966 = vrot.lane.b32.xlu0 %v3923, 32
        %v3967 = vpop.permute.xlu0 %3966
        %3968 = vrot.lane.b32.xlu0 %v3926, 32
        %v3969 = vpop.permute.xlu0 %3968
        %3970 = vrot.lane.b32.xlu0 %v3928, 32
        %v3971 = vpop.permute.xlu0 %3970
        %3972 = vrot.lane.b32.xlu0 %v3931, 32
        %v3973 = vpop.permute.xlu0 %3972
        %3974 = vrot.lane.b32.xlu0 %v3933, 32
        %v3975 = vpop.permute.xlu0 %3974
        %3976 = vrot.lane.b32.xlu0 %v3936, 32
        %v3977 = vpop.permute.xlu0 %3976
        %3978 = vrot.lane.b32.xlu0 %v3938, 32
        %v3979 = vpop.permute.xlu0 %3978
        %3980 = vrot.lane.b32.xlu0 %v3941, 32
        %v3981 = vpop.permute.xlu0 %3980
        %3982 = vrot.lane.b32.xlu0 %v3943, 32
        %v3983 = vpop.permute.xlu0 %3982
        %4005 = vrot.lane.b32.xlu0 %v3741, 48
        %v4006 = vpop.permute.xlu0 %4005
        %4007 = vrot.lane.b32.xlu0 %v3675, 48
        %v4008 = vpop.permute.xlu0 %4007
        %4009 = vrot.lane.b32.xlu0 %v3742, 48
        %v4010 = vpop.permute.xlu0 %4009
        %4011 = vrot.lane.b32.xlu0 %v3678, 48
        %v4012 = vpop.permute.xlu0 %4011
        %4013 = vrot.lane.b32.xlu0 %v3743, 48
        %v4014 = vpop.permute.xlu0 %4013
        %4015 = vrot.lane.b32.xlu0 %v3681, 48
        %v4016 = vpop.permute.xlu0 %4015
        %4017 = vrot.lane.b32.xlu0 %v3744, 48
        %v4018 = vpop.permute.xlu0 %4017
        %4019 = vrot.lane.b32.xlu0 %v3684, 48
        %v4020 = vpop.permute.xlu0 %4019
        %4021 = vrot.lane.b32.xlu0 %v3745, 48
        %v4022 = vpop.permute.xlu0 %4021
        %4023 = vrot.lane.b32.xlu0 %v3687, 48
        %v4024 = vpop.permute.xlu0 %4023
        %4025 = vrot.lane.b32.xlu0 %v3746, 48
        %v4026 = vpop.permute.xlu0 %4025
        %4027 = vrot.lane.b32.xlu0 %v3690, 48
        %v4028 = vpop.permute.xlu0 %4027
        %4029 = vrot.lane.b32.xlu0 %v3747, 48
        %v4030 = vpop.permute.xlu0 %4029
        %4031 = vrot.lane.b32.xlu0 %v3693, 48
        %v4032 = vpop.permute.xlu0 %4031
        %4033 = vrot.lane.b32.xlu0 %v3748, 48
        %v4034 = vpop.permute.xlu0 %4033
        %4035 = vrot.lane.b32.xlu0 %v3696, 48
        %v4036 = vpop.permute.xlu0 %4035
        %4037 = vrot.lane.b32.xlu0 %v3749, 48
        %v4038 = vpop.permute.xlu0 %4037
        %4039 = vrot.lane.b32.xlu0 %v3699, 48
        %v4040 = vpop.permute.xlu0 %4039
        %4041 = vrot.lane.b32.xlu0 %v3750, 48
        %v4042 = vpop.permute.xlu0 %4041
        %4043 = vrot.lane.b32.xlu0 %v3702, 48
        %v4044 = vpop.permute.xlu0 %4043
        %v4066 = vrot.slane %v3750, 1
        %v4067 = vrot.slane %v3702, 1
        %v4068 = vsel %vm648, %v4066, %v4067
        %v4069 = vrot.slane %v3762, 1
        %v4070 = vsel %vm648, %v4067, %v4069
        %4071 = vrot.lane.b32.xlu0 %v3791, 64
        %v4072 = vpop.permute.xlu0 %4071
        %4073 = vrot.lane.b32.xlu0 %v3793, 64
        %v4074 = vpop.permute.xlu0 %4073
        %4075 = vrot.lane.b32.xlu0 %v3796, 64
        %v4076 = vpop.permute.xlu0 %4075
        %4077 = vrot.lane.b32.xlu0 %v3798, 64
        %v4078 = vpop.permute.xlu0 %4077
        %4079 = vrot.lane.b32.xlu0 %v3801, 64
        %v4080 = vpop.permute.xlu0 %4079
        %4081 = vrot.lane.b32.xlu0 %v3803, 64
        %v4082 = vpop.permute.xlu0 %4081
        %4083 = vrot.lane.b32.xlu0 %v3806, 64
        %v4084 = vpop.permute.xlu0 %4083
        %4085 = vrot.lane.b32.xlu0 %v3808, 64
        %v4086 = vpop.permute.xlu0 %4085
        %4087 = vrot.lane.b32.xlu0 %v3811, 64
        %v4088 = vpop.permute.xlu0 %4087
        %4089 = vrot.lane.b32.xlu0 %v3813, 64
        %v4090 = vpop.permute.xlu0 %4089
        %4091 = vrot.lane.b32.xlu0 %v3816, 64
        %v4092 = vpop.permute.xlu0 %4091
        %4093 = vrot.lane.b32.xlu0 %v3818, 64
        %v4094 = vpop.permute.xlu0 %4093
        %4095 = vrot.lane.b32.xlu0 %v3821, 64
        %v4096 = vpop.permute.xlu0 %4095
        %4097 = vrot.lane.b32.xlu0 %v3823, 64
        %v4098 = vpop.permute.xlu0 %4097
        %4099 = vrot.lane.b32.xlu0 %v3826, 64
        %v4100 = vpop.permute.xlu0 %4099
        %4101 = vrot.lane.b32.xlu0 %v3828, 64
        %v4102 = vpop.permute.xlu0 %4101
        %4103 = vrot.lane.b32.xlu0 %v3831, 64
        %v4104 = vpop.permute.xlu0 %4103
        %4105 = vrot.lane.b32.xlu0 %v3833, 64
        %v4106 = vpop.permute.xlu0 %4105
        %4107 = vrot.lane.b32.xlu0 %v4068, 64
        %v4108 = vpop.permute.xlu0 %4107
        %4109 = vrot.lane.b32.xlu0 %v4070, 64
        %v4110 = vpop.permute.xlu0 %4109
        %v4131 = vrot.slane %v3750, 2
        %v4132 = vrot.slane %v3702, 2
        %v4133 = vsel %vm803, %v4131, %v4132
        %v4134 = vrot.slane %v3762, 2
        %v4135 = vsel %vm803, %v4132, %v4134
        %4136 = vrot.lane.b32.xlu0 %v3901, 80
        %v4137 = vpop.permute.xlu0 %4136
        %4138 = vrot.lane.b32.xlu0 %v3903, 80
        %v4139 = vpop.permute.xlu0 %4138
        %4140 = vrot.lane.b32.xlu0 %v3906, 80
        %v4141 = vpop.permute.xlu0 %4140
        %4142 = vrot.lane.b32.xlu0 %v3908, 80
        %v4143 = vpop.permute.xlu0 %4142
        %4144 = vrot.lane.b32.xlu0 %v3911, 80
        %v4145 = vpop.permute.xlu0 %4144
        %4146 = vrot.lane.b32.xlu0 %v3913, 80
        %v4147 = vpop.permute.xlu0 %4146
        %4148 = vrot.lane.b32.xlu0 %v3916, 80
        %v4149 = vpop.permute.xlu0 %4148
        %4150 = vrot.lane.b32.xlu0 %v3918, 80
        %v4151 = vpop.permute.xlu0 %4150
        %4152 = vrot.lane.b32.xlu0 %v3921, 80
        %v4153 = vpop.permute.xlu0 %4152
        %4154 = vrot.lane.b32.xlu0 %v3923, 80
        %v4155 = vpop.permute.xlu0 %4154
        %4156 = vrot.lane.b32.xlu0 %v3926, 80
        %v4157 = vpop.permute.xlu0 %4156
        %4158 = vrot.lane.b32.xlu0 %v3928, 80
        %v4159 = vpop.permute.xlu0 %4158
        %4160 = vrot.lane.b32.xlu0 %v3931, 80
        %v4161 = vpop.permute.xlu0 %4160
        %4162 = vrot.lane.b32.xlu0 %v3933, 80
        %v4163 = vpop.permute.xlu0 %4162
        %4164 = vrot.lane.b32.xlu0 %v3936, 80
        %v4165 = vpop.permute.xlu0 %4164
        %4166 = vrot.lane.b32.xlu0 %v3938, 80
        %v4167 = vpop.permute.xlu0 %4166
        %4168 = vrot.lane.b32.xlu0 %v3941, 80
        %v4169 = vpop.permute.xlu0 %4168
        %4170 = vrot.lane.b32.xlu0 %v3943, 80
        %v4171 = vpop.permute.xlu0 %4170
        %4172 = vrot.lane.b32.xlu0 %v4133, 80
        %v4173 = vpop.permute.xlu0 %4172
        %4174 = vrot.lane.b32.xlu0 %v4135, 80
        %v4175 = vpop.permute.xlu0 %4174
        %4197 = vrot.lane.b32.xlu0 %v3742, 96
        %v4198 = vpop.permute.xlu0 %4197
        %4199 = vrot.lane.b32.xlu0 %v3678, 96
        %v4200 = vpop.permute.xlu0 %4199
        %4201 = vrot.lane.b32.xlu0 %v3743, 96
        %v4202 = vpop.permute.xlu0 %4201
        %4203 = vrot.lane.b32.xlu0 %v3681, 96
        %v4204 = vpop.permute.xlu0 %4203
        %4205 = vrot.lane.b32.xlu0 %v3744, 96
        %v4206 = vpop.permute.xlu0 %4205
        %4207 = vrot.lane.b32.xlu0 %v3684, 96
        %v4208 = vpop.permute.xlu0 %4207
        %4209 = vrot.lane.b32.xlu0 %v3745, 96
        %v4210 = vpop.permute.xlu0 %4209
        %4211 = vrot.lane.b32.xlu0 %v3687, 96
        %v4212 = vpop.permute.xlu0 %4211
        %4213 = vrot.lane.b32.xlu0 %v3746, 96
        %v4214 = vpop.permute.xlu0 %4213
        %4215 = vrot.lane.b32.xlu0 %v3690, 96
        %v4216 = vpop.permute.xlu0 %4215
        %4217 = vrot.lane.b32.xlu0 %v3747, 96
        %v4218 = vpop.permute.xlu0 %4217
        %4219 = vrot.lane.b32.xlu0 %v3693, 96
        %v4220 = vpop.permute.xlu0 %4219
        %4221 = vrot.lane.b32.xlu0 %v3748, 96
        %v4222 = vpop.permute.xlu0 %4221
        %4223 = vrot.lane.b32.xlu0 %v3696, 96
        %v4224 = vpop.permute.xlu0 %4223
        %4225 = vrot.lane.b32.xlu0 %v3749, 96
        %v4226 = vpop.permute.xlu0 %4225
        %4227 = vrot.lane.b32.xlu0 %v3699, 96
        %v4228 = vpop.permute.xlu0 %4227
        %4229 = vrot.lane.b32.xlu0 %v3750, 96
        %v4230 = vpop.permute.xlu0 %4229
        %4231 = vrot.lane.b32.xlu0 %v3702, 96
        %v4232 = vpop.permute.xlu0 %4231
        %4233 = vrot.lane.b32.xlu0 %v3751, 96
        %v4234 = vpop.permute.xlu0 %4233
        %4235 = vrot.lane.b32.xlu0 %v3705, 96
        %v4236 = vpop.permute.xlu0 %4235
        %v4258 = vrot.slane %v3751, 1
        %v4259 = vrot.slane %v3705, 1
        %v4260 = vsel %vm648, %v4258, %v4259
        %v4261 = vrot.slane %v3763, 1
        %v4262 = vsel %vm648, %v4259, %v4261
        %4263 = vrot.lane.b32.xlu0 %v3796, 112
        %v4264 = vpop.permute.xlu0 %4263
        %4265 = vrot.lane.b32.xlu0 %v3798, 112
        %v4266 = vpop.permute.xlu0 %4265
        %4267 = vrot.lane.b32.xlu0 %v3801, 112
        %v4268 = vpop.permute.xlu0 %4267
        %4269 = vrot.lane.b32.xlu0 %v3803, 112
        %v4270 = vpop.permute.xlu0 %4269
        %4271 = vrot.lane.b32.xlu0 %v3806, 112
        %v4272 = vpop.permute.xlu0 %4271
        %4273 = vrot.lane.b32.xlu0 %v3808, 112
        %v4274 = vpop.permute.xlu0 %4273
        %4275 = vrot.lane.b32.xlu0 %v3811, 112
        %v4276 = vpop.permute.xlu0 %4275
        %4277 = vrot.lane.b32.xlu0 %v3813, 112
        %v4278 = vpop.permute.xlu0 %4277
        %4279 = vrot.lane.b32.xlu0 %v3816, 112
        %v4280 = vpop.permute.xlu0 %4279
        %4281 = vrot.lane.b32.xlu0 %v3818, 112
        %v4282 = vpop.permute.xlu0 %4281
        %4283 = vrot.lane.b32.xlu0 %v3821, 112
        %v4284 = vpop.permute.xlu0 %4283
        %4285 = vrot.lane.b32.xlu0 %v3823, 112
        %v4286 = vpop.permute.xlu0 %4285
        %4287 = vrot.lane.b32.xlu0 %v3826, 112
        %v4288 = vpop.permute.xlu0 %4287
        %4289 = vrot.lane.b32.xlu0 %v3828, 112
        %v4290 = vpop.permute.xlu0 %4289
        %4291 = vrot.lane.b32.xlu0 %v3831, 112
        %v4292 = vpop.permute.xlu0 %4291
        %4293 = vrot.lane.b32.xlu0 %v3833, 112
        %v4294 = vpop.permute.xlu0 %4293
        %4295 = vrot.lane.b32.xlu0 %v4068, 112
        %v4296 = vpop.permute.xlu0 %4295
        %4297 = vrot.lane.b32.xlu0 %v4070, 112
        %v4298 = vpop.permute.xlu0 %4297
        %4299 = vrot.lane.b32.xlu0 %v4260, 112
        %v4300 = vpop.permute.xlu0 %4299
        %4301 = vrot.lane.b32.xlu0 %v4262, 112
        %v4302 = vpop.permute.xlu0 %4301
        %v4323 = vrot.slane %v3751, 2
        %v4324 = vrot.slane %v3705, 2
        %v4325 = vsel %vm803, %v4323, %v4324
        %v4326 = vrot.slane %v3763, 2
        %v4327 = vsel %vm803, %v4324, %v4326
        %v4328 = vsel %vm3037, %v3740, %v3835
        %v4329 = vsel %vm3037, %v3672, %v3837
        %v4330 = vsel %vm3037, %v3741, %v3839
        %v4331 = vsel %vm3037, %v3675, %v3841
        %v4332 = vsel %vm3037, %v3742, %v3843
        %v4333 = vsel %vm3037, %v3678, %v3845
        %v4334 = vsel %vm3037, %v3743, %v3847
        %v4335 = vsel %vm3037, %v3681, %v3849
        %v4336 = vsel %vm3037, %v3744, %v3851
        %v4337 = vsel %vm3037, %v3684, %v3853
        %v4338 = vsel %vm3037, %v3745, %v3855
        %v4339 = vsel %vm3037, %v3687, %v3857
        %v4340 = vsel %vm3037, %v3746, %v3859
        %v4341 = vsel %vm3037, %v3690, %v3861
        %v4342 = vsel %vm3037, %v3747, %v3863
        %v4343 = vsel %vm3037, %v3693, %v3865
        %v4344 = vsel %vm3037, %v3748, %v3867
        %v4345 = vsel %vm3037, %v3696, %v3869
        %v4346 = vsel %vm3037, %v3749, %v3871
        %v4347 = vsel %vm3037, %v3699, %v3873
        %v4348 = vsel %vm3062, %v4328, %v3945
        %v4349 = vsel %vm3062, %v4329, %v3947
        %v4350 = vsel %vm3062, %v4330, %v3949
        %v4351 = vsel %vm3062, %v4331, %v3951
        %v4352 = vsel %vm3062, %v4332, %v3953
        %v4353 = vsel %vm3062, %v4333, %v3955
        %v4354 = vsel %vm3062, %v4334, %v3957
        %v4355 = vsel %vm3062, %v4335, %v3959
        %v4356 = vsel %vm3062, %v4336, %v3961
        %v4357 = vsel %vm3062, %v4337, %v3963
        %v4358 = vsel %vm3062, %v4338, %v3965
        %v4359 = vsel %vm3062, %v4339, %v3967
        %v4360 = vsel %vm3062, %v4340, %v3969
        %v4361 = vsel %vm3062, %v4341, %v3971
        %v4362 = vsel %vm3062, %v4342, %v3973
        %v4363 = vsel %vm3062, %v4343, %v3975
        %v4364 = vsel %vm3062, %v4344, %v3977
        %v4365 = vsel %vm3062, %v4345, %v3979
        %v4366 = vsel %vm3062, %v4346, %v3981
        %v4367 = vsel %vm3062, %v4347, %v3983
        %v4368 = vsel %vm3087, %v4348, %v4006
        %v4369 = vsel %vm3087, %v4349, %v4008
        %v4370 = vsel %vm3087, %v4350, %v4010
        %v4371 = vsel %vm3087, %v4351, %v4012
        %v4372 = vsel %vm3087, %v4352, %v4014
        %v4373 = vsel %vm3087, %v4353, %v4016
        %v4374 = vsel %vm3087, %v4354, %v4018
        %v4375 = vsel %vm3087, %v4355, %v4020
        %v4376 = vsel %vm3087, %v4356, %v4022
        %v4377 = vsel %vm3087, %v4357, %v4024
        %v4378 = vsel %vm3087, %v4358, %v4026
        %v4379 = vsel %vm3087, %v4359, %v4028
        %v4380 = vsel %vm3087, %v4360, %v4030
        %v4381 = vsel %vm3087, %v4361, %v4032
        %v4382 = vsel %vm3087, %v4362, %v4034
        %v4383 = vsel %vm3087, %v4363, %v4036
        %v4384 = vsel %vm3087, %v4364, %v4038
        %v4385 = vsel %vm3087, %v4365, %v4040
        %v4386 = vsel %vm3087, %v4366, %v4042
        %v4387 = vsel %vm3087, %v4367, %v4044
        %v4388 = vsel %vm3112, %v4368, %v4072
        %v4389 = vsel %vm3112, %v4369, %v4074
        %v4390 = vsel %vm3112, %v4370, %v4076
        %v4391 = vsel %vm3112, %v4371, %v4078
        %v4392 = vsel %vm3112, %v4372, %v4080
        %v4393 = vsel %vm3112, %v4373, %v4082
        %v4394 = vsel %vm3112, %v4374, %v4084
        %v4395 = vsel %vm3112, %v4375, %v4086
        %v4396 = vsel %vm3112, %v4376, %v4088
        %v4397 = vsel %vm3112, %v4377, %v4090
        %v4398 = vsel %vm3112, %v4378, %v4092
        %v4399 = vsel %vm3112, %v4379, %v4094
        %v4400 = vsel %vm3112, %v4380, %v4096
        %v4401 = vsel %vm3112, %v4381, %v4098
        %v4402 = vsel %vm3112, %v4382, %v4100
        %v4403 = vsel %vm3112, %v4383, %v4102
        %v4404 = vsel %vm3112, %v4384, %v4104
        %v4405 = vsel %vm3112, %v4385, %v4106
        %v4406 = vsel %vm3112, %v4386, %v4108
        %v4407 = vsel %vm3112, %v4387, %v4110
        %v4408 = vsel %vm3137, %v4388, %v4137
        %v4409 = vsel %vm3137, %v4389, %v4139
        %v4410 = vsel %vm3137, %v4390, %v4141
        %v4411 = vsel %vm3137, %v4391, %v4143
        %v4412 = vsel %vm3137, %v4392, %v4145
        %v4413 = vsel %vm3137, %v4393, %v4147
        %v4414 = vsel %vm3137, %v4394, %v4149
        %v4415 = vsel %vm3137, %v4395, %v4151
        %v4416 = vsel %vm3137, %v4396, %v4153
        %v4417 = vsel %vm3137, %v4397, %v4155
        %v4418 = vsel %vm3137, %v4398, %v4157
        %v4419 = vsel %vm3137, %v4399, %v4159
        %v4420 = vsel %vm3137, %v4400, %v4161
        %v4421 = vsel %vm3137, %v4401, %v4163
        %v4422 = vsel %vm3137, %v4402, %v4165
        %v4423 = vsel %vm3137, %v4403, %v4167
        %v4424 = vsel %vm3137, %v4404, %v4169
        %v4425 = vsel %vm3137, %v4405, %v4171
        %v4426 = vsel %vm3137, %v4406, %v4173
        %v4427 = vsel %vm3137, %v4407, %v4175
        %v4428 = vsel %vm3162, %v4408, %v4198
        %v4429 = vsel %vm3162, %v4409, %v4200
        %v4430 = vsel %vm3162, %v4410, %v4202
        %v4431 = vsel %vm3162, %v4411, %v4204
        %v4432 = vsel %vm3162, %v4412, %v4206
        %v4433 = vsel %vm3162, %v4413, %v4208
        %v4434 = vsel %vm3162, %v4414, %v4210
        %v4435 = vsel %vm3162, %v4415, %v4212
        %v4436 = vsel %vm3162, %v4416, %v4214
        %v4437 = vsel %vm3162, %v4417, %v4216
        %v4438 = vsel %vm3162, %v4418, %v4218
        %v4439 = vsel %vm3162, %v4419, %v4220
        %v4440 = vsel %vm3162, %v4420, %v4222
        %v4441 = vsel %vm3162, %v4421, %v4224
        %v4442 = vsel %vm3162, %v4422, %v4226
        %v4443 = vsel %vm3162, %v4423, %v4228
        %v4444 = vsel %vm3162, %v4424, %v4230
        %v4445 = vsel %vm3162, %v4425, %v4232
        %v4446 = vsel %vm3162, %v4426, %v4234
        %v4447 = vsel %vm3162, %v4427, %v4236
        %v4448 = vsel %vm3187, %v4428, %v4264
        %v4449 = vsel %vm3187, %v4429, %v4266
        %v4450 = vsel %vm3187, %v4430, %v4268
        %v4451 = vsel %vm3187, %v4431, %v4270
        %v4452 = vsel %vm3187, %v4432, %v4272
        %v4453 = vsel %vm3187, %v4433, %v4274
        %v4454 = vsel %vm3187, %v4434, %v4276
        %v4455 = vsel %vm3187, %v4435, %v4278
        %v4456 = vsel %vm3187, %v4436, %v4280
        %v4457 = vsel %vm3187, %v4437, %v4282
        %v4458 = vsel %vm3187, %v4438, %v4284
        %v4459 = vsel %vm3187, %v4439, %v4286
        %v4460 = vsel %vm3187, %v4440, %v4288
        %v4461 = vsel %vm3187, %v4441, %v4290
        %v4462 = vsel %vm3187, %v4442, %v4292
        %v4463 = vsel %vm3187, %v4443, %v4294
        %v4464 = vsel %vm3187, %v4444, %v4296
        %v4465 = vsel %vm3187, %v4445, %v4298
        %v4466 = vsel %vm3187, %v4446, %v4300
        %v4467 = vsel %vm3187, %v4447, %v4302
        %v4468 = vld [vmem:[%s7] sm:$0xff]
        %v4469 = vld [vmem:[%s7 + $0x8] sm:$0xff]
        %v4470 = vld [vmem:[%s7 + $0x10] sm:$0xff]
        %v4471 = vld [vmem:[%s7 + $0x18] sm:$0xff]
        %v4472 = vld [vmem:[%s7 + $0x20] sm:$0xff]
        %v4473 = vld [vmem:[%s7 + $0x28] sm:$0xff]
        %v4474 = vld [vmem:[%s7 + $0x30] sm:$0xff]
        %v4475 = vld [vmem:[%s7 + $0x38] sm:$0xff]
        %v4476 = vld [vmem:[%s7 + $0x40] sm:$0xff]
        %v4477 = vld [vmem:[%s7 + $0x48] sm:$0xff]
        %v4478 = vld [vmem:[%s7 + $0x50] sm:$0xff]
        %v4479 = vld [vmem:[%s7 + $0x58] sm:$0xff]
        %v4480 = vld [vmem:[%s7 + $0x60] sm:$0xff]
        %v4481 = vld [vmem:[%s7 + $0x68] sm:$0xff]
        %v4482 = vld [vmem:[%s7 + $0x70] sm:$0xff]
        %v4483 = vld [vmem:[%s7 + $0x78] sm:$0xff]
        %v4484 = vld [vmem:[%s7 + $0x80] sm:$0xff]
        %v4485 = vld [vmem:[%s7 + $0x88] sm:$0xff]
        %v4486 = vld [vmem:[%s8] sm:$0x1]
        %v4488 = vlaneseq
        %v4489 = vshrl.u32 %v4488, 7
        %v4490 = vsub.s32 0, %v4489
        %v4491 = vrot.slane %v4486, %v4490
        %v4493 = vsel %vm3037, %v3906, 0
        %v4495 = vsel %vm3037, %v3908, 0
        %v4497 = vsel %vm3037, %v3911, 0
        %v4499 = vsel %vm3037, %v3913, 0
        %v4501 = vsel %vm3037, %v3916, 0
        %v4503 = vsel %vm3037, %v3918, 0
        %v4505 = vsel %vm3037, %v3921, 0
        %v4507 = vsel %vm3037, %v3923, 0
        %v4509 = vsel %vm3037, %v3926, 0
        %v4511 = vsel %vm3037, %v3928, 0
        %v4513 = vsel %vm3037, %v3931, 0
        %v4515 = vsel %vm3037, %v3933, 0
        %v4517 = vsel %vm3037, %v3936, 0
        %v4519 = vsel %vm3037, %v3938, 0
        %v4521 = vsel %vm3037, %v3941, 0
        %v4523 = vsel %vm3037, %v3943, 0
        %v4525 = vsel %vm3037, %v4133, 0
        %v4527 = vsel %vm3037, %v4135, 0
        %v4529 = vsel %vm3037, %v4325, 0
        %v4531 = vsel %vm3037, %v4327, 0
        %4533 = vmatprep.subr.mxu0 0.0
        %4534 = vmatpush1.msra.mxu0 %v4483
        %4535 = vmatprep.subr.mxu0 0.0
        %4536 = vmatpush1.msra.mxu0 %v4482
        %4537 = vmatprep.subr.mxu0 0.0
        %4538 = vmatpush1.msra.mxu0 %v4481
        %4539 = vmatprep.subr.mxu0 0.0
        %4540 = vmatpush1.msra.mxu0 %v4480
        %4541 = vmatprep.subr.mxu0 0.0
        %4542 = vmatpush1.msra.mxu0 %v4479
        %4543 = vmatprep.subr.mxu0 0.0
        %4544 = vmatpush1.msra.mxu0 %v4478
        %4545 = vmatprep.subr.mxu0 0.0
        %4546 = vmatpush1.msra.mxu0 %v4477
        %4547 = vmatprep.subr.mxu0 0.0
        %4548 = vmatpush1.msra.mxu0 %v4476
        %4549 = vmatprep.subr.mxu0 0.0
        %4550 = vmatpush1.msra.mxu0 %v4475
        %4551 = vmatprep.subr.mxu0 0.0
        %4552 = vmatpush1.msra.mxu0 %v4474
        %4553 = vmatprep.subr.mxu0 0.0
        %4554 = vmatpush1.msra.mxu0 %v4473
        %4555 = vmatprep.subr.mxu0 0.0
        %4556 = vmatpush1.msra.mxu0 %v4472
        %4557 = vmatprep.subr.mxu0 0.0
        %4558 = vmatpush1.msra.mxu0 %v4471
        %4559 = vmatprep.subr.mxu0 0.0
        %4560 = vmatpush1.msra.mxu0 %v4470
        %4561 = vmatprep.subr.mxu0 0.0
        %4562 = vmatpush1.msra.mxu0 %v4469
        %4563 = vmatprep.subr.mxu0 0.0
        %4564 = vmatpush1.msra.mxu0 %v4468
        %4565 = vmatprep.subr.mxu0 0.0
        %4566 = vmatpush2.msra.mxu0 0.0
        %4567 = vmatprep.subr.mxu0 0.0
        %4568 = vmatpush2.msra.mxu0 0.0
        %4569 = vmatprep.subr.mxu0 0.0
        %4570 = vmatpush2.msra.mxu0 0.0
        %4571 = vmatprep.subr.mxu0 0.0
        %4572 = vmatpush2.msra.mxu0 0.0
        %4573 = vmatprep.subr.mxu0 0.0
        %4574 = vmatpush2.msra.mxu0 0.0
        %4575 = vmatprep.subr.mxu0 0.0
        %4576 = vmatpush2.msra.mxu0 0.0
        %4577 = vmatprep.subr.mxu0 0.0
        %4578 = vmatpush2.msra.mxu0 0.0
        %4579 = vmatprep.subr.mxu0 0.0
        %4580 = vmatpush2.msra.mxu0 0.0
        %4581 = vmatprep.subr.mxu0 0.0
        %4582 = vmatpush2.msra.mxu0 0.0
        %4583 = vmatprep.subr.mxu0 0.0
        %4584 = vmatpush2.msra.mxu0 0.0
        %4585 = vmatprep.subr.mxu0 0.0
        %4586 = vmatpush2.msra.mxu0 0.0
        %4587 = vmatprep.subr.mxu0 0.0
        %4588 = vmatpush2.msra.mxu0 0.0
        %4589 = vmatprep.subr.mxu0 0.0
        %4590 = vmatpush2.msra.mxu0 0.0
        %4591 = vmatprep.subr.mxu0 0.0
        %4592 = vmatpush2.msra.mxu0 0.0
        %4593 = vmatprep.subr.mxu0 0.0
        %4594 = vmatpush2.msra.mxu0 %v4485
        %4595 = vmatprep.subr.mxu0 0.0
        %4596 = vmatpush2.msra.mxu0 %v4484
        %4597 = vmatprep.mubr.f32.mxu0 %v4493
        %4598 = vmatmul.mubr.f32.gmra.mxu0 %v4448
        %v4599 = vpop.f32.mrf.mxu0
        %v4600 = vadd.f32 %v4491, %v4599
        %v4601 = vpop.f32.mrf.mxu0
        %4602 = vmatprep.mubr.f32.mxu0 %v4495
        %4603 = vmatmul.mubr.f32.gmra.mxu0 %v4449
        %v4604 = vpop.f32.mrf.mxu0
        %v4605 = vadd.f32 %v4491, %v4604
        %v4606 = vpop.f32.mrf.mxu0
        %4607 = vmatprep.mubr.f32.mxu0 %v4497
        %4608 = vmatmul.mubr.f32.gmra.mxu0 %v4450
        %v4609 = vpop.f32.mrf.mxu0
        %v4610 = vadd.f32 %v4491, %v4609
        %v4611 = vpop.f32.mrf.mxu0
        %4612 = vmatprep.mubr.f32.mxu0 %v4499
        %4613 = vmatmul.mubr.f32.gmra.mxu0 %v4451
        %v4614 = vpop.f32.mrf.mxu0
        %v4615 = vadd.f32 %v4491, %v4614
        %v4616 = vpop.f32.mrf.mxu0
        %4617 = vmatprep.mubr.f32.mxu0 %v4501
        %4618 = vmatmul.mubr.f32.gmra.mxu0 %v4452
        %v4619 = vpop.f32.mrf.mxu0
        %v4620 = vadd.f32 %v4491, %v4619
        %v4621 = vpop.f32.mrf.mxu0
        %4622 = vmatprep.mubr.f32.mxu0 %v4503
        %4623 = vmatmul.mubr.f32.gmra.mxu0 %v4453
        %v4624 = vpop.f32.mrf.mxu0
        %v4625 = vadd.f32 %v4491, %v4624
        %v4626 = vpop.f32.mrf.mxu0
        %4627 = vmatprep.mubr.f32.mxu0 %v4505
        %4628 = vmatmul.mubr.f32.gmra.mxu0 %v4454
        %v4629 = vpop.f32.mrf.mxu0
        %v4630 = vadd.f32 %v4491, %v4629
        %v4631 = vpop.f32.mrf.mxu0
        %4632 = vmatprep.mubr.f32.mxu0 %v4507
        %4633 = vmatmul.mubr.f32.gmra.mxu0 %v4455
        %v4634 = vpop.f32.mrf.mxu0
        %v4635 = vadd.f32 %v4491, %v4634
        %v4636 = vpop.f32.mrf.mxu0
        %4637 = vmatprep.mubr.f32.mxu0 %v4509
        %4638 = vmatmul.mubr.f32.gmra.mxu0 %v4456
        %v4639 = vpop.f32.mrf.mxu0
        %v4640 = vadd.f32 %v4491, %v4639
        %v4641 = vpop.f32.mrf.mxu0
        %4642 = vmatprep.mubr.f32.mxu0 %v4511
        %4643 = vmatmul.mubr.f32.gmra.mxu0 %v4457
        %v4644 = vpop.f32.mrf.mxu0
        %v4645 = vadd.f32 %v4491, %v4644
        %v4646 = vpop.f32.mrf.mxu0
        %4647 = vmatprep.mubr.f32.mxu0 %v4513
        %4648 = vmatmul.mubr.f32.gmra.mxu0 %v4458
        %v4649 = vpop.f32.mrf.mxu0
        %v4650 = vadd.f32 %v4491, %v4649
        %v4651 = vpop.f32.mrf.mxu0
        %4652 = vmatprep.mubr.f32.mxu0 %v4515
        %4653 = vmatmul.mubr.f32.gmra.mxu0 %v4459
        %v4654 = vpop.f32.mrf.mxu0
        %v4655 = vadd.f32 %v4491, %v4654
        %v4656 = vpop.f32.mrf.mxu0
        %4657 = vmatprep.mubr.f32.mxu0 %v4517
        %4658 = vmatmul.mubr.f32.gmra.mxu0 %v4460
        %v4659 = vpop.f32.mrf.mxu0
        %v4660 = vadd.f32 %v4491, %v4659
        %v4661 = vpop.f32.mrf.mxu0
        %4662 = vmatprep.mubr.f32.mxu0 %v4519
        %4663 = vmatmul.mubr.f32.gmra.mxu0 %v4461
        %v4664 = vpop.f32.mrf.mxu0
        %v4665 = vadd.f32 %v4491, %v4664
        %v4666 = vpop.f32.mrf.mxu0
        %4667 = vmatprep.mubr.f32.mxu0 %v4521
        %4668 = vmatmul.mubr.f32.gmra.mxu0 %v4462
        %v4669 = vpop.f32.mrf.mxu0
        %v4670 = vadd.f32 %v4491, %v4669
        %v4671 = vpop.f32.mrf.mxu0
        %4672 = vmatprep.mubr.f32.mxu0 %v4523
        %4673 = vmatmul.mubr.f32.gmra.mxu0 %v4463
        %v4674 = vpop.f32.mrf.mxu0
        %v4675 = vadd.f32 %v4491, %v4674
        %v4676 = vpop.f32.mrf.mxu0
        %4677 = vmatprep.mubr.f32.mxu0 %v4525
        %4678 = vmatmul.mubr.f32.gmra.mxu0 %v4464
        %v4679 = vpop.f32.mrf.mxu0
        %v4680 = vadd.f32 %v4491, %v4679
        %v4681 = vpop.f32.mrf.mxu0
        %4682 = vmatprep.mubr.f32.mxu0 %v4527
        %4683 = vmatmul.mubr.f32.gmra.mxu0 %v4465
        %v4684 = vpop.f32.mrf.mxu0
        %v4685 = vadd.f32 %v4491, %v4684
        %v4686 = vpop.f32.mrf.mxu0
        %4687 = vmatprep.mubr.f32.mxu0 %v4529
        %4688 = vmatmul.mubr.f32.gmra.mxu0 %v4466
        %v4689 = vpop.f32.mrf.mxu0
        %v4690 = vadd.f32 %v4491, %v4689
        %v4691 = vpop.f32.mrf.mxu0
        %4692 = vmatprep.mubr.f32.mxu0 %v4531
        %4693 = vmatmul.mubr.f32.gmra.mxu0 %v4467
        %v4694 = vpop.f32.mrf.mxu0
        %v4695 = vadd.f32 %v4491, %v4694
        %v4696 = vpop.f32.mrf.mxu0
        %4697 = vdwg.mxu0
        %vm4698 = vcmp.ge.f32.partialorder %v4600, 0.0
        %vm4699 = vcmp.ge.f32.partialorder %v4605, 0.0
        %vm4700 = vcmp.ge.f32.partialorder %v4610, 0.0
        %vm4701 = vcmp.ge.f32.partialorder %v4615, 0.0
        %vm4702 = vcmp.ge.f32.partialorder %v4620, 0.0
        %vm4703 = vcmp.ge.f32.partialorder %v4625, 0.0
        %vm4704 = vcmp.ge.f32.partialorder %v4630, 0.0
        %vm4705 = vcmp.ge.f32.partialorder %v4635, 0.0
        %vm4706 = vcmp.ge.f32.partialorder %v4640, 0.0
        %vm4707 = vcmp.ge.f32.partialorder %v4645, 0.0
        %vm4708 = vcmp.ge.f32.partialorder %v4650, 0.0
        %vm4709 = vcmp.ge.f32.partialorder %v4655, 0.0
        %vm4710 = vcmp.ge.f32.partialorder %v4660, 0.0
        %vm4711 = vcmp.ge.f32.partialorder %v4665, 0.0
        %vm4712 = vcmp.ge.f32.partialorder %v4670, 0.0
        %vm4713 = vcmp.ge.f32.partialorder %v4675, 0.0
        %vm4714 = vcmp.ge.f32.partialorder %v4680, 0.0
        %vm4715 = vcmp.ge.f32.partialorder %v4685, 0.0
        %vm4716 = vcmp.ge.f32.partialorder %v4690, 0.0
        %vm4717 = vcmp.ge.f32.partialorder %v4695, 0.0
        %v4718 = vld [vmem:[%s9] sm:$0x1]
        %v4720 = vlaneseq
        %v4721 = vshrl.u32 %v4720, 7
        %v4722 = vsub.s32 0, %v4721
        %v4723 = vrot.slane %v4718, %v4722
        %v4725 = vmul.f32 %v4600, %v4723
        %v4726 = vmul.f32 %v4605, %v4723
        %v4727 = vmul.f32 %v4610, %v4723
        %v4728 = vmul.f32 %v4615, %v4723
        %v4729 = vmul.f32 %v4620, %v4723
        %v4730 = vmul.f32 %v4625, %v4723
        %v4731 = vmul.f32 %v4630, %v4723
        %v4732 = vmul.f32 %v4635, %v4723
        %v4733 = vmul.f32 %v4640, %v4723
        %v4734 = vmul.f32 %v4645, %v4723
        %v4735 = vmul.f32 %v4650, %v4723
        %v4736 = vmul.f32 %v4655, %v4723
        %v4737 = vmul.f32 %v4660, %v4723
        %v4738 = vmul.f32 %v4665, %v4723
        %v4739 = vmul.f32 %v4670, %v4723
        %v4740 = vmul.f32 %v4675, %v4723
        %v4741 = vmul.f32 %v4680, %v4723
        %v4742 = vmul.f32 %v4685, %v4723
        %v4743 = vmul.f32 %v4690, %v4723
        %v4744 = vmul.f32 %v4695, %v4723
        %v4745 = vsel %vm4698, %v4600, %v4725
        %v4746 = vsel %vm4699, %v4605, %v4726
        %v4747 = vsel %vm4700, %v4610, %v4727
        %v4748 = vsel %vm4701, %v4615, %v4728
        %v4749 = vsel %vm4702, %v4620, %v4729
        %v4750 = vsel %vm4703, %v4625, %v4730
        %v4751 = vsel %vm4704, %v4630, %v4731
        %v4752 = vsel %vm4705, %v4635, %v4732
        %v4753 = vsel %vm4706, %v4640, %v4733
        %v4754 = vsel %vm4707, %v4645, %v4734
        %v4755 = vsel %vm4708, %v4650, %v4735
        %v4756 = vsel %vm4709, %v4655, %v4736
        %v4757 = vsel %vm4710, %v4660, %v4737
        %v4758 = vsel %vm4711, %v4665, %v4738
        %v4759 = vsel %vm4712, %v4670, %v4739
        %v4760 = vsel %vm4713, %v4675, %v4740
        %v4761 = vsel %vm4714, %v4680, %v4741
        %v4762 = vsel %vm4715, %v4685, %v4742
        %v4763 = vsel %vm4716, %v4690, %v4743
        %v4764 = vsel %vm4717, %v4695, %v4744
        %s4765 = ssub.s32 %s426, 1
        %v4766 = vstv %s4765
        %v4767 = vadd.s32 %v4766, 1
        %v4768 = vadd.s32 %v4766, 2
        %v4769 = vadd.s32 %v4766, 3
        %v4770 = vadd.s32 %v4766, 4
        %v4771 = vadd.s32 %v4766, 5
        %v4772 = vadd.s32 %v4766, 6
        %v4773 = vadd.s32 %v4766, 7
        %v4774 = vadd.s32 %v4766, 8
        %v4775 = vadd.s32 %v4766, 9
        %vm4776 = vcmp.ge.s32.totalorder %v4766, 0
        %vm4777 = vcmp.ge.s32.totalorder %v4767, 0
        %vm4778 = vcmp.ge.s32.totalorder %v4768, 0
        %vm4779 = vcmp.ge.s32.totalorder %v4769, 0
        %vm4780 = vcmp.ge.s32.totalorder %v4770, 0
        %vm4781 = vcmp.ge.s32.totalorder %v4771, 0
        %vm4782 = vcmp.ge.s32.totalorder %v4772, 0
        %vm4783 = vcmp.ge.s32.totalorder %v4773, 0
        %vm4784 = vcmp.ge.s32.totalorder %v4774, 0
        %vm4785 = vcmp.ge.s32.totalorder %v4775, 0
        %vm4786 = vcmp.lt.s32.totalorder %v4766, 16
        %vm4787 = vcmp.lt.s32.totalorder %v4767, 16
        %vm4788 = vcmp.lt.s32.totalorder %v4768, 16
        %vm4789 = vcmp.lt.s32.totalorder %v4769, 16
        %vm4790 = vcmp.lt.s32.totalorder %v4770, 16
        %vm4791 = vcmp.lt.s32.totalorder %v4771, 16
        %vm4792 = vcmp.lt.s32.totalorder %v4772, 16
        %vm4793 = vcmp.lt.s32.totalorder %v4773, 16
        %vm4794 = vcmp.lt.s32.totalorder %v4774, 16
        %vm4795 = vcmp.lt.s32.totalorder %v4775, 16
        %vm4796 = vmand %vm4776, %vm4786
        %vm4797 = vmand %vm4777, %vm4787
        %vm4798 = vmand %vm4778, %vm4788
        %vm4799 = vmand %vm4779, %vm4789
        %vm4800 = vmand %vm4780, %vm4790
        %vm4801 = vmand %vm4781, %vm4791
        %vm4802 = vmand %vm4782, %vm4792
        %vm4803 = vmand %vm4783, %vm4793
        %vm4804 = vmand %vm4784, %vm4794
        %vm4805 = vmand %vm4785, %vm4795
        %v4806 = vsel %vm4796, 1, 0
        %v4807 = vsel %vm4797, 1, 0
        %v4808 = vsel %vm4798, 1, 0
        %v4809 = vsel %vm4799, 1, 0
        %v4810 = vsel %vm4800, 1, 0
        %v4811 = vsel %vm4801, 1, 0
        %v4812 = vsel %vm4802, 1, 0
        %v4813 = vsel %vm4803, 1, 0
        %v4814 = vsel %vm4804, 1, 0
        %v4815 = vsel %vm4805, 1, 0
        %vm4816 = vcmp.eq.s32.totalorder %v4806, 1
        %vm4817 = vcmp.eq.s32.totalorder %v4807, 1
        %vm4818 = vcmp.eq.s32.totalorder %v4808, 1
        %vm4819 = vcmp.eq.s32.totalorder %v4809, 1
        %vm4820 = vcmp.eq.s32.totalorder %v4810, 1
        %vm4821 = vcmp.eq.s32.totalorder %v4811, 1
        %vm4822 = vcmp.eq.s32.totalorder %v4812, 1
        %vm4823 = vcmp.eq.s32.totalorder %v4813, 1
        %vm4824 = vcmp.eq.s32.totalorder %v4814, 1
        %vm4825 = vcmp.eq.s32.totalorder %v4815, 1
        %v4826 = vsel %vm4816, %v4745, 0.0
        %v4827 = vsel %vm4816, %v4746, 0.0
        %v4828 = vsel %vm4817, %v4747, 0.0
        %v4829 = vsel %vm4817, %v4748, 0.0
        %v4830 = vsel %vm4818, %v4749, 0.0
        %v4831 = vsel %vm4818, %v4750, 0.0
        %v4832 = vsel %vm4819, %v4751, 0.0
        %v4833 = vsel %vm4819, %v4752, 0.0
        %v4834 = vsel %vm4820, %v4753, 0.0
        %v4835 = vsel %vm4820, %v4754, 0.0
        %v4836 = vsel %vm4821, %v4755, 0.0
        %v4837 = vsel %vm4821, %v4756, 0.0
        %v4838 = vsel %vm4822, %v4757, 0.0
        %v4839 = vsel %vm4822, %v4758, 0.0
        %v4840 = vsel %vm4823, %v4759, 0.0
        %v4841 = vsel %vm4823, %v4760, 0.0
        %v4842 = vsel %vm4824, %v4761, 0.0
        %v4843 = vsel %vm4824, %v4762, 0.0
        %v4844 = vsel %vm4825, %v4763, 0.0
        %v4845 = vsel %vm4825, %v4764, 0.0
        %v4866 = vrot.slane %v4826, 7
        %v4867 = vrot.slane %v4827, 7
        %v4868 = vsel %vm493, %v4866, %v4867
        %v4869 = vrot.slane %v4828, 7
        %v4870 = vrot.slane %v4829, 7
        %v4871 = vsel %vm493, %v4869, %v4870
        %v4872 = vrot.slane %v4830, 7
        %v4873 = vrot.slane %v4831, 7
        %v4874 = vsel %vm493, %v4872, %v4873
        %v4875 = vrot.slane %v4832, 7
        %v4876 = vrot.slane %v4833, 7
        %v4877 = vsel %vm493, %v4875, %v4876
        %v4878 = vrot.slane %v4834, 7
        %v4879 = vrot.slane %v4835, 7
        %v4880 = vsel %vm493, %v4878, %v4879
        %v4881 = vrot.slane %v4836, 7
        %v4882 = vrot.slane %v4837, 7
        %v4883 = vsel %vm493, %v4881, %v4882
        %v4884 = vrot.slane %v4838, 7
        %v4885 = vrot.slane %v4839, 7
        %v4886 = vsel %vm493, %v4884, %v4885
        %v4887 = vrot.slane %v4840, 7
        %v4888 = vrot.slane %v4841, 7
        %v4889 = vsel %vm493, %v4887, %v4888
        %v4890 = vrot.slane %v4842, 7
        %v4891 = vrot.slane %v4843, 7
        %v4892 = vsel %vm493, %v4890, %v4891
        %v4893 = vrot.slane %v4844, 7
        %v4894 = vrot.slane %v4845, 7
        %v4895 = vsel %vm493, %v4893, %v4894
        %v4924 = vsel %vm493, 0.0, %v4866
        %v4925 = vsel %vm493, 0.0, %v4869
        %v4926 = vsel %vm493, 0.0, %v4872
        %v4927 = vsel %vm493, 0.0, %v4875
        %v4928 = vsel %vm493, 0.0, %v4878
        %v4929 = vsel %vm493, 0.0, %v4881
        %v4930 = vsel %vm493, 0.0, %v4884
        %v4931 = vsel %vm493, 0.0, %v4887
        %v4932 = vsel %vm493, 0.0, %v4890
        %v4933 = vsel %vm493, 0.0, %v4893
        %v4934 = vsel %vm493, %v4867, 0.0
        %v4935 = vsel %vm493, %v4870, 0.0
        %v4936 = vsel %vm493, %v4873, 0.0
        %v4937 = vsel %vm493, %v4876, 0.0
        %v4938 = vsel %vm493, %v4879, 0.0
        %v4939 = vsel %vm493, %v4882, 0.0
        %v4940 = vsel %vm493, %v4885, 0.0
        %v4941 = vsel %vm493, %v4888, 0.0
        %v4942 = vsel %vm493, %v4891, 0.0
        %v4943 = vsel %vm493, %v4894, 0.0
        %v4960 = vrot.slane %v4924, 1
        %v4961 = vrot.slane %v4868, 1
        %v4962 = vsel %vm648, %v4960, %v4961
        %v4963 = vrot.slane %v4934, 1
        %v4964 = vsel %vm648, %v4961, %v4963
        %v4965 = vrot.slane %v4925, 1
        %v4966 = vrot.slane %v4871, 1
        %v4967 = vsel %vm648, %v4965, %v4966
        %v4968 = vrot.slane %v4935, 1
        %v4969 = vsel %vm648, %v4966, %v4968
        %v4970 = vrot.slane %v4926, 1
        %v4971 = vrot.slane %v4874, 1
        %v4972 = vsel %vm648, %v4970, %v4971
        %v4973 = vrot.slane %v4936, 1
        %v4974 = vsel %vm648, %v4971, %v4973
        %v4975 = vrot.slane %v4927, 1
        %v4976 = vrot.slane %v4877, 1
        %v4977 = vsel %vm648, %v4975, %v4976
        %v4978 = vrot.slane %v4937, 1
        %v4979 = vsel %vm648, %v4976, %v4978
        %v4980 = vrot.slane %v4928, 1
        %v4981 = vrot.slane %v4880, 1
        %v4982 = vsel %vm648, %v4980, %v4981
        %v4983 = vrot.slane %v4938, 1
        %v4984 = vsel %vm648, %v4981, %v4983
        %v4985 = vrot.slane %v4929, 1
        %v4986 = vrot.slane %v4883, 1
        %v4987 = vsel %vm648, %v4985, %v4986
        %v4988 = vrot.slane %v4939, 1
        %v4989 = vsel %vm648, %v4986, %v4988
        %v4990 = vrot.slane %v4930, 1
        %v4991 = vrot.slane %v4886, 1
        %v4992 = vsel %vm648, %v4990, %v4991
        %v4993 = vrot.slane %v4940, 1
        %v4994 = vsel %vm648, %v4991, %v4993
        %v4995 = vrot.slane %v4931, 1
        %v4996 = vrot.slane %v4889, 1
        %v4997 = vsel %vm648, %v4995, %v4996
        %v4998 = vrot.slane %v4941, 1
        %v4999 = vsel %vm648, %v4996, %v4998
        %5000 = vrot.lane.b32.xlu0 %v4962, 16
        %v5001 = vpop.permute.xlu0 %5000
        %5002 = vrot.lane.b32.xlu0 %v4964, 16
        %v5003 = vpop.permute.xlu0 %5002
        %5004 = vrot.lane.b32.xlu0 %v4967, 16
        %v5005 = vpop.permute.xlu0 %5004
        %5006 = vrot.lane.b32.xlu0 %v4969, 16
        %v5007 = vpop.permute.xlu0 %5006
        %5008 = vrot.lane.b32.xlu0 %v4972, 16
        %v5009 = vpop.permute.xlu0 %5008
        %5010 = vrot.lane.b32.xlu0 %v4974, 16
        %v5011 = vpop.permute.xlu0 %5010
        %5012 = vrot.lane.b32.xlu0 %v4977, 16
        %v5013 = vpop.permute.xlu0 %5012
        %5014 = vrot.lane.b32.xlu0 %v4979, 16
        %v5015 = vpop.permute.xlu0 %5014
        %5016 = vrot.lane.b32.xlu0 %v4982, 16
        %v5017 = vpop.permute.xlu0 %5016
        %5018 = vrot.lane.b32.xlu0 %v4984, 16
        %v5019 = vpop.permute.xlu0 %5018
        %5020 = vrot.lane.b32.xlu0 %v4987, 16
        %v5021 = vpop.permute.xlu0 %5020
        %5022 = vrot.lane.b32.xlu0 %v4989, 16
        %v5023 = vpop.permute.xlu0 %5022
        %5024 = vrot.lane.b32.xlu0 %v4992, 16
        %v5025 = vpop.permute.xlu0 %5024
        %5026 = vrot.lane.b32.xlu0 %v4994, 16
        %v5027 = vpop.permute.xlu0 %5026
        %5028 = vrot.lane.b32.xlu0 %v4997, 16
        %v5029 = vpop.permute.xlu0 %5028
        %5030 = vrot.lane.b32.xlu0 %v4999, 16
        %v5031 = vpop.permute.xlu0 %5030
        %v5048 = vrot.slane %v4924, 2
        %v5049 = vrot.slane %v4868, 2
        %v5050 = vsel %vm803, %v5048, %v5049
        %v5051 = vrot.slane %v4934, 2
        %v5052 = vsel %vm803, %v5049, %v5051
        %v5053 = vrot.slane %v4925, 2
        %v5054 = vrot.slane %v4871, 2
        %v5055 = vsel %vm803, %v5053, %v5054
        %v5056 = vrot.slane %v4935, 2
        %v5057 = vsel %vm803, %v5054, %v5056
        %v5058 = vrot.slane %v4926, 2
        %v5059 = vrot.slane %v4874, 2
        %v5060 = vsel %vm803, %v5058, %v5059
        %v5061 = vrot.slane %v4936, 2
        %v5062 = vsel %vm803, %v5059, %v5061
        %v5063 = vrot.slane %v4927, 2
        %v5064 = vrot.slane %v4877, 2
        %v5065 = vsel %vm803, %v5063, %v5064
        %v5066 = vrot.slane %v4937, 2
        %v5067 = vsel %vm803, %v5064, %v5066
        %v5068 = vrot.slane %v4928, 2
        %v5069 = vrot.slane %v4880, 2
        %v5070 = vsel %vm803, %v5068, %v5069
        %v5071 = vrot.slane %v4938, 2
        %v5072 = vsel %vm803, %v5069, %v5071
        %v5073 = vrot.slane %v4929, 2
        %v5074 = vrot.slane %v4883, 2
        %v5075 = vsel %vm803, %v5073, %v5074
        %v5076 = vrot.slane %v4939, 2
        %v5077 = vsel %vm803, %v5074, %v5076
        %v5078 = vrot.slane %v4930, 2
        %v5079 = vrot.slane %v4886, 2
        %v5080 = vsel %vm803, %v5078, %v5079
        %v5081 = vrot.slane %v4940, 2
        %v5082 = vsel %vm803, %v5079, %v5081
        %v5083 = vrot.slane %v4931, 2
        %v5084 = vrot.slane %v4889, 2
        %v5085 = vsel %vm803, %v5083, %v5084
        %v5086 = vrot.slane %v4941, 2
        %v5087 = vsel %vm803, %v5084, %v5086
        %5088 = vrot.lane.b32.xlu0 %v5050, 32
        %v5089 = vpop.permute.xlu0 %5088
        %5090 = vrot.lane.b32.xlu0 %v5052, 32
        %v5091 = vpop.permute.xlu0 %5090
        %5092 = vrot.lane.b32.xlu0 %v5055, 32
        %v5093 = vpop.permute.xlu0 %5092
        %5094 = vrot.lane.b32.xlu0 %v5057, 32
        %v5095 = vpop.permute.xlu0 %5094
        %5096 = vrot.lane.b32.xlu0 %v5060, 32
        %v5097 = vpop.permute.xlu0 %5096
        %5098 = vrot.lane.b32.xlu0 %v5062, 32
        %v5099 = vpop.permute.xlu0 %5098
        %5100 = vrot.lane.b32.xlu0 %v5065, 32
        %v5101 = vpop.permute.xlu0 %5100
        %5102 = vrot.lane.b32.xlu0 %v5067, 32
        %v5103 = vpop.permute.xlu0 %5102
        %5104 = vrot.lane.b32.xlu0 %v5070, 32
        %v5105 = vpop.permute.xlu0 %5104
        %5106 = vrot.lane.b32.xlu0 %v5072, 32
        %v5107 = vpop.permute.xlu0 %5106
        %5108 = vrot.lane.b32.xlu0 %v5075, 32
        %v5109 = vpop.permute.xlu0 %5108
        %5110 = vrot.lane.b32.xlu0 %v5077, 32
        %v5111 = vpop.permute.xlu0 %5110
        %5112 = vrot.lane.b32.xlu0 %v5080, 32
        %v5113 = vpop.permute.xlu0 %5112
        %5114 = vrot.lane.b32.xlu0 %v5082, 32
        %v5115 = vpop.permute.xlu0 %5114
        %5116 = vrot.lane.b32.xlu0 %v5085, 32
        %v5117 = vpop.permute.xlu0 %5116
        %5118 = vrot.lane.b32.xlu0 %v5087, 32
        %v5119 = vpop.permute.xlu0 %5118
        %5137 = vrot.lane.b32.xlu0 %v4925, 48
        %v5138 = vpop.permute.xlu0 %5137
        %5139 = vrot.lane.b32.xlu0 %v4871, 48
        %v5140 = vpop.permute.xlu0 %5139
        %5141 = vrot.lane.b32.xlu0 %v4926, 48
        %v5142 = vpop.permute.xlu0 %5141
        %5143 = vrot.lane.b32.xlu0 %v4874, 48
        %v5144 = vpop.permute.xlu0 %5143
        %5145 = vrot.lane.b32.xlu0 %v4927, 48
        %v5146 = vpop.permute.xlu0 %5145
        %5147 = vrot.lane.b32.xlu0 %v4877, 48
        %v5148 = vpop.permute.xlu0 %5147
        %5149 = vrot.lane.b32.xlu0 %v4928, 48
        %v5150 = vpop.permute.xlu0 %5149
        %5151 = vrot.lane.b32.xlu0 %v4880, 48
        %v5152 = vpop.permute.xlu0 %5151
        %5153 = vrot.lane.b32.xlu0 %v4929, 48
        %v5154 = vpop.permute.xlu0 %5153
        %5155 = vrot.lane.b32.xlu0 %v4883, 48
        %v5156 = vpop.permute.xlu0 %5155
        %5157 = vrot.lane.b32.xlu0 %v4930, 48
        %v5158 = vpop.permute.xlu0 %5157
        %5159 = vrot.lane.b32.xlu0 %v4886, 48
        %v5160 = vpop.permute.xlu0 %5159
        %5161 = vrot.lane.b32.xlu0 %v4931, 48
        %v5162 = vpop.permute.xlu0 %5161
        %5163 = vrot.lane.b32.xlu0 %v4889, 48
        %v5164 = vpop.permute.xlu0 %5163
        %5165 = vrot.lane.b32.xlu0 %v4932, 48
        %v5166 = vpop.permute.xlu0 %5165
        %5167 = vrot.lane.b32.xlu0 %v4892, 48
        %v5168 = vpop.permute.xlu0 %5167
        %v5186 = vrot.slane %v4932, 1
        %v5187 = vrot.slane %v4892, 1
        %v5188 = vsel %vm648, %v5186, %v5187
        %v5189 = vrot.slane %v4942, 1
        %v5190 = vsel %vm648, %v5187, %v5189
        %5191 = vrot.lane.b32.xlu0 %v4967, 64
        %v5192 = vpop.permute.xlu0 %5191
        %5193 = vrot.lane.b32.xlu0 %v4969, 64
        %v5194 = vpop.permute.xlu0 %5193
        %5195 = vrot.lane.b32.xlu0 %v4972, 64
        %v5196 = vpop.permute.xlu0 %5195
        %5197 = vrot.lane.b32.xlu0 %v4974, 64
        %v5198 = vpop.permute.xlu0 %5197
        %5199 = vrot.lane.b32.xlu0 %v4977, 64
        %v5200 = vpop.permute.xlu0 %5199
        %5201 = vrot.lane.b32.xlu0 %v4979, 64
        %v5202 = vpop.permute.xlu0 %5201
        %5203 = vrot.lane.b32.xlu0 %v4982, 64
        %v5204 = vpop.permute.xlu0 %5203
        %5205 = vrot.lane.b32.xlu0 %v4984, 64
        %v5206 = vpop.permute.xlu0 %5205
        %5207 = vrot.lane.b32.xlu0 %v4987, 64
        %v5208 = vpop.permute.xlu0 %5207
        %5209 = vrot.lane.b32.xlu0 %v4989, 64
        %v5210 = vpop.permute.xlu0 %5209
        %5211 = vrot.lane.b32.xlu0 %v4992, 64
        %v5212 = vpop.permute.xlu0 %5211
        %5213 = vrot.lane.b32.xlu0 %v4994, 64
        %v5214 = vpop.permute.xlu0 %5213
        %5215 = vrot.lane.b32.xlu0 %v4997, 64
        %v5216 = vpop.permute.xlu0 %5215
        %5217 = vrot.lane.b32.xlu0 %v4999, 64
        %v5218 = vpop.permute.xlu0 %5217
        %5219 = vrot.lane.b32.xlu0 %v5188, 64
        %v5220 = vpop.permute.xlu0 %5219
        %5221 = vrot.lane.b32.xlu0 %v5190, 64
        %v5222 = vpop.permute.xlu0 %5221
        %v5239 = vrot.slane %v4932, 2
        %v5240 = vrot.slane %v4892, 2
        %v5241 = vsel %vm803, %v5239, %v5240
        %v5242 = vrot.slane %v4942, 2
        %v5243 = vsel %vm803, %v5240, %v5242
        %5244 = vrot.lane.b32.xlu0 %v5055, 80
        %v5245 = vpop.permute.xlu0 %5244
        %5246 = vrot.lane.b32.xlu0 %v5057, 80
        %v5247 = vpop.permute.xlu0 %5246
        %5248 = vrot.lane.b32.xlu0 %v5060, 80
        %v5249 = vpop.permute.xlu0 %5248
        %5250 = vrot.lane.b32.xlu0 %v5062, 80
        %v5251 = vpop.permute.xlu0 %5250
        %5252 = vrot.lane.b32.xlu0 %v5065, 80
        %v5253 = vpop.permute.xlu0 %5252
        %5254 = vrot.lane.b32.xlu0 %v5067, 80
        %v5255 = vpop.permute.xlu0 %5254
        %5256 = vrot.lane.b32.xlu0 %v5070, 80
        %v5257 = vpop.permute.xlu0 %5256
        %5258 = vrot.lane.b32.xlu0 %v5072, 80
        %v5259 = vpop.permute.xlu0 %5258
        %5260 = vrot.lane.b32.xlu0 %v5075, 80
        %v5261 = vpop.permute.xlu0 %5260
        %5262 = vrot.lane.b32.xlu0 %v5077, 80
        %v5263 = vpop.permute.xlu0 %5262
        %5264 = vrot.lane.b32.xlu0 %v5080, 80
        %v5265 = vpop.permute.xlu0 %5264
        %5266 = vrot.lane.b32.xlu0 %v5082, 80
        %v5267 = vpop.permute.xlu0 %5266
        %5268 = vrot.lane.b32.xlu0 %v5085, 80
        %v5269 = vpop.permute.xlu0 %5268
        %5270 = vrot.lane.b32.xlu0 %v5087, 80
        %v5271 = vpop.permute.xlu0 %5270
        %5272 = vrot.lane.b32.xlu0 %v5241, 80
        %v5273 = vpop.permute.xlu0 %5272
        %5274 = vrot.lane.b32.xlu0 %v5243, 80
        %v5275 = vpop.permute.xlu0 %5274
        %5293 = vrot.lane.b32.xlu0 %v4926, 96
        %v5294 = vpop.permute.xlu0 %5293
        %5295 = vrot.lane.b32.xlu0 %v4874, 96
        %v5296 = vpop.permute.xlu0 %5295
        %5297 = vrot.lane.b32.xlu0 %v4927, 96
        %v5298 = vpop.permute.xlu0 %5297
        %5299 = vrot.lane.b32.xlu0 %v4877, 96
        %v5300 = vpop.permute.xlu0 %5299
        %5301 = vrot.lane.b32.xlu0 %v4928, 96
        %v5302 = vpop.permute.xlu0 %5301
        %5303 = vrot.lane.b32.xlu0 %v4880, 96
        %v5304 = vpop.permute.xlu0 %5303
        %5305 = vrot.lane.b32.xlu0 %v4929, 96
        %v5306 = vpop.permute.xlu0 %5305
        %5307 = vrot.lane.b32.xlu0 %v4883, 96
        %v5308 = vpop.permute.xlu0 %5307
        %5309 = vrot.lane.b32.xlu0 %v4930, 96
        %v5310 = vpop.permute.xlu0 %5309
        %5311 = vrot.lane.b32.xlu0 %v4886, 96
        %v5312 = vpop.permute.xlu0 %5311
        %5313 = vrot.lane.b32.xlu0 %v4931, 96
        %v5314 = vpop.permute.xlu0 %5313
        %5315 = vrot.lane.b32.xlu0 %v4889, 96
        %v5316 = vpop.permute.xlu0 %5315
        %5317 = vrot.lane.b32.xlu0 %v4932, 96
        %v5318 = vpop.permute.xlu0 %5317
        %5319 = vrot.lane.b32.xlu0 %v4892, 96
        %v5320 = vpop.permute.xlu0 %5319
        %5321 = vrot.lane.b32.xlu0 %v4933, 96
        %v5322 = vpop.permute.xlu0 %5321
        %5323 = vrot.lane.b32.xlu0 %v4895, 96
        %v5324 = vpop.permute.xlu0 %5323
        %v5342 = vrot.slane %v4933, 1
        %v5343 = vrot.slane %v4895, 1
        %v5344 = vsel %vm648, %v5342, %v5343
        %v5345 = vrot.slane %v4943, 1
        %v5346 = vsel %vm648, %v5343, %v5345
        %5347 = vrot.lane.b32.xlu0 %v4972, 112
        %v5348 = vpop.permute.xlu0 %5347
        %5349 = vrot.lane.b32.xlu0 %v4974, 112
        %v5350 = vpop.permute.xlu0 %5349
        %5351 = vrot.lane.b32.xlu0 %v4977, 112
        %v5352 = vpop.permute.xlu0 %5351
        %5353 = vrot.lane.b32.xlu0 %v4979, 112
        %v5354 = vpop.permute.xlu0 %5353
        %5355 = vrot.lane.b32.xlu0 %v4982, 112
        %v5356 = vpop.permute.xlu0 %5355
        %5357 = vrot.lane.b32.xlu0 %v4984, 112
        %v5358 = vpop.permute.xlu0 %5357
        %5359 = vrot.lane.b32.xlu0 %v4987, 112
        %v5360 = vpop.permute.xlu0 %5359
        %5361 = vrot.lane.b32.xlu0 %v4989, 112
        %v5362 = vpop.permute.xlu0 %5361
        %5363 = vrot.lane.b32.xlu0 %v4992, 112
        %v5364 = vpop.permute.xlu0 %5363
        %5365 = vrot.lane.b32.xlu0 %v4994, 112
        %v5366 = vpop.permute.xlu0 %5365
        %5367 = vrot.lane.b32.xlu0 %v4997, 112
        %v5368 = vpop.permute.xlu0 %5367
        %5369 = vrot.lane.b32.xlu0 %v4999, 112
        %v5370 = vpop.permute.xlu0 %5369
        %5371 = vrot.lane.b32.xlu0 %v5188, 112
        %v5372 = vpop.permute.xlu0 %5371
        %5373 = vrot.lane.b32.xlu0 %v5190, 112
        %v5374 = vpop.permute.xlu0 %5373
        %5375 = vrot.lane.b32.xlu0 %v5344, 112
        %v5376 = vpop.permute.xlu0 %5375
        %5377 = vrot.lane.b32.xlu0 %v5346, 112
        %v5378 = vpop.permute.xlu0 %5377
        %v5395 = vrot.slane %v4933, 2
        %v5396 = vrot.slane %v4895, 2
        %v5397 = vsel %vm803, %v5395, %v5396
        %v5398 = vrot.slane %v4943, 2
        %v5399 = vsel %vm803, %v5396, %v5398
        %v5400 = vsel %vm3037, %v4924, %v5001
        %v5401 = vsel %vm3037, %v4868, %v5003
        %v5402 = vsel %vm3037, %v4925, %v5005
        %v5403 = vsel %vm3037, %v4871, %v5007
        %v5404 = vsel %vm3037, %v4926, %v5009
        %v5405 = vsel %vm3037, %v4874, %v5011
        %v5406 = vsel %vm3037, %v4927, %v5013
        %v5407 = vsel %vm3037, %v4877, %v5015
        %v5408 = vsel %vm3037, %v4928, %v5017
        %v5409 = vsel %vm3037, %v4880, %v5019
        %v5410 = vsel %vm3037, %v4929, %v5021
        %v5411 = vsel %vm3037, %v4883, %v5023
        %v5412 = vsel %vm3037, %v4930, %v5025
        %v5413 = vsel %vm3037, %v4886, %v5027
        %v5414 = vsel %vm3037, %v4931, %v5029
        %v5415 = vsel %vm3037, %v4889, %v5031
        %v5416 = vsel %vm3062, %v5400, %v5089
        %v5417 = vsel %vm3062, %v5401, %v5091
        %v5418 = vsel %vm3062, %v5402, %v5093
        %v5419 = vsel %vm3062, %v5403, %v5095
        %v5420 = vsel %vm3062, %v5404, %v5097
        %v5421 = vsel %vm3062, %v5405, %v5099
        %v5422 = vsel %vm3062, %v5406, %v5101
        %v5423 = vsel %vm3062, %v5407, %v5103
        %v5424 = vsel %vm3062, %v5408, %v5105
        %v5425 = vsel %vm3062, %v5409, %v5107
        %v5426 = vsel %vm3062, %v5410, %v5109
        %v5427 = vsel %vm3062, %v5411, %v5111
        %v5428 = vsel %vm3062, %v5412, %v5113
        %v5429 = vsel %vm3062, %v5413, %v5115
        %v5430 = vsel %vm3062, %v5414, %v5117
        %v5431 = vsel %vm3062, %v5415, %v5119
        %v5432 = vsel %vm3087, %v5416, %v5138
        %v5433 = vsel %vm3087, %v5417, %v5140
        %v5434 = vsel %vm3087, %v5418, %v5142
        %v5435 = vsel %vm3087, %v5419, %v5144
        %v5436 = vsel %vm3087, %v5420, %v5146
        %v5437 = vsel %vm3087, %v5421, %v5148
        %v5438 = vsel %vm3087, %v5422, %v5150
        %v5439 = vsel %vm3087, %v5423, %v5152
        %v5440 = vsel %vm3087, %v5424, %v5154
        %v5441 = vsel %vm3087, %v5425, %v5156
        %v5442 = vsel %vm3087, %v5426, %v5158
        %v5443 = vsel %vm3087, %v5427, %v5160
        %v5444 = vsel %vm3087, %v5428, %v5162
        %v5445 = vsel %vm3087, %v5429, %v5164
        %v5446 = vsel %vm3087, %v5430, %v5166
        %v5447 = vsel %vm3087, %v5431, %v5168
        %v5448 = vsel %vm3112, %v5432, %v5192
        %v5449 = vsel %vm3112, %v5433, %v5194
        %v5450 = vsel %vm3112, %v5434, %v5196
        %v5451 = vsel %vm3112, %v5435, %v5198
        %v5452 = vsel %vm3112, %v5436, %v5200
        %v5453 = vsel %vm3112, %v5437, %v5202
        %v5454 = vsel %vm3112, %v5438, %v5204
        %v5455 = vsel %vm3112, %v5439, %v5206
        %v5456 = vsel %vm3112, %v5440, %v5208
        %v5457 = vsel %vm3112, %v5441, %v5210
        %v5458 = vsel %vm3112, %v5442, %v5212
        %v5459 = vsel %vm3112, %v5443, %v5214
        %v5460 = vsel %vm3112, %v5444, %v5216
        %v5461 = vsel %vm3112, %v5445, %v5218
        %v5462 = vsel %vm3112, %v5446, %v5220
        %v5463 = vsel %vm3112, %v5447, %v5222
        %v5464 = vsel %vm3137, %v5448, %v5245
        %v5465 = vsel %vm3137, %v5449, %v5247
        %v5466 = vsel %vm3137, %v5450, %v5249
        %v5467 = vsel %vm3137, %v5451, %v5251
        %v5468 = vsel %vm3137, %v5452, %v5253
        %v5469 = vsel %vm3137, %v5453, %v5255
        %v5470 = vsel %vm3137, %v5454, %v5257
        %v5471 = vsel %vm3137, %v5455, %v5259
        %v5472 = vsel %vm3137, %v5456, %v5261
        %v5473 = vsel %vm3137, %v5457, %v5263
        %v5474 = vsel %vm3137, %v5458, %v5265
        %v5475 = vsel %vm3137, %v5459, %v5267
        %v5476 = vsel %vm3137, %v5460, %v5269
        %v5477 = vsel %vm3137, %v5461, %v5271
        %v5478 = vsel %vm3137, %v5462, %v5273
        %v5479 = vsel %vm3137, %v5463, %v5275
        %v5480 = vsel %vm3162, %v5464, %v5294
        %v5481 = vsel %vm3162, %v5465, %v5296
        %v5482 = vsel %vm3162, %v5466, %v5298
        %v5483 = vsel %vm3162, %v5467, %v5300
        %v5484 = vsel %vm3162, %v5468, %v5302
        %v5485 = vsel %vm3162, %v5469, %v5304
        %v5486 = vsel %vm3162, %v5470, %v5306
        %v5487 = vsel %vm3162, %v5471, %v5308
        %v5488 = vsel %vm3162, %v5472, %v5310
        %v5489 = vsel %vm3162, %v5473, %v5312
        %v5490 = vsel %vm3162, %v5474, %v5314
        %v5491 = vsel %vm3162, %v5475, %v5316
        %v5492 = vsel %vm3162, %v5476, %v5318
        %v5493 = vsel %vm3162, %v5477, %v5320
        %v5494 = vsel %vm3162, %v5478, %v5322
        %v5495 = vsel %vm3162, %v5479, %v5324
        %v5496 = vsel %vm3187, %v5480, %v5348
        %v5497 = vsel %vm3187, %v5481, %v5350
        %v5498 = vsel %vm3187, %v5482, %v5352
        %v5499 = vsel %vm3187, %v5483, %v5354
        %v5500 = vsel %vm3187, %v5484, %v5356
        %v5501 = vsel %vm3187, %v5485, %v5358
        %v5502 = vsel %vm3187, %v5486, %v5360
        %v5503 = vsel %vm3187, %v5487, %v5362
        %v5504 = vsel %vm3187, %v5488, %v5364
        %v5505 = vsel %vm3187, %v5489, %v5366
        %v5506 = vsel %vm3187, %v5490, %v5368
        %v5507 = vsel %vm3187, %v5491, %v5370
        %v5508 = vsel %vm3187, %v5492, %v5372
        %v5509 = vsel %vm3187, %v5493, %v5374
        %v5510 = vsel %vm3187, %v5494, %v5376
        %v5511 = vsel %vm3187, %v5495, %v5378
        %v5512 = vld [vmem:[%s10] sm:$0xff]
        %v5513 = vld [vmem:[%s10 + $0x8] sm:$0xff]
        %v5514 = vld [vmem:[%s10 + $0x10] sm:$0xff]
        %v5515 = vld [vmem:[%s10 + $0x18] sm:$0xff]
        %v5516 = vld [vmem:[%s10 + $0x20] sm:$0xff]
        %v5517 = vld [vmem:[%s10 + $0x28] sm:$0xff]
        %v5518 = vld [vmem:[%s10 + $0x30] sm:$0xff]
        %v5519 = vld [vmem:[%s10 + $0x38] sm:$0xff]
        %v5520 = vld [vmem:[%s10 + $0x40] sm:$0xff]
        %v5521 = vld [vmem:[%s10 + $0x48] sm:$0xff]
        %v5522 = vld [vmem:[%s10 + $0x50] sm:$0xff]
        %v5523 = vld [vmem:[%s10 + $0x58] sm:$0xff]
        %v5524 = vld [vmem:[%s10 + $0x60] sm:$0xff]
        %v5525 = vld [vmem:[%s10 + $0x68] sm:$0xff]
        %v5526 = vld [vmem:[%s10 + $0x70] sm:$0xff]
        %v5527 = vld [vmem:[%s10 + $0x78] sm:$0xff]
        %v5528 = vld [vmem:[%s10 + $0x80] sm:$0xff]
        %v5529 = vld [vmem:[%s10 + $0x88] sm:$0xff]
        %v5530 = vld [vmem:[%s11] sm:$0x1]
        %v5532 = vlaneseq
        %v5533 = vshrl.u32 %v5532, 7
        %v5534 = vsub.s32 0, %v5533
        %v5535 = vrot.slane %v5530, %v5534
        %v5537 = vsel %vm3037, %v5060, 0
        %v5539 = vsel %vm3037, %v5062, 0
        %v5541 = vsel %vm3037, %v5065, 0
        %v5543 = vsel %vm3037, %v5067, 0
        %v5545 = vsel %vm3037, %v5070, 0
        %v5547 = vsel %vm3037, %v5072, 0
        %v5549 = vsel %vm3037, %v5075, 0
        %v5551 = vsel %vm3037, %v5077, 0
        %v5553 = vsel %vm3037, %v5080, 0
        %v5555 = vsel %vm3037, %v5082, 0
        %v5557 = vsel %vm3037, %v5085, 0
        %v5559 = vsel %vm3037, %v5087, 0
        %v5561 = vsel %vm3037, %v5241, 0
        %v5563 = vsel %vm3037, %v5243, 0
        %v5565 = vsel %vm3037, %v5397, 0
        %v5567 = vsel %vm3037, %v5399, 0
        %5569 = vmatprep.subr.mxu0 0.0
        %5570 = vmatpush1.msra.mxu0 %v5527
        %5571 = vmatprep.subr.mxu0 0.0
        %5572 = vmatpush1.msra.mxu0 %v5526
        %5573 = vmatprep.subr.mxu0 0.0
        %5574 = vmatpush1.msra.mxu0 %v5525
        %5575 = vmatprep.subr.mxu0 0.0
        %5576 = vmatpush1.msra.mxu0 %v5524
        %5577 = vmatprep.subr.mxu0 0.0
        %5578 = vmatpush1.msra.mxu0 %v5523
        %5579 = vmatprep.subr.mxu0 0.0
        %5580 = vmatpush1.msra.mxu0 %v5522
        %5581 = vmatprep.subr.mxu0 0.0
        %5582 = vmatpush1.msra.mxu0 %v5521
        %5583 = vmatprep.subr.mxu0 0.0
        %5584 = vmatpush1.msra.mxu0 %v5520
        %5585 = vmatprep.subr.mxu0 0.0
        %5586 = vmatpush1.msra.mxu0 %v5519
        %5587 = vmatprep.subr.mxu0 0.0
        %5588 = vmatpush1.msra.mxu0 %v5518
        %5589 = vmatprep.subr.mxu0 0.0
        %5590 = vmatpush1.msra.mxu0 %v5517
        %5591 = vmatprep.subr.mxu0 0.0
        %5592 = vmatpush1.msra.mxu0 %v5516
        %5593 = vmatprep.subr.mxu0 0.0
        %5594 = vmatpush1.msra.mxu0 %v5515
        %5595 = vmatprep.subr.mxu0 0.0
        %5596 = vmatpush1.msra.mxu0 %v5514
        %5597 = vmatprep.subr.mxu0 0.0
        %5598 = vmatpush1.msra.mxu0 %v5513
        %5599 = vmatprep.subr.mxu0 0.0
        %5600 = vmatpush1.msra.mxu0 %v5512
        %5601 = vmatprep.subr.mxu0 0.0
        %5602 = vmatpush2.msra.mxu0 0.0
        %5603 = vmatprep.subr.mxu0 0.0
        %5604 = vmatpush2.msra.mxu0 0.0
        %5605 = vmatprep.subr.mxu0 0.0
        %5606 = vmatpush2.msra.mxu0 0.0
        %5607 = vmatprep.subr.mxu0 0.0
        %5608 = vmatpush2.msra.mxu0 0.0
        %5609 = vmatprep.subr.mxu0 0.0
        %5610 = vmatpush2.msra.mxu0 0.0
        %5611 = vmatprep.subr.mxu0 0.0
        %5612 = vmatpush2.msra.mxu0 0.0
        %5613 = vmatprep.subr.mxu0 0.0
        %5614 = vmatpush2.msra.mxu0 0.0
        %5615 = vmatprep.subr.mxu0 0.0
        %5616 = vmatpush2.msra.mxu0 0.0
        %5617 = vmatprep.subr.mxu0 0.0
        %5618 = vmatpush2.msra.mxu0 0.0
        %5619 = vmatprep.subr.mxu0 0.0
        %5620 = vmatpush2.msra.mxu0 0.0
        %5621 = vmatprep.subr.mxu0 0.0
        %5622 = vmatpush2.msra.mxu0 0.0
        %5623 = vmatprep.subr.mxu0 0.0
        %5624 = vmatpush2.msra.mxu0 0.0
        %5625 = vmatprep.subr.mxu0 0.0
        %5626 = vmatpush2.msra.mxu0 0.0
        %5627 = vmatprep.subr.mxu0 0.0
        %5628 = vmatpush2.msra.mxu0 0.0
        %5629 = vmatprep.subr.mxu0 0.0
        %5630 = vmatpush2.msra.mxu0 %v5529
        %5631 = vmatprep.subr.mxu0 0.0
        %5632 = vmatpush2.msra.mxu0 %v5528
        %5633 = vmatprep.mubr.f32.mxu0 %v5537
        %5634 = vmatmul.mubr.f32.gmra.mxu0 %v5496
        %v5635 = vpop.f32.mrf.mxu0
        %v5636 = vadd.f32 %v5535, %v5635
        %v5637 = vpop.f32.mrf.mxu0
        %5638 = vmatprep.mubr.f32.mxu0 %v5539
        %5639 = vmatmul.mubr.f32.gmra.mxu0 %v5497
        %v5640 = vpop.f32.mrf.mxu0
        %v5641 = vadd.f32 %v5535, %v5640
        %v5642 = vpop.f32.mrf.mxu0
        %5643 = vmatprep.mubr.f32.mxu0 %v5541
        %5644 = vmatmul.mubr.f32.gmra.mxu0 %v5498
        %v5645 = vpop.f32.mrf.mxu0
        %v5646 = vadd.f32 %v5535, %v5645
        %v5647 = vpop.f32.mrf.mxu0
        %5648 = vmatprep.mubr.f32.mxu0 %v5543
        %5649 = vmatmul.mubr.f32.gmra.mxu0 %v5499
        %v5650 = vpop.f32.mrf.mxu0
        %v5651 = vadd.f32 %v5535, %v5650
        %v5652 = vpop.f32.mrf.mxu0
        %5653 = vmatprep.mubr.f32.mxu0 %v5545
        %5654 = vmatmul.mubr.f32.gmra.mxu0 %v5500
        %v5655 = vpop.f32.mrf.mxu0
        %v5656 = vadd.f32 %v5535, %v5655
        %v5657 = vpop.f32.mrf.mxu0
        %5658 = vmatprep.mubr.f32.mxu0 %v5547
        %5659 = vmatmul.mubr.f32.gmra.mxu0 %v5501
        %v5660 = vpop.f32.mrf.mxu0
        %v5661 = vadd.f32 %v5535, %v5660
        %v5662 = vpop.f32.mrf.mxu0
        %5663 = vmatprep.mubr.f32.mxu0 %v5549
        %5664 = vmatmul.mubr.f32.gmra.mxu0 %v5502
        %v5665 = vpop.f32.mrf.mxu0
        %v5666 = vadd.f32 %v5535, %v5665
        %v5667 = vpop.f32.mrf.mxu0
        %5668 = vmatprep.mubr.f32.mxu0 %v5551
        %5669 = vmatmul.mubr.f32.gmra.mxu0 %v5503
        %v5670 = vpop.f32.mrf.mxu0
        %v5671 = vadd.f32 %v5535, %v5670
        %v5672 = vpop.f32.mrf.mxu0
        %5673 = vmatprep.mubr.f32.mxu0 %v5553
        %5674 = vmatmul.mubr.f32.gmra.mxu0 %v5504
        %v5675 = vpop.f32.mrf.mxu0
        %v5676 = vadd.f32 %v5535, %v5675
        %v5677 = vpop.f32.mrf.mxu0
        %5678 = vmatprep.mubr.f32.mxu0 %v5555
        %5679 = vmatmul.mubr.f32.gmra.mxu0 %v5505
        %v5680 = vpop.f32.mrf.mxu0
        %v5681 = vadd.f32 %v5535, %v5680
        %v5682 = vpop.f32.mrf.mxu0
        %5683 = vmatprep.mubr.f32.mxu0 %v5557
        %5684 = vmatmul.mubr.f32.gmra.mxu0 %v5506
        %v5685 = vpop.f32.mrf.mxu0
        %v5686 = vadd.f32 %v5535, %v5685
        %v5687 = vpop.f32.mrf.mxu0
        %5688 = vmatprep.mubr.f32.mxu0 %v5559
        %5689 = vmatmul.mubr.f32.gmra.mxu0 %v5507
        %v5690 = vpop.f32.mrf.mxu0
        %v5691 = vadd.f32 %v5535, %v5690
        %v5692 = vpop.f32.mrf.mxu0
        %5693 = vmatprep.mubr.f32.mxu0 %v5561
        %5694 = vmatmul.mubr.f32.gmra.mxu0 %v5508
        %v5695 = vpop.f32.mrf.mxu0
        %v5696 = vadd.f32 %v5535, %v5695
        %v5697 = vpop.f32.mrf.mxu0
        %5698 = vmatprep.mubr.f32.mxu0 %v5563
        %5699 = vmatmul.mubr.f32.gmra.mxu0 %v5509
        %v5700 = vpop.f32.mrf.mxu0
        %v5701 = vadd.f32 %v5535, %v5700
        %v5702 = vpop.f32.mrf.mxu0
        %5703 = vmatprep.mubr.f32.mxu0 %v5565
        %5704 = vmatmul.mubr.f32.gmra.mxu0 %v5510
        %v5705 = vpop.f32.mrf.mxu0
        %v5706 = vadd.f32 %v5535, %v5705
        %v5707 = vpop.f32.mrf.mxu0
        %5708 = vmatprep.mubr.f32.mxu0 %v5567
        %5709 = vmatmul.mubr.f32.gmra.mxu0 %v5511
        %v5710 = vpop.f32.mrf.mxu0
        %v5711 = vadd.f32 %v5535, %v5710
        %v5712 = vpop.f32.mrf.mxu0
        %5713 = vdwg.mxu0
        %s5714 = sadd.s32 %s426, 4
        %s5715 = smul.u32 %s5714, 16
        %s5716 = scalar_lea.vmem %s425, %s5715
        %v5717 = vld [vmem:[%s5716] sm:$0xff]
        %v5718 = vld [vmem:[%s5716 + $0x8] sm:$0xff]
        %v5719 = vld [vmem:[%s5716 + $0x10] sm:$0xff]
        %v5720 = vld [vmem:[%s5716 + $0x18] sm:$0xff]
        %v5721 = vld [vmem:[%s5716 + $0x20] sm:$0xff]
        %v5722 = vld [vmem:[%s5716 + $0x28] sm:$0xff]
        %v5723 = vld [vmem:[%s5716 + $0x30] sm:$0xff]
        %v5724 = vld [vmem:[%s5716 + $0x38] sm:$0xff]
        %v5725 = vld [vmem:[%s5716 + $0x40] sm:$0xff]
        %v5726 = vld [vmem:[%s5716 + $0x48] sm:$0xff]
        %v5727 = vld [vmem:[%s5716 + $0x50] sm:$0xff]
        %v5728 = vld [vmem:[%s5716 + $0x58] sm:$0xff]
        %v5729 = vld [vmem:[%s5716 + $0x60] sm:$0xff]
        %v5730 = vld [vmem:[%s5716 + $0x68] sm:$0xff]
        %v5731 = vld [vmem:[%s5716 + $0x70] sm:$0xff]
        %v5732 = vld [vmem:[%s5716 + $0x78] sm:$0xff]
        %v5733 = vlaneseq
        %v5734 = vshrl.u32 %v5733, 7
        %v5735 = vsub.s32 0, %v5734
        %v5736 = vrot.slane %v5717, %v5735
        %5738 = vbcast.lane.b32.xlu0 %v5736, 256
        %v5739 = vpop.permute.xlu0 %5738
        %v5740 = vlaneseq
        %v5741 = vshrl.u32 %v5740, 7
        %v5742 = vsub.s32 1, %v5741
        %v5743 = vrot.slane %v5717, %v5742
        %5745 = vbcast.lane.b32.xlu0 %v5743, 256
        %v5746 = vpop.permute.xlu0 %5745
        %v5747 = vlaneseq
        %v5748 = vshrl.u32 %v5747, 7
        %v5749 = vsub.s32 2, %v5748
        %v5750 = vrot.slane %v5717, %v5749
        %5752 = vbcast.lane.b32.xlu0 %v5750, 256
        %v5753 = vpop.permute.xlu0 %5752
        %v5754 = vlaneseq
        %v5755 = vshrl.u32 %v5754, 7
        %v5756 = vsub.s32 3, %v5755
        %v5757 = vrot.slane %v5717, %v5756
        %5759 = vbcast.lane.b32.xlu0 %v5757, 256
        %v5760 = vpop.permute.xlu0 %5759
        %v5761 = vlaneseq
        %v5762 = vshrl.u32 %v5761, 7
        %v5763 = vsub.s32 4, %v5762
        %v5764 = vrot.slane %v5717, %v5763
        %5766 = vbcast.lane.b32.xlu0 %v5764, 256
        %v5767 = vpop.permute.xlu0 %5766
        %v5768 = vlaneseq
        %v5769 = vshrl.u32 %v5768, 7
        %v5770 = vsub.s32 5, %v5769
        %v5771 = vrot.slane %v5717, %v5770
        %5773 = vbcast.lane.b32.xlu0 %v5771, 256
        %v5774 = vpop.permute.xlu0 %5773
        %v5775 = vlaneseq
        %v5776 = vshrl.u32 %v5775, 7
        %v5777 = vsub.s32 6, %v5776
        %v5778 = vrot.slane %v5717, %v5777
        %5780 = vbcast.lane.b32.xlu0 %v5778, 256
        %v5781 = vpop.permute.xlu0 %5780
        %v5782 = vlaneseq
        %v5783 = vshrl.u32 %v5782, 7
        %v5784 = vsub.s32 7, %v5783
        %v5785 = vrot.slane %v5717, %v5784
        %5787 = vbcast.lane.b32.xlu0 %v5785, 256
        %v5788 = vpop.permute.xlu0 %5787
        %v5789 = vlaneseq
        %v5790 = vshrl.u32 %v5789, 7
        %v5791 = vsub.s32 0, %v5790
        %v5792 = vrot.slane %v5718, %v5791
        %5794 = vbcast.lane.b32.xlu0 %v5792, 256
        %v5795 = vpop.permute.xlu0 %5794
        %v5796 = vlaneseq
        %v5797 = vshrl.u32 %v5796, 7
        %v5798 = vsub.s32 1, %v5797
        %v5799 = vrot.slane %v5718, %v5798
        %5801 = vbcast.lane.b32.xlu0 %v5799, 256
        %v5802 = vpop.permute.xlu0 %5801
        %v5803 = vlaneseq
        %v5804 = vshrl.u32 %v5803, 7
        %v5805 = vsub.s32 2, %v5804
        %v5806 = vrot.slane %v5718, %v5805
        %5808 = vbcast.lane.b32.xlu0 %v5806, 256
        %v5809 = vpop.permute.xlu0 %5808
        %v5810 = vlaneseq
        %v5811 = vshrl.u32 %v5810, 7
        %v5812 = vsub.s32 3, %v5811
        %v5813 = vrot.slane %v5718, %v5812
        %5815 = vbcast.lane.b32.xlu0 %v5813, 256
        %v5816 = vpop.permute.xlu0 %5815
        %v5817 = vlaneseq
        %v5818 = vshrl.u32 %v5817, 7
        %v5819 = vsub.s32 4, %v5818
        %v5820 = vrot.slane %v5718, %v5819
        %5822 = vbcast.lane.b32.xlu0 %v5820, 256
        %v5823 = vpop.permute.xlu0 %5822
        %v5824 = vlaneseq
        %v5825 = vshrl.u32 %v5824, 7
        %v5826 = vsub.s32 5, %v5825
        %v5827 = vrot.slane %v5718, %v5826
        %5829 = vbcast.lane.b32.xlu0 %v5827, 256
        %v5830 = vpop.permute.xlu0 %5829
        %v5831 = vlaneseq
        %v5832 = vshrl.u32 %v5831, 7
        %v5833 = vsub.s32 6, %v5832
        %v5834 = vrot.slane %v5718, %v5833
        %5836 = vbcast.lane.b32.xlu0 %v5834, 256
        %v5837 = vpop.permute.xlu0 %5836
        %v5838 = vlaneseq
        %v5839 = vshrl.u32 %v5838, 7
        %v5840 = vsub.s32 7, %v5839
        %v5841 = vrot.slane %v5718, %v5840
        %5843 = vbcast.lane.b32.xlu0 %v5841, 256
        %v5844 = vpop.permute.xlu0 %5843
        %v5845 = vlaneseq
        %v5846 = vshrl.u32 %v5845, 7
        %v5847 = vsub.s32 0, %v5846
        %v5848 = vrot.slane %v5719, %v5847
        %5850 = vbcast.lane.b32.xlu0 %v5848, 256
        %v5851 = vpop.permute.xlu0 %5850
        %v5852 = vlaneseq
        %v5853 = vshrl.u32 %v5852, 7
        %v5854 = vsub.s32 1, %v5853
        %v5855 = vrot.slane %v5719, %v5854
        %5857 = vbcast.lane.b32.xlu0 %v5855, 256
        %v5858 = vpop.permute.xlu0 %5857
        %v5859 = vlaneseq
        %v5860 = vshrl.u32 %v5859, 7
        %v5861 = vsub.s32 2, %v5860
        %v5862 = vrot.slane %v5719, %v5861
        %5864 = vbcast.lane.b32.xlu0 %v5862, 256
        %v5865 = vpop.permute.xlu0 %5864
        %v5866 = vlaneseq
        %v5867 = vshrl.u32 %v5866, 7
        %v5868 = vsub.s32 3, %v5867
        %v5869 = vrot.slane %v5719, %v5868
        %5871 = vbcast.lane.b32.xlu0 %v5869, 256
        %v5872 = vpop.permute.xlu0 %5871
        %v5873 = vlaneseq
        %v5874 = vshrl.u32 %v5873, 7
        %v5875 = vsub.s32 4, %v5874
        %v5876 = vrot.slane %v5719, %v5875
        %5878 = vbcast.lane.b32.xlu0 %v5876, 256
        %v5879 = vpop.permute.xlu0 %5878
        %v5880 = vlaneseq
        %v5881 = vshrl.u32 %v5880, 7
        %v5882 = vsub.s32 5, %v5881
        %v5883 = vrot.slane %v5719, %v5882
        %5885 = vbcast.lane.b32.xlu0 %v5883, 256
        %v5886 = vpop.permute.xlu0 %5885
        %v5887 = vlaneseq
        %v5888 = vshrl.u32 %v5887, 7
        %v5889 = vsub.s32 6, %v5888
        %v5890 = vrot.slane %v5719, %v5889
        %5892 = vbcast.lane.b32.xlu0 %v5890, 256
        %v5893 = vpop.permute.xlu0 %5892
        %v5894 = vlaneseq
        %v5895 = vshrl.u32 %v5894, 7
        %v5896 = vsub.s32 7, %v5895
        %v5897 = vrot.slane %v5719, %v5896
        %5899 = vbcast.lane.b32.xlu0 %v5897, 256
        %v5900 = vpop.permute.xlu0 %5899
        %v5901 = vlaneseq
        %v5902 = vshrl.u32 %v5901, 7
        %v5903 = vsub.s32 0, %v5902
        %v5904 = vrot.slane %v5720, %v5903
        %5906 = vbcast.lane.b32.xlu0 %v5904, 256
        %v5907 = vpop.permute.xlu0 %5906
        %v5908 = vlaneseq
        %v5909 = vshrl.u32 %v5908, 7
        %v5910 = vsub.s32 1, %v5909
        %v5911 = vrot.slane %v5720, %v5910
        %5913 = vbcast.lane.b32.xlu0 %v5911, 256
        %v5914 = vpop.permute.xlu0 %5913
        %v5915 = vlaneseq
        %v5916 = vshrl.u32 %v5915, 7
        %v5917 = vsub.s32 2, %v5916
        %v5918 = vrot.slane %v5720, %v5917
        %5920 = vbcast.lane.b32.xlu0 %v5918, 256
        %v5921 = vpop.permute.xlu0 %5920
        %v5922 = vlaneseq
        %v5923 = vshrl.u32 %v5922, 7
        %v5924 = vsub.s32 3, %v5923
        %v5925 = vrot.slane %v5720, %v5924
        %5927 = vbcast.lane.b32.xlu0 %v5925, 256
        %v5928 = vpop.permute.xlu0 %5927
        %v5929 = vlaneseq
        %v5930 = vshrl.u32 %v5929, 7
        %v5931 = vsub.s32 4, %v5930
        %v5932 = vrot.slane %v5720, %v5931
        %5934 = vbcast.lane.b32.xlu0 %v5932, 256
        %v5935 = vpop.permute.xlu0 %5934
        %v5936 = vlaneseq
        %v5937 = vshrl.u32 %v5936, 7
        %v5938 = vsub.s32 5, %v5937
        %v5939 = vrot.slane %v5720, %v5938
        %5941 = vbcast.lane.b32.xlu0 %v5939, 256
        %v5942 = vpop.permute.xlu0 %5941
        %v5943 = vlaneseq
        %v5944 = vshrl.u32 %v5943, 7
        %v5945 = vsub.s32 6, %v5944
        %v5946 = vrot.slane %v5720, %v5945
        %5948 = vbcast.lane.b32.xlu0 %v5946, 256
        %v5949 = vpop.permute.xlu0 %5948
        %v5950 = vlaneseq
        %v5951 = vshrl.u32 %v5950, 7
        %v5952 = vsub.s32 7, %v5951
        %v5953 = vrot.slane %v5720, %v5952
        %5955 = vbcast.lane.b32.xlu0 %v5953, 256
        %v5956 = vpop.permute.xlu0 %5955
        %v5957 = vlaneseq
        %v5958 = vshrl.u32 %v5957, 7
        %v5959 = vsub.s32 0, %v5958
        %v5960 = vrot.slane %v5721, %v5959
        %5962 = vbcast.lane.b32.xlu0 %v5960, 256
        %v5963 = vpop.permute.xlu0 %5962
        %v5964 = vlaneseq
        %v5965 = vshrl.u32 %v5964, 7
        %v5966 = vsub.s32 1, %v5965
        %v5967 = vrot.slane %v5721, %v5966
        %5969 = vbcast.lane.b32.xlu0 %v5967, 256
        %v5970 = vpop.permute.xlu0 %5969
        %v5971 = vlaneseq
        %v5972 = vshrl.u32 %v5971, 7
        %v5973 = vsub.s32 2, %v5972
        %v5974 = vrot.slane %v5721, %v5973
        %5976 = vbcast.lane.b32.xlu0 %v5974, 256
        %v5977 = vpop.permute.xlu0 %5976
        %v5978 = vlaneseq
        %v5979 = vshrl.u32 %v5978, 7
        %v5980 = vsub.s32 3, %v5979
        %v5981 = vrot.slane %v5721, %v5980
        %5983 = vbcast.lane.b32.xlu0 %v5981, 256
        %v5984 = vpop.permute.xlu0 %5983
        %v5985 = vlaneseq
        %v5986 = vshrl.u32 %v5985, 7
        %v5987 = vsub.s32 4, %v5986
        %v5988 = vrot.slane %v5721, %v5987
        %5990 = vbcast.lane.b32.xlu0 %v5988, 256
        %v5991 = vpop.permute.xlu0 %5990
        %v5992 = vlaneseq
        %v5993 = vshrl.u32 %v5992, 7
        %v5994 = vsub.s32 5, %v5993
        %v5995 = vrot.slane %v5721, %v5994
        %5997 = vbcast.lane.b32.xlu0 %v5995, 256
        %v5998 = vpop.permute.xlu0 %5997
        %v5999 = vlaneseq
        %v6000 = vshrl.u32 %v5999, 7
        %v6001 = vsub.s32 6, %v6000
        %v6002 = vrot.slane %v5721, %v6001
        %6004 = vbcast.lane.b32.xlu0 %v6002, 256
        %v6005 = vpop.permute.xlu0 %6004
        %v6006 = vlaneseq
        %v6007 = vshrl.u32 %v6006, 7
        %v6008 = vsub.s32 7, %v6007
        %v6009 = vrot.slane %v5721, %v6008
        %6011 = vbcast.lane.b32.xlu0 %v6009, 256
        %v6012 = vpop.permute.xlu0 %6011
        %v6013 = vlaneseq
        %v6014 = vshrl.u32 %v6013, 7
        %v6015 = vsub.s32 0, %v6014
        %v6016 = vrot.slane %v5722, %v6015
        %6018 = vbcast.lane.b32.xlu0 %v6016, 256
        %v6019 = vpop.permute.xlu0 %6018
        %v6020 = vlaneseq
        %v6021 = vshrl.u32 %v6020, 7
        %v6022 = vsub.s32 1, %v6021
        %v6023 = vrot.slane %v5722, %v6022
        %6025 = vbcast.lane.b32.xlu0 %v6023, 256
        %v6026 = vpop.permute.xlu0 %6025
        %v6027 = vlaneseq
        %v6028 = vshrl.u32 %v6027, 7
        %v6029 = vsub.s32 2, %v6028
        %v6030 = vrot.slane %v5722, %v6029
        %6032 = vbcast.lane.b32.xlu0 %v6030, 256
        %v6033 = vpop.permute.xlu0 %6032
        %v6034 = vlaneseq
        %v6035 = vshrl.u32 %v6034, 7
        %v6036 = vsub.s32 3, %v6035
        %v6037 = vrot.slane %v5722, %v6036
        %6039 = vbcast.lane.b32.xlu0 %v6037, 256
        %v6040 = vpop.permute.xlu0 %6039
        %v6041 = vlaneseq
        %v6042 = vshrl.u32 %v6041, 7
        %v6043 = vsub.s32 4, %v6042
        %v6044 = vrot.slane %v5722, %v6043
        %6046 = vbcast.lane.b32.xlu0 %v6044, 256
        %v6047 = vpop.permute.xlu0 %6046
        %v6048 = vlaneseq
        %v6049 = vshrl.u32 %v6048, 7
        %v6050 = vsub.s32 5, %v6049
        %v6051 = vrot.slane %v5722, %v6050
        %6053 = vbcast.lane.b32.xlu0 %v6051, 256
        %v6054 = vpop.permute.xlu0 %6053
        %v6055 = vlaneseq
        %v6056 = vshrl.u32 %v6055, 7
        %v6057 = vsub.s32 6, %v6056
        %v6058 = vrot.slane %v5722, %v6057
        %6060 = vbcast.lane.b32.xlu0 %v6058, 256
        %v6061 = vpop.permute.xlu0 %6060
        %v6062 = vlaneseq
        %v6063 = vshrl.u32 %v6062, 7
        %v6064 = vsub.s32 7, %v6063
        %v6065 = vrot.slane %v5722, %v6064
        %6067 = vbcast.lane.b32.xlu0 %v6065, 256
        %v6068 = vpop.permute.xlu0 %6067
        %v6069 = vlaneseq
        %v6070 = vshrl.u32 %v6069, 7
        %v6071 = vsub.s32 0, %v6070
        %v6072 = vrot.slane %v5723, %v6071
        %6074 = vbcast.lane.b32.xlu0 %v6072, 256
        %v6075 = vpop.permute.xlu0 %6074
        %v6076 = vlaneseq
        %v6077 = vshrl.u32 %v6076, 7
        %v6078 = vsub.s32 1, %v6077
        %v6079 = vrot.slane %v5723, %v6078
        %6081 = vbcast.lane.b32.xlu0 %v6079, 256
        %v6082 = vpop.permute.xlu0 %6081
        %v6083 = vlaneseq
        %v6084 = vshrl.u32 %v6083, 7
        %v6085 = vsub.s32 2, %v6084
        %v6086 = vrot.slane %v5723, %v6085
        %6088 = vbcast.lane.b32.xlu0 %v6086, 256
        %v6089 = vpop.permute.xlu0 %6088
        %v6090 = vlaneseq
        %v6091 = vshrl.u32 %v6090, 7
        %v6092 = vsub.s32 3, %v6091
        %v6093 = vrot.slane %v5723, %v6092
        %6095 = vbcast.lane.b32.xlu0 %v6093, 256
        %v6096 = vpop.permute.xlu0 %6095
        %v6097 = vlaneseq
        %v6098 = vshrl.u32 %v6097, 7
        %v6099 = vsub.s32 4, %v6098
        %v6100 = vrot.slane %v5723, %v6099
        %6102 = vbcast.lane.b32.xlu0 %v6100, 256
        %v6103 = vpop.permute.xlu0 %6102
        %v6104 = vlaneseq
        %v6105 = vshrl.u32 %v6104, 7
        %v6106 = vsub.s32 5, %v6105
        %v6107 = vrot.slane %v5723, %v6106
        %6109 = vbcast.lane.b32.xlu0 %v6107, 256
        %v6110 = vpop.permute.xlu0 %6109
        %v6111 = vlaneseq
        %v6112 = vshrl.u32 %v6111, 7
        %v6113 = vsub.s32 6, %v6112
        %v6114 = vrot.slane %v5723, %v6113
        %6116 = vbcast.lane.b32.xlu0 %v6114, 256
        %v6117 = vpop.permute.xlu0 %6116
        %v6118 = vlaneseq
        %v6119 = vshrl.u32 %v6118, 7
        %v6120 = vsub.s32 7, %v6119
        %v6121 = vrot.slane %v5723, %v6120
        %6123 = vbcast.lane.b32.xlu0 %v6121, 256
        %v6124 = vpop.permute.xlu0 %6123
        %v6125 = vlaneseq
        %v6126 = vshrl.u32 %v6125, 7
        %v6127 = vsub.s32 0, %v6126
        %v6128 = vrot.slane %v5724, %v6127
        %6130 = vbcast.lane.b32.xlu0 %v6128, 256
        %v6131 = vpop.permute.xlu0 %6130
        %v6132 = vlaneseq
        %v6133 = vshrl.u32 %v6132, 7
        %v6134 = vsub.s32 1, %v6133
        %v6135 = vrot.slane %v5724, %v6134
        %6137 = vbcast.lane.b32.xlu0 %v6135, 256
        %v6138 = vpop.permute.xlu0 %6137
        %v6139 = vlaneseq
        %v6140 = vshrl.u32 %v6139, 7
        %v6141 = vsub.s32 2, %v6140
        %v6142 = vrot.slane %v5724, %v6141
        %6144 = vbcast.lane.b32.xlu0 %v6142, 256
        %v6145 = vpop.permute.xlu0 %6144
        %v6146 = vlaneseq
        %v6147 = vshrl.u32 %v6146, 7
        %v6148 = vsub.s32 3, %v6147
        %v6149 = vrot.slane %v5724, %v6148
        %6151 = vbcast.lane.b32.xlu0 %v6149, 256
        %v6152 = vpop.permute.xlu0 %6151
        %v6153 = vlaneseq
        %v6154 = vshrl.u32 %v6153, 7
        %v6155 = vsub.s32 4, %v6154
        %v6156 = vrot.slane %v5724, %v6155
        %6158 = vbcast.lane.b32.xlu0 %v6156, 256
        %v6159 = vpop.permute.xlu0 %6158
        %v6160 = vlaneseq
        %v6161 = vshrl.u32 %v6160, 7
        %v6162 = vsub.s32 5, %v6161
        %v6163 = vrot.slane %v5724, %v6162
        %6165 = vbcast.lane.b32.xlu0 %v6163, 256
        %v6166 = vpop.permute.xlu0 %6165
        %v6167 = vlaneseq
        %v6168 = vshrl.u32 %v6167, 7
        %v6169 = vsub.s32 6, %v6168
        %v6170 = vrot.slane %v5724, %v6169
        %6172 = vbcast.lane.b32.xlu0 %v6170, 256
        %v6173 = vpop.permute.xlu0 %6172
        %v6174 = vlaneseq
        %v6175 = vshrl.u32 %v6174, 7
        %v6176 = vsub.s32 7, %v6175
        %v6177 = vrot.slane %v5724, %v6176
        %6179 = vbcast.lane.b32.xlu0 %v6177, 256
        %v6180 = vpop.permute.xlu0 %6179
        %v6181 = vlaneseq
        %v6182 = vshrl.u32 %v6181, 7
        %v6183 = vsub.s32 0, %v6182
        %v6184 = vrot.slane %v5725, %v6183
        %6186 = vbcast.lane.b32.xlu0 %v6184, 256
        %v6187 = vpop.permute.xlu0 %6186
        %v6188 = vlaneseq
        %v6189 = vshrl.u32 %v6188, 7
        %v6190 = vsub.s32 1, %v6189
        %v6191 = vrot.slane %v5725, %v6190
        %6193 = vbcast.lane.b32.xlu0 %v6191, 256
        %v6194 = vpop.permute.xlu0 %6193
        %v6195 = vlaneseq
        %v6196 = vshrl.u32 %v6195, 7
        %v6197 = vsub.s32 2, %v6196
        %v6198 = vrot.slane %v5725, %v6197
        %6200 = vbcast.lane.b32.xlu0 %v6198, 256
        %v6201 = vpop.permute.xlu0 %6200
        %v6202 = vlaneseq
        %v6203 = vshrl.u32 %v6202, 7
        %v6204 = vsub.s32 3, %v6203
        %v6205 = vrot.slane %v5725, %v6204
        %6207 = vbcast.lane.b32.xlu0 %v6205, 256
        %v6208 = vpop.permute.xlu0 %6207
        %v6209 = vlaneseq
        %v6210 = vshrl.u32 %v6209, 7
        %v6211 = vsub.s32 4, %v6210
        %v6212 = vrot.slane %v5725, %v6211
        %6214 = vbcast.lane.b32.xlu0 %v6212, 256
        %v6215 = vpop.permute.xlu0 %6214
        %v6216 = vlaneseq
        %v6217 = vshrl.u32 %v6216, 7
        %v6218 = vsub.s32 5, %v6217
        %v6219 = vrot.slane %v5725, %v6218
        %6221 = vbcast.lane.b32.xlu0 %v6219, 256
        %v6222 = vpop.permute.xlu0 %6221
        %v6223 = vlaneseq
        %v6224 = vshrl.u32 %v6223, 7
        %v6225 = vsub.s32 6, %v6224
        %v6226 = vrot.slane %v5725, %v6225
        %6228 = vbcast.lane.b32.xlu0 %v6226, 256
        %v6229 = vpop.permute.xlu0 %6228
        %v6230 = vlaneseq
        %v6231 = vshrl.u32 %v6230, 7
        %v6232 = vsub.s32 7, %v6231
        %v6233 = vrot.slane %v5725, %v6232
        %6235 = vbcast.lane.b32.xlu0 %v6233, 256
        %v6236 = vpop.permute.xlu0 %6235
        %v6237 = vlaneseq
        %v6238 = vshrl.u32 %v6237, 7
        %v6239 = vsub.s32 0, %v6238
        %v6240 = vrot.slane %v5726, %v6239
        %6242 = vbcast.lane.b32.xlu0 %v6240, 256
        %v6243 = vpop.permute.xlu0 %6242
        %v6244 = vlaneseq
        %v6245 = vshrl.u32 %v6244, 7
        %v6246 = vsub.s32 1, %v6245
        %v6247 = vrot.slane %v5726, %v6246
        %6249 = vbcast.lane.b32.xlu0 %v6247, 256
        %v6250 = vpop.permute.xlu0 %6249
        %v6251 = vlaneseq
        %v6252 = vshrl.u32 %v6251, 7
        %v6253 = vsub.s32 2, %v6252
        %v6254 = vrot.slane %v5726, %v6253
        %6256 = vbcast.lane.b32.xlu0 %v6254, 256
        %v6257 = vpop.permute.xlu0 %6256
        %v6258 = vlaneseq
        %v6259 = vshrl.u32 %v6258, 7
        %v6260 = vsub.s32 3, %v6259
        %v6261 = vrot.slane %v5726, %v6260
        %6263 = vbcast.lane.b32.xlu0 %v6261, 256
        %v6264 = vpop.permute.xlu0 %6263
        %v6265 = vlaneseq
        %v6266 = vshrl.u32 %v6265, 7
        %v6267 = vsub.s32 4, %v6266
        %v6268 = vrot.slane %v5726, %v6267
        %6270 = vbcast.lane.b32.xlu0 %v6268, 256
        %v6271 = vpop.permute.xlu0 %6270
        %v6272 = vlaneseq
        %v6273 = vshrl.u32 %v6272, 7
        %v6274 = vsub.s32 5, %v6273
        %v6275 = vrot.slane %v5726, %v6274
        %6277 = vbcast.lane.b32.xlu0 %v6275, 256
        %v6278 = vpop.permute.xlu0 %6277
        %v6279 = vlaneseq
        %v6280 = vshrl.u32 %v6279, 7
        %v6281 = vsub.s32 6, %v6280
        %v6282 = vrot.slane %v5726, %v6281
        %6284 = vbcast.lane.b32.xlu0 %v6282, 256
        %v6285 = vpop.permute.xlu0 %6284
        %v6286 = vlaneseq
        %v6287 = vshrl.u32 %v6286, 7
        %v6288 = vsub.s32 7, %v6287
        %v6289 = vrot.slane %v5726, %v6288
        %6291 = vbcast.lane.b32.xlu0 %v6289, 256
        %v6292 = vpop.permute.xlu0 %6291
        %v6293 = vlaneseq
        %v6294 = vshrl.u32 %v6293, 7
        %v6295 = vsub.s32 0, %v6294
        %v6296 = vrot.slane %v5727, %v6295
        %6298 = vbcast.lane.b32.xlu0 %v6296, 256
        %v6299 = vpop.permute.xlu0 %6298
        %v6300 = vlaneseq
        %v6301 = vshrl.u32 %v6300, 7
        %v6302 = vsub.s32 1, %v6301
        %v6303 = vrot.slane %v5727, %v6302
        %6305 = vbcast.lane.b32.xlu0 %v6303, 256
        %v6306 = vpop.permute.xlu0 %6305
        %v6307 = vlaneseq
        %v6308 = vshrl.u32 %v6307, 7
        %v6309 = vsub.s32 2, %v6308
        %v6310 = vrot.slane %v5727, %v6309
        %6312 = vbcast.lane.b32.xlu0 %v6310, 256
        %v6313 = vpop.permute.xlu0 %6312
        %v6314 = vlaneseq
        %v6315 = vshrl.u32 %v6314, 7
        %v6316 = vsub.s32 3, %v6315
        %v6317 = vrot.slane %v5727, %v6316
        %6319 = vbcast.lane.b32.xlu0 %v6317, 256
        %v6320 = vpop.permute.xlu0 %6319
        %v6321 = vlaneseq
        %v6322 = vshrl.u32 %v6321, 7
        %v6323 = vsub.s32 4, %v6322
        %v6324 = vrot.slane %v5727, %v6323
        %6326 = vbcast.lane.b32.xlu0 %v6324, 256
        %v6327 = vpop.permute.xlu0 %6326
        %v6328 = vlaneseq
        %v6329 = vshrl.u32 %v6328, 7
        %v6330 = vsub.s32 5, %v6329
        %v6331 = vrot.slane %v5727, %v6330
        %6333 = vbcast.lane.b32.xlu0 %v6331, 256
        %v6334 = vpop.permute.xlu0 %6333
        %v6335 = vlaneseq
        %v6336 = vshrl.u32 %v6335, 7
        %v6337 = vsub.s32 6, %v6336
        %v6338 = vrot.slane %v5727, %v6337
        %6340 = vbcast.lane.b32.xlu0 %v6338, 256
        %v6341 = vpop.permute.xlu0 %6340
        %v6342 = vlaneseq
        %v6343 = vshrl.u32 %v6342, 7
        %v6344 = vsub.s32 7, %v6343
        %v6345 = vrot.slane %v5727, %v6344
        %6347 = vbcast.lane.b32.xlu0 %v6345, 256
        %v6348 = vpop.permute.xlu0 %6347
        %v6349 = vlaneseq
        %v6350 = vshrl.u32 %v6349, 7
        %v6351 = vsub.s32 0, %v6350
        %v6352 = vrot.slane %v5728, %v6351
        %6354 = vbcast.lane.b32.xlu0 %v6352, 256
        %v6355 = vpop.permute.xlu0 %6354
        %v6356 = vlaneseq
        %v6357 = vshrl.u32 %v6356, 7
        %v6358 = vsub.s32 1, %v6357
        %v6359 = vrot.slane %v5728, %v6358
        %6361 = vbcast.lane.b32.xlu0 %v6359, 256
        %v6362 = vpop.permute.xlu0 %6361
        %v6363 = vlaneseq
        %v6364 = vshrl.u32 %v6363, 7
        %v6365 = vsub.s32 2, %v6364
        %v6366 = vrot.slane %v5728, %v6365
        %6368 = vbcast.lane.b32.xlu0 %v6366, 256
        %v6369 = vpop.permute.xlu0 %6368
        %v6370 = vlaneseq
        %v6371 = vshrl.u32 %v6370, 7
        %v6372 = vsub.s32 3, %v6371
        %v6373 = vrot.slane %v5728, %v6372
        %6375 = vbcast.lane.b32.xlu0 %v6373, 256
        %v6376 = vpop.permute.xlu0 %6375
        %v6377 = vlaneseq
        %v6378 = vshrl.u32 %v6377, 7
        %v6379 = vsub.s32 4, %v6378
        %v6380 = vrot.slane %v5728, %v6379
        %6382 = vbcast.lane.b32.xlu0 %v6380, 256
        %v6383 = vpop.permute.xlu0 %6382
        %v6384 = vlaneseq
        %v6385 = vshrl.u32 %v6384, 7
        %v6386 = vsub.s32 5, %v6385
        %v6387 = vrot.slane %v5728, %v6386
        %6389 = vbcast.lane.b32.xlu0 %v6387, 256
        %v6390 = vpop.permute.xlu0 %6389
        %v6391 = vlaneseq
        %v6392 = vshrl.u32 %v6391, 7
        %v6393 = vsub.s32 6, %v6392
        %v6394 = vrot.slane %v5728, %v6393
        %6396 = vbcast.lane.b32.xlu0 %v6394, 256
        %v6397 = vpop.permute.xlu0 %6396
        %v6398 = vlaneseq
        %v6399 = vshrl.u32 %v6398, 7
        %v6400 = vsub.s32 7, %v6399
        %v6401 = vrot.slane %v5728, %v6400
        %6403 = vbcast.lane.b32.xlu0 %v6401, 256
        %v6404 = vpop.permute.xlu0 %6403
        %v6405 = vlaneseq
        %v6406 = vshrl.u32 %v6405, 7
        %v6407 = vsub.s32 0, %v6406
        %v6408 = vrot.slane %v5729, %v6407
        %6410 = vbcast.lane.b32.xlu0 %v6408, 256
        %v6411 = vpop.permute.xlu0 %6410
        %v6412 = vlaneseq
        %v6413 = vshrl.u32 %v6412, 7
        %v6414 = vsub.s32 1, %v6413
        %v6415 = vrot.slane %v5729, %v6414
        %6417 = vbcast.lane.b32.xlu0 %v6415, 256
        %v6418 = vpop.permute.xlu0 %6417
        %v6419 = vlaneseq
        %v6420 = vshrl.u32 %v6419, 7
        %v6421 = vsub.s32 2, %v6420
        %v6422 = vrot.slane %v5729, %v6421
        %6424 = vbcast.lane.b32.xlu0 %v6422, 256
        %v6425 = vpop.permute.xlu0 %6424
        %v6426 = vlaneseq
        %v6427 = vshrl.u32 %v6426, 7
        %v6428 = vsub.s32 3, %v6427
        %v6429 = vrot.slane %v5729, %v6428
        %6431 = vbcast.lane.b32.xlu0 %v6429, 256
        %v6432 = vpop.permute.xlu0 %6431
        %v6433 = vlaneseq
        %v6434 = vshrl.u32 %v6433, 7
        %v6435 = vsub.s32 4, %v6434
        %v6436 = vrot.slane %v5729, %v6435
        %6438 = vbcast.lane.b32.xlu0 %v6436, 256
        %v6439 = vpop.permute.xlu0 %6438
        %v6440 = vlaneseq
        %v6441 = vshrl.u32 %v6440, 7
        %v6442 = vsub.s32 5, %v6441
        %v6443 = vrot.slane %v5729, %v6442
        %6445 = vbcast.lane.b32.xlu0 %v6443, 256
        %v6446 = vpop.permute.xlu0 %6445
        %v6447 = vlaneseq
        %v6448 = vshrl.u32 %v6447, 7
        %v6449 = vsub.s32 6, %v6448
        %v6450 = vrot.slane %v5729, %v6449
        %6452 = vbcast.lane.b32.xlu0 %v6450, 256
        %v6453 = vpop.permute.xlu0 %6452
        %v6454 = vlaneseq
        %v6455 = vshrl.u32 %v6454, 7
        %v6456 = vsub.s32 7, %v6455
        %v6457 = vrot.slane %v5729, %v6456
        %6459 = vbcast.lane.b32.xlu0 %v6457, 256
        %v6460 = vpop.permute.xlu0 %6459
        %v6461 = vlaneseq
        %v6462 = vshrl.u32 %v6461, 7
        %v6463 = vsub.s32 0, %v6462
        %v6464 = vrot.slane %v5730, %v6463
        %6466 = vbcast.lane.b32.xlu0 %v6464, 256
        %v6467 = vpop.permute.xlu0 %6466
        %v6468 = vlaneseq
        %v6469 = vshrl.u32 %v6468, 7
        %v6470 = vsub.s32 1, %v6469
        %v6471 = vrot.slane %v5730, %v6470
        %6473 = vbcast.lane.b32.xlu0 %v6471, 256
        %v6474 = vpop.permute.xlu0 %6473
        %v6475 = vlaneseq
        %v6476 = vshrl.u32 %v6475, 7
        %v6477 = vsub.s32 2, %v6476
        %v6478 = vrot.slane %v5730, %v6477
        %6480 = vbcast.lane.b32.xlu0 %v6478, 256
        %v6481 = vpop.permute.xlu0 %6480
        %v6482 = vlaneseq
        %v6483 = vshrl.u32 %v6482, 7
        %v6484 = vsub.s32 3, %v6483
        %v6485 = vrot.slane %v5730, %v6484
        %6487 = vbcast.lane.b32.xlu0 %v6485, 256
        %v6488 = vpop.permute.xlu0 %6487
        %v6489 = vlaneseq
        %v6490 = vshrl.u32 %v6489, 7
        %v6491 = vsub.s32 4, %v6490
        %v6492 = vrot.slane %v5730, %v6491
        %6494 = vbcast.lane.b32.xlu0 %v6492, 256
        %v6495 = vpop.permute.xlu0 %6494
        %v6496 = vlaneseq
        %v6497 = vshrl.u32 %v6496, 7
        %v6498 = vsub.s32 5, %v6497
        %v6499 = vrot.slane %v5730, %v6498
        %6501 = vbcast.lane.b32.xlu0 %v6499, 256
        %v6502 = vpop.permute.xlu0 %6501
        %v6503 = vlaneseq
        %v6504 = vshrl.u32 %v6503, 7
        %v6505 = vsub.s32 6, %v6504
        %v6506 = vrot.slane %v5730, %v6505
        %6508 = vbcast.lane.b32.xlu0 %v6506, 256
        %v6509 = vpop.permute.xlu0 %6508
        %v6510 = vlaneseq
        %v6511 = vshrl.u32 %v6510, 7
        %v6512 = vsub.s32 7, %v6511
        %v6513 = vrot.slane %v5730, %v6512
        %6515 = vbcast.lane.b32.xlu0 %v6513, 256
        %v6516 = vpop.permute.xlu0 %6515
        %v6517 = vlaneseq
        %v6518 = vshrl.u32 %v6517, 7
        %v6519 = vsub.s32 0, %v6518
        %v6520 = vrot.slane %v5731, %v6519
        %6522 = vbcast.lane.b32.xlu0 %v6520, 256
        %v6523 = vpop.permute.xlu0 %6522
        %v6524 = vlaneseq
        %v6525 = vshrl.u32 %v6524, 7
        %v6526 = vsub.s32 1, %v6525
        %v6527 = vrot.slane %v5731, %v6526
        %6529 = vbcast.lane.b32.xlu0 %v6527, 256
        %v6530 = vpop.permute.xlu0 %6529
        %v6531 = vlaneseq
        %v6532 = vshrl.u32 %v6531, 7
        %v6533 = vsub.s32 2, %v6532
        %v6534 = vrot.slane %v5731, %v6533
        %6536 = vbcast.lane.b32.xlu0 %v6534, 256
        %v6537 = vpop.permute.xlu0 %6536
        %v6538 = vlaneseq
        %v6539 = vshrl.u32 %v6538, 7
        %v6540 = vsub.s32 3, %v6539
        %v6541 = vrot.slane %v5731, %v6540
        %6543 = vbcast.lane.b32.xlu0 %v6541, 256
        %v6544 = vpop.permute.xlu0 %6543
        %v6545 = vlaneseq
        %v6546 = vshrl.u32 %v6545, 7
        %v6547 = vsub.s32 4, %v6546
        %v6548 = vrot.slane %v5731, %v6547
        %6550 = vbcast.lane.b32.xlu0 %v6548, 256
        %v6551 = vpop.permute.xlu0 %6550
        %v6552 = vlaneseq
        %v6553 = vshrl.u32 %v6552, 7
        %v6554 = vsub.s32 5, %v6553
        %v6555 = vrot.slane %v5731, %v6554
        %6557 = vbcast.lane.b32.xlu0 %v6555, 256
        %v6558 = vpop.permute.xlu0 %6557
        %v6559 = vlaneseq
        %v6560 = vshrl.u32 %v6559, 7
        %v6561 = vsub.s32 6, %v6560
        %v6562 = vrot.slane %v5731, %v6561
        %6564 = vbcast.lane.b32.xlu0 %v6562, 256
        %v6565 = vpop.permute.xlu0 %6564
        %v6566 = vlaneseq
        %v6567 = vshrl.u32 %v6566, 7
        %v6568 = vsub.s32 7, %v6567
        %v6569 = vrot.slane %v5731, %v6568
        %6571 = vbcast.lane.b32.xlu0 %v6569, 256
        %v6572 = vpop.permute.xlu0 %6571
        %v6573 = vlaneseq
        %v6574 = vshrl.u32 %v6573, 7
        %v6575 = vsub.s32 0, %v6574
        %v6576 = vrot.slane %v5732, %v6575
        %6578 = vbcast.lane.b32.xlu0 %v6576, 256
        %v6579 = vpop.permute.xlu0 %6578
        %v6580 = vlaneseq
        %v6581 = vshrl.u32 %v6580, 7
        %v6582 = vsub.s32 1, %v6581
        %v6583 = vrot.slane %v5732, %v6582
        %6585 = vbcast.lane.b32.xlu0 %v6583, 256
        %v6586 = vpop.permute.xlu0 %6585
        %v6587 = vlaneseq
        %v6588 = vshrl.u32 %v6587, 7
        %v6589 = vsub.s32 2, %v6588
        %v6590 = vrot.slane %v5732, %v6589
        %6592 = vbcast.lane.b32.xlu0 %v6590, 256
        %v6593 = vpop.permute.xlu0 %6592
        %v6594 = vlaneseq
        %v6595 = vshrl.u32 %v6594, 7
        %v6596 = vsub.s32 3, %v6595
        %v6597 = vrot.slane %v5732, %v6596
        %6599 = vbcast.lane.b32.xlu0 %v6597, 256
        %v6600 = vpop.permute.xlu0 %6599
        %v6601 = vlaneseq
        %v6602 = vshrl.u32 %v6601, 7
        %v6603 = vsub.s32 4, %v6602
        %v6604 = vrot.slane %v5732, %v6603
        %6606 = vbcast.lane.b32.xlu0 %v6604, 256
        %v6607 = vpop.permute.xlu0 %6606
        %v6608 = vlaneseq
        %v6609 = vshrl.u32 %v6608, 7
        %v6610 = vsub.s32 5, %v6609
        %v6611 = vrot.slane %v5732, %v6610
        %6613 = vbcast.lane.b32.xlu0 %v6611, 256
        %v6614 = vpop.permute.xlu0 %6613
        %v6615 = vlaneseq
        %v6616 = vshrl.u32 %v6615, 7
        %v6617 = vsub.s32 6, %v6616
        %v6618 = vrot.slane %v5732, %v6617
        %6620 = vbcast.lane.b32.xlu0 %v6618, 256
        %v6621 = vpop.permute.xlu0 %6620
        %v6622 = vlaneseq
        %v6623 = vshrl.u32 %v6622, 7
        %v6624 = vsub.s32 7, %v6623
        %v6625 = vrot.slane %v5732, %v6624
        %6627 = vbcast.lane.b32.xlu0 %v6625, 256
        %v6628 = vpop.permute.xlu0 %6627
        %v6629 = vcombine.low %v5739, %v5753
        %v6631 = vunpack.c.l.s4 1983009808
        %v6632 = vunpack.c.0.s8 %v6631
        %v6633 = vlaneseq
        %v6634 = vshrl.u32 %v6633, 7
        %v6635 = vsub.s32 %v6632, %v6634
        %v6636 = vrot.slane %v6629, %v6635
        %v6637 = vcombine.low %v5746, %v5760
        %v6639 = vunpack.c.l.s4 1983009808
        %v6640 = vunpack.c.0.s8 %v6639
        %v6641 = vlaneseq
        %v6642 = vshrl.u32 %v6641, 7
        %v6643 = vsub.s32 %v6640, %v6642
        %v6644 = vrot.slane %v6637, %v6643
        %v6645 = vcombine.low %v5767, %v5781
        %v6647 = vunpack.c.l.s4 1983009808
        %v6648 = vunpack.c.0.s8 %v6647
        %v6649 = vlaneseq
        %v6650 = vshrl.u32 %v6649, 7
        %v6651 = vsub.s32 %v6648, %v6650
        %v6652 = vrot.slane %v6645, %v6651
        %v6653 = vcombine.low %v5774, %v5788
        %v6655 = vunpack.c.l.s4 1983009808
        %v6656 = vunpack.c.0.s8 %v6655
        %v6657 = vlaneseq
        %v6658 = vshrl.u32 %v6657, 7
        %v6659 = vsub.s32 %v6656, %v6658
        %v6660 = vrot.slane %v6653, %v6659
        %v6661 = vcombine.low %v6636, %v6644
        %v6662 = vcombine.high %v6636, %v6644
        %v6664 = vunpack.c.l.s4 1934713408
        %v6665 = vunpack.c.0.s8 %v6664
        %v6666 = vlaneseq
        %v6667 = vshrl.u32 %v6666, 7
        %v6668 = vsub.s32 %v6665, %v6667
        %v6669 = vrot.slane %v6661, %v6668
        %v6671 = vunpack.c.l.s4 1934713408
        %v6672 = vunpack.c.0.s8 %v6671
        %v6673 = vlaneseq
        %v6674 = vshrl.u32 %v6673, 7
        %v6675 = vsub.s32 %v6672, %v6674
        %v6676 = vrot.slane %v6662, %v6675
        %v6677 = vcombine.low %v6652, %v6660
        %v6678 = vcombine.high %v6652, %v6660
        %v6680 = vunpack.c.l.s4 1934713408
        %v6681 = vunpack.c.0.s8 %v6680
        %v6682 = vlaneseq
        %v6683 = vshrl.u32 %v6682, 7
        %v6684 = vsub.s32 %v6681, %v6683
        %v6685 = vrot.slane %v6677, %v6684
        %v6687 = vunpack.c.l.s4 1934713408
        %v6688 = vunpack.c.0.s8 %v6687
        %v6689 = vlaneseq
        %v6690 = vshrl.u32 %v6689, 7
        %v6691 = vsub.s32 %v6688, %v6690
        %v6692 = vrot.slane %v6678, %v6691
        %v6693 = vcombine.low %v6669, %v6685
        %v6694 = vcombine.high %v6669, %v6685
        %v6695 = vcombine.low %v6676, %v6692
        %v6696 = vcombine.low %v5795, %v5809
        %v6698 = vunpack.c.l.s4 1983009808
        %v6699 = vunpack.c.0.s8 %v6698
        %v6700 = vlaneseq
        %v6701 = vshrl.u32 %v6700, 7
        %v6702 = vsub.s32 %v6699, %v6701
        %v6703 = vrot.slane %v6696, %v6702
        %v6704 = vcombine.low %v5802, %v5816
        %v6706 = vunpack.c.l.s4 1983009808
        %v6707 = vunpack.c.0.s8 %v6706
        %v6708 = vlaneseq
        %v6709 = vshrl.u32 %v6708, 7
        %v6710 = vsub.s32 %v6707, %v6709
        %v6711 = vrot.slane %v6704, %v6710
        %v6712 = vcombine.low %v5823, %v5837
        %v6714 = vunpack.c.l.s4 1983009808
        %v6715 = vunpack.c.0.s8 %v6714
        %v6716 = vlaneseq
        %v6717 = vshrl.u32 %v6716, 7
        %v6718 = vsub.s32 %v6715, %v6717
        %v6719 = vrot.slane %v6712, %v6718
        %v6720 = vcombine.low %v5830, %v5844
        %v6722 = vunpack.c.l.s4 1983009808
        %v6723 = vunpack.c.0.s8 %v6722
        %v6724 = vlaneseq
        %v6725 = vshrl.u32 %v6724, 7
        %v6726 = vsub.s32 %v6723, %v6725
        %v6727 = vrot.slane %v6720, %v6726
        %v6728 = vcombine.low %v6703, %v6711
        %v6729 = vcombine.high %v6703, %v6711
        %v6731 = vunpack.c.l.s4 1934713408
        %v6732 = vunpack.c.0.s8 %v6731
        %v6733 = vlaneseq
        %v6734 = vshrl.u32 %v6733, 7
        %v6735 = vsub.s32 %v6732, %v6734
        %v6736 = vrot.slane %v6728, %v6735
        %v6738 = vunpack.c.l.s4 1934713408
        %v6739 = vunpack.c.0.s8 %v6738
        %v6740 = vlaneseq
        %v6741 = vshrl.u32 %v6740, 7
        %v6742 = vsub.s32 %v6739, %v6741
        %v6743 = vrot.slane %v6729, %v6742
        %v6744 = vcombine.low %v6719, %v6727
        %v6745 = vcombine.high %v6719, %v6727
        %v6747 = vunpack.c.l.s4 1934713408
        %v6748 = vunpack.c.0.s8 %v6747
        %v6749 = vlaneseq
        %v6750 = vshrl.u32 %v6749, 7
        %v6751 = vsub.s32 %v6748, %v6750
        %v6752 = vrot.slane %v6744, %v6751
        %v6754 = vunpack.c.l.s4 1934713408
        %v6755 = vunpack.c.0.s8 %v6754
        %v6756 = vlaneseq
        %v6757 = vshrl.u32 %v6756, 7
        %v6758 = vsub.s32 %v6755, %v6757
        %v6759 = vrot.slane %v6745, %v6758
        %v6760 = vcombine.low %v6736, %v6752
        %v6761 = vcombine.high %v6736, %v6752
        %v6762 = vcombine.low %v6743, %v6759
        %v6763 = vcombine.low %v5851, %v5865
        %v6765 = vunpack.c.l.s4 1983009808
        %v6766 = vunpack.c.0.s8 %v6765
        %v6767 = vlaneseq
        %v6768 = vshrl.u32 %v6767, 7
        %v6769 = vsub.s32 %v6766, %v6768
        %v6770 = vrot.slane %v6763, %v6769
        %v6771 = vcombine.low %v5858, %v5872
        %v6773 = vunpack.c.l.s4 1983009808
        %v6774 = vunpack.c.0.s8 %v6773
        %v6775 = vlaneseq
        %v6776 = vshrl.u32 %v6775, 7
        %v6777 = vsub.s32 %v6774, %v6776
        %v6778 = vrot.slane %v6771, %v6777
        %v6779 = vcombine.low %v5879, %v5893
        %v6781 = vunpack.c.l.s4 1983009808
        %v6782 = vunpack.c.0.s8 %v6781
        %v6783 = vlaneseq
        %v6784 = vshrl.u32 %v6783, 7
        %v6785 = vsub.s32 %v6782, %v6784
        %v6786 = vrot.slane %v6779, %v6785
        %v6787 = vcombine.low %v5886, %v5900
        %v6789 = vunpack.c.l.s4 1983009808
        %v6790 = vunpack.c.0.s8 %v6789
        %v6791 = vlaneseq
        %v6792 = vshrl.u32 %v6791, 7
        %v6793 = vsub.s32 %v6790, %v6792
        %v6794 = vrot.slane %v6787, %v6793
        %v6795 = vcombine.low %v6770, %v6778
        %v6796 = vcombine.high %v6770, %v6778
        %v6798 = vunpack.c.l.s4 1934713408
        %v6799 = vunpack.c.0.s8 %v6798
        %v6800 = vlaneseq
        %v6801 = vshrl.u32 %v6800, 7
        %v6802 = vsub.s32 %v6799, %v6801
        %v6803 = vrot.slane %v6795, %v6802
        %v6805 = vunpack.c.l.s4 1934713408
        %v6806 = vunpack.c.0.s8 %v6805
        %v6807 = vlaneseq
        %v6808 = vshrl.u32 %v6807, 7
        %v6809 = vsub.s32 %v6806, %v6808
        %v6810 = vrot.slane %v6796, %v6809
        %v6811 = vcombine.low %v6786, %v6794
        %v6812 = vcombine.high %v6786, %v6794
        %v6814 = vunpack.c.l.s4 1934713408
        %v6815 = vunpack.c.0.s8 %v6814
        %v6816 = vlaneseq
        %v6817 = vshrl.u32 %v6816, 7
        %v6818 = vsub.s32 %v6815, %v6817
        %v6819 = vrot.slane %v6811, %v6818
        %v6821 = vunpack.c.l.s4 1934713408
        %v6822 = vunpack.c.0.s8 %v6821
        %v6823 = vlaneseq
        %v6824 = vshrl.u32 %v6823, 7
        %v6825 = vsub.s32 %v6822, %v6824
        %v6826 = vrot.slane %v6812, %v6825
        %v6827 = vcombine.low %v6803, %v6819
        %v6828 = vcombine.high %v6803, %v6819
        %v6829 = vcombine.low %v6810, %v6826
        %v6830 = vcombine.low %v5907, %v5921
        %v6832 = vunpack.c.l.s4 1983009808
        %v6833 = vunpack.c.0.s8 %v6832
        %v6834 = vlaneseq
        %v6835 = vshrl.u32 %v6834, 7
        %v6836 = vsub.s32 %v6833, %v6835
        %v6837 = vrot.slane %v6830, %v6836
        %v6838 = vcombine.low %v5914, %v5928
        %v6840 = vunpack.c.l.s4 1983009808
        %v6841 = vunpack.c.0.s8 %v6840
        %v6842 = vlaneseq
        %v6843 = vshrl.u32 %v6842, 7
        %v6844 = vsub.s32 %v6841, %v6843
        %v6845 = vrot.slane %v6838, %v6844
        %v6846 = vcombine.low %v5935, %v5949
        %v6848 = vunpack.c.l.s4 1983009808
        %v6849 = vunpack.c.0.s8 %v6848
        %v6850 = vlaneseq
        %v6851 = vshrl.u32 %v6850, 7
        %v6852 = vsub.s32 %v6849, %v6851
        %v6853 = vrot.slane %v6846, %v6852
        %v6854 = vcombine.low %v5942, %v5956
        %v6856 = vunpack.c.l.s4 1983009808
        %v6857 = vunpack.c.0.s8 %v6856
        %v6858 = vlaneseq
        %v6859 = vshrl.u32 %v6858, 7
        %v6860 = vsub.s32 %v6857, %v6859
        %v6861 = vrot.slane %v6854, %v6860
        %v6862 = vcombine.low %v6837, %v6845
        %v6863 = vcombine.high %v6837, %v6845
        %v6865 = vunpack.c.l.s4 1934713408
        %v6866 = vunpack.c.0.s8 %v6865
        %v6867 = vlaneseq
        %v6868 = vshrl.u32 %v6867, 7
        %v6869 = vsub.s32 %v6866, %v6868
        %v6870 = vrot.slane %v6862, %v6869
        %v6872 = vunpack.c.l.s4 1934713408
        %v6873 = vunpack.c.0.s8 %v6872
        %v6874 = vlaneseq
        %v6875 = vshrl.u32 %v6874, 7
        %v6876 = vsub.s32 %v6873, %v6875
        %v6877 = vrot.slane %v6863, %v6876
        %v6878 = vcombine.low %v6853, %v6861
        %v6879 = vcombine.high %v6853, %v6861
        %v6881 = vunpack.c.l.s4 1934713408
        %v6882 = vunpack.c.0.s8 %v6881
        %v6883 = vlaneseq
        %v6884 = vshrl.u32 %v6883, 7
        %v6885 = vsub.s32 %v6882, %v6884
        %v6886 = vrot.slane %v6878, %v6885
        %v6888 = vunpack.c.l.s4 1934713408
        %v6889 = vunpack.c.0.s8 %v6888
        %v6890 = vlaneseq
        %v6891 = vshrl.u32 %v6890, 7
        %v6892 = vsub.s32 %v6889, %v6891
        %v6893 = vrot.slane %v6879, %v6892
        %v6894 = vcombine.low %v6870, %v6886
        %v6895 = vcombine.high %v6870, %v6886
        %v6896 = vcombine.low %v6877, %v6893
        %v6897 = vcombine.low %v5963, %v5977
        %v6899 = vunpack.c.l.s4 1983009808
        %v6900 = vunpack.c.0.s8 %v6899
        %v6901 = vlaneseq
        %v6902 = vshrl.u32 %v6901, 7
        %v6903 = vsub.s32 %v6900, %v6902
        %v6904 = vrot.slane %v6897, %v6903
        %v6905 = vcombine.low %v5970, %v5984
        %v6907 = vunpack.c.l.s4 1983009808
        %v6908 = vunpack.c.0.s8 %v6907
        %v6909 = vlaneseq
        %v6910 = vshrl.u32 %v6909, 7
        %v6911 = vsub.s32 %v6908, %v6910
        %v6912 = vrot.slane %v6905, %v6911
        %v6913 = vcombine.low %v5991, %v6005
        %v6915 = vunpack.c.l.s4 1983009808
        %v6916 = vunpack.c.0.s8 %v6915
        %v6917 = vlaneseq
        %v6918 = vshrl.u32 %v6917, 7
        %v6919 = vsub.s32 %v6916, %v6918
        %v6920 = vrot.slane %v6913, %v6919
        %v6921 = vcombine.low %v5998, %v6012
        %v6923 = vunpack.c.l.s4 1983009808
        %v6924 = vunpack.c.0.s8 %v6923
        %v6925 = vlaneseq
        %v6926 = vshrl.u32 %v6925, 7
        %v6927 = vsub.s32 %v6924, %v6926
        %v6928 = vrot.slane %v6921, %v6927
        %v6929 = vcombine.low %v6904, %v6912
        %v6930 = vcombine.high %v6904, %v6912
        %v6932 = vunpack.c.l.s4 1934713408
        %v6933 = vunpack.c.0.s8 %v6932
        %v6934 = vlaneseq
        %v6935 = vshrl.u32 %v6934, 7
        %v6936 = vsub.s32 %v6933, %v6935
        %v6937 = vrot.slane %v6929, %v6936
        %v6939 = vunpack.c.l.s4 1934713408
        %v6940 = vunpack.c.0.s8 %v6939
        %v6941 = vlaneseq
        %v6942 = vshrl.u32 %v6941, 7
        %v6943 = vsub.s32 %v6940, %v6942
        %v6944 = vrot.slane %v6930, %v6943
        %v6945 = vcombine.low %v6920, %v6928
        %v6946 = vcombine.high %v6920, %v6928
        %v6948 = vunpack.c.l.s4 1934713408
        %v6949 = vunpack.c.0.s8 %v6948
        %v6950 = vlaneseq
        %v6951 = vshrl.u32 %v6950, 7
        %v6952 = vsub.s32 %v6949, %v6951
        %v6953 = vrot.slane %v6945, %v6952
        %v6955 = vunpack.c.l.s4 1934713408
        %v6956 = vunpack.c.0.s8 %v6955
        %v6957 = vlaneseq
        %v6958 = vshrl.u32 %v6957, 7
        %v6959 = vsub.s32 %v6956, %v6958
        %v6960 = vrot.slane %v6946, %v6959
        %v6961 = vcombine.low %v6937, %v6953
        %v6962 = vcombine.high %v6937, %v6953
        %v6963 = vcombine.low %v6944, %v6960
        %v6964 = vcombine.low %v6019, %v6033
        %v6966 = vunpack.c.l.s4 1983009808
        %v6967 = vunpack.c.0.s8 %v6966
        %v6968 = vlaneseq
        %v6969 = vshrl.u32 %v6968, 7
        %v6970 = vsub.s32 %v6967, %v6969
        %v6971 = vrot.slane %v6964, %v6970
        %v6972 = vcombine.low %v6026, %v6040
        %v6974 = vunpack.c.l.s4 1983009808
        %v6975 = vunpack.c.0.s8 %v6974
        %v6976 = vlaneseq
        %v6977 = vshrl.u32 %v6976, 7
        %v6978 = vsub.s32 %v6975, %v6977
        %v6979 = vrot.slane %v6972, %v6978
        %v6980 = vcombine.low %v6047, %v6061
        %v6982 = vunpack.c.l.s4 1983009808
        %v6983 = vunpack.c.0.s8 %v6982
        %v6984 = vlaneseq
        %v6985 = vshrl.u32 %v6984, 7
        %v6986 = vsub.s32 %v6983, %v6985
        %v6987 = vrot.slane %v6980, %v6986
        %v6988 = vcombine.low %v6054, %v6068
        %v6990 = vunpack.c.l.s4 1983009808
        %v6991 = vunpack.c.0.s8 %v6990
        %v6992 = vlaneseq
        %v6993 = vshrl.u32 %v6992, 7
        %v6994 = vsub.s32 %v6991, %v6993
        %v6995 = vrot.slane %v6988, %v6994
        %v6996 = vcombine.low %v6971, %v6979
        %v6997 = vcombine.high %v6971, %v6979
        %v6999 = vunpack.c.l.s4 1934713408
        %v7000 = vunpack.c.0.s8 %v6999
        %v7001 = vlaneseq
        %v7002 = vshrl.u32 %v7001, 7
        %v7003 = vsub.s32 %v7000, %v7002
        %v7004 = vrot.slane %v6996, %v7003
        %v7006 = vunpack.c.l.s4 1934713408
        %v7007 = vunpack.c.0.s8 %v7006
        %v7008 = vlaneseq
        %v7009 = vshrl.u32 %v7008, 7
        %v7010 = vsub.s32 %v7007, %v7009
        %v7011 = vrot.slane %v6997, %v7010
        %v7012 = vcombine.low %v6987, %v6995
        %v7013 = vcombine.high %v6987, %v6995
        %v7015 = vunpack.c.l.s4 1934713408
        %v7016 = vunpack.c.0.s8 %v7015
        %v7017 = vlaneseq
        %v7018 = vshrl.u32 %v7017, 7
        %v7019 = vsub.s32 %v7016, %v7018
        %v7020 = vrot.slane %v7012, %v7019
        %v7022 = vunpack.c.l.s4 1934713408
        %v7023 = vunpack.c.0.s8 %v7022
        %v7024 = vlaneseq
        %v7025 = vshrl.u32 %v7024, 7
        %v7026 = vsub.s32 %v7023, %v7025
        %v7027 = vrot.slane %v7013, %v7026
        %v7028 = vcombine.low %v7004, %v7020
        %v7029 = vcombine.high %v7004, %v7020
        %v7030 = vcombine.low %v7011, %v7027
        %v7031 = vcombine.low %v6075, %v6089
        %v7033 = vunpack.c.l.s4 1983009808
        %v7034 = vunpack.c.0.s8 %v7033
        %v7035 = vlaneseq
        %v7036 = vshrl.u32 %v7035, 7
        %v7037 = vsub.s32 %v7034, %v7036
        %v7038 = vrot.slane %v7031, %v7037
        %v7039 = vcombine.low %v6082, %v6096
        %v7041 = vunpack.c.l.s4 1983009808
        %v7042 = vunpack.c.0.s8 %v7041
        %v7043 = vlaneseq
        %v7044 = vshrl.u32 %v7043, 7
        %v7045 = vsub.s32 %v7042, %v7044
        %v7046 = vrot.slane %v7039, %v7045
        %v7047 = vcombine.low %v6103, %v6117
        %v7049 = vunpack.c.l.s4 1983009808
        %v7050 = vunpack.c.0.s8 %v7049
        %v7051 = vlaneseq
        %v7052 = vshrl.u32 %v7051, 7
        %v7053 = vsub.s32 %v7050, %v7052
        %v7054 = vrot.slane %v7047, %v7053
        %v7055 = vcombine.low %v6110, %v6124
        %v7057 = vunpack.c.l.s4 1983009808
        %v7058 = vunpack.c.0.s8 %v7057
        %v7059 = vlaneseq
        %v7060 = vshrl.u32 %v7059, 7
        %v7061 = vsub.s32 %v7058, %v7060
        %v7062 = vrot.slane %v7055, %v7061
        %v7063 = vcombine.low %v7038, %v7046
        %v7064 = vcombine.high %v7038, %v7046
        %v7066 = vunpack.c.l.s4 1934713408
        %v7067 = vunpack.c.0.s8 %v7066
        %v7068 = vlaneseq
        %v7069 = vshrl.u32 %v7068, 7
        %v7070 = vsub.s32 %v7067, %v7069
        %v7071 = vrot.slane %v7063, %v7070
        %v7073 = vunpack.c.l.s4 1934713408
        %v7074 = vunpack.c.0.s8 %v7073
        %v7075 = vlaneseq
        %v7076 = vshrl.u32 %v7075, 7
        %v7077 = vsub.s32 %v7074, %v7076
        %v7078 = vrot.slane %v7064, %v7077
        %v7079 = vcombine.low %v7054, %v7062
        %v7080 = vcombine.high %v7054, %v7062
        %v7082 = vunpack.c.l.s4 1934713408
        %v7083 = vunpack.c.0.s8 %v7082
        %v7084 = vlaneseq
        %v7085 = vshrl.u32 %v7084, 7
        %v7086 = vsub.s32 %v7083, %v7085
        %v7087 = vrot.slane %v7079, %v7086
        %v7089 = vunpack.c.l.s4 1934713408
        %v7090 = vunpack.c.0.s8 %v7089
        %v7091 = vlaneseq
        %v7092 = vshrl.u32 %v7091, 7
        %v7093 = vsub.s32 %v7090, %v7092
        %v7094 = vrot.slane %v7080, %v7093
        %v7095 = vcombine.low %v7071, %v7087
        %v7096 = vcombine.high %v7071, %v7087
        %v7097 = vcombine.low %v7078, %v7094
        %v7098 = vcombine.low %v6131, %v6145
        %v7100 = vunpack.c.l.s4 1983009808
        %v7101 = vunpack.c.0.s8 %v7100
        %v7102 = vlaneseq
        %v7103 = vshrl.u32 %v7102, 7
        %v7104 = vsub.s32 %v7101, %v7103
        %v7105 = vrot.slane %v7098, %v7104
        %v7106 = vcombine.low %v6138, %v6152
        %v7108 = vunpack.c.l.s4 1983009808
        %v7109 = vunpack.c.0.s8 %v7108
        %v7110 = vlaneseq
        %v7111 = vshrl.u32 %v7110, 7
        %v7112 = vsub.s32 %v7109, %v7111
        %v7113 = vrot.slane %v7106, %v7112
        %v7114 = vcombine.low %v6159, %v6173
        %v7116 = vunpack.c.l.s4 1983009808
        %v7117 = vunpack.c.0.s8 %v7116
        %v7118 = vlaneseq
        %v7119 = vshrl.u32 %v7118, 7
        %v7120 = vsub.s32 %v7117, %v7119
        %v7121 = vrot.slane %v7114, %v7120
        %v7122 = vcombine.low %v6166, %v6180
        %v7124 = vunpack.c.l.s4 1983009808
        %v7125 = vunpack.c.0.s8 %v7124
        %v7126 = vlaneseq
        %v7127 = vshrl.u32 %v7126, 7
        %v7128 = vsub.s32 %v7125, %v7127
        %v7129 = vrot.slane %v7122, %v7128
        %v7130 = vcombine.low %v7105, %v7113
        %v7131 = vcombine.high %v7105, %v7113
        %v7133 = vunpack.c.l.s4 1934713408
        %v7134 = vunpack.c.0.s8 %v7133
        %v7135 = vlaneseq
        %v7136 = vshrl.u32 %v7135, 7
        %v7137 = vsub.s32 %v7134, %v7136
        %v7138 = vrot.slane %v7130, %v7137
        %v7140 = vunpack.c.l.s4 1934713408
        %v7141 = vunpack.c.0.s8 %v7140
        %v7142 = vlaneseq
        %v7143 = vshrl.u32 %v7142, 7
        %v7144 = vsub.s32 %v7141, %v7143
        %v7145 = vrot.slane %v7131, %v7144
        %v7146 = vcombine.low %v7121, %v7129
        %v7147 = vcombine.high %v7121, %v7129
        %v7149 = vunpack.c.l.s4 1934713408
        %v7150 = vunpack.c.0.s8 %v7149
        %v7151 = vlaneseq
        %v7152 = vshrl.u32 %v7151, 7
        %v7153 = vsub.s32 %v7150, %v7152
        %v7154 = vrot.slane %v7146, %v7153
        %v7156 = vunpack.c.l.s4 1934713408
        %v7157 = vunpack.c.0.s8 %v7156
        %v7158 = vlaneseq
        %v7159 = vshrl.u32 %v7158, 7
        %v7160 = vsub.s32 %v7157, %v7159
        %v7161 = vrot.slane %v7147, %v7160
        %v7162 = vcombine.low %v7138, %v7154
        %v7163 = vcombine.high %v7138, %v7154
        %v7164 = vcombine.low %v7145, %v7161
        %v7165 = vcombine.low %v6187, %v6201
        %v7167 = vunpack.c.l.s4 1983009808
        %v7168 = vunpack.c.0.s8 %v7167
        %v7169 = vlaneseq
        %v7170 = vshrl.u32 %v7169, 7
        %v7171 = vsub.s32 %v7168, %v7170
        %v7172 = vrot.slane %v7165, %v7171
        %v7173 = vcombine.low %v6194, %v6208
        %v7175 = vunpack.c.l.s4 1983009808
        %v7176 = vunpack.c.0.s8 %v7175
        %v7177 = vlaneseq
        %v7178 = vshrl.u32 %v7177, 7
        %v7179 = vsub.s32 %v7176, %v7178
        %v7180 = vrot.slane %v7173, %v7179
        %v7181 = vcombine.low %v6215, %v6229
        %v7183 = vunpack.c.l.s4 1983009808
        %v7184 = vunpack.c.0.s8 %v7183
        %v7185 = vlaneseq
        %v7186 = vshrl.u32 %v7185, 7
        %v7187 = vsub.s32 %v7184, %v7186
        %v7188 = vrot.slane %v7181, %v7187
        %v7189 = vcombine.low %v6222, %v6236
        %v7191 = vunpack.c.l.s4 1983009808
        %v7192 = vunpack.c.0.s8 %v7191
        %v7193 = vlaneseq
        %v7194 = vshrl.u32 %v7193, 7
        %v7195 = vsub.s32 %v7192, %v7194
        %v7196 = vrot.slane %v7189, %v7195
        %v7197 = vcombine.low %v7172, %v7180
        %v7198 = vcombine.high %v7172, %v7180
        %v7200 = vunpack.c.l.s4 1934713408
        %v7201 = vunpack.c.0.s8 %v7200
        %v7202 = vlaneseq
        %v7203 = vshrl.u32 %v7202, 7
        %v7204 = vsub.s32 %v7201, %v7203
        %v7205 = vrot.slane %v7197, %v7204
        %v7207 = vunpack.c.l.s4 1934713408
        %v7208 = vunpack.c.0.s8 %v7207
        %v7209 = vlaneseq
        %v7210 = vshrl.u32 %v7209, 7
        %v7211 = vsub.s32 %v7208, %v7210
        %v7212 = vrot.slane %v7198, %v7211
        %v7213 = vcombine.low %v7188, %v7196
        %v7214 = vcombine.high %v7188, %v7196
        %v7216 = vunpack.c.l.s4 1934713408
        %v7217 = vunpack.c.0.s8 %v7216
        %v7218 = vlaneseq
        %v7219 = vshrl.u32 %v7218, 7
        %v7220 = vsub.s32 %v7217, %v7219
        %v7221 = vrot.slane %v7213, %v7220
        %v7223 = vunpack.c.l.s4 1934713408
        %v7224 = vunpack.c.0.s8 %v7223
        %v7225 = vlaneseq
        %v7226 = vshrl.u32 %v7225, 7
        %v7227 = vsub.s32 %v7224, %v7226
        %v7228 = vrot.slane %v7214, %v7227
        %v7229 = vcombine.low %v7205, %v7221
        %v7230 = vcombine.high %v7205, %v7221
        %v7231 = vcombine.low %v7212, %v7228
        %v7232 = vcombine.low %v6243, %v6257
        %v7234 = vunpack.c.l.s4 1983009808
        %v7235 = vunpack.c.0.s8 %v7234
        %v7236 = vlaneseq
        %v7237 = vshrl.u32 %v7236, 7
        %v7238 = vsub.s32 %v7235, %v7237
        %v7239 = vrot.slane %v7232, %v7238
        %v7240 = vcombine.low %v6250, %v6264
        %v7242 = vunpack.c.l.s4 1983009808
        %v7243 = vunpack.c.0.s8 %v7242
        %v7244 = vlaneseq
        %v7245 = vshrl.u32 %v7244, 7
        %v7246 = vsub.s32 %v7243, %v7245
        %v7247 = vrot.slane %v7240, %v7246
        %v7248 = vcombine.low %v6271, %v6285
        %v7250 = vunpack.c.l.s4 1983009808
        %v7251 = vunpack.c.0.s8 %v7250
        %v7252 = vlaneseq
        %v7253 = vshrl.u32 %v7252, 7
        %v7254 = vsub.s32 %v7251, %v7253
        %v7255 = vrot.slane %v7248, %v7254
        %v7256 = vcombine.low %v6278, %v6292
        %v7258 = vunpack.c.l.s4 1983009808
        %v7259 = vunpack.c.0.s8 %v7258
        %v7260 = vlaneseq
        %v7261 = vshrl.u32 %v7260, 7
        %v7262 = vsub.s32 %v7259, %v7261
        %v7263 = vrot.slane %v7256, %v7262
        %v7264 = vcombine.low %v7239, %v7247
        %v7265 = vcombine.high %v7239, %v7247
        %v7267 = vunpack.c.l.s4 1934713408
        %v7268 = vunpack.c.0.s8 %v7267
        %v7269 = vlaneseq
        %v7270 = vshrl.u32 %v7269, 7
        %v7271 = vsub.s32 %v7268, %v7270
        %v7272 = vrot.slane %v7264, %v7271
        %v7274 = vunpack.c.l.s4 1934713408
        %v7275 = vunpack.c.0.s8 %v7274
        %v7276 = vlaneseq
        %v7277 = vshrl.u32 %v7276, 7
        %v7278 = vsub.s32 %v7275, %v7277
        %v7279 = vrot.slane %v7265, %v7278
        %v7280 = vcombine.low %v7255, %v7263
        %v7281 = vcombine.high %v7255, %v7263
        %v7283 = vunpack.c.l.s4 1934713408
        %v7284 = vunpack.c.0.s8 %v7283
        %v7285 = vlaneseq
        %v7286 = vshrl.u32 %v7285, 7
        %v7287 = vsub.s32 %v7284, %v7286
        %v7288 = vrot.slane %v7280, %v7287
        %v7290 = vunpack.c.l.s4 1934713408
        %v7291 = vunpack.c.0.s8 %v7290
        %v7292 = vlaneseq
        %v7293 = vshrl.u32 %v7292, 7
        %v7294 = vsub.s32 %v7291, %v7293
        %v7295 = vrot.slane %v7281, %v7294
        %v7296 = vcombine.low %v7272, %v7288
        %v7297 = vcombine.high %v7272, %v7288
        %v7298 = vcombine.low %v7279, %v7295
        %v7299 = vcombine.low %v6299, %v6313
        %v7301 = vunpack.c.l.s4 1983009808
        %v7302 = vunpack.c.0.s8 %v7301
        %v7303 = vlaneseq
        %v7304 = vshrl.u32 %v7303, 7
        %v7305 = vsub.s32 %v7302, %v7304
        %v7306 = vrot.slane %v7299, %v7305
        %v7307 = vcombine.low %v6306, %v6320
        %v7309 = vunpack.c.l.s4 1983009808
        %v7310 = vunpack.c.0.s8 %v7309
        %v7311 = vlaneseq
        %v7312 = vshrl.u32 %v7311, 7
        %v7313 = vsub.s32 %v7310, %v7312
        %v7314 = vrot.slane %v7307, %v7313
        %v7315 = vcombine.low %v6327, %v6341
        %v7317 = vunpack.c.l.s4 1983009808
        %v7318 = vunpack.c.0.s8 %v7317
        %v7319 = vlaneseq
        %v7320 = vshrl.u32 %v7319, 7
        %v7321 = vsub.s32 %v7318, %v7320
        %v7322 = vrot.slane %v7315, %v7321
        %v7323 = vcombine.low %v6334, %v6348
        %v7325 = vunpack.c.l.s4 1983009808
        %v7326 = vunpack.c.0.s8 %v7325
        %v7327 = vlaneseq
        %v7328 = vshrl.u32 %v7327, 7
        %v7329 = vsub.s32 %v7326, %v7328
        %v7330 = vrot.slane %v7323, %v7329
        %v7331 = vcombine.low %v7306, %v7314
        %v7332 = vcombine.high %v7306, %v7314
        %v7334 = vunpack.c.l.s4 1934713408
        %v7335 = vunpack.c.0.s8 %v7334
        %v7336 = vlaneseq
        %v7337 = vshrl.u32 %v7336, 7
        %v7338 = vsub.s32 %v7335, %v7337
        %v7339 = vrot.slane %v7331, %v7338
        %v7341 = vunpack.c.l.s4 1934713408
        %v7342 = vunpack.c.0.s8 %v7341
        %v7343 = vlaneseq
        %v7344 = vshrl.u32 %v7343, 7
        %v7345 = vsub.s32 %v7342, %v7344
        %v7346 = vrot.slane %v7332, %v7345
        %v7347 = vcombine.low %v7322, %v7330
        %v7348 = vcombine.high %v7322, %v7330
        %v7350 = vunpack.c.l.s4 1934713408
        %v7351 = vunpack.c.0.s8 %v7350
        %v7352 = vlaneseq
        %v7353 = vshrl.u32 %v7352, 7
        %v7354 = vsub.s32 %v7351, %v7353
        %v7355 = vrot.slane %v7347, %v7354
        %v7357 = vunpack.c.l.s4 1934713408
        %v7358 = vunpack.c.0.s8 %v7357
        %v7359 = vlaneseq
        %v7360 = vshrl.u32 %v7359, 7
        %v7361 = vsub.s32 %v7358, %v7360
        %v7362 = vrot.slane %v7348, %v7361
        %v7363 = vcombine.low %v7339, %v7355
        %v7364 = vcombine.high %v7339, %v7355
        %v7365 = vcombine.low %v7346, %v7362
        %v7366 = vcombine.low %v6355, %v6369
        %v7368 = vunpack.c.l.s4 1983009808
        %v7369 = vunpack.c.0.s8 %v7368
        %v7370 = vlaneseq
        %v7371 = vshrl.u32 %v7370, 7
        %v7372 = vsub.s32 %v7369, %v7371
        %v7373 = vrot.slane %v7366, %v7372
        %v7374 = vcombine.low %v6362, %v6376
        %v7376 = vunpack.c.l.s4 1983009808
        %v7377 = vunpack.c.0.s8 %v7376
        %v7378 = vlaneseq
        %v7379 = vshrl.u32 %v7378, 7
        %v7380 = vsub.s32 %v7377, %v7379
        %v7381 = vrot.slane %v7374, %v7380
        %v7382 = vcombine.low %v6383, %v6397
        %v7384 = vunpack.c.l.s4 1983009808
        %v7385 = vunpack.c.0.s8 %v7384
        %v7386 = vlaneseq
        %v7387 = vshrl.u32 %v7386, 7
        %v7388 = vsub.s32 %v7385, %v7387
        %v7389 = vrot.slane %v7382, %v7388
        %v7390 = vcombine.low %v6390, %v6404
        %v7392 = vunpack.c.l.s4 1983009808
        %v7393 = vunpack.c.0.s8 %v7392
        %v7394 = vlaneseq
        %v7395 = vshrl.u32 %v7394, 7
        %v7396 = vsub.s32 %v7393, %v7395
        %v7397 = vrot.slane %v7390, %v7396
        %v7398 = vcombine.low %v7373, %v7381
        %v7399 = vcombine.high %v7373, %v7381
        %v7401 = vunpack.c.l.s4 1934713408
        %v7402 = vunpack.c.0.s8 %v7401
        %v7403 = vlaneseq
        %v7404 = vshrl.u32 %v7403, 7
        %v7405 = vsub.s32 %v7402, %v7404
        %v7406 = vrot.slane %v7398, %v7405
        %v7408 = vunpack.c.l.s4 1934713408
        %v7409 = vunpack.c.0.s8 %v7408
        %v7410 = vlaneseq
        %v7411 = vshrl.u32 %v7410, 7
        %v7412 = vsub.s32 %v7409, %v7411
        %v7413 = vrot.slane %v7399, %v7412
        %v7414 = vcombine.low %v7389, %v7397
        %v7415 = vcombine.high %v7389, %v7397
        %v7417 = vunpack.c.l.s4 1934713408
        %v7418 = vunpack.c.0.s8 %v7417
        %v7419 = vlaneseq
        %v7420 = vshrl.u32 %v7419, 7
        %v7421 = vsub.s32 %v7418, %v7420
        %v7422 = vrot.slane %v7414, %v7421
        %v7424 = vunpack.c.l.s4 1934713408
        %v7425 = vunpack.c.0.s8 %v7424
        %v7426 = vlaneseq
        %v7427 = vshrl.u32 %v7426, 7
        %v7428 = vsub.s32 %v7425, %v7427
        %v7429 = vrot.slane %v7415, %v7428
        %v7430 = vcombine.low %v7406, %v7422
        %v7431 = vcombine.high %v7406, %v7422
        %v7432 = vcombine.low %v7413, %v7429
        %v7433 = vcombine.low %v6411, %v6425
        %v7435 = vunpack.c.l.s4 1983009808
        %v7436 = vunpack.c.0.s8 %v7435
        %v7437 = vlaneseq
        %v7438 = vshrl.u32 %v7437, 7
        %v7439 = vsub.s32 %v7436, %v7438
        %v7440 = vrot.slane %v7433, %v7439
        %v7441 = vcombine.low %v6418, %v6432
        %v7443 = vunpack.c.l.s4 1983009808
        %v7444 = vunpack.c.0.s8 %v7443
        %v7445 = vlaneseq
        %v7446 = vshrl.u32 %v7445, 7
        %v7447 = vsub.s32 %v7444, %v7446
        %v7448 = vrot.slane %v7441, %v7447
        %v7449 = vcombine.low %v6439, %v6453
        %v7451 = vunpack.c.l.s4 1983009808
        %v7452 = vunpack.c.0.s8 %v7451
        %v7453 = vlaneseq
        %v7454 = vshrl.u32 %v7453, 7
        %v7455 = vsub.s32 %v7452, %v7454
        %v7456 = vrot.slane %v7449, %v7455
        %v7457 = vcombine.low %v6446, %v6460
        %v7459 = vunpack.c.l.s4 1983009808
        %v7460 = vunpack.c.0.s8 %v7459
        %v7461 = vlaneseq
        %v7462 = vshrl.u32 %v7461, 7
        %v7463 = vsub.s32 %v7460, %v7462
        %v7464 = vrot.slane %v7457, %v7463
        %v7465 = vcombine.low %v7440, %v7448
        %v7466 = vcombine.high %v7440, %v7448
        %v7468 = vunpack.c.l.s4 1934713408
        %v7469 = vunpack.c.0.s8 %v7468
        %v7470 = vlaneseq
        %v7471 = vshrl.u32 %v7470, 7
        %v7472 = vsub.s32 %v7469, %v7471
        %v7473 = vrot.slane %v7465, %v7472
        %v7475 = vunpack.c.l.s4 1934713408
        %v7476 = vunpack.c.0.s8 %v7475
        %v7477 = vlaneseq
        %v7478 = vshrl.u32 %v7477, 7
        %v7479 = vsub.s32 %v7476, %v7478
        %v7480 = vrot.slane %v7466, %v7479
        %v7481 = vcombine.low %v7456, %v7464
        %v7482 = vcombine.high %v7456, %v7464
        %v7484 = vunpack.c.l.s4 1934713408
        %v7485 = vunpack.c.0.s8 %v7484
        %v7486 = vlaneseq
        %v7487 = vshrl.u32 %v7486, 7
        %v7488 = vsub.s32 %v7485, %v7487
        %v7489 = vrot.slane %v7481, %v7488
        %v7491 = vunpack.c.l.s4 1934713408
        %v7492 = vunpack.c.0.s8 %v7491
        %v7493 = vlaneseq
        %v7494 = vshrl.u32 %v7493, 7
        %v7495 = vsub.s32 %v7492, %v7494
        %v7496 = vrot.slane %v7482, %v7495
        %v7497 = vcombine.low %v7473, %v7489
        %v7498 = vcombine.high %v7473, %v7489
        %v7499 = vcombine.low %v7480, %v7496
        %v7500 = vcombine.low %v6467, %v6481
        %v7502 = vunpack.c.l.s4 1983009808
        %v7503 = vunpack.c.0.s8 %v7502
        %v7504 = vlaneseq
        %v7505 = vshrl.u32 %v7504, 7
        %v7506 = vsub.s32 %v7503, %v7505
        %v7507 = vrot.slane %v7500, %v7506
        %v7508 = vcombine.low %v6474, %v6488
        %v7510 = vunpack.c.l.s4 1983009808
        %v7511 = vunpack.c.0.s8 %v7510
        %v7512 = vlaneseq
        %v7513 = vshrl.u32 %v7512, 7
        %v7514 = vsub.s32 %v7511, %v7513
        %v7515 = vrot.slane %v7508, %v7514
        %v7516 = vcombine.low %v6495, %v6509
        %v7518 = vunpack.c.l.s4 1983009808
        %v7519 = vunpack.c.0.s8 %v7518
        %v7520 = vlaneseq
        %v7521 = vshrl.u32 %v7520, 7
        %v7522 = vsub.s32 %v7519, %v7521
        %v7523 = vrot.slane %v7516, %v7522
        %v7524 = vcombine.low %v6502, %v6516
        %v7526 = vunpack.c.l.s4 1983009808
        %v7527 = vunpack.c.0.s8 %v7526
        %v7528 = vlaneseq
        %v7529 = vshrl.u32 %v7528, 7
        %v7530 = vsub.s32 %v7527, %v7529
        %v7531 = vrot.slane %v7524, %v7530
        %v7532 = vcombine.low %v7507, %v7515
        %v7533 = vcombine.high %v7507, %v7515
        %v7535 = vunpack.c.l.s4 1934713408
        %v7536 = vunpack.c.0.s8 %v7535
        %v7537 = vlaneseq
        %v7538 = vshrl.u32 %v7537, 7
        %v7539 = vsub.s32 %v7536, %v7538
        %v7540 = vrot.slane %v7532, %v7539
        %v7542 = vunpack.c.l.s4 1934713408
        %v7543 = vunpack.c.0.s8 %v7542
        %v7544 = vlaneseq
        %v7545 = vshrl.u32 %v7544, 7
        %v7546 = vsub.s32 %v7543, %v7545
        %v7547 = vrot.slane %v7533, %v7546
        %v7548 = vcombine.low %v7523, %v7531
        %v7549 = vcombine.high %v7523, %v7531
        %v7551 = vunpack.c.l.s4 1934713408
        %v7552 = vunpack.c.0.s8 %v7551
        %v7553 = vlaneseq
        %v7554 = vshrl.u32 %v7553, 7
        %v7555 = vsub.s32 %v7552, %v7554
        %v7556 = vrot.slane %v7548, %v7555
        %v7558 = vunpack.c.l.s4 1934713408
        %v7559 = vunpack.c.0.s8 %v7558
        %v7560 = vlaneseq
        %v7561 = vshrl.u32 %v7560, 7
        %v7562 = vsub.s32 %v7559, %v7561
        %v7563 = vrot.slane %v7549, %v7562
        %v7564 = vcombine.low %v7540, %v7556
        %v7565 = vcombine.high %v7540, %v7556
        %v7566 = vcombine.low %v7547, %v7563
        %v7567 = vcombine.low %v6523, %v6537
        %v7569 = vunpack.c.l.s4 1983009808
        %v7570 = vunpack.c.0.s8 %v7569
        %v7571 = vlaneseq
        %v7572 = vshrl.u32 %v7571, 7
        %v7573 = vsub.s32 %v7570, %v7572
        %v7574 = vrot.slane %v7567, %v7573
        %v7575 = vcombine.low %v6530, %v6544
        %v7577 = vunpack.c.l.s4 1983009808
        %v7578 = vunpack.c.0.s8 %v7577
        %v7579 = vlaneseq
        %v7580 = vshrl.u32 %v7579, 7
        %v7581 = vsub.s32 %v7578, %v7580
        %v7582 = vrot.slane %v7575, %v7581
        %v7583 = vcombine.low %v6551, %v6565
        %v7585 = vunpack.c.l.s4 1983009808
        %v7586 = vunpack.c.0.s8 %v7585
        %v7587 = vlaneseq
        %v7588 = vshrl.u32 %v7587, 7
        %v7589 = vsub.s32 %v7586, %v7588
        %v7590 = vrot.slane %v7583, %v7589
        %v7591 = vcombine.low %v6558, %v6572
        %v7593 = vunpack.c.l.s4 1983009808
        %v7594 = vunpack.c.0.s8 %v7593
        %v7595 = vlaneseq
        %v7596 = vshrl.u32 %v7595, 7
        %v7597 = vsub.s32 %v7594, %v7596
        %v7598 = vrot.slane %v7591, %v7597
        %v7599 = vcombine.low %v7574, %v7582
        %v7600 = vcombine.high %v7574, %v7582
        %v7602 = vunpack.c.l.s4 1934713408
        %v7603 = vunpack.c.0.s8 %v7602
        %v7604 = vlaneseq
        %v7605 = vshrl.u32 %v7604, 7
        %v7606 = vsub.s32 %v7603, %v7605
        %v7607 = vrot.slane %v7599, %v7606
        %v7609 = vunpack.c.l.s4 1934713408
        %v7610 = vunpack.c.0.s8 %v7609
        %v7611 = vlaneseq
        %v7612 = vshrl.u32 %v7611, 7
        %v7613 = vsub.s32 %v7610, %v7612
        %v7614 = vrot.slane %v7600, %v7613
        %v7615 = vcombine.low %v7590, %v7598
        %v7616 = vcombine.high %v7590, %v7598
        %v7618 = vunpack.c.l.s4 1934713408
        %v7619 = vunpack.c.0.s8 %v7618
        %v7620 = vlaneseq
        %v7621 = vshrl.u32 %v7620, 7
        %v7622 = vsub.s32 %v7619, %v7621
        %v7623 = vrot.slane %v7615, %v7622
        %v7625 = vunpack.c.l.s4 1934713408
        %v7626 = vunpack.c.0.s8 %v7625
        %v7627 = vlaneseq
        %v7628 = vshrl.u32 %v7627, 7
        %v7629 = vsub.s32 %v7626, %v7628
        %v7630 = vrot.slane %v7616, %v7629
        %v7631 = vcombine.low %v7607, %v7623
        %v7632 = vcombine.high %v7607, %v7623
        %v7633 = vcombine.low %v7614, %v7630
        %v7634 = vcombine.low %v6579, %v6593
        %v7636 = vunpack.c.l.s4 1983009808
        %v7637 = vunpack.c.0.s8 %v7636
        %v7638 = vlaneseq
        %v7639 = vshrl.u32 %v7638, 7
        %v7640 = vsub.s32 %v7637, %v7639
        %v7641 = vrot.slane %v7634, %v7640
        %v7642 = vcombine.low %v6586, %v6600
        %v7644 = vunpack.c.l.s4 1983009808
        %v7645 = vunpack.c.0.s8 %v7644
        %v7646 = vlaneseq
        %v7647 = vshrl.u32 %v7646, 7
        %v7648 = vsub.s32 %v7645, %v7647
        %v7649 = vrot.slane %v7642, %v7648
        %v7650 = vcombine.low %v6607, %v6621
        %v7652 = vunpack.c.l.s4 1983009808
        %v7653 = vunpack.c.0.s8 %v7652
        %v7654 = vlaneseq
        %v7655 = vshrl.u32 %v7654, 7
        %v7656 = vsub.s32 %v7653, %v7655
        %v7657 = vrot.slane %v7650, %v7656
        %v7658 = vcombine.low %v6614, %v6628
        %v7660 = vunpack.c.l.s4 1983009808
        %v7661 = vunpack.c.0.s8 %v7660
        %v7662 = vlaneseq
        %v7663 = vshrl.u32 %v7662, 7
        %v7664 = vsub.s32 %v7661, %v7663
        %v7665 = vrot.slane %v7658, %v7664
        %v7666 = vcombine.low %v7641, %v7649
        %v7667 = vcombine.high %v7641, %v7649
        %v7669 = vunpack.c.l.s4 1934713408
        %v7670 = vunpack.c.0.s8 %v7669
        %v7671 = vlaneseq
        %v7672 = vshrl.u32 %v7671, 7
        %v7673 = vsub.s32 %v7670, %v7672
        %v7674 = vrot.slane %v7666, %v7673
        %v7676 = vunpack.c.l.s4 1934713408
        %v7677 = vunpack.c.0.s8 %v7676
        %v7678 = vlaneseq
        %v7679 = vshrl.u32 %v7678, 7
        %v7680 = vsub.s32 %v7677, %v7679
        %v7681 = vrot.slane %v7667, %v7680
        %v7682 = vcombine.low %v7657, %v7665
        %v7683 = vcombine.high %v7657, %v7665
        %v7685 = vunpack.c.l.s4 1934713408
        %v7686 = vunpack.c.0.s8 %v7685
        %v7687 = vlaneseq
        %v7688 = vshrl.u32 %v7687, 7
        %v7689 = vsub.s32 %v7686, %v7688
        %v7690 = vrot.slane %v7682, %v7689
        %v7692 = vunpack.c.l.s4 1934713408
        %v7693 = vunpack.c.0.s8 %v7692
        %v7694 = vlaneseq
        %v7695 = vshrl.u32 %v7694, 7
        %v7696 = vsub.s32 %v7693, %v7695
        %v7697 = vrot.slane %v7683, %v7696
        %v7698 = vcombine.low %v7674, %v7690
        %v7699 = vcombine.high %v7674, %v7690
        %v7700 = vcombine.low %v7681, %v7697
        %7717 = vrot.lane.b32.xlu0 %v6694, 4
        %v7718 = vpop.permute.xlu0 %7717
        %7719 = vrot.lane.b32.xlu0 %v6761, 4
        %v7720 = vpop.permute.xlu0 %7719
        %7721 = vrot.lane.b32.xlu0 %v6828, 4
        %v7722 = vpop.permute.xlu0 %7721
        %7723 = vrot.lane.b32.xlu0 %v6895, 4
        %v7724 = vpop.permute.xlu0 %7723
        %7725 = vrot.lane.b32.xlu0 %v6962, 4
        %v7726 = vpop.permute.xlu0 %7725
        %7727 = vrot.lane.b32.xlu0 %v7029, 4
        %v7728 = vpop.permute.xlu0 %7727
        %7729 = vrot.lane.b32.xlu0 %v7096, 4
        %v7730 = vpop.permute.xlu0 %7729
        %7731 = vrot.lane.b32.xlu0 %v7163, 4
        %v7732 = vpop.permute.xlu0 %7731
        %7733 = vrot.lane.b32.xlu0 %v7230, 4
        %v7734 = vpop.permute.xlu0 %7733
        %7735 = vrot.lane.b32.xlu0 %v7297, 4
        %v7736 = vpop.permute.xlu0 %7735
        %7737 = vrot.lane.b32.xlu0 %v7364, 4
        %v7738 = vpop.permute.xlu0 %7737
        %7739 = vrot.lane.b32.xlu0 %v7431, 4
        %v7740 = vpop.permute.xlu0 %7739
        %7741 = vrot.lane.b32.xlu0 %v7498, 4
        %v7742 = vpop.permute.xlu0 %7741
        %7743 = vrot.lane.b32.xlu0 %v7565, 4
        %v7744 = vpop.permute.xlu0 %7743
        %7745 = vrot.lane.b32.xlu0 %v7632, 4
        %v7746 = vpop.permute.xlu0 %7745
        %7747 = vrot.lane.b32.xlu0 %v7699, 4
        %v7748 = vpop.permute.xlu0 %7747
        %7781 = vrot.lane.b32.xlu0 %v6695, 8
        %v7782 = vpop.permute.xlu0 %7781
        %7783 = vrot.lane.b32.xlu0 %v6762, 8
        %v7784 = vpop.permute.xlu0 %7783
        %7785 = vrot.lane.b32.xlu0 %v6829, 8
        %v7786 = vpop.permute.xlu0 %7785
        %7787 = vrot.lane.b32.xlu0 %v6896, 8
        %v7788 = vpop.permute.xlu0 %7787
        %7789 = vrot.lane.b32.xlu0 %v6963, 8
        %v7790 = vpop.permute.xlu0 %7789
        %7791 = vrot.lane.b32.xlu0 %v7030, 8
        %v7792 = vpop.permute.xlu0 %7791
        %7793 = vrot.lane.b32.xlu0 %v7097, 8
        %v7794 = vpop.permute.xlu0 %7793
        %7795 = vrot.lane.b32.xlu0 %v7164, 8
        %v7796 = vpop.permute.xlu0 %7795
        %7797 = vrot.lane.b32.xlu0 %v7231, 8
        %v7798 = vpop.permute.xlu0 %7797
        %7799 = vrot.lane.b32.xlu0 %v7298, 8
        %v7800 = vpop.permute.xlu0 %7799
        %7801 = vrot.lane.b32.xlu0 %v7365, 8
        %v7802 = vpop.permute.xlu0 %7801
        %7803 = vrot.lane.b32.xlu0 %v7432, 8
        %v7804 = vpop.permute.xlu0 %7803
        %7805 = vrot.lane.b32.xlu0 %v7499, 8
        %v7806 = vpop.permute.xlu0 %7805
        %7807 = vrot.lane.b32.xlu0 %v7566, 8
        %v7808 = vpop.permute.xlu0 %7807
        %7809 = vrot.lane.b32.xlu0 %v7633, 8
        %v7810 = vpop.permute.xlu0 %7809
        %7811 = vrot.lane.b32.xlu0 %v7700, 8
        %v7812 = vpop.permute.xlu0 %7811
        %vm7829 = vcmask 31744
        %v7830 = vsel %vm7829, %v6693, %v7718
        %v7831 = vsel %vm7829, %v6760, %v7720
        %v7832 = vsel %vm7829, %v6827, %v7722
        %v7833 = vsel %vm7829, %v6894, %v7724
        %v7834 = vsel %vm7829, %v6961, %v7726
        %v7835 = vsel %vm7829, %v7028, %v7728
        %v7836 = vsel %vm7829, %v7095, %v7730
        %v7837 = vsel %vm7829, %v7162, %v7732
        %v7838 = vsel %vm7829, %v7229, %v7734
        %v7839 = vsel %vm7829, %v7296, %v7736
        %v7840 = vsel %vm7829, %v7363, %v7738
        %v7841 = vsel %vm7829, %v7430, %v7740
        %v7842 = vsel %vm7829, %v7497, %v7742
        %v7843 = vsel %vm7829, %v7564, %v7744
        %v7844 = vsel %vm7829, %v7631, %v7746
        %v7845 = vsel %vm7829, %v7698, %v7748
        %vm7846 = vcmask 64512
        %v7847 = vsel %vm7846, %v7830, %v7782
        %v7848 = vsel %vm7846, %v7831, %v7784
        %v7849 = vsel %vm7846, %v7832, %v7786
        %v7850 = vsel %vm7846, %v7833, %v7788
        %v7851 = vsel %vm7846, %v7834, %v7790
        %v7852 = vsel %vm7846, %v7835, %v7792
        %v7853 = vsel %vm7846, %v7836, %v7794
        %v7854 = vsel %vm7846, %v7837, %v7796
        %v7855 = vsel %vm7846, %v7838, %v7798
        %v7856 = vsel %vm7846, %v7839, %v7800
        %v7857 = vsel %vm7846, %v7840, %v7802
        %v7858 = vsel %vm7846, %v7841, %v7804
        %v7859 = vsel %vm7846, %v7842, %v7806
        %v7860 = vsel %vm7846, %v7843, %v7808
        %v7861 = vsel %vm7846, %v7844, %v7810
        %v7862 = vsel %vm7846, %v7845, %v7812
        %v7863 = vadd.f32 %v5636, %v7847
        %v7864 = vadd.f32 %v5641, %v7848
        %v7865 = vadd.f32 %v5646, %v7849
        %v7866 = vadd.f32 %v5651, %v7850
        %v7867 = vadd.f32 %v5656, %v7851
        %v7868 = vadd.f32 %v5661, %v7852
        %v7869 = vadd.f32 %v5666, %v7853
        %v7870 = vadd.f32 %v5671, %v7854
        %v7871 = vadd.f32 %v5676, %v7855
        %v7872 = vadd.f32 %v5681, %v7856
        %v7873 = vadd.f32 %v5686, %v7857
        %v7874 = vadd.f32 %v5691, %v7858
        %v7875 = vadd.f32 %v5696, %v7859
        %v7876 = vadd.f32 %v5701, %v7860
        %v7877 = vadd.f32 %v5706, %v7861
        %v7878 = vadd.f32 %v5711, %v7862
        %v7879 = vcombine.low %v7863, %v7867
        %v7880 = vcombine.high %v7863, %v7867
        %v7882 = vunpack.c.l.s4 1983009808
        %v7883 = vunpack.c.0.s8 %v7882
        %v7884 = vlaneseq
        %v7885 = vshrl.u32 %v7884, 7
        %v7886 = vsub.s32 %v7883, %v7885
        %v7887 = vrot.slane %v7879, %v7886
        %v7889 = vunpack.c.l.s4 1983009808
        %v7890 = vunpack.c.0.s8 %v7889
        %v7891 = vlaneseq
        %v7892 = vshrl.u32 %v7891, 7
        %v7893 = vsub.s32 %v7890, %v7892
        %v7894 = vrot.slane %v7880, %v7893
        %v7895 = vcombine.low %v7865, %v7869
        %v7896 = vcombine.high %v7865, %v7869
        %v7898 = vunpack.c.l.s4 1983009808
        %v7899 = vunpack.c.0.s8 %v7898
        %v7900 = vlaneseq
        %v7901 = vshrl.u32 %v7900, 7
        %v7902 = vsub.s32 %v7899, %v7901
        %v7903 = vrot.slane %v7895, %v7902
        %v7905 = vunpack.c.l.s4 1983009808
        %v7906 = vunpack.c.0.s8 %v7905
        %v7907 = vlaneseq
        %v7908 = vshrl.u32 %v7907, 7
        %v7909 = vsub.s32 %v7906, %v7908
        %v7910 = vrot.slane %v7896, %v7909
        %v7911 = vcombine.low %v7871, %v7875
        %v7912 = vcombine.high %v7871, %v7875
        %v7914 = vunpack.c.l.s4 1983009808
        %v7915 = vunpack.c.0.s8 %v7914
        %v7916 = vlaneseq
        %v7917 = vshrl.u32 %v7916, 7
        %v7918 = vsub.s32 %v7915, %v7917
        %v7919 = vrot.slane %v7911, %v7918
        %v7921 = vunpack.c.l.s4 1983009808
        %v7922 = vunpack.c.0.s8 %v7921
        %v7923 = vlaneseq
        %v7924 = vshrl.u32 %v7923, 7
        %v7925 = vsub.s32 %v7922, %v7924
        %v7926 = vrot.slane %v7912, %v7925
        %v7927 = vcombine.low %v7873, %v7877
        %v7928 = vcombine.high %v7873, %v7877
        %v7930 = vunpack.c.l.s4 1983009808
        %v7931 = vunpack.c.0.s8 %v7930
        %v7932 = vlaneseq
        %v7933 = vshrl.u32 %v7932, 7
        %v7934 = vsub.s32 %v7931, %v7933
        %v7935 = vrot.slane %v7927, %v7934
        %v7937 = vunpack.c.l.s4 1983009808
        %v7938 = vunpack.c.0.s8 %v7937
        %v7939 = vlaneseq
        %v7940 = vshrl.u32 %v7939, 7
        %v7941 = vsub.s32 %v7938, %v7940
        %v7942 = vrot.slane %v7928, %v7941
        %v7943 = vcombine.low %v7887, %v7903
        %v7944 = vcombine.high %v7887, %v7903
        %v7946 = vunpack.c.l.s4 1934713408
        %v7947 = vunpack.c.0.s8 %v7946
        %v7948 = vlaneseq
        %v7949 = vshrl.u32 %v7948, 7
        %v7950 = vsub.s32 %v7947, %v7949
        %v7951 = vrot.slane %v7943, %v7950
        %v7953 = vunpack.c.l.s4 1934713408
        %v7954 = vunpack.c.0.s8 %v7953
        %v7955 = vlaneseq
        %v7956 = vshrl.u32 %v7955, 7
        %v7957 = vsub.s32 %v7954, %v7956
        %v7958 = vrot.slane %v7944, %v7957
        %v7959 = vcombine.low %v7894, %v7910
        %v7960 = vcombine.high %v7894, %v7910
        %v7962 = vunpack.c.l.s4 1934713408
        %v7963 = vunpack.c.0.s8 %v7962
        %v7964 = vlaneseq
        %v7965 = vshrl.u32 %v7964, 7
        %v7966 = vsub.s32 %v7963, %v7965
        %v7967 = vrot.slane %v7959, %v7966
        %v7969 = vunpack.c.l.s4 1934713408
        %v7970 = vunpack.c.0.s8 %v7969
        %v7971 = vlaneseq
        %v7972 = vshrl.u32 %v7971, 7
        %v7973 = vsub.s32 %v7970, %v7972
        %v7974 = vrot.slane %v7960, %v7973
        %v7975 = vcombine.low %v7919, %v7935
        %v7976 = vcombine.high %v7919, %v7935
        %v7978 = vunpack.c.l.s4 1934713408
        %v7979 = vunpack.c.0.s8 %v7978
        %v7980 = vlaneseq
        %v7981 = vshrl.u32 %v7980, 7
        %v7982 = vsub.s32 %v7979, %v7981
        %v7983 = vrot.slane %v7975, %v7982
        %v7985 = vunpack.c.l.s4 1934713408
        %v7986 = vunpack.c.0.s8 %v7985
        %v7987 = vlaneseq
        %v7988 = vshrl.u32 %v7987, 7
        %v7989 = vsub.s32 %v7986, %v7988
        %v7990 = vrot.slane %v7976, %v7989
        %v7991 = vcombine.low %v7926, %v7942
        %v7992 = vcombine.high %v7926, %v7942
        %v7994 = vunpack.c.l.s4 1934713408
        %v7995 = vunpack.c.0.s8 %v7994
        %v7996 = vlaneseq
        %v7997 = vshrl.u32 %v7996, 7
        %v7998 = vsub.s32 %v7995, %v7997
        %v7999 = vrot.slane %v7991, %v7998
        %v8001 = vunpack.c.l.s4 1934713408
        %v8002 = vunpack.c.0.s8 %v8001
        %v8003 = vlaneseq
        %v8004 = vshrl.u32 %v8003, 7
        %v8005 = vsub.s32 %v8002, %v8004
        %v8006 = vrot.slane %v7992, %v8005
        %v8007 = vcombine.low %v7951, %v7983
        %v8008 = vcombine.high %v7951, %v7983
        %v8009 = vcombine.low %v7958, %v7990
        %v8010 = vcombine.high %v7958, %v7990
        %v8011 = vcombine.low %v7967, %v7999
        %v8012 = vcombine.high %v7967, %v7999
        %v8013 = vcombine.low %v7974, %v8006
        %v8014 = vcombine.high %v7974, %v8006
        %v8015 = vcombine.low %v7864, %v7868
        %v8016 = vcombine.high %v7864, %v7868
        %v8018 = vunpack.c.l.s4 1983009808
        %v8019 = vunpack.c.0.s8 %v8018
        %v8020 = vlaneseq
        %v8021 = vshrl.u32 %v8020, 7
        %v8022 = vsub.s32 %v8019, %v8021
        %v8023 = vrot.slane %v8015, %v8022
        %v8025 = vunpack.c.l.s4 1983009808
        %v8026 = vunpack.c.0.s8 %v8025
        %v8027 = vlaneseq
        %v8028 = vshrl.u32 %v8027, 7
        %v8029 = vsub.s32 %v8026, %v8028
        %v8030 = vrot.slane %v8016, %v8029
        %v8031 = vcombine.low %v7866, %v7870
        %v8032 = vcombine.high %v7866, %v7870
        %v8034 = vunpack.c.l.s4 1983009808
        %v8035 = vunpack.c.0.s8 %v8034
        %v8036 = vlaneseq
        %v8037 = vshrl.u32 %v8036, 7
        %v8038 = vsub.s32 %v8035, %v8037
        %v8039 = vrot.slane %v8031, %v8038
        %v8041 = vunpack.c.l.s4 1983009808
        %v8042 = vunpack.c.0.s8 %v8041
        %v8043 = vlaneseq
        %v8044 = vshrl.u32 %v8043, 7
        %v8045 = vsub.s32 %v8042, %v8044
        %v8046 = vrot.slane %v8032, %v8045
        %v8047 = vcombine.low %v7872, %v7876
        %v8048 = vcombine.high %v7872, %v7876
        %v8050 = vunpack.c.l.s4 1983009808
        %v8051 = vunpack.c.0.s8 %v8050
        %v8052 = vlaneseq
        %v8053 = vshrl.u32 %v8052, 7
        %v8054 = vsub.s32 %v8051, %v8053
        %v8055 = vrot.slane %v8047, %v8054
        %v8057 = vunpack.c.l.s4 1983009808
        %v8058 = vunpack.c.0.s8 %v8057
        %v8059 = vlaneseq
        %v8060 = vshrl.u32 %v8059, 7
        %v8061 = vsub.s32 %v8058, %v8060
        %v8062 = vrot.slane %v8048, %v8061
        %v8063 = vcombine.low %v7874, %v7878
        %v8064 = vcombine.high %v7874, %v7878
        %v8066 = vunpack.c.l.s4 1983009808
        %v8067 = vunpack.c.0.s8 %v8066
        %v8068 = vlaneseq
        %v8069 = vshrl.u32 %v8068, 7
        %v8070 = vsub.s32 %v8067, %v8069
        %v8071 = vrot.slane %v8063, %v8070
        %v8073 = vunpack.c.l.s4 1983009808
        %v8074 = vunpack.c.0.s8 %v8073
        %v8075 = vlaneseq
        %v8076 = vshrl.u32 %v8075, 7
        %v8077 = vsub.s32 %v8074, %v8076
        %v8078 = vrot.slane %v8064, %v8077
        %v8079 = vcombine.low %v8023, %v8039
        %v8080 = vcombine.high %v8023, %v8039
        %v8082 = vunpack.c.l.s4 1934713408
        %v8083 = vunpack.c.0.s8 %v8082
        %v8084 = vlaneseq
        %v8085 = vshrl.u32 %v8084, 7
        %v8086 = vsub.s32 %v8083, %v8085
        %v8087 = vrot.slane %v8079, %v8086
        %v8089 = vunpack.c.l.s4 1934713408
        %v8090 = vunpack.c.0.s8 %v8089
        %v8091 = vlaneseq
        %v8092 = vshrl.u32 %v8091, 7
        %v8093 = vsub.s32 %v8090, %v8092
        %v8094 = vrot.slane %v8080, %v8093
        %v8095 = vcombine.low %v8030, %v8046
        %v8096 = vcombine.high %v8030, %v8046
        %v8098 = vunpack.c.l.s4 1934713408
        %v8099 = vunpack.c.0.s8 %v8098
        %v8100 = vlaneseq
        %v8101 = vshrl.u32 %v8100, 7
        %v8102 = vsub.s32 %v8099, %v8101
        %v8103 = vrot.slane %v8095, %v8102
        %v8105 = vunpack.c.l.s4 1934713408
        %v8106 = vunpack.c.0.s8 %v8105
        %v8107 = vlaneseq
        %v8108 = vshrl.u32 %v8107, 7
        %v8109 = vsub.s32 %v8106, %v8108
        %v8110 = vrot.slane %v8096, %v8109
        %v8111 = vcombine.low %v8055, %v8071
        %v8112 = vcombine.high %v8055, %v8071
        %v8114 = vunpack.c.l.s4 1934713408
        %v8115 = vunpack.c.0.s8 %v8114
        %v8116 = vlaneseq
        %v8117 = vshrl.u32 %v8116, 7
        %v8118 = vsub.s32 %v8115, %v8117
        %v8119 = vrot.slane %v8111, %v8118
        %v8121 = vunpack.c.l.s4 1934713408
        %v8122 = vunpack.c.0.s8 %v8121
        %v8123 = vlaneseq
        %v8124 = vshrl.u32 %v8123, 7
        %v8125 = vsub.s32 %v8122, %v8124
        %v8126 = vrot.slane %v8112, %v8125
        %v8127 = vcombine.low %v8062, %v8078
        %v8128 = vcombine.high %v8062, %v8078
        %v8130 = vunpack.c.l.s4 1934713408
        %v8131 = vunpack.c.0.s8 %v8130
        %v8132 = vlaneseq
        %v8133 = vshrl.u32 %v8132, 7
        %v8134 = vsub.s32 %v8131, %v8133
        %v8135 = vrot.slane %v8127, %v8134
        %v8137 = vunpack.c.l.s4 1934713408
        %v8138 = vunpack.c.0.s8 %v8137
        %v8139 = vlaneseq
        %v8140 = vshrl.u32 %v8139, 7
        %v8141 = vsub.s32 %v8138, %v8140
        %v8142 = vrot.slane %v8128, %v8141
        %v8143 = vcombine.low %v8087, %v8119
        %v8144 = vcombine.high %v8087, %v8119
        %v8145 = vcombine.low %v8094, %v8126
        %v8146 = vcombine.high %v8094, %v8126
        %v8147 = vcombine.low %v8103, %v8135
        %v8148 = vcombine.high %v8103, %v8135
        %v8149 = vcombine.low %v8110, %v8142
        %v8150 = vcombine.high %v8110, %v8142
        %8152 = vrot.lane.b32.xlu0 %v8008, 12
        %v8153 = vpop.permute.xlu0 %8152
        %8156 = vrot.lane.b32.xlu0 %v8009, 24
        %v8157 = vpop.permute.xlu0 %8156
        %8160 = vrot.lane.b32.xlu0 %v8010, 36
        %v8161 = vpop.permute.xlu0 %8160
        %8164 = vrot.lane.b32.xlu0 %v8011, 48
        %v8165 = vpop.permute.xlu0 %8164
        %8168 = vrot.lane.b32.xlu0 %v8012, 60
        %v8169 = vpop.permute.xlu0 %8168
        %8172 = vrot.lane.b32.xlu0 %v8013, 72
        %v8173 = vpop.permute.xlu0 %8172
        %8176 = vrot.lane.b32.xlu0 %v8014, 84
        %v8177 = vpop.permute.xlu0 %8176
        %8180 = vrot.lane.b32.xlu0 %v8143, 96
        %v8181 = vpop.permute.xlu0 %8180
        %8184 = vrot.lane.b32.xlu0 %v8144, 108
        %v8185 = vpop.permute.xlu0 %8184
        %8188 = vrot.lane.b32.xlu0 %v8145, 120
        %v8189 = vpop.permute.xlu0 %8188
        %8192 = vrot.lane.b32.xlu0 %v8146, 4
        %v8193 = vpop.permute.xlu0 %8192
        %8196 = vrot.lane.b32.xlu0 %v8147, 16
        %v8197 = vpop.permute.xlu0 %8196
        %8200 = vrot.lane.b32.xlu0 %v8148, 28
        %v8201 = vpop.permute.xlu0 %8200
        %8204 = vrot.lane.b32.xlu0 %v8149, 40
        %v8205 = vpop.permute.xlu0 %8204
        %8208 = vrot.lane.b32.xlu0 %v8150, 52
        %v8209 = vpop.permute.xlu0 %8208
        %v8211 = vsel %vm1573, %v8007, %v8153
        %v8212 = vsel %vm1689, %v8211, %v8157
        %vm8213 = vcmask 293888
        %v8214 = vsel %vm8213, %v8212, %v8161
        %v8215 = vsel %vm3087, %v8214, %v8165
        %vm8216 = vcmask 490496
        %v8217 = vsel %vm8216, %v8215, %v8169
        %vm8218 = vcmask 588800
        %v8219 = vsel %vm8218, %v8217, %v8173
        %vm8220 = vcmask 687104
        %v8221 = vsel %vm8220, %v8219, %v8177
        %v8222 = vsel %vm3162, %v8221, %v8181
        %vm8223 = vcmask 883712
        %v8224 = vsel %vm8223, %v8222, %v8185
        %vm8225 = vcmask 982016
        %v8226 = vsel %vm8225, %v8224, %v8189
        %v8227 = vsel %vm7829, %v8189, %v8193
        %v8228 = vsel %vm3037, %v8227, %v8197
        %vm8229 = vcmask 228352
        %v8230 = vsel %vm8229, %v8228, %v8201
        %vm8231 = vcmask 326656
        %v8232 = vsel %vm8231, %v8230, %v8205
        %vm8233 = vcmask 424960
        %v8234 = vsel %vm8233, %v8232, %v8209
        %8235 = vst [vmem:[%s420] sm:$0xff] %v8226
        %8236 = vst.msk [vmem:[%s420 + $0x8] sm:$0xff] %vm3112, %v8234
        %s8237 = sand.u32 %s305, 1
        %s8238 = scalar_lea.sflag [#allocation3], %s8237
        %s8239 = sand.u32 %s305, 1
        %s8240 = smul.addr %s8239, 16
        %s8241 = scalar_lea.vmem [#allocation2], %s8240
        // Predicated region
        $region69: #{tpu_custom_call.1} parent=67 // pred_check
          %p8242 = pneg %p315
        $region70: #{tpu_custom_call.1} parent=67 // pred_check_branch
          %8244 = sbr.rel (%p8242) target = $region72
        $region71: #{tpu_custom_call.1} parent=67 // pred_region
          %s8246 = ssub.s32 256, 256
          %8247 = vsyncadd %s8238, %s8246
          %s8248 = smul.addr %s31, 2
          %s8249 = smul.addr %s30, 4
          %s8250 = sadd.s32 %s8248, %s8249
          %s8251 = smul.addr %s8250, 128
          %s8252 = scalar_lea.hbm %s12, %s8251
          %s8254 = sshll.u32 %s8241, 4
          %s8255 = int_to_ptr.vmem [resolvable:$true] %s8254
          %8257 = dma.vmem_to_hbm [thread:$0]  %s8255, 256, %s8252, %s8238
        $region72: #{tpu_custom_call.1} parent=67 // pred_fallthru
          _
      $region68: #{tpu_custom_call.1} parent=5 // pred_fallthru
        _
      %p8258 = scmp.le.s32.totalorder 2, %s21
      // Predicated region
      $region73: #{tpu_custom_call.1} parent=5 // pred_check
        %p8259 = pneg %p8258
      $region74: #{tpu_custom_call.1} parent=5 // pred_check_branch
        %8261 = sbr.rel (%p8259) target = $region76
      $region75: #{tpu_custom_call.1} parent=5 // pred_region
        %s8262 = ssub.s32 %s21, 2
        // Predicated region
        $region77: #{tpu_custom_call.1} parent=75 // pred_check
          %p8263 = pneg %p321
        $region78: #{tpu_custom_call.1} parent=75 // pred_check_branch
          %8265 = sbr.rel (%p8263) target = $region80
        $region79: #{tpu_custom_call.1} parent=75 // pred_region
          %s8266 = sand.u32 %s306, 1
          %s8267 = scalar_lea.sflag [#allocation3], %s8266
          %s8268 = sand.u32 %s306, 1
          %s8269 = smul.addr %s8268, 16
          %s8270 = scalar_lea.vmem [#allocation2], %s8269
          %8271 = dma.done %s8267, 256
        $region80: #{tpu_custom_call.1} parent=75 // pred_fallthru
          _
      $region76: #{tpu_custom_call.1} parent=5 // pred_fallthru
        _
    $region6: #{tpu_custom_call.1} parent=1 // loop_footer
      %s25 = sadd.s32 1, %s21
    $region7: #{tpu_custom_call.1} parent=1 // loop_footer_branch
      %20 = sbr.rel target = $region3
    $region8: #{tpu_custom_call.1} parent=1 // loop_exit
      _
    %8272 = vsyncpa [#allocation3], 1
    %s8273 = scalar_lea.sflag [#allocation3], 1
    %8274 = vsyncpa %s8273, 1

</llo_original>
